<compile_context>
chip_gen: v7x
topology: tpu7x:2x2x1
jax: 0.10.0
libtpu: 0.0.40
codegen_flags: <defaults>
</compile_context>

<pallas_src>
import jax
import jax.numpy as jnp
import numpy as np
from jax import lax
from jax.experimental import pallas as pl
from jax.experimental.pallas import tpu as pltpu

EPS = 1e-5      # PyTorch BatchNorm2d default eps
LANE = 128      # pad every channel dim to a multiple of the TPU lane width


def _round_up(x, m):
    return (x + m - 1) // m * m


# -----------------------------------------------------------------------------
# Fused kernel: the whole Bottleneck block for ONE image tile per grid step
# -----------------------------------------------------------------------------
def _make_bottleneck_kernel(H, W, Wp, P_p):
    HW = H * W

    def kernel(x_ref, w1_ref, bn1_ref, w2_ref, bn2_ref, w3_ref, bn3_ref,
               o_ref, halo_ref, acc_ref):
        def bn_relu(y_f32, bn):
            # bn rows: [scale, shift] (f32).  Padded channels have scale=shift=0
            # so padded lanes stay exactly 0 through the whole block.
            return jnp.maximum(y_f32 * bn[0:1, :] + bn[1:2, :], 0.0)

        x = x_ref[...]                                   # (HW, Cin_p) f32
        bn1 = bn1_ref[...]
        bn2 = bn2_ref[...]
        bn3 = bn3_ref[...]

        # ---- conv1 (1x1) -> BN -> ReLU: one bf16 MXU matmul, f32 accumulate ---
        y1 = bn_relu(
            jnp.dot(x.astype(jnp.bfloat16), w1_ref[...],
                    preferred_element_type=jnp.float32),
            bn1).astype(jnp.bfloat16)                    # (HW, P_p) bf16

        # ---- conv2 (3x3, pad=1): bf16 halo scratch in VMEM ---------------------
        # Re-zero ONLY the 1-pixel border (4 thin, sublane-aligned slabs) each
        # step instead of the whole halo.  Deliberately NOT under
        # pl.when(program_id==0): with a "parallel" grid axis each TensorCore
        # owns a private scratch and only one core executes grid step 0.
        zrow = jnp.zeros((Wp, P_p), jnp.bfloat16)
        halo_ref[0] = zrow                               # top border row
        halo_ref[H + 1] = zrow                           # bottom border row
        zcol = jnp.zeros((H + 2, 8, P_p), jnp.bfloat16)
        halo_ref[:, 0:8, :] = zcol                       # covers left border col 0
        halo_ref[:, Wp - 8:Wp, :] = zcol                 # covers right border + W-pad
        # (interior columns touched by the aligned strips are rewritten below)
        halo_ref[1:H + 1, 1:W + 1, :] = y1.reshape(H, W, P_p)

        # 9 shifted bf16 MXU matmuls into an f32 VMEM accumulator.
        # 3 contiguous kh-slab VMEM reads; kw shifts sliced in-register.
        # No casts in the loop (weights pre-bf16, halo already bf16).
        for kh in range(3):
            slab = halo_ref[kh:kh + H, :, :]             # (H, Wp, P_p) bf16
            for kw in range(3):
                window = slab[:, kw:kw + W, :].reshape(HW, P_p)
                tap = jnp.dot(window, w2_ref[kh, kw],
                              preferred_element_type=jnp.float32)
                if kh == 0 and kw == 0:
                    acc_ref[...] = tap
                else:
                    acc_ref[...] += tap

        y2 = bn_relu(acc_ref[...], bn2).astype(jnp.bfloat16)   # (HW, P_p) bf16

        # ---- conv3 (1x1) -> BN -> ReLU -> + identity residual -> ReLU (f32) ----
        y3 = bn_relu(
            jnp.dot(y2, w3_ref[...], preferred_element_type=jnp.float32), bn3)
        o_ref[...] = jnp.maximum(y3 + x, 0.0)            # downsample=None => residual = x

    return kernel


# -----------------------------------------------------------------------------
# Wrapper: layout conversion, channel padding, BN folding, bf16 weight prep
# -----------------------------------------------------------------------------
def _fold_bn(gamma, beta, rmean, rvar, cp):
    """Eval-mode BN folded to per-channel scale/shift, padded to lane width."""
    scale = gamma * lax.rsqrt(rvar + EPS)
    shift = beta - rmean * scale
    scale = jnp.pad(scale, (0, cp - scale.shape[0]))
    shift = jnp.pad(shift, (0, cp - shift.shape[0]))
    return jnp.stack([scale, shift]).astype(jnp.float32)     # (2, cp)


def bottleneck_forward(x_nchw, params, stride=1):
    N, Cin, H, W = x_nchw.shape
    planes = params["w1"].shape[0]
    Cout = params["w3"].shape[0]

    # downsample=None => identity residual; shapes only work out when:
    assert stride == 1 and Cin == Cout, "identity residual requires stride==1, Cin==Cout"

    Cin_p = _round_up(Cin, LANE)
    P_p = _round_up(planes, LANE)
    Cout_p = _round_up(Cout, LANE)      # == Cin_p here since Cin == Cout
    HW = H * W
    Wp = _round_up(W + 2, 8)            # halo W padded to a sublane multiple

    # NCHW -> NHWC rows per image, pad channels to lane width (lane-dense I/O).
    x_nhwc = jnp.transpose(x_nchw, (0, 2, 3, 1)).astype(jnp.float32)
    x_rows = jnp.pad(x_nhwc.reshape(N, HW, Cin), ((0, 0), (0, 0), (0, Cin_p - Cin)))

    # Conv weights: lane-dense matmul operands, pre-padded and pre-cast to bf16.
    w1 = jnp.pad(jnp.transpose(params["w1"].reshape(planes, Cin), (1, 0)),
                 ((0, Cin_p - Cin), (0, P_p - planes))).astype(jnp.bfloat16)
    w2 = jnp.pad(jnp.transpose(params["w2"], (2, 3, 1, 0)),
                 ((0, 0), (0, 0), (0, P_p - planes), (0, P_p - planes))
                 ).astype(jnp.bfloat16)                                      # (3,3,P_p,P_p)
    w3 = jnp.pad(jnp.transpose(params["w3"].reshape(Cout, planes), (1, 0)),
                 ((0, P_p - planes), (0, Cout_p - Cout))).astype(jnp.bfloat16)

    bn1 = _fold_bn(params["g1"], params["b1"], params["rm1"], params["rv1"], P_p)
    bn2 = _fold_bn(params["g2"], params["b2"], params["rm2"], params["rv2"], P_p)
    bn3 = _fold_bn(params["g3"], params["b3"], params["rm3"], params["rv3"], Cout_p)

    kernel = _make_bottleneck_kernel(H, W, Wp, P_p)

    flops = 2 * N * HW * (Cin_p * P_p + 9 * P_p * P_p + P_p * Cout_p)
    bytes_accessed = (4 * N * HW * (Cin_p + Cout_p)
                      + 2 * (Cin_p * P_p + 9 * P_p * P_p + P_p * Cout_p)
                      + 4 * 2 * (2 * P_p + Cout_p))
    cost = pl.CostEstimate(flops=int(flops), transcendentals=0,
                           bytes_accessed=int(bytes_accessed))

    # Explicit VMEM budget (double-buffered tiles + resident weights + scratch),
    # with headroom, capped to fit v7x's 64 MiB physical VMEM.
    halo_bytes = (H + 2) * Wp * P_p * 2
    acc_bytes = HW * P_p * 4
    io_bytes = 2 * HW * (Cin_p + Cout_p) * 4
    w_bytes = 2 * 2 * (Cin_p * P_p + 9 * P_p * P_p + P_p * Cout_p) \
        + 2 * 4 * 2 * (2 * P_p + Cout_p)
    vmem_limit = int(min(max(4 * (halo_bytes + acc_bytes + io_bytes + w_bytes),
                             16 * 1024 * 1024), 48 * 1024 * 1024))

    grid_spec = pltpu.PrefetchScalarGridSpec(
        num_scalar_prefetch=0,
        grid=(N,),                                        # one image tile per step
        in_specs=[
            pl.BlockSpec((None, HW, Cin_p), lambda n: (n, 0, 0)),
            pl.BlockSpec((Cin_p, P_p), lambda n: (0, 0)),
            pl.BlockSpec((2, P_p), lambda n: (0, 0)),
            pl.BlockSpec((3, 3, P_p, P_p), lambda n: (0, 0, 0, 0)),
            pl.BlockSpec((2, P_p), lambda n: (0, 0)),
            pl.BlockSpec((P_p, Cout_p), lambda n: (0, 0)),
            pl.BlockSpec((2, Cout_p), lambda n: (0, 0)),
        ],
        out_specs=pl.BlockSpec((None, HW, Cout_p), lambda n: (n, 0, 0)),
        scratch_shapes=[
            pltpu.VMEM((H + 2, Wp, P_p), jnp.bfloat16),   # bf16 halo buffer
            pltpu.VMEM((HW, P_p), jnp.float32),           # f32 conv2 accumulator
        ],
    )

    out_p = pl.pallas_call(
        kernel,
        out_shape=jax.ShapeDtypeStruct((N, HW, Cout_p), jnp.float32),
        grid_spec=grid_spec,
        compiler_params=pltpu.CompilerParams(
            dimension_semantics=("parallel",),            # megacore on v7x
            vmem_limit_bytes=vmem_limit),
        cost_estimate=cost,
    )(x_rows, w1, bn1, w2, bn2, w3, bn3)

    out = out_p[:, :, :Cout].reshape(N, H, W, Cout)
    return jnp.transpose(out, (0, 3, 1, 2))               # back to NCHW


# -----------------------------------------------------------------------------
# Pure-JAX reference (eval-mode BN, matching module.eval() forward semantics)
# -----------------------------------------------------------------------------
def _bn_relu_ref(y, gamma, beta, rmean, rvar):
    return jnp.maximum((y - rmean) * lax.rsqrt(rvar + EPS) * gamma + beta, 0.0)


def bottleneck_ref(x_nchw, params, stride=1):
    x = jnp.transpose(x_nchw, (0, 2, 3, 1)).astype(jnp.float32)   # NHWC
    dn = lax.conv_dimension_numbers(x.shape, (1, 1, 1, 1), ("NHWC", "HWIO", "NHWC"))

    def conv(inp, w_oihw, stride_, pad):
        w = jnp.transpose(w_oihw, (2, 3, 1, 0))                   # HWIO
        return lax.conv_general_dilated(inp, w, (stride_, stride_), pad,
                                        dimension_numbers=dn)

    out = _bn_relu_ref(conv(x, params["w1"], stride, "VALID"),
                       params["g1"], params["b1"], params["rm1"], params["rv1"])
    out = _bn_relu_ref(conv(out, params["w2"], 1, [(1, 1), (1, 1)]),
                       params["g2"], params["b2"], params["rm2"], params["rv2"])
    out = _bn_relu_ref(conv(out, params["w3"], 1, "VALID"),
                       params["g3"], params["b3"], params["rm3"], params["rv3"])
    residual = x[:, ::stride, ::stride, :]
    out = jnp.maximum(out + residual, 0.0)
    return jnp.transpose(out, (0, 3, 1, 2))


# -----------------------------------------------------------------------------
# Main
# -----------------------------------------------------------------------------
if __name__ == "__main__":
    # Bottleneck(inplanes=16, planes=4, stride=1, downsample=None), eval mode.
    N, inplanes, H, W = 2, 16, 16, 16
    planes, extention, stride = 4, 4, 1
    Cout = planes * extention          # 16 == inplanes => identity residual valid

    key = jax.random.PRNGKey(0)
    ks = jax.random.split(key, 16)

    params = {
        "w1": jax.random.normal(ks[0], (planes, inplanes, 1, 1), jnp.float32) * 0.1,
        "g1": 1.0 + 0.1 * jax.random.normal(ks[1], (planes,), jnp.float32),
        "b1": 0.1 * jax.random.normal(ks[2], (planes,), jnp.float32),
        "rm1": 0.1 * jax.random.normal(ks[3], (planes,), jnp.float32),
        "rv1": jax.random.uniform(ks[4], (planes,), jnp.float32, 0.5, 1.5),
        "w2": jax.random.normal(ks[5], (planes, planes, 3, 3), jnp.float32) * 0.1,
        "g2": 1.0 + 0.1 * jax.random.normal(ks[6], (planes,), jnp.float32),
        "b2": 0.1 * jax.random.normal(ks[7], (planes,), jnp.float32),
        "rm2": 0.1 * jax.random.normal(ks[8], (planes,), jnp.float32),
        "rv2": jax.random.uniform(ks[9], (planes,), jnp.float32, 0.5, 1.5),
        "w3": jax.random.normal(ks[10], (Cout, planes, 1, 1), jnp.float32) * 0.1,
        "g3": 1.0 + 0.1 * jax.random.normal(ks[11], (Cout,), jnp.float32),
        "b3": 0.1 * jax.random.normal(ks[12], (Cout,), jnp.float32),
        "rm3": 0.1 * jax.random.normal(ks[13], (Cout,), jnp.float32),
        "rv3": jax.random.uniform(ks[14], (Cout,), jnp.float32, 0.5, 1.5),
    }

    x = jax.random.normal(ks[15], (N, inplanes, H, W), jnp.float32)

    out = jax.block_until_ready(bottleneck_forward(x, params, stride=stride))
    ref = jax.block_until_ready(bottleneck_ref(x, params, stride=stride))

    assert out.shape == (N, Cout, H, W), out.shape
    # bf16 MXU operands with f32 accumulation/epilogue: a few 1e-3 of error vs
    # the full-f32 reference is expected; tolerances sized accordingly.
    np.testing.assert_allclose(np.asarray(out), np.asarray(ref), rtol=3e-2, atol=3e-2)

    print("KERNEL_OK")
</pallas_src>

<mosaic_0001>
module attributes {stable_mosaic.version = 11 : i64} {
  func.func @kernel(%arg0: i32, %arg1: memref<1x256x128xf32, #tpu.memory_space<vmem>>, %arg2: memref<128x128xbf16, #tpu.memory_space<vmem>>, %arg3: memref<2x128xf32, #tpu.memory_space<vmem>>, %arg4: memref<3x3x128x128xbf16, #tpu.memory_space<vmem>>, %arg5: memref<2x128xf32, #tpu.memory_space<vmem>>, %arg6: memref<128x128xbf16, #tpu.memory_space<vmem>>, %arg7: memref<2x128xf32, #tpu.memory_space<vmem>>, %arg8: memref<1x256x128xf32, #tpu.memory_space<vmem>>, %arg9: memref<18x24x128xbf16, #tpu.memory_space<vmem>>, %arg10: memref<256x128xf32, #tpu.memory_space<vmem>>) attributes {dimension_semantics = [#tpu.dimension_semantics<parallel>], iteration_bounds = array<i64: 2>, scalar_prefetch = 0 : i64, scratch_operands = 2 : i64, tpu.core_type = #tpu.core_type<tc>, window_params = [{transform_indices = @transform_0, window_bounds = array<i64: 1, 256, 128>}, {pipeline_mode = #tpu.pipeline_mode<synchronous>, transform_indices = @transform_1, window_bounds = array<i64: 128, 128>}, {pipeline_mode = #tpu.pipeline_mode<synchronous>, transform_indices = @transform_2, window_bounds = array<i64: 2, 128>}, {pipeline_mode = #tpu.pipeline_mode<synchronous>, transform_indices = @transform_3, window_bounds = array<i64: 3, 3, 128, 128>}, {pipeline_mode = #tpu.pipeline_mode<synchronous>, transform_indices = @transform_4, window_bounds = array<i64: 2, 128>}, {pipeline_mode = #tpu.pipeline_mode<synchronous>, transform_indices = @transform_5, window_bounds = array<i64: 128, 128>}, {pipeline_mode = #tpu.pipeline_mode<synchronous>, transform_indices = @transform_6, window_bounds = array<i64: 2, 128>}, {transform_indices = @transform_7, window_bounds = array<i64: 1, 256, 128>}]} {
    %c0 = arith.constant 0 : index
    %c0_0 = arith.constant 0 : index
    %c0_1 = arith.constant 0 : index
    %0 = vector.load %arg1[%c0, %c0_0, %c0_1] : memref<1x256x128xf32, #tpu.memory_space<vmem>>, vector<1x256x128xf32>
    %1 = vector.shape_cast %0 : vector<1x256x128xf32> to vector<256x128xf32>
    %c0_2 = arith.constant 0 : index
    %c0_3 = arith.constant 0 : index
    %2 = vector.load %arg3[%c0_2, %c0_3] : memref<2x128xf32, #tpu.memory_space<vmem>>, vector<2x128xf32>
    %c0_4 = arith.constant 0 : index
    %c0_5 = arith.constant 0 : index
    %3 = vector.load %arg5[%c0_4, %c0_5] : memref<2x128xf32, #tpu.memory_space<vmem>>, vector<2x128xf32>
    %c0_6 = arith.constant 0 : index
    %c0_7 = arith.constant 0 : index
    %4 = vector.load %arg7[%c0_6, %c0_7] : memref<2x128xf32, #tpu.memory_space<vmem>>, vector<2x128xf32>
    %5 = arith.truncf %1 : vector<256x128xf32> to vector<256x128xbf16>
    %c0_8 = arith.constant 0 : index
    %c0_9 = arith.constant 0 : index
    %6 = vector.load %arg2[%c0_8, %c0_9] : memref<128x128xbf16, #tpu.memory_space<vmem>>, vector<128x128xbf16>
    %cst = arith.constant dense<0.000000e+00> : vector<256x128xf32>
    %7 = tpu.matmul %5, %6, %cst {dimension_numbers = #tpu.dot_dimension_numbers<[1], [0], [0], [1], [0, 0, 1, 1], [], []>} : vector<256x128xbf16>, vector<128x128xbf16>, vector<256x128xf32> -> vector<256x128xf32>
    %8 = vector.extract_strided_slice %2 {offsets = [0, 0], sizes = [1, 128], strides = [1, 1]} : vector<2x128xf32> to vector<1x128xf32>
    %9 = vector.broadcast %8 : vector<1x128xf32> to vector<256x128xf32>
    %10 = arith.mulf %7, %9 : vector<256x128xf32>
    %11 = vector.extract_strided_slice %2 {offsets = [1, 0], sizes = [1, 128], strides = [1, 1]} : vector<2x128xf32> to vector<1x128xf32>
    %12 = vector.broadcast %11 : vector<1x128xf32> to vector<256x128xf32>
    %13 = arith.addf %10, %12 : vector<256x128xf32>
    %cst_10 = arith.constant 0.000000e+00 : f32
    %14 = vector.broadcast %cst_10 : f32 to vector<256x128xf32>
    %15 = arith.maximumf %13, %14 : vector<256x128xf32>
    %16 = arith.truncf %15 : vector<256x128xf32> to vector<256x128xbf16>
    %cst_11 = arith.constant 0.000000e+00 : bf16
    %17 = vector.broadcast %cst_11 : bf16 to vector<24x128xbf16>
    %c0_12 = arith.constant 0 : index
    %c0_13 = arith.constant 0 : index
    %c0_14 = arith.constant 0 : index
    %18 = vector.load %arg9[%c0_12, %c0_13, %c0_14] : memref<18x24x128xbf16, #tpu.memory_space<vmem>>, vector<1x24x128xbf16>
    %19 = vector.shape_cast %18 : vector<1x24x128xbf16> to vector<24x128xbf16>
    %20 = vector.shape_cast %17 : vector<24x128xbf16> to vector<1x24x128xbf16>
    tpu.vector_store %arg9[%c0_12, %c0_13, %c0_14], %20 {strides = array<i32>} : memref<18x24x128xbf16, #tpu.memory_space<vmem>>, vector<1x24x128xbf16>,
    %c17 = arith.constant 17 : index
    %c0_15 = arith.constant 0 : index
    %c0_16 = arith.constant 0 : index
    %21 = vector.load %arg9[%c17, %c0_15, %c0_16] : memref<18x24x128xbf16, #tpu.memory_space<vmem>>, vector<1x24x128xbf16>
    %22 = vector.shape_cast %21 : vector<1x24x128xbf16> to vector<24x128xbf16>
    %23 = vector.shape_cast %17 : vector<24x128xbf16> to vector<1x24x128xbf16>
    tpu.vector_store %arg9[%c17, %c0_15, %c0_16], %23 {strides = array<i32>} : memref<18x24x128xbf16, #tpu.memory_space<vmem>>, vector<1x24x128xbf16>,
    %cst_17 = arith.constant 0.000000e+00 : bf16
    %24 = vector.broadcast %cst_17 : bf16 to vector<18x8x128xbf16>
    %c0_18 = arith.constant 0 : index
    %c0_19 = arith.constant 0 : index
    %c0_20 = arith.constant 0 : index
    %25 = vector.load %arg9[%c0_18, %c0_19, %c0_20] : memref<18x24x128xbf16, #tpu.memory_space<vmem>>, vector<18x8x128xbf16>
    tpu.vector_store %arg9[%c0_18, %c0_19, %c0_20], %24 {strides = array<i32>} : memref<18x24x128xbf16, #tpu.memory_space<vmem>>, vector<18x8x128xbf16>,
    %c0_21 = arith.constant 0 : index
    %c16 = arith.constant 16 : index
    %c0_22 = arith.constant 0 : index
    %26 = vector.load %arg9[%c0_21, %c16, %c0_22] : memref<18x24x128xbf16, #tpu.memory_space<vmem>>, vector<18x8x128xbf16>
    tpu.vector_store %arg9[%c0_21, %c16, %c0_22], %24 {strides = array<i32>} : memref<18x24x128xbf16, #tpu.memory_space<vmem>>, vector<18x8x128xbf16>,
    %27 = vector.shape_cast %16 : vector<256x128xbf16> to vector<16x16x128xbf16>
    %c1 = arith.constant 1 : index
    %c1_23 = arith.constant 1 : index
    %c0_24 = arith.constant 0 : index
    %28 = vector.load %arg9[%c1, %c1_23, %c0_24] : memref<18x24x128xbf16, #tpu.memory_space<vmem>>, vector<16x16x128xbf16>
    tpu.vector_store %arg9[%c1, %c1_23, %c0_24], %27 {strides = array<i32>} : memref<18x24x128xbf16, #tpu.memory_space<vmem>>, vector<16x16x128xbf16>,
    %c0_25 = arith.constant 0 : index
    %c0_26 = arith.constant 0 : index
    %c0_27 = arith.constant 0 : index
    %29 = vector.load %arg9[%c0_25, %c0_26, %c0_27] : memref<18x24x128xbf16, #tpu.memory_space<vmem>>, vector<16x24x128xbf16>
    %30 = vector.extract_strided_slice %29 {offsets = [0, 0, 0], sizes = [16, 16, 128], strides = [1, 1, 1]} : vector<16x24x128xbf16> to vector<16x16x128xbf16>
    %31 = vector.shape_cast %30 : vector<16x16x128xbf16> to vector<256x128xbf16>
    %c0_28 = arith.constant 0 : index
    %c0_29 = arith.constant 0 : index
    %c0_30 = arith.constant 0 : index
    %c0_31 = arith.constant 0 : index
    %32 = vector.load %arg4[%c0_28, %c0_29, %c0_30, %c0_31] : memref<3x3x128x128xbf16, #tpu.memory_space<vmem>>, vector<1x1x128x128xbf16>
    %33 = vector.shape_cast %32 : vector<1x1x128x128xbf16> to vector<128x128xbf16>
    %cst_32 = arith.constant dense<0.000000e+00> : vector<256x128xf32>
    %34 = tpu.matmul %31, %33, %cst_32 {dimension_numbers = #tpu.dot_dimension_numbers<[1], [0], [0], [1], [0, 0, 1, 1], [], []>} : vector<256x128xbf16>, vector<128x128xbf16>, vector<256x128xf32> -> vector<256x128xf32>
    %c0_33 = arith.constant 0 : index
    %c0_34 = arith.constant 0 : index
    %35 = vector.load %arg10[%c0_33, %c0_34] : memref<256x128xf32, #tpu.memory_space<vmem>>, vector<256x128xf32>
    tpu.vector_store %arg10[%c0_33, %c0_34], %34 {strides = array<i32>} : memref<256x128xf32, #tpu.memory_space<vmem>>, vector<256x128xf32>,
    %36 = vector.extract_strided_slice %29 {offsets = [0, 1, 0], sizes = [16, 16, 128], strides = [1, 1, 1]} : vector<16x24x128xbf16> to vector<16x16x128xbf16>
    %37 = vector.shape_cast %36 : vector<16x16x128xbf16> to vector<256x128xbf16>
    %c0_35 = arith.constant 0 : index
    %c1_36 = arith.constant 1 : index
    %c0_37 = arith.constant 0 : index
    %c0_38 = arith.constant 0 : index
    %38 = vector.load %arg4[%c0_35, %c1_36, %c0_37, %c0_38] : memref<3x3x128x128xbf16, #tpu.memory_space<vmem>>, vector<1x1x128x128xbf16>
    %39 = vector.shape_cast %38 : vector<1x1x128x128xbf16> to vector<128x128xbf16>
    %cst_39 = arith.constant dense<0.000000e+00> : vector<256x128xf32>
    %40 = tpu.matmul %37, %39, %cst_39 {dimension_numbers = #tpu.dot_dimension_numbers<[1], [0], [0], [1], [0, 0, 1, 1], [], []>} : vector<256x128xbf16>, vector<128x128xbf16>, vector<256x128xf32> -> vector<256x128xf32>
    %c0_40 = arith.constant 0 : index
    %c0_41 = arith.constant 0 : index
    %41 = vector.load %arg10[%c0_40, %c0_41] : memref<256x128xf32, #tpu.memory_space<vmem>>, vector<256x128xf32>
    %42 = arith.addf %41, %40 : vector<256x128xf32>
    %c0_42 = arith.constant 0 : index
    %c0_43 = arith.constant 0 : index
    %43 = vector.load %arg10[%c0_42, %c0_43] : memref<256x128xf32, #tpu.memory_space<vmem>>, vector<256x128xf32>
    tpu.vector_store %arg10[%c0_42, %c0_43], %42 {strides = array<i32>} : memref<256x128xf32, #tpu.memory_space<vmem>>, vector<256x128xf32>,
    %44 = vector.extract_strided_slice %29 {offsets = [0, 2, 0], sizes = [16, 16, 128], strides = [1, 1, 1]} : vector<16x24x128xbf16> to vector<16x16x128xbf16>
    %45 = vector.shape_cast %44 : vector<16x16x128xbf16> to vector<256x128xbf16>
    %c0_44 = arith.constant 0 : index
    %c2 = arith.constant 2 : index
    %c0_45 = arith.constant 0 : index
    %c0_46 = arith.constant 0 : index
    %46 = vector.load %arg4[%c0_44, %c2, %c0_45, %c0_46] : memref<3x3x128x128xbf16, #tpu.memory_space<vmem>>, vector<1x1x128x128xbf16>
    %47 = vector.shape_cast %46 : vector<1x1x128x128xbf16> to vector<128x128xbf16>
    %cst_47 = arith.constant dense<0.000000e+00> : vector<256x128xf32>
    %48 = tpu.matmul %45, %47, %cst_47 {dimension_numbers = #tpu.dot_dimension_numbers<[1], [0], [0], [1], [0, 0, 1, 1], [], []>} : vector<256x128xbf16>, vector<128x128xbf16>, vector<256x128xf32> -> vector<256x128xf32>
    %c0_48 = arith.constant 0 : index
    %c0_49 = arith.constant 0 : index
    %49 = vector.load %arg10[%c0_48, %c0_49] : memref<256x128xf32, #tpu.memory_space<vmem>>, vector<256x128xf32>
    %50 = arith.addf %49, %48 : vector<256x128xf32>
    %c0_50 = arith.constant 0 : index
    %c0_51 = arith.constant 0 : index
    %51 = vector.load %arg10[%c0_50, %c0_51] : memref<256x128xf32, #tpu.memory_space<vmem>>, vector<256x128xf32>
    tpu.vector_store %arg10[%c0_50, %c0_51], %50 {strides = array<i32>} : memref<256x128xf32, #tpu.memory_space<vmem>>, vector<256x128xf32>,
    %c1_52 = arith.constant 1 : index
    %c0_53 = arith.constant 0 : index
    %c0_54 = arith.constant 0 : index
    %52 = vector.load %arg9[%c1_52, %c0_53, %c0_54] : memref<18x24x128xbf16, #tpu.memory_space<vmem>>, vector<16x24x128xbf16>
    %53 = vector.extract_strided_slice %52 {offsets = [0, 0, 0], sizes = [16, 16, 128], strides = [1, 1, 1]} : vector<16x24x128xbf16> to vector<16x16x128xbf16>
    %54 = vector.shape_cast %53 : vector<16x16x128xbf16> to vector<256x128xbf16>
    %c1_55 = arith.constant 1 : index
    %c0_56 = arith.constant 0 : index
    %c0_57 = arith.constant 0 : index
    %c0_58 = arith.constant 0 : index
    %55 = vector.load %arg4[%c1_55, %c0_56, %c0_57, %c0_58] : memref<3x3x128x128xbf16, #tpu.memory_space<vmem>>, vector<1x1x128x128xbf16>
    %56 = vector.shape_cast %55 : vector<1x1x128x128xbf16> to vector<128x128xbf16>
    %cst_59 = arith.constant dense<0.000000e+00> : vector<256x128xf32>
    %57 = tpu.matmul %54, %56, %cst_59 {dimension_numbers = #tpu.dot_dimension_numbers<[1], [0], [0], [1], [0, 0, 1, 1], [], []>} : vector<256x128xbf16>, vector<128x128xbf16>, vector<256x128xf32> -> vector<256x128xf32>
    %c0_60 = arith.constant 0 : index
    %c0_61 = arith.constant 0 : index
    %58 = vector.load %arg10[%c0_60, %c0_61] : memref<256x128xf32, #tpu.memory_space<vmem>>, vector<256x128xf32>
    %59 = arith.addf %58, %57 : vector<256x128xf32>
    %c0_62 = arith.constant 0 : index
    %c0_63 = arith.constant 0 : index
    %60 = vector.load %arg10[%c0_62, %c0_63] : memref<256x128xf32, #tpu.memory_space<vmem>>, vector<256x128xf32>
    tpu.vector_store %arg10[%c0_62, %c0_63], %59 {strides = array<i32>} : memref<256x128xf32, #tpu.memory_space<vmem>>, vector<256x128xf32>,
    %61 = vector.extract_strided_slice %52 {offsets = [0, 1, 0], sizes = [16, 16, 128], strides = [1, 1, 1]} : vector<16x24x128xbf16> to vector<16x16x128xbf16>
    %62 = vector.shape_cast %61 : vector<16x16x128xbf16> to vector<256x128xbf16>
    %c1_64 = arith.constant 1 : index
    %c1_65 = arith.constant 1 : index
    %c0_66 = arith.constant 0 : index
    %c0_67 = arith.constant 0 : index
    %63 = vector.load %arg4[%c1_64, %c1_65, %c0_66, %c0_67] : memref<3x3x128x128xbf16, #tpu.memory_space<vmem>>, vector<1x1x128x128xbf16>
    %64 = vector.shape_cast %63 : vector<1x1x128x128xbf16> to vector<128x128xbf16>
    %cst_68 = arith.constant dense<0.000000e+00> : vector<256x128xf32>
    %65 = tpu.matmul %62, %64, %cst_68 {dimension_numbers = #tpu.dot_dimension_numbers<[1], [0], [0], [1], [0, 0, 1, 1], [], []>} : vector<256x128xbf16>, vector<128x128xbf16>, vector<256x128xf32> -> vector<256x128xf32>
    %c0_69 = arith.constant 0 : index
    %c0_70 = arith.constant 0 : index
    %66 = vector.load %arg10[%c0_69, %c0_70] : memref<256x128xf32, #tpu.memory_space<vmem>>, vector<256x128xf32>
    %67 = arith.addf %66, %65 : vector<256x128xf32>
    %c0_71 = arith.constant 0 : index
    %c0_72 = arith.constant 0 : index
    %68 = vector.load %arg10[%c0_71, %c0_72] : memref<256x128xf32, #tpu.memory_space<vmem>>, vector<256x128xf32>
    tpu.vector_store %arg10[%c0_71, %c0_72], %67 {strides = array<i32>} : memref<256x128xf32, #tpu.memory_space<vmem>>, vector<256x128xf32>,
    %69 = vector.extract_strided_slice %52 {offsets = [0, 2, 0], sizes = [16, 16, 128], strides = [1, 1, 1]} : vector<16x24x128xbf16> to vector<16x16x128xbf16>
    %70 = vector.shape_cast %69 : vector<16x16x128xbf16> to vector<256x128xbf16>
    %c1_73 = arith.constant 1 : index
    %c2_74 = arith.constant 2 : index
    %c0_75 = arith.constant 0 : index
    %c0_76 = arith.constant 0 : index
    %71 = vector.load %arg4[%c1_73, %c2_74, %c0_75, %c0_76] : memref<3x3x128x128xbf16, #tpu.memory_space<vmem>>, vector<1x1x128x128xbf16>
    %72 = vector.shape_cast %71 : vector<1x1x128x128xbf16> to vector<128x128xbf16>
    %cst_77 = arith.constant dense<0.000000e+00> : vector<256x128xf32>
    %73 = tpu.matmul %70, %72, %cst_77 {dimension_numbers = #tpu.dot_dimension_numbers<[1], [0], [0], [1], [0, 0, 1, 1], [], []>} : vector<256x128xbf16>, vector<128x128xbf16>, vector<256x128xf32> -> vector<256x128xf32>
    %c0_78 = arith.constant 0 : index
    %c0_79 = arith.constant 0 : index
    %74 = vector.load %arg10[%c0_78, %c0_79] : memref<256x128xf32, #tpu.memory_space<vmem>>, vector<256x128xf32>
    %75 = arith.addf %74, %73 : vector<256x128xf32>
    %c0_80 = arith.constant 0 : index
    %c0_81 = arith.constant 0 : index
    %76 = vector.load %arg10[%c0_80, %c0_81] : memref<256x128xf32, #tpu.memory_space<vmem>>, vector<256x128xf32>
    tpu.vector_store %arg10[%c0_80, %c0_81], %75 {strides = array<i32>} : memref<256x128xf32, #tpu.memory_space<vmem>>, vector<256x128xf32>,
    %c2_82 = arith.constant 2 : index
    %c0_83 = arith.constant 0 : index
    %c0_84 = arith.constant 0 : index
    %77 = vector.load %arg9[%c2_82, %c0_83, %c0_84] : memref<18x24x128xbf16, #tpu.memory_space<vmem>>, vector<16x24x128xbf16>
    %78 = vector.extract_strided_slice %77 {offsets = [0, 0, 0], sizes = [16, 16, 128], strides = [1, 1, 1]} : vector<16x24x128xbf16> to vector<16x16x128xbf16>
    %79 = vector.shape_cast %78 : vector<16x16x128xbf16> to vector<256x128xbf16>
    %c2_85 = arith.constant 2 : index
    %c0_86 = arith.constant 0 : index
    %c0_87 = arith.constant 0 : index
    %c0_88 = arith.constant 0 : index
    %80 = vector.load %arg4[%c2_85, %c0_86, %c0_87, %c0_88] : memref<3x3x128x128xbf16, #tpu.memory_space<vmem>>, vector<1x1x128x128xbf16>
    %81 = vector.shape_cast %80 : vector<1x1x128x128xbf16> to vector<128x128xbf16>
    %cst_89 = arith.constant dense<0.000000e+00> : vector<256x128xf32>
    %82 = tpu.matmul %79, %81, %cst_89 {dimension_numbers = #tpu.dot_dimension_numbers<[1], [0], [0], [1], [0, 0, 1, 1], [], []>} : vector<256x128xbf16>, vector<128x128xbf16>, vector<256x128xf32> -> vector<256x128xf32>
    %c0_90 = arith.constant 0 : index
    %c0_91 = arith.constant 0 : index
    %83 = vector.load %arg10[%c0_90, %c0_91] : memref<256x128xf32, #tpu.memory_space<vmem>>, vector<256x128xf32>
    %84 = arith.addf %83, %82 : vector<256x128xf32>
    %c0_92 = arith.constant 0 : index
    %c0_93 = arith.constant 0 : index
    %85 = vector.load %arg10[%c0_92, %c0_93] : memref<256x128xf32, #tpu.memory_space<vmem>>, vector<256x128xf32>
    tpu.vector_store %arg10[%c0_92, %c0_93], %84 {strides = array<i32>} : memref<256x128xf32, #tpu.memory_space<vmem>>, vector<256x128xf32>,
    %86 = vector.extract_strided_slice %77 {offsets = [0, 1, 0], sizes = [16, 16, 128], strides = [1, 1, 1]} : vector<16x24x128xbf16> to vector<16x16x128xbf16>
    %87 = vector.shape_cast %86 : vector<16x16x128xbf16> to vector<256x128xbf16>
    %c2_94 = arith.constant 2 : index
    %c1_95 = arith.constant 1 : index
    %c0_96 = arith.constant 0 : index
    %c0_97 = arith.constant 0 : index
    %88 = vector.load %arg4[%c2_94, %c1_95, %c0_96, %c0_97] : memref<3x3x128x128xbf16, #tpu.memory_space<vmem>>, vector<1x1x128x128xbf16>
    %89 = vector.shape_cast %88 : vector<1x1x128x128xbf16> to vector<128x128xbf16>
    %cst_98 = arith.constant dense<0.000000e+00> : vector<256x128xf32>
    %90 = tpu.matmul %87, %89, %cst_98 {dimension_numbers = #tpu.dot_dimension_numbers<[1], [0], [0], [1], [0, 0, 1, 1], [], []>} : vector<256x128xbf16>, vector<128x128xbf16>, vector<256x128xf32> -> vector<256x128xf32>
    %c0_99 = arith.constant 0 : index
    %c0_100 = arith.constant 0 : index
    %91 = vector.load %arg10[%c0_99, %c0_100] : memref<256x128xf32, #tpu.memory_space<vmem>>, vector<256x128xf32>
    %92 = arith.addf %91, %90 : vector<256x128xf32>
    %c0_101 = arith.constant 0 : index
    %c0_102 = arith.constant 0 : index
    %93 = vector.load %arg10[%c0_101, %c0_102] : memref<256x128xf32, #tpu.memory_space<vmem>>, vector<256x128xf32>
    tpu.vector_store %arg10[%c0_101, %c0_102], %92 {strides = array<i32>} : memref<256x128xf32, #tpu.memory_space<vmem>>, vector<256x128xf32>,
    %94 = vector.extract_strided_slice %77 {offsets = [0, 2, 0], sizes = [16, 16, 128], strides = [1, 1, 1]} : vector<16x24x128xbf16> to vector<16x16x128xbf16>
    %95 = vector.shape_cast %94 : vector<16x16x128xbf16> to vector<256x128xbf16>
    %c2_103 = arith.constant 2 : index
    %c2_104 = arith.constant 2 : index
    %c0_105 = arith.constant 0 : index
    %c0_106 = arith.constant 0 : index
    %96 = vector.load %arg4[%c2_103, %c2_104, %c0_105, %c0_106] : memref<3x3x128x128xbf16, #tpu.memory_space<vmem>>, vector<1x1x128x128xbf16>
    %97 = vector.shape_cast %96 : vector<1x1x128x128xbf16> to vector<128x128xbf16>
    %cst_107 = arith.constant dense<0.000000e+00> : vector<256x128xf32>
    %98 = tpu.matmul %95, %97, %cst_107 {dimension_numbers = #tpu.dot_dimension_numbers<[1], [0], [0], [1], [0, 0, 1, 1], [], []>} : vector<256x128xbf16>, vector<128x128xbf16>, vector<256x128xf32> -> vector<256x128xf32>
    %c0_108 = arith.constant 0 : index
    %c0_109 = arith.constant 0 : index
    %99 = vector.load %arg10[%c0_108, %c0_109] : memref<256x128xf32, #tpu.memory_space<vmem>>, vector<256x128xf32>
    %100 = arith.addf %99, %98 : vector<256x128xf32>
    %c0_110 = arith.constant 0 : index
    %c0_111 = arith.constant 0 : index
    %101 = vector.load %arg10[%c0_110, %c0_111] : memref<256x128xf32, #tpu.memory_space<vmem>>, vector<256x128xf32>
    tpu.vector_store %arg10[%c0_110, %c0_111], %100 {strides = array<i32>} : memref<256x128xf32, #tpu.memory_space<vmem>>, vector<256x128xf32>,
    %c0_112 = arith.constant 0 : index
    %c0_113 = arith.constant 0 : index
    %102 = vector.load %arg10[%c0_112, %c0_113] : memref<256x128xf32, #tpu.memory_space<vmem>>, vector<256x128xf32>
    %103 = vector.extract_strided_slice %3 {offsets = [0, 0], sizes = [1, 128], strides = [1, 1]} : vector<2x128xf32> to vector<1x128xf32>
    %104 = vector.broadcast %103 : vector<1x128xf32> to vector<256x128xf32>
    %105 = arith.mulf %102, %104 : vector<256x128xf32>
    %106 = vector.extract_strided_slice %3 {offsets = [1, 0], sizes = [1, 128], strides = [1, 1]} : vector<2x128xf32> to vector<1x128xf32>
    %107 = vector.broadcast %106 : vector<1x128xf32> to vector<256x128xf32>
    %108 = arith.addf %105, %107 : vector<256x128xf32>
    %cst_114 = arith.constant 0.000000e+00 : f32
    %109 = vector.broadcast %cst_114 : f32 to vector<256x128xf32>
    %110 = arith.maximumf %108, %109 : vector<256x128xf32>
    %111 = arith.truncf %110 : vector<256x128xf32> to vector<256x128xbf16>
    %c0_115 = arith.constant 0 : index
    %c0_116 = arith.constant 0 : index
    %112 = vector.load %arg6[%c0_115, %c0_116] : memref<128x128xbf16, #tpu.memory_space<vmem>>, vector<128x128xbf16>
    %cst_117 = arith.constant dense<0.000000e+00> : vector<256x128xf32>
    %113 = tpu.matmul %111, %112, %cst_117 {dimension_numbers = #tpu.dot_dimension_numbers<[1], [0], [0], [1], [0, 0, 1, 1], [], []>} : vector<256x128xbf16>, vector<128x128xbf16>, vector<256x128xf32> -> vector<256x128xf32>
    %114 = vector.extract_strided_slice %4 {offsets = [0, 0], sizes = [1, 128], strides = [1, 1]} : vector<2x128xf32> to vector<1x128xf32>
    %115 = vector.broadcast %114 : vector<1x128xf32> to vector<256x128xf32>
    %116 = arith.mulf %113, %115 : vector<256x128xf32>
    %117 = vector.extract_strided_slice %4 {offsets = [1, 0], sizes = [1, 128], strides = [1, 1]} : vector<2x128xf32> to vector<1x128xf32>
    %118 = vector.broadcast %117 : vector<1x128xf32> to vector<256x128xf32>
    %119 = arith.addf %116, %118 : vector<256x128xf32>
    %cst_118 = arith.constant 0.000000e+00 : f32
    %120 = vector.broadcast %cst_118 : f32 to vector<256x128xf32>
    %121 = arith.maximumf %119, %120 : vector<256x128xf32>
    %122 = arith.addf %121, %1 : vector<256x128xf32>
    %cst_119 = arith.constant 0.000000e+00 : f32
    %123 = vector.broadcast %cst_119 : f32 to vector<256x128xf32>
    %124 = arith.maximumf %122, %123 : vector<256x128xf32>
    %c0_120 = arith.constant 0 : index
    %c0_121 = arith.constant 0 : index
    %c0_122 = arith.constant 0 : index
    %125 = vector.load %arg8[%c0_120, %c0_121, %c0_122] : memref<1x256x128xf32, #tpu.memory_space<vmem>>, vector<1x256x128xf32>
    %126 = vector.shape_cast %125 : vector<1x256x128xf32> to vector<256x128xf32>
    %127 = vector.shape_cast %124 : vector<256x128xf32> to vector<1x256x128xf32>
    tpu.vector_store %arg8[%c0_120, %c0_121, %c0_122], %127 {strides = array<i32>} : memref<1x256x128xf32, #tpu.memory_space<vmem>>, vector<1x256x128xf32>,
    return
  }
  func.func @transform_0(%arg0: i32) -> (i32, i32, i32) {
    %c0_i32 = arith.constant 0 : i32
    %c0_i32_0 = arith.constant 0 : i32
    %c0_i32_1 = arith.constant 0 : i32
    return %arg0, %c0_i32, %c0_i32_0 : i32, i32, i32
  }
  func.func @transform_1(%arg0: i32) -> (i32, i32) {
    %c0_i32 = arith.constant 0 : i32
    %c0_i32_0 = arith.constant 0 : i32
    %c0_i32_1 = arith.constant 0 : i32
    return %c0_i32, %c0_i32_0 : i32, i32
  }
  func.func @transform_2(%arg0: i32) -> (i32, i32) {
    %c0_i32 = arith.constant 0 : i32
    %c0_i32_0 = arith.constant 0 : i32
    %c0_i32_1 = arith.constant 0 : i32
    return %c0_i32, %c0_i32_0 : i32, i32
  }
  func.func @transform_3(%arg0: i32) -> (i32, i32, i32, i32) {
    %c0_i32 = arith.constant 0 : i32
    %c0_i32_0 = arith.constant 0 : i32
    %c0_i32_1 = arith.constant 0 : i32
    %c0_i32_2 = arith.constant 0 : i32
    %c0_i32_3 = arith.constant 0 : i32
    return %c0_i32, %c0_i32_0, %c0_i32_1, %c0_i32_2 : i32, i32, i32, i32
  }
  func.func @transform_4(%arg0: i32) -> (i32, i32) {
    %c0_i32 = arith.constant 0 : i32
    %c0_i32_0 = arith.constant 0 : i32
    %c0_i32_1 = arith.constant 0 : i32
    return %c0_i32, %c0_i32_0 : i32, i32
  }
  func.func @transform_5(%arg0: i32) -> (i32, i32) {
    %c0_i32 = arith.constant 0 : i32
    %c0_i32_0 = arith.constant 0 : i32
    %c0_i32_1 = arith.constant 0 : i32
    return %c0_i32, %c0_i32_0 : i32, i32
  }
  func.func @transform_6(%arg0: i32) -> (i32, i32) {
    %c0_i32 = arith.constant 0 : i32
    %c0_i32_0 = arith.constant 0 : i32
    %c0_i32_1 = arith.constant 0 : i32
    return %c0_i32, %c0_i32_0 : i32, i32
  }
  func.func @transform_7(%arg0: i32) -> (i32, i32, i32) {
    %c0_i32 = arith.constant 0 : i32
    %c0_i32_0 = arith.constant 0 : i32
    %c0_i32_1 = arith.constant 0 : i32
    return %arg0, %c0_i32, %c0_i32_0 : i32, i32, i32
  }
}

</mosaic_0001>

<llo_original>
// kernel: tpu_custom_call.1
$region0: #{tpu_custom_call.1}
  #allocation0 [shape = 'u32[]', space=smem, size = 0x4, offset = 0x4, fixed_abs, tag = 'smem constant byte address 0x4 - core index']
  #allocation1 [shape = 'u32[144,128]{1,0:T(1,128)}', space=vmem, size = 0x12000, scoped, tag = 'internal scratch']
  #allocation2 [shape = 'bf16[18,24,128]{2,1,0:T(8,128)(2,1)}', space=vmem, size = 0x1b000, scoped, tag = 'scratch operand']
  #allocation3 [shape = 'f32[256,128]{1,0:T(8,128)}', space=vmem, size = 0x20000, scoped, tag = 'scratch operand']
  %s0 = inlined_call_operand.hbm [shape: f32[2,256,128], index: 0, kind: input, shape index: {}]
  %s1 = inlined_call_operand.hbm [shape: bf16[128,128], index: 1, kind: input, shape index: {}]
  %s2 = inlined_call_operand.vmem [shape: f32[2,128], index: 2, kind: input, shape index: {}]
  %s3 = inlined_call_operand.hbm [shape: bf16[3,3,128,128], index: 3, kind: input, shape index: {}]
  %s4 = inlined_call_operand.vmem [shape: f32[2,128], index: 4, kind: input, shape index: {}]
  %s5 = inlined_call_operand.hbm [shape: bf16[128,128], index: 5, kind: input, shape index: {}]
  %s6 = inlined_call_operand.vmem [shape: f32[2,128], index: 6, kind: input, shape index: {}]
  %s7 = inlined_call_operand.hbm [shape: f32[2,256,128], index: 7, kind: output, shape index: {}]
  %s8 = sld [smem:[#allocation0]]
  $region77: #{tpu_custom_call.1} parent=0
    _
  %s10 = ssub.s32 1, %s8
  %s11 = scalar_select 0, %s10, %s8
  $region1: #{tpu_custom_call.1} parent=0
    #allocation4 [shape = 'u8[262144]{0}', space=vmem, size = 0x40000, scoped, tag = 'input window, operand 0']
    #allocation5 [shape = 's32[2]{0}', space=sflag, size = 0x8, scoped, tag = 'scoped memory for tpu_custom_call.1']
    #allocation6 [shape = 's32[2]{0}', space=sflag, size = 0x8, scoped, tag = 'scoped memory for tpu_custom_call.1']
    #allocation7 [shape = 'u8[32768]{0}', space=vmem, size = 0x8000, scoped, tag = 'input window, operand 1, single buffered']
    #allocation8 [shape = 's32[1]{0}', space=sflag, size = 0x4, scoped, tag = 'scoped memory for tpu_custom_call.1']
    #allocation9 [shape = 'u8[294912]{0}', space=vmem, size = 0x48000, scoped, tag = 'input window, operand 3, single buffered']
    #allocation10 [shape = 'u8[32768]{0}', space=vmem, size = 0x8000, scoped, tag = 'input window, operand 5, single buffered']
    #allocation11 [shape = 's32[1]{0}', space=sflag, size = 0x4, scoped, tag = 'scoped memory for tpu_custom_call.1']
    #allocation12 [shape = 'u8[262144]{0}', space=vmem, size = 0x40000, scoped, tag = 'output window, operand 0']
    %12 = vsyncpa [#allocation5], 0
    %s13 = scalar_lea.sflag [#allocation5], 1
    %14 = vsyncpa %s13, 0
    %15 = vsyncpa [#allocation8], 0
    %16 = vsyncpa [#allocation11], 0
    %17 = vsyncpa [#allocation6], 0
    %s18 = scalar_lea.sflag [#allocation6], 1
    %19 = vsyncpa %s18, 0
    loop: start=0, step=1, limit=4
    $region2: #{tpu_custom_call.1} parent=1 // loop_pre_header
      _
    $region3: #{tpu_custom_call.1} parent=1 // loop_header
      %s21 = sphi 0, %s25
      %p22 = scmp.ge.s32.totalorder %s21, 4
      %s31 = sphi 0, %s33
      %s34 = sphi 0, %s31
      %s35 = sphi 0, %s34
      %s51 = sphi 0, %s35
      %s55 = sphi 0, %s55
      %s57 = sphi 0, %s55
      %s58 = sphi 0, %s57
      %s72 = sphi 0, %s58
      %s76 = sphi 0, %s76
      %s78 = sphi 0, %s76
      %s79 = sphi 0, %s78
      %s93 = sphi 0, %s79
      %s97 = sphi 0, %s97
      %s99 = sphi 0, %s97
      %s100 = sphi 0, %s99
      %s114 = sphi 0, %s100
      %s118 = sphi 0, %s118
      %s120 = sphi 0, %s118
      %s121 = sphi 0, %s120
      %s135 = sphi 0, %s121
      %s139 = sphi 0, %s139
      %s141 = sphi 0, %s139
      %s142 = sphi 0, %s141
      %s156 = sphi 0, %s142
      %s160 = sphi 0, %s160
      %s162 = sphi 0, %s160
      %s163 = sphi 0, %s162
      %s177 = sphi 0, %s163
      %s183 = sphi 0, %s185
      %s186 = sphi 0, %s183
      %s187 = sphi 0, %s186
      %s203 = sphi 0, %s187
    $region4: #{tpu_custom_call.1} parent=1 // loop_header_branch
      %24 = sbr.rel (%p22) target = $region8
    $region5: #{tpu_custom_call.1} parent=1 // loop_body
      %s26 = ssub.s32 %s21, 1
      %s27 = ssub.s32 %s21, 2
      %s28 = sadd.s32 %s21, 1
      %s29 = ssub.s32 %s21, %s28
      %p30 = scmp.eq.s32.totalorder %s29, 0
      %s32 = sadd.s32 %s31, 1
      %s33 = scalar_select %p30, %s31, %s32
      %p36 = pneg %p30
      %p37 = scmp.eq.s32.totalorder %s21, 1
      %p38 = por %p36, %p37
      %p39 = scmp.ne.s32.totalorder %s31, %s34
      %p40 = scmp.eq.s32.totalorder %s21, 0
      %p41 = por %p39, %p40
      %p42 = scmp.ne.s32.totalorder %s31, %s34
      %p43 = scmp.eq.s32.totalorder %s26, 1
      %p44 = por %p42, %p43
      %p45 = scmp.ne.s32.totalorder %s34, %s35
      %p46 = scmp.eq.s32.totalorder %s26, 0
      %p47 = por %p45, %p46
      %p48 = scmp.ne.s32.totalorder %s34, %s35
      %p49 = scmp.eq.s32.totalorder %s27, 1
      %p50 = por %p48, %p49
      %p52 = scmp.ne.s32.totalorder %s35, %s51
      %p53 = scmp.eq.s32.totalorder %s27, 0
      %p54 = por %p52, %p53
      %s56 = sadd.s32 %s55, 1
      %p59 = scmp.eq.s32.totalorder %s21, 1
      %p60 = scmp.ne.s32.totalorder %s55, %s57
      %p61 = scmp.eq.s32.totalorder %s21, 0
      %p62 = por %p60, %p61
      %p63 = scmp.ne.s32.totalorder %s55, %s57
      %p64 = scmp.eq.s32.totalorder %s26, 1
      %p65 = por %p63, %p64
      %p66 = scmp.ne.s32.totalorder %s57, %s58
      %p67 = scmp.eq.s32.totalorder %s26, 0
      %p68 = por %p66, %p67
      %p69 = scmp.ne.s32.totalorder %s57, %s58
      %p70 = scmp.eq.s32.totalorder %s27, 1
      %p71 = por %p69, %p70
      %p73 = scmp.ne.s32.totalorder %s58, %s72
      %p74 = scmp.eq.s32.totalorder %s27, 0
      %p75 = por %p73, %p74
      %s77 = sadd.s32 %s76, 1
      %p80 = scmp.eq.s32.totalorder %s21, 1
      %p81 = scmp.ne.s32.totalorder %s76, %s78
      %p82 = scmp.eq.s32.totalorder %s21, 0
      %p83 = por %p81, %p82
      %p84 = scmp.ne.s32.totalorder %s76, %s78
      %p85 = scmp.eq.s32.totalorder %s26, 1
      %p86 = por %p84, %p85
      %p87 = scmp.ne.s32.totalorder %s78, %s79
      %p88 = scmp.eq.s32.totalorder %s26, 0
      %p89 = por %p87, %p88
      %p90 = scmp.ne.s32.totalorder %s78, %s79
      %p91 = scmp.eq.s32.totalorder %s27, 1
      %p92 = por %p90, %p91
      %p94 = scmp.ne.s32.totalorder %s79, %s93
      %p95 = scmp.eq.s32.totalorder %s27, 0
      %p96 = por %p94, %p95
      %s98 = sadd.s32 %s97, 1
      %p101 = scmp.eq.s32.totalorder %s21, 1
      %p102 = scmp.ne.s32.totalorder %s97, %s99
      %p103 = scmp.eq.s32.totalorder %s21, 0
      %p104 = por %p102, %p103
      %p105 = scmp.ne.s32.totalorder %s97, %s99
      %p106 = scmp.eq.s32.totalorder %s26, 1
      %p107 = por %p105, %p106
      %p108 = scmp.ne.s32.totalorder %s99, %s100
      %p109 = scmp.eq.s32.totalorder %s26, 0
      %p110 = por %p108, %p109
      %p111 = scmp.ne.s32.totalorder %s99, %s100
      %p112 = scmp.eq.s32.totalorder %s27, 1
      %p113 = por %p111, %p112
      %p115 = scmp.ne.s32.totalorder %s100, %s114
      %p116 = scmp.eq.s32.totalorder %s27, 0
      %p117 = por %p115, %p116
      %s119 = sadd.s32 %s118, 1
      %p122 = scmp.eq.s32.totalorder %s21, 1
      %p123 = scmp.ne.s32.totalorder %s118, %s120
      %p124 = scmp.eq.s32.totalorder %s21, 0
      %p125 = por %p123, %p124
      %p126 = scmp.ne.s32.totalorder %s118, %s120
      %p127 = scmp.eq.s32.totalorder %s26, 1
      %p128 = por %p126, %p127
      %p129 = scmp.ne.s32.totalorder %s120, %s121
      %p130 = scmp.eq.s32.totalorder %s26, 0
      %p131 = por %p129, %p130
      %p132 = scmp.ne.s32.totalorder %s120, %s121
      %p133 = scmp.eq.s32.totalorder %s27, 1
      %p134 = por %p132, %p133
      %p136 = scmp.ne.s32.totalorder %s121, %s135
      %p137 = scmp.eq.s32.totalorder %s27, 0
      %p138 = por %p136, %p137
      %s140 = sadd.s32 %s139, 1
      %p143 = scmp.eq.s32.totalorder %s21, 1
      %p144 = scmp.ne.s32.totalorder %s139, %s141
      %p145 = scmp.eq.s32.totalorder %s21, 0
      %p146 = por %p144, %p145
      %p147 = scmp.ne.s32.totalorder %s139, %s141
      %p148 = scmp.eq.s32.totalorder %s26, 1
      %p149 = por %p147, %p148
      %p150 = scmp.ne.s32.totalorder %s141, %s142
      %p151 = scmp.eq.s32.totalorder %s26, 0
      %p152 = por %p150, %p151
      %p153 = scmp.ne.s32.totalorder %s141, %s142
      %p154 = scmp.eq.s32.totalorder %s27, 1
      %p155 = por %p153, %p154
      %p157 = scmp.ne.s32.totalorder %s142, %s156
      %p158 = scmp.eq.s32.totalorder %s27, 0
      %p159 = por %p157, %p158
      %s161 = sadd.s32 %s160, 1
      %p164 = scmp.eq.s32.totalorder %s21, 1
      %p165 = scmp.ne.s32.totalorder %s160, %s162
      %p166 = scmp.eq.s32.totalorder %s21, 0
      %p167 = por %p165, %p166
      %p168 = scmp.ne.s32.totalorder %s160, %s162
      %p169 = scmp.eq.s32.totalorder %s26, 1
      %p170 = por %p168, %p169
      %p171 = scmp.ne.s32.totalorder %s162, %s163
      %p172 = scmp.eq.s32.totalorder %s26, 0
      %p173 = por %p171, %p172
      %p174 = scmp.ne.s32.totalorder %s162, %s163
      %p175 = scmp.eq.s32.totalorder %s27, 1
      %p176 = por %p174, %p175
      %p178 = scmp.ne.s32.totalorder %s163, %s177
      %p179 = scmp.eq.s32.totalorder %s27, 0
      %p180 = por %p178, %p179
      %s181 = ssub.s32 %s21, %s28
      %p182 = scmp.eq.s32.totalorder %s181, 0
      %s184 = sadd.s32 %s183, 1
      %s185 = scalar_select %p182, %s183, %s184
      %p188 = pneg %p182
      %p189 = scmp.eq.s32.totalorder %s21, 1
      %p190 = por %p188, %p189
      %p191 = scmp.ne.s32.totalorder %s183, %s186
      %p192 = scmp.eq.s32.totalorder %s21, 0
      %p193 = por %p191, %p192
      %p194 = scmp.ne.s32.totalorder %s183, %s186
      %p195 = scmp.eq.s32.totalorder %s26, 1
      %p196 = por %p194, %p195
      %p197 = scmp.ne.s32.totalorder %s186, %s187
      %p198 = scmp.eq.s32.totalorder %s26, 0
      %p199 = por %p197, %p198
      %p200 = scmp.ne.s32.totalorder %s186, %s187
      %p201 = scmp.eq.s32.totalorder %s27, 1
      %p202 = por %p200, %p201
      %p204 = scmp.ne.s32.totalorder %s187, %s203
      %p205 = scmp.eq.s32.totalorder %s27, 0
      %p206 = por %p204, %p205
      %p207 = scmp.le.s32.totalorder 1, %s21
      %p208 = scmp.lt.s32.totalorder %s21, 3
      %p209 = pnand %p207, %p208
      %p210 = pneg %p209
      // Predicated region
      $region9: #{tpu_custom_call.1} parent=5 // pred_check
        _
      $region10: #{tpu_custom_call.1} parent=5 // pred_check_branch
        %212 = sbr.rel (%p209) target = $region12
      $region11: #{tpu_custom_call.1} parent=5 // pred_region
        %s213 = ssub.s32 %s21, 1
        // Predicated region
        $region13: #{tpu_custom_call.1} parent=11 // pred_check
          %p214 = pneg %p68
        $region14: #{tpu_custom_call.1} parent=11 // pred_check_branch
          %216 = sbr.rel (%p214) target = $region16
        $region15: #{tpu_custom_call.1} parent=11 // pred_region
          %s218 = ssub.s32 1024, 1024
          %219 = vsyncadd [#allocation8], %s218
          %s220 = sshll.u32 [#allocation7], 4
          %s221 = int_to_ptr.vmem [resolvable:$true] %s220
          %226 = dma.hbm_to_vmem [thread:$0]  %s1, 1024, %s221, [#allocation8], 64, 64, 4
        $region16: #{tpu_custom_call.1} parent=11 // pred_fallthru
          _
        // Predicated region
        $region17: #{tpu_custom_call.1} parent=11 // pred_check
          %p227 = pneg %p89
        $region18: #{tpu_custom_call.1} parent=11 // pred_check_branch
          %229 = sbr.rel (%p227) target = $region20
        $region19: #{tpu_custom_call.1} parent=11 // pred_region
          _
        $region20: #{tpu_custom_call.1} parent=11 // pred_fallthru
          _
        // Predicated region
        $region21: #{tpu_custom_call.1} parent=11 // pred_check
          %p230 = pneg %p110
        $region22: #{tpu_custom_call.1} parent=11 // pred_check_branch
          %232 = sbr.rel (%p230) target = $region24
        $region23: #{tpu_custom_call.1} parent=11 // pred_region
          %s234 = ssub.s32 9216, 9216
          %235 = vsyncadd [#allocation8], %s234
          %s236 = sshll.u32 [#allocation9], 4
          %s237 = int_to_ptr.vmem [resolvable:$true] %s236
          %242 = dma.hbm_to_vmem [thread:$0]  %s3, 9216, %s237, [#allocation8], 64, 64, 4
        $region24: #{tpu_custom_call.1} parent=11 // pred_fallthru
          _
        // Predicated region
        $region25: #{tpu_custom_call.1} parent=11 // pred_check
          %p243 = pneg %p131
        $region26: #{tpu_custom_call.1} parent=11 // pred_check_branch
          %245 = sbr.rel (%p243) target = $region28
        $region27: #{tpu_custom_call.1} parent=11 // pred_region
          _
        $region28: #{tpu_custom_call.1} parent=11 // pred_fallthru
          _
        // Predicated region
        $region29: #{tpu_custom_call.1} parent=11 // pred_check
          %p246 = pneg %p152
        $region30: #{tpu_custom_call.1} parent=11 // pred_check_branch
          %248 = sbr.rel (%p246) target = $region32
        $region31: #{tpu_custom_call.1} parent=11 // pred_region
          %s250 = ssub.s32 1024, 1024
          %251 = vsyncadd [#allocation11], %s250
          %s252 = sshll.u32 [#allocation10], 4
          %s253 = int_to_ptr.vmem [resolvable:$true] %s252
          %258 = dma.hbm_to_vmem [thread:$0]  %s5, 1024, %s253, [#allocation11], 64, 64, 4
        $region32: #{tpu_custom_call.1} parent=11 // pred_fallthru
          _
        // Predicated region
        $region33: #{tpu_custom_call.1} parent=11 // pred_check
          %p259 = pneg %p173
        $region34: #{tpu_custom_call.1} parent=11 // pred_check_branch
          %261 = sbr.rel (%p259) target = $region36
        $region35: #{tpu_custom_call.1} parent=11 // pred_region
          _
        $region36: #{tpu_custom_call.1} parent=11 // pred_fallthru
          _
      $region12: #{tpu_custom_call.1} parent=5 // pred_fallthru
        _
      %p262 = scmp.lt.s32.totalorder %s21, 2
      // Predicated region
      $region37: #{tpu_custom_call.1} parent=5 // pred_check
        %p263 = pneg %p262
      $region38: #{tpu_custom_call.1} parent=5 // pred_check_branch
        %265 = sbr.rel (%p263) target = $region40
      $region39: #{tpu_custom_call.1} parent=5 // pred_region
        // Predicated region
        $region41: #{tpu_custom_call.1} parent=39 // pred_check
          %p266 = pneg %p41
        $region42: #{tpu_custom_call.1} parent=39 // pred_check_branch
          %268 = sbr.rel (%p266) target = $region44
        $region43: #{tpu_custom_call.1} parent=39 // pred_region
          %s269 = sand.u32 %s31, 1
          %s270 = scalar_lea.sflag [#allocation5], %s269
          %s271 = sand.u32 %s31, 1
          %s272 = smul.addr %s271, 256
          %s273 = scalar_lea.vmem [#allocation4], %s272
          %s275 = ssub.s32 4096, 4096
          %276 = vsyncadd %s270, %s275
          %s277 = smul.addr %s21, 32
          %s278 = smul.addr %s277, 128
          %s279 = scalar_lea.hbm %s0, %s278
          %s280 = sshll.u32 %s273, 4
          %s281 = int_to_ptr.vmem [resolvable:$true] %s280
          %286 = dma.hbm_to_vmem [thread:$0]  %s279, 4096, %s281, %s270, 128, 128, 8
        $region44: #{tpu_custom_call.1} parent=39 // pred_fallthru
          _
      $region40: #{tpu_custom_call.1} parent=5 // pred_fallthru
        _
      %p287 = scmp.le.s32.totalorder 1, %s21
      %p288 = scmp.lt.s32.totalorder %s21, 3
      %p289 = pnand %p287, %p288
      %p290 = pneg %p289
      // Predicated region
      $region45: #{tpu_custom_call.1} parent=5 // pred_check
        _
      $region46: #{tpu_custom_call.1} parent=5 // pred_check_branch
        %292 = sbr.rel (%p289) target = $region48
      $region47: #{tpu_custom_call.1} parent=5 // pred_region
        %s293 = ssub.s32 %s21, 1
        %s294 = sand.u32 %s34, 1
        %s295 = scalar_lea.sflag [#allocation5], %s294
        %s296 = sand.u32 %s34, 1
        %s297 = smul.addr %s296, 256
        %s298 = scalar_lea.vmem [#allocation4], %s297
        // Predicated region
        $region49: #{tpu_custom_call.1} parent=47 // pred_check
          %p299 = pneg %p47
        $region50: #{tpu_custom_call.1} parent=47 // pred_check_branch
          %301 = sbr.rel (%p299) target = $region52
        $region51: #{tpu_custom_call.1} parent=47 // pred_region
          %302 = dma.done %s295, 4096
        $region52: #{tpu_custom_call.1} parent=47 // pred_fallthru
          _
        // Predicated region
        $region53: #{tpu_custom_call.1} parent=47 // pred_check
          %p303 = pneg %p68
        $region54: #{tpu_custom_call.1} parent=47 // pred_check_branch
          %305 = sbr.rel (%p303) target = $region56
        $region55: #{tpu_custom_call.1} parent=47 // pred_region
          %306 = dma.done [#allocation8], 1024
        $region56: #{tpu_custom_call.1} parent=47 // pred_fallthru
          _
        // Predicated region
        $region57: #{tpu_custom_call.1} parent=47 // pred_check
          %p307 = pneg %p110
        $region58: #{tpu_custom_call.1} parent=47 // pred_check_branch
          %309 = sbr.rel (%p307) target = $region60
        $region59: #{tpu_custom_call.1} parent=47 // pred_region
          %310 = dma.done [#allocation8], 9216
        $region60: #{tpu_custom_call.1} parent=47 // pred_fallthru
          _
        // Predicated region
        $region61: #{tpu_custom_call.1} parent=47 // pred_check
          %p311 = pneg %p152
        $region62: #{tpu_custom_call.1} parent=47 // pred_check_branch
          %313 = sbr.rel (%p311) target = $region64
        $region63: #{tpu_custom_call.1} parent=47 // pred_region
          %314 = dma.done [#allocation11], 1024
        $region64: #{tpu_custom_call.1} parent=47 // pred_fallthru
          _
        %s315 = sand.u32 %s34, 1
        %s316 = scalar_lea.sflag [#allocation5], %s315
        %s317 = sand.u32 %s34, 1
        %s318 = smul.addr %s317, 256
        %s319 = scalar_lea.vmem [#allocation4], %s318
        %p320 = pneg %p47
        %p321 = pneg %p44
        %p322 = pneg %p68
        %p323 = pneg %p65
        %p324 = pneg %p89
        %p325 = pneg %p86
        %p326 = pneg %p110
        %p327 = pneg %p107
        %p328 = pneg %p131
        %p329 = pneg %p128
        %p330 = pneg %p152
        %p331 = pneg %p149
        %p332 = pneg %p173
        %p333 = pneg %p170
        %p334 = pneg %p199
        %p335 = pneg %p196
        %s336 = sand.u32 %s186, 1
        %s337 = scalar_lea.sflag [#allocation6], %s336
        %s338 = sand.u32 %s186, 1
        %s339 = smul.addr %s338, 256
        %s340 = scalar_lea.vmem [#allocation12], %s339
        %v342 = vld [vmem:[%s298] sm:$0xff]
        %v343 = vld [vmem:[%s298 + $0x8] sm:$0xff]
        %v344 = vld [vmem:[%s298 + $0x10] sm:$0xff]
        %v345 = vld [vmem:[%s298 + $0x18] sm:$0xff]
        %v346 = vld [vmem:[%s298 + $0x20] sm:$0xff]
        %v347 = vld [vmem:[%s298 + $0x28] sm:$0xff]
        %v348 = vld [vmem:[%s298 + $0x30] sm:$0xff]
        %v349 = vld [vmem:[%s298 + $0x38] sm:$0xff]
        %v350 = vld [vmem:[%s298 + $0x40] sm:$0xff]
        %v351 = vld [vmem:[%s298 + $0x48] sm:$0xff]
        %v352 = vld [vmem:[%s298 + $0x50] sm:$0xff]
        %v353 = vld [vmem:[%s298 + $0x58] sm:$0xff]
        %v354 = vld [vmem:[%s298 + $0x60] sm:$0xff]
        %v355 = vld [vmem:[%s298 + $0x68] sm:$0xff]
        %v356 = vld [vmem:[%s298 + $0x70] sm:$0xff]
        %v357 = vld [vmem:[%s298 + $0x78] sm:$0xff]
        %v358 = vld [vmem:[%s298 + $0x80] sm:$0xff]
        %v359 = vld [vmem:[%s298 + $0x88] sm:$0xff]
        %v360 = vld [vmem:[%s298 + $0x90] sm:$0xff]
        %v361 = vld [vmem:[%s298 + $0x98] sm:$0xff]
        %v362 = vld [vmem:[%s298 + $0xa0] sm:$0xff]
        %v363 = vld [vmem:[%s298 + $0xa8] sm:$0xff]
        %v364 = vld [vmem:[%s298 + $0xb0] sm:$0xff]
        %v365 = vld [vmem:[%s298 + $0xb8] sm:$0xff]
        %v366 = vld [vmem:[%s298 + $0xc0] sm:$0xff]
        %v367 = vld [vmem:[%s298 + $0xc8] sm:$0xff]
        %v368 = vld [vmem:[%s298 + $0xd0] sm:$0xff]
        %v369 = vld [vmem:[%s298 + $0xd8] sm:$0xff]
        %v370 = vld [vmem:[%s298 + $0xe0] sm:$0xff]
        %v371 = vld [vmem:[%s298 + $0xe8] sm:$0xff]
        %v372 = vld [vmem:[%s298 + $0xf0] sm:$0xff]
        %v373 = vld [vmem:[%s298 + $0xf8] sm:$0xff]
        %v374 = vld [vmem:[%s2] sm:$0x3]
        %v375 = vld [vmem:[%s4] sm:$0x3]
        %v376 = vld [vmem:[%s6] sm:$0x3]
        %v377 = vpack.c.bf16 %v343, %v342
        %v378 = vpack.c.bf16 %v345, %v344
        %v379 = vpack.c.bf16 %v347, %v346
        %v380 = vpack.c.bf16 %v349, %v348
        %v381 = vpack.c.bf16 %v351, %v350
        %v382 = vpack.c.bf16 %v353, %v352
        %v383 = vpack.c.bf16 %v355, %v354
        %v384 = vpack.c.bf16 %v357, %v356
        %v385 = vpack.c.bf16 %v359, %v358
        %v386 = vpack.c.bf16 %v361, %v360
        %v387 = vpack.c.bf16 %v363, %v362
        %v388 = vpack.c.bf16 %v365, %v364
        %v389 = vpack.c.bf16 %v367, %v366
        %v390 = vpack.c.bf16 %v369, %v368
        %v391 = vpack.c.bf16 %v371, %v370
        %v392 = vpack.c.bf16 %v373, %v372
        %v393 = vld [vmem:[#allocation7] sm:$0xf]
        %v394 = vld [vmem:[#allocation7 + $0x4] sm:$0xf]
        %v395 = vld [vmem:[#allocation7 + $0x8] sm:$0xf]
        %v396 = vld [vmem:[#allocation7 + $0xc] sm:$0xf]
        %v397 = vld [vmem:[#allocation7 + $0x10] sm:$0xf]
        %v398 = vld [vmem:[#allocation7 + $0x14] sm:$0xf]
        %v399 = vld [vmem:[#allocation7 + $0x18] sm:$0xf]
        %v400 = vld [vmem:[#allocation7 + $0x1c] sm:$0xf]
        %v401 = vld [vmem:[#allocation7 + $0x20] sm:$0xf]
        %v402 = vld [vmem:[#allocation7 + $0x24] sm:$0xf]
        %v403 = vld [vmem:[#allocation7 + $0x28] sm:$0xf]
        %v404 = vld [vmem:[#allocation7 + $0x2c] sm:$0xf]
        %v405 = vld [vmem:[#allocation7 + $0x30] sm:$0xf]
        %v406 = vld [vmem:[#allocation7 + $0x34] sm:$0xf]
        %v407 = vld [vmem:[#allocation7 + $0x38] sm:$0xf]
        %v408 = vld [vmem:[#allocation7 + $0x3c] sm:$0xf]
        %v425 = vunpack.c.l.b16 %v393
        %v426 = vunpack.c.l.b16 %v394
        %v427 = vunpack.c.l.b16 %v395
        %v428 = vunpack.c.l.b16 %v396
        %v429 = vunpack.c.l.b16 %v397
        %v430 = vunpack.c.l.b16 %v398
        %v431 = vunpack.c.l.b16 %v399
        %v432 = vunpack.c.l.b16 %v400
        %v433 = vunpack.c.l.b16 %v401
        %v434 = vunpack.c.l.b16 %v402
        %v435 = vunpack.c.l.b16 %v403
        %v436 = vunpack.c.l.b16 %v404
        %v437 = vunpack.c.l.b16 %v405
        %v438 = vunpack.c.l.b16 %v406
        %v439 = vunpack.c.l.b16 %v407
        %v440 = vunpack.c.l.b16 %v408
        %v441 = vpack.c.b16 %v426, %v425
        %v442 = vpack.c.b16 %v428, %v427
        %v443 = vpack.c.b16 %v430, %v429
        %v444 = vpack.c.b16 %v432, %v431
        %v445 = vpack.c.b16 %v434, %v433
        %v446 = vpack.c.b16 %v436, %v435
        %v447 = vpack.c.b16 %v438, %v437
        %v448 = vpack.c.b16 %v440, %v439
        %457 = vmatprep.subr.bf16.mxu0 0
        %458 = vmatpush1.bf16.msra.mxu0 %v441
        %459 = vmatprep.subr.bf16.mxu0 0
        %460 = vmatpush1.bf16.msra.mxu0 %v442
        %461 = vmatprep.subr.bf16.mxu0 0
        %462 = vmatpush1.bf16.msra.mxu0 %v443
        %463 = vmatprep.subr.bf16.mxu0 0
        %464 = vmatpush1.bf16.msra.mxu0 %v444
        %465 = vmatprep.subr.bf16.mxu0 0
        %466 = vmatpush1.bf16.msra.mxu0 %v445
        %467 = vmatprep.subr.bf16.mxu0 0
        %468 = vmatpush1.bf16.msra.mxu0 %v446
        %469 = vmatprep.subr.bf16.mxu0 0
        %470 = vmatpush1.bf16.msra.mxu0 %v447
        %471 = vmatprep.subr.bf16.mxu0 0
        %472 = vmatpush1.bf16.msra.mxu0 %v448
        %473 = vmatprep.subr.bf16.mxu0 0
        %474 = vmatpush1.bf16.msra.mxu0 0
        %475 = vmatprep.subr.bf16.mxu0 0
        %476 = vmatpush1.bf16.msra.mxu0 0
        %477 = vmatprep.subr.bf16.mxu0 0
        %478 = vmatpush1.bf16.msra.mxu0 0
        %479 = vmatprep.subr.bf16.mxu0 0
        %480 = vmatpush1.bf16.msra.mxu0 0
        %481 = vmatprep.subr.bf16.mxu0 0
        %482 = vmatpush1.bf16.msra.mxu0 0
        %483 = vmatprep.subr.bf16.mxu0 0
        %484 = vmatpush1.bf16.msra.mxu0 0
        %485 = vmatprep.subr.bf16.mxu0 0
        %486 = vmatpush1.bf16.msra.mxu0 0
        %487 = vmatprep.subr.bf16.mxu0 0
        %488 = vmatpush1.bf16.msra.mxu0 0
        %489 = vmatprep.mubr.bf16.mxu0 0
        %490 = vmatmul.mubr.bf16.gmra.mrb[0].mxu0 %v377
        %v491 = vpop.f32.mrb[0].mxu0
        %v492 = vadd.f32 0.0, %v491
        %v493 = vpop.f32.mrb[0].mxu0
        %v494 = vpop.f32.mrb[0].mxu0
        %v495 = vadd.f32 0.0, %v494
        %v496 = vpop.f32.mrb[0].mxu0
        %497 = vmatprep.mubr.bf16.mxu0 0
        %498 = vmatmul.mubr.bf16.gmra.mrb[0].mxu0 %v378
        %v499 = vpop.f32.mrb[0].mxu0
        %v500 = vadd.f32 0.0, %v499
        %v501 = vpop.f32.mrb[0].mxu0
        %v502 = vpop.f32.mrb[0].mxu0
        %v503 = vadd.f32 0.0, %v502
        %v504 = vpop.f32.mrb[0].mxu0
        %505 = vmatprep.mubr.bf16.mxu0 0
        %506 = vmatmul.mubr.bf16.gmra.mrb[0].mxu0 %v379
        %v507 = vpop.f32.mrb[0].mxu0
        %v508 = vadd.f32 0.0, %v507
        %v509 = vpop.f32.mrb[0].mxu0
        %v510 = vpop.f32.mrb[0].mxu0
        %v511 = vadd.f32 0.0, %v510
        %v512 = vpop.f32.mrb[0].mxu0
        %513 = vmatprep.mubr.bf16.mxu0 0
        %514 = vmatmul.mubr.bf16.gmra.mrb[0].mxu0 %v380
        %v515 = vpop.f32.mrb[0].mxu0
        %v516 = vadd.f32 0.0, %v515
        %v517 = vpop.f32.mrb[0].mxu0
        %v518 = vpop.f32.mrb[0].mxu0
        %v519 = vadd.f32 0.0, %v518
        %v520 = vpop.f32.mrb[0].mxu0
        %521 = vmatprep.mubr.bf16.mxu0 0
        %522 = vmatmul.mubr.bf16.gmra.mrb[0].mxu0 %v381
        %v523 = vpop.f32.mrb[0].mxu0
        %v524 = vadd.f32 0.0, %v523
        %v525 = vpop.f32.mrb[0].mxu0
        %v526 = vpop.f32.mrb[0].mxu0
        %v527 = vadd.f32 0.0, %v526
        %v528 = vpop.f32.mrb[0].mxu0
        %529 = vmatprep.mubr.bf16.mxu0 0
        %530 = vmatmul.mubr.bf16.gmra.mrb[0].mxu0 %v382
        %v531 = vpop.f32.mrb[0].mxu0
        %v532 = vadd.f32 0.0, %v531
        %v533 = vpop.f32.mrb[0].mxu0
        %v534 = vpop.f32.mrb[0].mxu0
        %v535 = vadd.f32 0.0, %v534
        %v536 = vpop.f32.mrb[0].mxu0
        %537 = vmatprep.mubr.bf16.mxu0 0
        %538 = vmatmul.mubr.bf16.gmra.mrb[0].mxu0 %v383
        %v539 = vpop.f32.mrb[0].mxu0
        %v540 = vadd.f32 0.0, %v539
        %v541 = vpop.f32.mrb[0].mxu0
        %v542 = vpop.f32.mrb[0].mxu0
        %v543 = vadd.f32 0.0, %v542
        %v544 = vpop.f32.mrb[0].mxu0
        %545 = vmatprep.mubr.bf16.mxu0 0
        %546 = vmatmul.mubr.bf16.gmra.mrb[0].mxu0 %v384
        %v547 = vpop.f32.mrb[0].mxu0
        %v548 = vadd.f32 0.0, %v547
        %v549 = vpop.f32.mrb[0].mxu0
        %v550 = vpop.f32.mrb[0].mxu0
        %v551 = vadd.f32 0.0, %v550
        %v552 = vpop.f32.mrb[0].mxu0
        %553 = vmatprep.mubr.bf16.mxu0 0
        %554 = vmatmul.mubr.bf16.gmra.mrb[0].mxu0 %v385
        %v555 = vpop.f32.mrb[0].mxu0
        %v556 = vadd.f32 0.0, %v555
        %v557 = vpop.f32.mrb[0].mxu0
        %v558 = vpop.f32.mrb[0].mxu0
        %v559 = vadd.f32 0.0, %v558
        %v560 = vpop.f32.mrb[0].mxu0
        %561 = vmatprep.mubr.bf16.mxu0 0
        %562 = vmatmul.mubr.bf16.gmra.mrb[0].mxu0 %v386
        %v563 = vpop.f32.mrb[0].mxu0
        %v564 = vadd.f32 0.0, %v563
        %v565 = vpop.f32.mrb[0].mxu0
        %v566 = vpop.f32.mrb[0].mxu0
        %v567 = vadd.f32 0.0, %v566
        %v568 = vpop.f32.mrb[0].mxu0
        %569 = vmatprep.mubr.bf16.mxu0 0
        %570 = vmatmul.mubr.bf16.gmra.mrb[0].mxu0 %v387
        %v571 = vpop.f32.mrb[0].mxu0
        %v572 = vadd.f32 0.0, %v571
        %v573 = vpop.f32.mrb[0].mxu0
        %v574 = vpop.f32.mrb[0].mxu0
        %v575 = vadd.f32 0.0, %v574
        %v576 = vpop.f32.mrb[0].mxu0
        %577 = vmatprep.mubr.bf16.mxu0 0
        %578 = vmatmul.mubr.bf16.gmra.mrb[0].mxu0 %v388
        %v579 = vpop.f32.mrb[0].mxu0
        %v580 = vadd.f32 0.0, %v579
        %v581 = vpop.f32.mrb[0].mxu0
        %v582 = vpop.f32.mrb[0].mxu0
        %v583 = vadd.f32 0.0, %v582
        %v584 = vpop.f32.mrb[0].mxu0
        %585 = vmatprep.mubr.bf16.mxu0 0
        %586 = vmatmul.mubr.bf16.gmra.mrb[0].mxu0 %v389
        %v587 = vpop.f32.mrb[0].mxu0
        %v588 = vadd.f32 0.0, %v587
        %v589 = vpop.f32.mrb[0].mxu0
        %v590 = vpop.f32.mrb[0].mxu0
        %v591 = vadd.f32 0.0, %v590
        %v592 = vpop.f32.mrb[0].mxu0
        %593 = vmatprep.mubr.bf16.mxu0 0
        %594 = vmatmul.mubr.bf16.gmra.mrb[0].mxu0 %v390
        %v595 = vpop.f32.mrb[0].mxu0
        %v596 = vadd.f32 0.0, %v595
        %v597 = vpop.f32.mrb[0].mxu0
        %v598 = vpop.f32.mrb[0].mxu0
        %v599 = vadd.f32 0.0, %v598
        %v600 = vpop.f32.mrb[0].mxu0
        %601 = vmatprep.mubr.bf16.mxu0 0
        %602 = vmatmul.mubr.bf16.gmra.mrb[0].mxu0 %v391
        %v603 = vpop.f32.mrb[0].mxu0
        %v604 = vadd.f32 0.0, %v603
        %v605 = vpop.f32.mrb[0].mxu0
        %v606 = vpop.f32.mrb[0].mxu0
        %v607 = vadd.f32 0.0, %v606
        %v608 = vpop.f32.mrb[0].mxu0
        %609 = vmatprep.mubr.bf16.mxu0 0
        %610 = vmatmul.mubr.bf16.gmra.mrb[0].mxu0 %v392
        %v611 = vpop.f32.mrb[0].mxu0
        %v612 = vadd.f32 0.0, %v611
        %v613 = vpop.f32.mrb[0].mxu0
        %v614 = vpop.f32.mrb[0].mxu0
        %v615 = vadd.f32 0.0, %v614
        %v616 = vpop.f32.mrb[0].mxu0
        %617 = vdwg.mxu0
        %v618 = vlaneseq
        %v619 = vshrl.u32 %v618, 7
        %v620 = vsub.s32 0, %v619
        %v621 = vrot.slane %v374, %v620
        %v622 = vmul.f32 %v492, %v621
        %v623 = vmul.f32 %v495, %v621
        %v624 = vmul.f32 %v500, %v621
        %v625 = vmul.f32 %v503, %v621
        %v626 = vmul.f32 %v508, %v621
        %v627 = vmul.f32 %v511, %v621
        %v628 = vmul.f32 %v516, %v621
        %v629 = vmul.f32 %v519, %v621
        %v630 = vmul.f32 %v524, %v621
        %v631 = vmul.f32 %v527, %v621
        %v632 = vmul.f32 %v532, %v621
        %v633 = vmul.f32 %v535, %v621
        %v634 = vmul.f32 %v540, %v621
        %v635 = vmul.f32 %v543, %v621
        %v636 = vmul.f32 %v548, %v621
        %v637 = vmul.f32 %v551, %v621
        %v638 = vmul.f32 %v556, %v621
        %v639 = vmul.f32 %v559, %v621
        %v640 = vmul.f32 %v564, %v621
        %v641 = vmul.f32 %v567, %v621
        %v642 = vmul.f32 %v572, %v621
        %v643 = vmul.f32 %v575, %v621
        %v644 = vmul.f32 %v580, %v621
        %v645 = vmul.f32 %v583, %v621
        %v646 = vmul.f32 %v588, %v621
        %v647 = vmul.f32 %v591, %v621
        %v648 = vmul.f32 %v596, %v621
        %v649 = vmul.f32 %v599, %v621
        %v650 = vmul.f32 %v604, %v621
        %v651 = vmul.f32 %v607, %v621
        %v652 = vmul.f32 %v612, %v621
        %v653 = vmul.f32 %v615, %v621
        %v654 = vlaneseq
        %v655 = vshrl.u32 %v654, 7
        %v656 = vsub.s32 1, %v655
        %v657 = vrot.slane %v374, %v656
        %v658 = vadd.f32 %v622, %v657
        %v659 = vadd.f32 %v623, %v657
        %v660 = vadd.f32 %v624, %v657
        %v661 = vadd.f32 %v625, %v657
        %v662 = vadd.f32 %v626, %v657
        %v663 = vadd.f32 %v627, %v657
        %v664 = vadd.f32 %v628, %v657
        %v665 = vadd.f32 %v629, %v657
        %v666 = vadd.f32 %v630, %v657
        %v667 = vadd.f32 %v631, %v657
        %v668 = vadd.f32 %v632, %v657
        %v669 = vadd.f32 %v633, %v657
        %v670 = vadd.f32 %v634, %v657
        %v671 = vadd.f32 %v635, %v657
        %v672 = vadd.f32 %v636, %v657
        %v673 = vadd.f32 %v637, %v657
        %v674 = vadd.f32 %v638, %v657
        %v675 = vadd.f32 %v639, %v657
        %v676 = vadd.f32 %v640, %v657
        %v677 = vadd.f32 %v641, %v657
        %v678 = vadd.f32 %v642, %v657
        %v679 = vadd.f32 %v643, %v657
        %v680 = vadd.f32 %v644, %v657
        %v681 = vadd.f32 %v645, %v657
        %v682 = vadd.f32 %v646, %v657
        %v683 = vadd.f32 %v647, %v657
        %v684 = vadd.f32 %v648, %v657
        %v685 = vadd.f32 %v649, %v657
        %v686 = vadd.f32 %v650, %v657
        %v687 = vadd.f32 %v651, %v657
        %v688 = vadd.f32 %v652, %v657
        %v689 = vadd.f32 %v653, %v657
        %v690 = vmax.f32 %v658, 0.0
        %v691 = vmax.f32 %v659, 0.0
        %v692 = vmax.f32 %v660, 0.0
        %v693 = vmax.f32 %v661, 0.0
        %v694 = vmax.f32 %v662, 0.0
        %v695 = vmax.f32 %v663, 0.0
        %v696 = vmax.f32 %v664, 0.0
        %v697 = vmax.f32 %v665, 0.0
        %v698 = vmax.f32 %v666, 0.0
        %v699 = vmax.f32 %v667, 0.0
        %v700 = vmax.f32 %v668, 0.0
        %v701 = vmax.f32 %v669, 0.0
        %v702 = vmax.f32 %v670, 0.0
        %v703 = vmax.f32 %v671, 0.0
        %v704 = vmax.f32 %v672, 0.0
        %v705 = vmax.f32 %v673, 0.0
        %v706 = vmax.f32 %v674, 0.0
        %v707 = vmax.f32 %v675, 0.0
        %v708 = vmax.f32 %v676, 0.0
        %v709 = vmax.f32 %v677, 0.0
        %v710 = vmax.f32 %v678, 0.0
        %v711 = vmax.f32 %v679, 0.0
        %v712 = vmax.f32 %v680, 0.0
        %v713 = vmax.f32 %v681, 0.0
        %v714 = vmax.f32 %v682, 0.0
        %v715 = vmax.f32 %v683, 0.0
        %v716 = vmax.f32 %v684, 0.0
        %v717 = vmax.f32 %v685, 0.0
        %v718 = vmax.f32 %v686, 0.0
        %v719 = vmax.f32 %v687, 0.0
        %v720 = vmax.f32 %v688, 0.0
        %v721 = vmax.f32 %v689, 0.0
        %v722 = vpack.c.bf16 %v691, %v690
        %v723 = vpack.c.bf16 %v693, %v692
        %v724 = vpack.c.bf16 %v695, %v694
        %v725 = vpack.c.bf16 %v697, %v696
        %v726 = vpack.c.bf16 %v699, %v698
        %v727 = vpack.c.bf16 %v701, %v700
        %v728 = vpack.c.bf16 %v703, %v702
        %v729 = vpack.c.bf16 %v705, %v704
        %v730 = vpack.c.bf16 %v707, %v706
        %v731 = vpack.c.bf16 %v709, %v708
        %v732 = vpack.c.bf16 %v711, %v710
        %v733 = vpack.c.bf16 %v713, %v712
        %v734 = vpack.c.bf16 %v715, %v714
        %v735 = vpack.c.bf16 %v717, %v716
        %v736 = vpack.c.bf16 %v719, %v718
        %v737 = vpack.c.bf16 %v721, %v720
        %738 = vst [vmem:[#allocation2] sm:$0xf] 0
        %739 = vst [vmem:[#allocation2 + $0x4] sm:$0xf] 0
        %740 = vst [vmem:[#allocation2 + $0x8] sm:$0xf] 0
        %s741 = scalar_lea.vmem [#allocation2], 204
        %742 = vst [vmem:[%s741] sm:$0xf] 0
        %743 = vst [vmem:[%s741 + $0x4] sm:$0xf] 0
        %744 = vst [vmem:[%s741 + $0x8] sm:$0xf] 0
        %745 = vst [vmem:[#allocation2] sm:$0xf] 0
        %746 = vst [vmem:[#allocation2 + $0xc] sm:$0xf] 0
        %747 = vst [vmem:[#allocation2 + $0x18] sm:$0xf] 0
        %748 = vst [vmem:[#allocation2 + $0x24] sm:$0xf] 0
        %749 = vst [vmem:[#allocation2 + $0x30] sm:$0xf] 0
        %750 = vst [vmem:[#allocation2 + $0x3c] sm:$0xf] 0
        %751 = vst [vmem:[#allocation2 + $0x48] sm:$0xf] 0
        %752 = vst [vmem:[#allocation2 + $0x54] sm:$0xf] 0
        %753 = vst [vmem:[#allocation2 + $0x60] sm:$0xf] 0
        %754 = vst [vmem:[#allocation2 + $0x6c] sm:$0xf] 0
        %755 = vst [vmem:[#allocation2 + $0x78] sm:$0xf] 0
        %756 = vst [vmem:[#allocation2 + $0x84] sm:$0xf] 0
        %757 = vst [vmem:[#allocation2 + $0x90] sm:$0xf] 0
        %758 = vst [vmem:[#allocation2 + $0x9c] sm:$0xf] 0
        %759 = vst [vmem:[#allocation2 + $0xa8] sm:$0xf] 0
        %760 = vst [vmem:[#allocation2 + $0xb4] sm:$0xf] 0
        %761 = vst [vmem:[#allocation2 + $0xc0] sm:$0xf] 0
        %762 = vst [vmem:[#allocation2 + $0xcc] sm:$0xf] 0
        %763 = vst [vmem:[#allocation2 + $0x8] sm:$0xf] 0
        %764 = vst [vmem:[#allocation2 + $0x14] sm:$0xf] 0
        %765 = vst [vmem:[#allocation2 + $0x20] sm:$0xf] 0
        %766 = vst [vmem:[#allocation2 + $0x2c] sm:$0xf] 0
        %767 = vst [vmem:[#allocation2 + $0x38] sm:$0xf] 0
        %768 = vst [vmem:[#allocation2 + $0x44] sm:$0xf] 0
        %769 = vst [vmem:[#allocation2 + $0x50] sm:$0xf] 0
        %770 = vst [vmem:[#allocation2 + $0x5c] sm:$0xf] 0
        %771 = vst [vmem:[#allocation2 + $0x68] sm:$0xf] 0
        %772 = vst [vmem:[#allocation2 + $0x74] sm:$0xf] 0
        %773 = vst [vmem:[#allocation2 + $0x80] sm:$0xf] 0
        %774 = vst [vmem:[#allocation2 + $0x8c] sm:$0xf] 0
        %775 = vst [vmem:[#allocation2 + $0x98] sm:$0xf] 0
        %776 = vst [vmem:[#allocation2 + $0xa4] sm:$0xf] 0
        %777 = vst [vmem:[#allocation2 + $0xb0] sm:$0xf] 0
        %778 = vst [vmem:[#allocation2 + $0xbc] sm:$0xf] 0
        %779 = vst [vmem:[#allocation2 + $0xc8] sm:$0xf] 0
        %780 = vst [vmem:[#allocation2 + $0xd4] sm:$0xf] 0
        %v797 = vunpack.c.l.b16 %v722
        %v798 = vunpack.c.h.b16 %v722
        %v799 = vunpack.c.l.b16 %v723
        %v800 = vunpack.c.h.b16 %v723
        %v801 = vunpack.c.l.b16 %v724
        %v802 = vunpack.c.h.b16 %v724
        %v803 = vunpack.c.l.b16 %v725
        %v804 = vunpack.c.h.b16 %v725
        %v805 = vunpack.c.l.b16 %v726
        %v806 = vunpack.c.h.b16 %v726
        %v807 = vunpack.c.l.b16 %v727
        %v808 = vunpack.c.h.b16 %v727
        %v809 = vunpack.c.l.b16 %v728
        %v810 = vunpack.c.h.b16 %v728
        %v811 = vunpack.c.l.b16 %v729
        %v812 = vunpack.c.h.b16 %v729
        %v813 = vunpack.c.l.b16 %v730
        %v814 = vunpack.c.h.b16 %v730
        %v815 = vunpack.c.l.b16 %v731
        %v816 = vunpack.c.h.b16 %v731
        %v817 = vunpack.c.l.b16 %v732
        %v818 = vunpack.c.h.b16 %v732
        %v819 = vunpack.c.l.b16 %v733
        %v820 = vunpack.c.h.b16 %v733
        %v821 = vunpack.c.l.b16 %v734
        %v822 = vunpack.c.h.b16 %v734
        %v823 = vunpack.c.l.b16 %v735
        %v824 = vunpack.c.h.b16 %v735
        %v825 = vunpack.c.l.b16 %v736
        %v826 = vunpack.c.h.b16 %v736
        %v827 = vunpack.c.l.b16 %v737
        %v828 = vunpack.c.h.b16 %v737
        %v829 = vpack.c.b16 %v797, %v797
        %v830 = vpack.c.b16 %v798, %v798
        %v831 = vpack.c.b16 %v799, %v799
        %v832 = vpack.c.b16 %v800, %v800
        %v833 = vpack.c.b16 %v801, %v801
        %v834 = vpack.c.b16 %v802, %v802
        %v835 = vpack.c.b16 %v803, %v803
        %v836 = vpack.c.b16 %v804, %v804
        %v837 = vpack.c.b16 %v805, %v805
        %v838 = vpack.c.b16 %v806, %v806
        %v839 = vpack.c.b16 %v807, %v807
        %v840 = vpack.c.b16 %v808, %v808
        %v841 = vpack.c.b16 %v809, %v809
        %v842 = vpack.c.b16 %v810, %v810
        %v843 = vpack.c.b16 %v811, %v811
        %v844 = vpack.c.b16 %v812, %v812
        %v845 = vpack.c.b16 %v813, %v813
        %v846 = vpack.c.b16 %v814, %v814
        %v847 = vpack.c.b16 %v815, %v815
        %v848 = vpack.c.b16 %v816, %v816
        %v849 = vpack.c.b16 %v817, %v817
        %v850 = vpack.c.b16 %v818, %v818
        %v851 = vpack.c.b16 %v819, %v819
        %v852 = vpack.c.b16 %v820, %v820
        %v853 = vpack.c.b16 %v821, %v821
        %v854 = vpack.c.b16 %v822, %v822
        %v855 = vpack.c.b16 %v823, %v823
        %v856 = vpack.c.b16 %v824, %v824
        %v857 = vpack.c.b16 %v825, %v825
        %v858 = vpack.c.b16 %v826, %v826
        %v859 = vpack.c.b16 %v827, %v827
        %v860 = vpack.c.b16 %v828, %v828
        %vm861 = vsmask.f32 256
        %vm862 = vsmask.f32 4368
        %vm863 = vmor %vm861, %vm862
        %v865 = vshrl.u32 %v829, 16
        %v867 = vrot.slane %v865, 7
        %v868 = vshll.u32 %v829, 16
        %v870 = vor.u32 %v867, %v868
        %v871 = vrot.slane %v867, 4
        %v873 = vshrl.u32 %v830, 16
        %v875 = vrot.slane %v873, 7
        %v876 = vshll.u32 %v830, 16
        %v878 = vor.u32 %v875, %v876
        %v879 = vsel %vm863, %v871, %v878
        %v880 = vrot.slane %v875, 4
        %v882 = vshrl.u32 %v831, 16
        %v884 = vrot.slane %v882, 7
        %v885 = vshll.u32 %v831, 16
        %v887 = vor.u32 %v884, %v885
        %v888 = vrot.slane %v884, 4
        %v890 = vshrl.u32 %v832, 16
        %v892 = vrot.slane %v890, 7
        %v893 = vshll.u32 %v832, 16
        %v895 = vor.u32 %v892, %v893
        %v896 = vsel %vm863, %v888, %v895
        %v897 = vrot.slane %v892, 4
        %v899 = vshrl.u32 %v833, 16
        %v901 = vrot.slane %v899, 7
        %v902 = vshll.u32 %v833, 16
        %v904 = vor.u32 %v901, %v902
        %v905 = vrot.slane %v901, 4
        %v907 = vshrl.u32 %v834, 16
        %v909 = vrot.slane %v907, 7
        %v910 = vshll.u32 %v834, 16
        %v912 = vor.u32 %v909, %v910
        %v913 = vsel %vm863, %v905, %v912
        %v914 = vrot.slane %v909, 4
        %v916 = vshrl.u32 %v835, 16
        %v918 = vrot.slane %v916, 7
        %v919 = vshll.u32 %v835, 16
        %v921 = vor.u32 %v918, %v919
        %v922 = vrot.slane %v918, 4
        %v924 = vshrl.u32 %v836, 16
        %v926 = vrot.slane %v924, 7
        %v927 = vshll.u32 %v836, 16
        %v929 = vor.u32 %v926, %v927
        %v930 = vsel %vm863, %v922, %v929
        %v931 = vrot.slane %v926, 4
        %v933 = vshrl.u32 %v837, 16
        %v935 = vrot.slane %v933, 7
        %v936 = vshll.u32 %v837, 16
        %v938 = vor.u32 %v935, %v936
        %v939 = vrot.slane %v935, 4
        %v941 = vshrl.u32 %v838, 16
        %v943 = vrot.slane %v941, 7
        %v944 = vshll.u32 %v838, 16
        %v946 = vor.u32 %v943, %v944
        %v947 = vsel %vm863, %v939, %v946
        %v948 = vrot.slane %v943, 4
        %v950 = vshrl.u32 %v839, 16
        %v952 = vrot.slane %v950, 7
        %v953 = vshll.u32 %v839, 16
        %v955 = vor.u32 %v952, %v953
        %v956 = vrot.slane %v952, 4
        %v958 = vshrl.u32 %v840, 16
        %v960 = vrot.slane %v958, 7
        %v961 = vshll.u32 %v840, 16
        %v963 = vor.u32 %v960, %v961
        %v964 = vsel %vm863, %v956, %v963
        %v965 = vrot.slane %v960, 4
        %v967 = vshrl.u32 %v841, 16
        %v969 = vrot.slane %v967, 7
        %v970 = vshll.u32 %v841, 16
        %v972 = vor.u32 %v969, %v970
        %v973 = vrot.slane %v969, 4
        %v975 = vshrl.u32 %v842, 16
        %v977 = vrot.slane %v975, 7
        %v978 = vshll.u32 %v842, 16
        %v980 = vor.u32 %v977, %v978
        %v981 = vsel %vm863, %v973, %v980
        %v982 = vrot.slane %v977, 4
        %v984 = vshrl.u32 %v843, 16
        %v986 = vrot.slane %v984, 7
        %v987 = vshll.u32 %v843, 16
        %v989 = vor.u32 %v986, %v987
        %v990 = vrot.slane %v986, 4
        %v992 = vshrl.u32 %v844, 16
        %v994 = vrot.slane %v992, 7
        %v995 = vshll.u32 %v844, 16
        %v997 = vor.u32 %v994, %v995
        %v998 = vsel %vm863, %v990, %v997
        %v999 = vrot.slane %v994, 4
        %v1001 = vshrl.u32 %v845, 16
        %v1003 = vrot.slane %v1001, 7
        %v1004 = vshll.u32 %v845, 16
        %v1006 = vor.u32 %v1003, %v1004
        %v1007 = vrot.slane %v1003, 4
        %v1009 = vshrl.u32 %v846, 16
        %v1011 = vrot.slane %v1009, 7
        %v1012 = vshll.u32 %v846, 16
        %v1014 = vor.u32 %v1011, %v1012
        %v1015 = vsel %vm863, %v1007, %v1014
        %v1016 = vrot.slane %v1011, 4
        %v1018 = vshrl.u32 %v847, 16
        %v1020 = vrot.slane %v1018, 7
        %v1021 = vshll.u32 %v847, 16
        %v1023 = vor.u32 %v1020, %v1021
        %v1024 = vrot.slane %v1020, 4
        %v1026 = vshrl.u32 %v848, 16
        %v1028 = vrot.slane %v1026, 7
        %v1029 = vshll.u32 %v848, 16
        %v1031 = vor.u32 %v1028, %v1029
        %v1032 = vsel %vm863, %v1024, %v1031
        %v1033 = vrot.slane %v1028, 4
        %v1035 = vshrl.u32 %v849, 16
        %v1037 = vrot.slane %v1035, 7
        %v1038 = vshll.u32 %v849, 16
        %v1040 = vor.u32 %v1037, %v1038
        %v1041 = vrot.slane %v1037, 4
        %v1043 = vshrl.u32 %v850, 16
        %v1045 = vrot.slane %v1043, 7
        %v1046 = vshll.u32 %v850, 16
        %v1048 = vor.u32 %v1045, %v1046
        %v1049 = vsel %vm863, %v1041, %v1048
        %v1050 = vrot.slane %v1045, 4
        %v1052 = vshrl.u32 %v851, 16
        %v1054 = vrot.slane %v1052, 7
        %v1055 = vshll.u32 %v851, 16
        %v1057 = vor.u32 %v1054, %v1055
        %v1058 = vrot.slane %v1054, 4
        %v1060 = vshrl.u32 %v852, 16
        %v1062 = vrot.slane %v1060, 7
        %v1063 = vshll.u32 %v852, 16
        %v1065 = vor.u32 %v1062, %v1063
        %v1066 = vsel %vm863, %v1058, %v1065
        %v1067 = vrot.slane %v1062, 4
        %v1069 = vshrl.u32 %v853, 16
        %v1071 = vrot.slane %v1069, 7
        %v1072 = vshll.u32 %v853, 16
        %v1074 = vor.u32 %v1071, %v1072
        %v1075 = vrot.slane %v1071, 4
        %v1077 = vshrl.u32 %v854, 16
        %v1079 = vrot.slane %v1077, 7
        %v1080 = vshll.u32 %v854, 16
        %v1082 = vor.u32 %v1079, %v1080
        %v1083 = vsel %vm863, %v1075, %v1082
        %v1084 = vrot.slane %v1079, 4
        %v1086 = vshrl.u32 %v855, 16
        %v1088 = vrot.slane %v1086, 7
        %v1089 = vshll.u32 %v855, 16
        %v1091 = vor.u32 %v1088, %v1089
        %v1092 = vrot.slane %v1088, 4
        %v1094 = vshrl.u32 %v856, 16
        %v1096 = vrot.slane %v1094, 7
        %v1097 = vshll.u32 %v856, 16
        %v1099 = vor.u32 %v1096, %v1097
        %v1100 = vsel %vm863, %v1092, %v1099
        %v1101 = vrot.slane %v1096, 4
        %v1103 = vshrl.u32 %v857, 16
        %v1105 = vrot.slane %v1103, 7
        %v1106 = vshll.u32 %v857, 16
        %v1108 = vor.u32 %v1105, %v1106
        %v1109 = vrot.slane %v1105, 4
        %v1111 = vshrl.u32 %v858, 16
        %v1113 = vrot.slane %v1111, 7
        %v1114 = vshll.u32 %v858, 16
        %v1116 = vor.u32 %v1113, %v1114
        %v1117 = vsel %vm863, %v1109, %v1116
        %v1118 = vrot.slane %v1113, 4
        %v1120 = vshrl.u32 %v859, 16
        %v1122 = vrot.slane %v1120, 7
        %v1123 = vshll.u32 %v859, 16
        %v1125 = vor.u32 %v1122, %v1123
        %v1126 = vrot.slane %v1122, 4
        %v1128 = vshrl.u32 %v860, 16
        %v1130 = vrot.slane %v1128, 7
        %v1131 = vshll.u32 %v860, 16
        %v1133 = vor.u32 %v1130, %v1131
        %v1134 = vsel %vm863, %v1126, %v1133
        %v1135 = vrot.slane %v1130, 4
        %s1184 = scalar_lea.vmem [#allocation2], 12
        %vm1185 = vcmask 1043456
        %vm1186 = vsmask.f32 7938
        %vm1187 = vmand %vm1185, %vm1186
        %v1188 = vld [vmem:[%s1184] sm:$0xf]
        %v1189 = vsel %vm1187, %v870, %v1188
        %1190 = vst [vmem:[%s1184] sm:$0xf] %v1189
        %1191 = vst [vmem:[%s1184 + $0x4] sm:$0xf] %v879
        %vm1192 = vcmask 1040384
        %vm1193 = vmand %vm1192, %vm861
        %v1194 = vld [vmem:[%s1184 + $0x8] sm:$0x1]
        %v1195 = vsel %vm1193, %v880, %v1194
        %1196 = vst [vmem:[%s1184 + $0x8] sm:$0x1] %v1195
        %v1197 = vld [vmem:[%s1184 + $0xc] sm:$0xf]
        %v1198 = vsel %vm1187, %v887, %v1197
        %1199 = vst [vmem:[%s1184 + $0xc] sm:$0xf] %v1198
        %1200 = vst [vmem:[%s1184 + $0x10] sm:$0xf] %v896
        %v1201 = vld [vmem:[%s1184 + $0x14] sm:$0x1]
        %v1202 = vsel %vm1193, %v897, %v1201
        %1203 = vst [vmem:[%s1184 + $0x14] sm:$0x1] %v1202
        %v1204 = vld [vmem:[%s1184 + $0x18] sm:$0xf]
        %v1205 = vsel %vm1187, %v904, %v1204
        %1206 = vst [vmem:[%s1184 + $0x18] sm:$0xf] %v1205
        %1207 = vst [vmem:[%s1184 + $0x1c] sm:$0xf] %v913
        %v1208 = vld [vmem:[%s1184 + $0x20] sm:$0x1]
        %v1209 = vsel %vm1193, %v914, %v1208
        %1210 = vst [vmem:[%s1184 + $0x20] sm:$0x1] %v1209
        %v1211 = vld [vmem:[%s1184 + $0x24] sm:$0xf]
        %v1212 = vsel %vm1187, %v921, %v1211
        %1213 = vst [vmem:[%s1184 + $0x24] sm:$0xf] %v1212
        %1214 = vst [vmem:[%s1184 + $0x28] sm:$0xf] %v930
        %v1215 = vld [vmem:[%s1184 + $0x2c] sm:$0x1]
        %v1216 = vsel %vm1193, %v931, %v1215
        %1217 = vst [vmem:[%s1184 + $0x2c] sm:$0x1] %v1216
        %v1218 = vld [vmem:[%s1184 + $0x30] sm:$0xf]
        %v1219 = vsel %vm1187, %v938, %v1218
        %1220 = vst [vmem:[%s1184 + $0x30] sm:$0xf] %v1219
        %1221 = vst [vmem:[%s1184 + $0x34] sm:$0xf] %v947
        %v1222 = vld [vmem:[%s1184 + $0x38] sm:$0x1]
        %v1223 = vsel %vm1193, %v948, %v1222
        %1224 = vst [vmem:[%s1184 + $0x38] sm:$0x1] %v1223
        %v1225 = vld [vmem:[%s1184 + $0x3c] sm:$0xf]
        %v1226 = vsel %vm1187, %v955, %v1225
        %1227 = vst [vmem:[%s1184 + $0x3c] sm:$0xf] %v1226
        %1228 = vst [vmem:[%s1184 + $0x40] sm:$0xf] %v964
        %v1229 = vld [vmem:[%s1184 + $0x44] sm:$0x1]
        %v1230 = vsel %vm1193, %v965, %v1229
        %1231 = vst [vmem:[%s1184 + $0x44] sm:$0x1] %v1230
        %v1232 = vld [vmem:[%s1184 + $0x48] sm:$0xf]
        %v1233 = vsel %vm1187, %v972, %v1232
        %1234 = vst [vmem:[%s1184 + $0x48] sm:$0xf] %v1233
        %1235 = vst [vmem:[%s1184 + $0x4c] sm:$0xf] %v981
        %v1236 = vld [vmem:[%s1184 + $0x50] sm:$0x1]
        %v1237 = vsel %vm1193, %v982, %v1236
        %1238 = vst [vmem:[%s1184 + $0x50] sm:$0x1] %v1237
        %v1239 = vld [vmem:[%s1184 + $0x54] sm:$0xf]
        %v1240 = vsel %vm1187, %v989, %v1239
        %1241 = vst [vmem:[%s1184 + $0x54] sm:$0xf] %v1240
        %1242 = vst [vmem:[%s1184 + $0x58] sm:$0xf] %v998
        %v1243 = vld [vmem:[%s1184 + $0x5c] sm:$0x1]
        %v1244 = vsel %vm1193, %v999, %v1243
        %1245 = vst [vmem:[%s1184 + $0x5c] sm:$0x1] %v1244
        %v1246 = vld [vmem:[%s1184 + $0x60] sm:$0xf]
        %v1247 = vsel %vm1187, %v1006, %v1246
        %1248 = vst [vmem:[%s1184 + $0x60] sm:$0xf] %v1247
        %1249 = vst [vmem:[%s1184 + $0x64] sm:$0xf] %v1015
        %v1250 = vld [vmem:[%s1184 + $0x68] sm:$0x1]
        %v1251 = vsel %vm1193, %v1016, %v1250
        %1252 = vst [vmem:[%s1184 + $0x68] sm:$0x1] %v1251
        %v1253 = vld [vmem:[%s1184 + $0x6c] sm:$0xf]
        %v1254 = vsel %vm1187, %v1023, %v1253
        %1255 = vst [vmem:[%s1184 + $0x6c] sm:$0xf] %v1254
        %1256 = vst [vmem:[%s1184 + $0x70] sm:$0xf] %v1032
        %v1257 = vld [vmem:[%s1184 + $0x74] sm:$0x1]
        %v1258 = vsel %vm1193, %v1033, %v1257
        %1259 = vst [vmem:[%s1184 + $0x74] sm:$0x1] %v1258
        %v1260 = vld [vmem:[%s1184 + $0x78] sm:$0xf]
        %v1261 = vsel %vm1187, %v1040, %v1260
        %1262 = vst [vmem:[%s1184 + $0x78] sm:$0xf] %v1261
        %1263 = vst [vmem:[%s1184 + $0x7c] sm:$0xf] %v1049
        %v1264 = vld [vmem:[%s1184 + $0x80] sm:$0x1]
        %v1265 = vsel %vm1193, %v1050, %v1264
        %1266 = vst [vmem:[%s1184 + $0x80] sm:$0x1] %v1265
        %v1267 = vld [vmem:[%s1184 + $0x84] sm:$0xf]
        %v1268 = vsel %vm1187, %v1057, %v1267
        %1269 = vst [vmem:[%s1184 + $0x84] sm:$0xf] %v1268
        %1270 = vst [vmem:[%s1184 + $0x88] sm:$0xf] %v1066
        %v1271 = vld [vmem:[%s1184 + $0x8c] sm:$0x1]
        %v1272 = vsel %vm1193, %v1067, %v1271
        %1273 = vst [vmem:[%s1184 + $0x8c] sm:$0x1] %v1272
        %v1274 = vld [vmem:[%s1184 + $0x90] sm:$0xf]
        %v1275 = vsel %vm1187, %v1074, %v1274
        %1276 = vst [vmem:[%s1184 + $0x90] sm:$0xf] %v1275
        %1277 = vst [vmem:[%s1184 + $0x94] sm:$0xf] %v1083
        %v1278 = vld [vmem:[%s1184 + $0x98] sm:$0x1]
        %v1279 = vsel %vm1193, %v1084, %v1278
        %1280 = vst [vmem:[%s1184 + $0x98] sm:$0x1] %v1279
        %v1281 = vld [vmem:[%s1184 + $0x9c] sm:$0xf]
        %v1282 = vsel %vm1187, %v1091, %v1281
        %1283 = vst [vmem:[%s1184 + $0x9c] sm:$0xf] %v1282
        %1284 = vst [vmem:[%s1184 + $0xa0] sm:$0xf] %v1100
        %v1285 = vld [vmem:[%s1184 + $0xa4] sm:$0x1]
        %v1286 = vsel %vm1193, %v1101, %v1285
        %1287 = vst [vmem:[%s1184 + $0xa4] sm:$0x1] %v1286
        %v1288 = vld [vmem:[%s1184 + $0xa8] sm:$0xf]
        %v1289 = vsel %vm1187, %v1108, %v1288
        %1290 = vst [vmem:[%s1184 + $0xa8] sm:$0xf] %v1289
        %1291 = vst [vmem:[%s1184 + $0xac] sm:$0xf] %v1117
        %v1292 = vld [vmem:[%s1184 + $0xb0] sm:$0x1]
        %v1293 = vsel %vm1193, %v1118, %v1292
        %1294 = vst [vmem:[%s1184 + $0xb0] sm:$0x1] %v1293
        %v1295 = vld [vmem:[%s1184 + $0xb4] sm:$0xf]
        %v1296 = vsel %vm1187, %v1125, %v1295
        %1297 = vst [vmem:[%s1184 + $0xb4] sm:$0xf] %v1296
        %1298 = vst [vmem:[%s1184 + $0xb8] sm:$0xf] %v1134
        %v1299 = vld [vmem:[%s1184 + $0xbc] sm:$0x1]
        %v1300 = vsel %vm1193, %v1135, %v1299
        %1301 = vst [vmem:[%s1184 + $0xbc] sm:$0x1] %v1300
        %v1302 = vld [vmem:[#allocation2] sm:$0xf]
        %v1303 = vld [vmem:[#allocation2 + $0x4] sm:$0xf]
        %v1304 = vld [vmem:[#allocation2 + $0x8] sm:$0xf]
        %v1305 = vld [vmem:[#allocation2 + $0xc] sm:$0xf]
        %v1306 = vld [vmem:[#allocation2 + $0x10] sm:$0xf]
        %v1307 = vld [vmem:[#allocation2 + $0x14] sm:$0xf]
        %v1308 = vld [vmem:[#allocation2 + $0x18] sm:$0xf]
        %v1309 = vld [vmem:[#allocation2 + $0x1c] sm:$0xf]
        %v1310 = vld [vmem:[#allocation2 + $0x20] sm:$0xf]
        %v1311 = vld [vmem:[#allocation2 + $0x24] sm:$0xf]
        %v1312 = vld [vmem:[#allocation2 + $0x28] sm:$0xf]
        %v1313 = vld [vmem:[#allocation2 + $0x2c] sm:$0xf]
        %v1314 = vld [vmem:[#allocation2 + $0x30] sm:$0xf]
        %v1315 = vld [vmem:[#allocation2 + $0x34] sm:$0xf]
        %v1316 = vld [vmem:[#allocation2 + $0x38] sm:$0xf]
        %v1317 = vld [vmem:[#allocation2 + $0x3c] sm:$0xf]
        %v1318 = vld [vmem:[#allocation2 + $0x40] sm:$0xf]
        %v1319 = vld [vmem:[#allocation2 + $0x44] sm:$0xf]
        %v1320 = vld [vmem:[#allocation2 + $0x48] sm:$0xf]
        %v1321 = vld [vmem:[#allocation2 + $0x4c] sm:$0xf]
        %v1322 = vld [vmem:[#allocation2 + $0x50] sm:$0xf]
        %v1323 = vld [vmem:[#allocation2 + $0x54] sm:$0xf]
        %v1324 = vld [vmem:[#allocation2 + $0x58] sm:$0xf]
        %v1325 = vld [vmem:[#allocation2 + $0x5c] sm:$0xf]
        %v1326 = vld [vmem:[#allocation2 + $0x60] sm:$0xf]
        %v1327 = vld [vmem:[#allocation2 + $0x64] sm:$0xf]
        %v1328 = vld [vmem:[#allocation2 + $0x68] sm:$0xf]
        %v1329 = vld [vmem:[#allocation2 + $0x6c] sm:$0xf]
        %v1330 = vld [vmem:[#allocation2 + $0x70] sm:$0xf]
        %v1331 = vld [vmem:[#allocation2 + $0x74] sm:$0xf]
        %v1332 = vld [vmem:[#allocation2 + $0x78] sm:$0xf]
        %v1333 = vld [vmem:[#allocation2 + $0x7c] sm:$0xf]
        %v1334 = vld [vmem:[#allocation2 + $0x80] sm:$0xf]
        %v1335 = vld [vmem:[#allocation2 + $0x84] sm:$0xf]
        %v1336 = vld [vmem:[#allocation2 + $0x88] sm:$0xf]
        %v1337 = vld [vmem:[#allocation2 + $0x8c] sm:$0xf]
        %v1338 = vld [vmem:[#allocation2 + $0x90] sm:$0xf]
        %v1339 = vld [vmem:[#allocation2 + $0x94] sm:$0xf]
        %v1340 = vld [vmem:[#allocation2 + $0x98] sm:$0xf]
        %v1341 = vld [vmem:[#allocation2 + $0x9c] sm:$0xf]
        %v1342 = vld [vmem:[#allocation2 + $0xa0] sm:$0xf]
        %v1343 = vld [vmem:[#allocation2 + $0xa4] sm:$0xf]
        %v1344 = vld [vmem:[#allocation2 + $0xa8] sm:$0xf]
        %v1345 = vld [vmem:[#allocation2 + $0xac] sm:$0xf]
        %v1346 = vld [vmem:[#allocation2 + $0xb0] sm:$0xf]
        %v1347 = vld [vmem:[#allocation2 + $0xb4] sm:$0xf]
        %v1348 = vld [vmem:[#allocation2 + $0xb8] sm:$0xf]
        %v1349 = vld [vmem:[#allocation2 + $0xbc] sm:$0xf]
        %v1350 = vld [vmem:[#allocation9] sm:$0xf]
        %v1351 = vld [vmem:[#allocation9 + $0x4] sm:$0xf]
        %v1352 = vld [vmem:[#allocation9 + $0x8] sm:$0xf]
        %v1353 = vld [vmem:[#allocation9 + $0xc] sm:$0xf]
        %v1354 = vld [vmem:[#allocation9 + $0x10] sm:$0xf]
        %v1355 = vld [vmem:[#allocation9 + $0x14] sm:$0xf]
        %v1356 = vld [vmem:[#allocation9 + $0x18] sm:$0xf]
        %v1357 = vld [vmem:[#allocation9 + $0x1c] sm:$0xf]
        %v1358 = vld [vmem:[#allocation9 + $0x20] sm:$0xf]
        %v1359 = vld [vmem:[#allocation9 + $0x24] sm:$0xf]
        %v1360 = vld [vmem:[#allocation9 + $0x28] sm:$0xf]
        %v1361 = vld [vmem:[#allocation9 + $0x2c] sm:$0xf]
        %v1362 = vld [vmem:[#allocation9 + $0x30] sm:$0xf]
        %v1363 = vld [vmem:[#allocation9 + $0x34] sm:$0xf]
        %v1364 = vld [vmem:[#allocation9 + $0x38] sm:$0xf]
        %v1365 = vld [vmem:[#allocation9 + $0x3c] sm:$0xf]
        %v1398 = vunpack.c.l.b16 %v1302
        %v1399 = vunpack.c.l.b16 %v1303
        %v1400 = vunpack.c.l.b16 %v1305
        %v1401 = vunpack.c.l.b16 %v1306
        %v1402 = vunpack.c.l.b16 %v1308
        %v1403 = vunpack.c.l.b16 %v1309
        %v1404 = vunpack.c.l.b16 %v1311
        %v1405 = vunpack.c.l.b16 %v1312
        %v1406 = vunpack.c.l.b16 %v1314
        %v1407 = vunpack.c.l.b16 %v1315
        %v1408 = vunpack.c.l.b16 %v1317
        %v1409 = vunpack.c.l.b16 %v1318
        %v1410 = vunpack.c.l.b16 %v1320
        %v1411 = vunpack.c.l.b16 %v1321
        %v1412 = vunpack.c.l.b16 %v1323
        %v1413 = vunpack.c.l.b16 %v1324
        %v1414 = vunpack.c.l.b16 %v1326
        %v1415 = vunpack.c.l.b16 %v1327
        %v1416 = vunpack.c.l.b16 %v1329
        %v1417 = vunpack.c.l.b16 %v1330
        %v1418 = vunpack.c.l.b16 %v1332
        %v1419 = vunpack.c.l.b16 %v1333
        %v1420 = vunpack.c.l.b16 %v1335
        %v1421 = vunpack.c.l.b16 %v1336
        %v1422 = vunpack.c.l.b16 %v1338
        %v1423 = vunpack.c.l.b16 %v1339
        %v1424 = vunpack.c.l.b16 %v1341
        %v1425 = vunpack.c.l.b16 %v1342
        %v1426 = vunpack.c.l.b16 %v1344
        %v1427 = vunpack.c.l.b16 %v1345
        %v1428 = vunpack.c.l.b16 %v1347
        %v1429 = vunpack.c.l.b16 %v1348
        %v1430 = vpack.c.b16 %v1399, %v1398
        %v1431 = vpack.c.b16 %v1401, %v1400
        %v1432 = vpack.c.b16 %v1403, %v1402
        %v1433 = vpack.c.b16 %v1405, %v1404
        %v1434 = vpack.c.b16 %v1407, %v1406
        %v1435 = vpack.c.b16 %v1409, %v1408
        %v1436 = vpack.c.b16 %v1411, %v1410
        %v1437 = vpack.c.b16 %v1413, %v1412
        %v1438 = vpack.c.b16 %v1415, %v1414
        %v1439 = vpack.c.b16 %v1417, %v1416
        %v1440 = vpack.c.b16 %v1419, %v1418
        %v1441 = vpack.c.b16 %v1421, %v1420
        %v1442 = vpack.c.b16 %v1423, %v1422
        %v1443 = vpack.c.b16 %v1425, %v1424
        %v1444 = vpack.c.b16 %v1427, %v1426
        %v1445 = vpack.c.b16 %v1429, %v1428
        %v1478 = vunpack.c.l.b16 %v1350
        %v1479 = vunpack.c.l.b16 %v1351
        %v1480 = vunpack.c.l.b16 %v1352
        %v1481 = vunpack.c.l.b16 %v1353
        %v1482 = vunpack.c.l.b16 %v1354
        %v1483 = vunpack.c.l.b16 %v1355
        %v1484 = vunpack.c.l.b16 %v1356
        %v1485 = vunpack.c.l.b16 %v1357
        %v1486 = vunpack.c.l.b16 %v1358
        %v1487 = vunpack.c.l.b16 %v1359
        %v1488 = vunpack.c.l.b16 %v1360
        %v1489 = vunpack.c.l.b16 %v1361
        %v1490 = vunpack.c.l.b16 %v1362
        %v1491 = vunpack.c.l.b16 %v1363
        %v1492 = vunpack.c.l.b16 %v1364
        %v1493 = vunpack.c.l.b16 %v1365
        %v1494 = vpack.c.b16 %v1479, %v1478
        %v1495 = vpack.c.b16 %v1481, %v1480
        %v1496 = vpack.c.b16 %v1483, %v1482
        %v1497 = vpack.c.b16 %v1485, %v1484
        %v1498 = vpack.c.b16 %v1487, %v1486
        %v1499 = vpack.c.b16 %v1489, %v1488
        %v1500 = vpack.c.b16 %v1491, %v1490
        %v1501 = vpack.c.b16 %v1493, %v1492
        %1510 = vmatprep.subr.bf16.mxu0 0
        %1511 = vmatpush1.bf16.msra.mxu0 %v1494
        %1512 = vmatprep.subr.bf16.mxu0 0
        %1513 = vmatpush1.bf16.msra.mxu0 %v1495
        %1514 = vmatprep.subr.bf16.mxu0 0
        %1515 = vmatpush1.bf16.msra.mxu0 %v1496
        %1516 = vmatprep.subr.bf16.mxu0 0
        %1517 = vmatpush1.bf16.msra.mxu0 %v1497
        %1518 = vmatprep.subr.bf16.mxu0 0
        %1519 = vmatpush1.bf16.msra.mxu0 %v1498
        %1520 = vmatprep.subr.bf16.mxu0 0
        %1521 = vmatpush1.bf16.msra.mxu0 %v1499
        %1522 = vmatprep.subr.bf16.mxu0 0
        %1523 = vmatpush1.bf16.msra.mxu0 %v1500
        %1524 = vmatprep.subr.bf16.mxu0 0
        %1525 = vmatpush1.bf16.msra.mxu0 %v1501
        %1526 = vmatprep.subr.bf16.mxu0 0
        %1527 = vmatpush1.bf16.msra.mxu0 0
        %1528 = vmatprep.subr.bf16.mxu0 0
        %1529 = vmatpush1.bf16.msra.mxu0 0
        %1530 = vmatprep.subr.bf16.mxu0 0
        %1531 = vmatpush1.bf16.msra.mxu0 0
        %1532 = vmatprep.subr.bf16.mxu0 0
        %1533 = vmatpush1.bf16.msra.mxu0 0
        %1534 = vmatprep.subr.bf16.mxu0 0
        %1535 = vmatpush1.bf16.msra.mxu0 0
        %1536 = vmatprep.subr.bf16.mxu0 0
        %1537 = vmatpush1.bf16.msra.mxu0 0
        %1538 = vmatprep.subr.bf16.mxu0 0
        %1539 = vmatpush1.bf16.msra.mxu0 0
        %1540 = vmatprep.subr.bf16.mxu0 0
        %1541 = vmatpush1.bf16.msra.mxu0 0
        %1542 = vmatprep.mubr.bf16.mxu0 0
        %1543 = vmatmul.mubr.bf16.gmra.mrb[0].mxu0 %v1430
        %v1544 = vpop.f32.mrb[0].mxu0
        %v1545 = vadd.f32 0.0, %v1544
        %v1546 = vpop.f32.mrb[0].mxu0
        %v1547 = vpop.f32.mrb[0].mxu0
        %v1548 = vadd.f32 0.0, %v1547
        %v1549 = vpop.f32.mrb[0].mxu0
        %1550 = vmatprep.mubr.bf16.mxu0 0
        %1551 = vmatmul.mubr.bf16.gmra.mrb[0].mxu0 %v1431
        %v1552 = vpop.f32.mrb[0].mxu0
        %v1553 = vadd.f32 0.0, %v1552
        %v1554 = vpop.f32.mrb[0].mxu0
        %v1555 = vpop.f32.mrb[0].mxu0
        %v1556 = vadd.f32 0.0, %v1555
        %v1557 = vpop.f32.mrb[0].mxu0
        %1558 = vmatprep.mubr.bf16.mxu0 0
        %1559 = vmatmul.mubr.bf16.gmra.mrb[0].mxu0 %v1432
        %v1560 = vpop.f32.mrb[0].mxu0
        %v1561 = vadd.f32 0.0, %v1560
        %v1562 = vpop.f32.mrb[0].mxu0
        %v1563 = vpop.f32.mrb[0].mxu0
        %v1564 = vadd.f32 0.0, %v1563
        %v1565 = vpop.f32.mrb[0].mxu0
        %1566 = vmatprep.mubr.bf16.mxu0 0
        %1567 = vmatmul.mubr.bf16.gmra.mrb[0].mxu0 %v1433
        %v1568 = vpop.f32.mrb[0].mxu0
        %v1569 = vadd.f32 0.0, %v1568
        %v1570 = vpop.f32.mrb[0].mxu0
        %v1571 = vpop.f32.mrb[0].mxu0
        %v1572 = vadd.f32 0.0, %v1571
        %v1573 = vpop.f32.mrb[0].mxu0
        %1574 = vmatprep.mubr.bf16.mxu0 0
        %1575 = vmatmul.mubr.bf16.gmra.mrb[0].mxu0 %v1434
        %v1576 = vpop.f32.mrb[0].mxu0
        %v1577 = vadd.f32 0.0, %v1576
        %v1578 = vpop.f32.mrb[0].mxu0
        %v1579 = vpop.f32.mrb[0].mxu0
        %v1580 = vadd.f32 0.0, %v1579
        %v1581 = vpop.f32.mrb[0].mxu0
        %1582 = vmatprep.mubr.bf16.mxu0 0
        %1583 = vmatmul.mubr.bf16.gmra.mrb[0].mxu0 %v1435
        %v1584 = vpop.f32.mrb[0].mxu0
        %v1585 = vadd.f32 0.0, %v1584
        %v1586 = vpop.f32.mrb[0].mxu0
        %v1587 = vpop.f32.mrb[0].mxu0
        %v1588 = vadd.f32 0.0, %v1587
        %v1589 = vpop.f32.mrb[0].mxu0
        %1590 = vmatprep.mubr.bf16.mxu0 0
        %1591 = vmatmul.mubr.bf16.gmra.mrb[0].mxu0 %v1436
        %v1592 = vpop.f32.mrb[0].mxu0
        %v1593 = vadd.f32 0.0, %v1592
        %v1594 = vpop.f32.mrb[0].mxu0
        %v1595 = vpop.f32.mrb[0].mxu0
        %v1596 = vadd.f32 0.0, %v1595
        %v1597 = vpop.f32.mrb[0].mxu0
        %1598 = vmatprep.mubr.bf16.mxu0 0
        %1599 = vmatmul.mubr.bf16.gmra.mrb[0].mxu0 %v1437
        %v1600 = vpop.f32.mrb[0].mxu0
        %v1601 = vadd.f32 0.0, %v1600
        %v1602 = vpop.f32.mrb[0].mxu0
        %v1603 = vpop.f32.mrb[0].mxu0
        %v1604 = vadd.f32 0.0, %v1603
        %v1605 = vpop.f32.mrb[0].mxu0
        %1606 = vmatprep.mubr.bf16.mxu0 0
        %1607 = vmatmul.mubr.bf16.gmra.mrb[0].mxu0 %v1438
        %v1608 = vpop.f32.mrb[0].mxu0
        %v1609 = vadd.f32 0.0, %v1608
        %v1610 = vpop.f32.mrb[0].mxu0
        %v1611 = vpop.f32.mrb[0].mxu0
        %v1612 = vadd.f32 0.0, %v1611
        %v1613 = vpop.f32.mrb[0].mxu0
        %1614 = vmatprep.mubr.bf16.mxu0 0
        %1615 = vmatmul.mubr.bf16.gmra.mrb[0].mxu0 %v1439
        %v1616 = vpop.f32.mrb[0].mxu0
        %v1617 = vadd.f32 0.0, %v1616
        %v1618 = vpop.f32.mrb[0].mxu0
        %v1619 = vpop.f32.mrb[0].mxu0
        %v1620 = vadd.f32 0.0, %v1619
        %v1621 = vpop.f32.mrb[0].mxu0
        %1622 = vmatprep.mubr.bf16.mxu0 0
        %1623 = vmatmul.mubr.bf16.gmra.mrb[0].mxu0 %v1440
        %v1624 = vpop.f32.mrb[0].mxu0
        %v1625 = vadd.f32 0.0, %v1624
        %v1626 = vpop.f32.mrb[0].mxu0
        %v1627 = vpop.f32.mrb[0].mxu0
        %v1628 = vadd.f32 0.0, %v1627
        %v1629 = vpop.f32.mrb[0].mxu0
        %1630 = vmatprep.mubr.bf16.mxu0 0
        %1631 = vmatmul.mubr.bf16.gmra.mrb[0].mxu0 %v1441
        %v1632 = vpop.f32.mrb[0].mxu0
        %v1633 = vadd.f32 0.0, %v1632
        %v1634 = vpop.f32.mrb[0].mxu0
        %v1635 = vpop.f32.mrb[0].mxu0
        %v1636 = vadd.f32 0.0, %v1635
        %v1637 = vpop.f32.mrb[0].mxu0
        %1638 = vmatprep.mubr.bf16.mxu0 0
        %1639 = vmatmul.mubr.bf16.gmra.mrb[0].mxu0 %v1442
        %v1640 = vpop.f32.mrb[0].mxu0
        %v1641 = vadd.f32 0.0, %v1640
        %v1642 = vpop.f32.mrb[0].mxu0
        %v1643 = vpop.f32.mrb[0].mxu0
        %v1644 = vadd.f32 0.0, %v1643
        %v1645 = vpop.f32.mrb[0].mxu0
        %1646 = vmatprep.mubr.bf16.mxu0 0
        %1647 = vmatmul.mubr.bf16.gmra.mrb[0].mxu0 %v1443
        %v1648 = vpop.f32.mrb[0].mxu0
        %v1649 = vadd.f32 0.0, %v1648
        %v1650 = vpop.f32.mrb[0].mxu0
        %v1651 = vpop.f32.mrb[0].mxu0
        %v1652 = vadd.f32 0.0, %v1651
        %v1653 = vpop.f32.mrb[0].mxu0
        %1654 = vmatprep.mubr.bf16.mxu0 0
        %1655 = vmatmul.mubr.bf16.gmra.mrb[0].mxu0 %v1444
        %v1656 = vpop.f32.mrb[0].mxu0
        %v1657 = vadd.f32 0.0, %v1656
        %v1658 = vpop.f32.mrb[0].mxu0
        %v1659 = vpop.f32.mrb[0].mxu0
        %v1660 = vadd.f32 0.0, %v1659
        %v1661 = vpop.f32.mrb[0].mxu0
        %1662 = vmatprep.mubr.bf16.mxu0 0
        %1663 = vmatmul.mubr.bf16.gmra.mrb[0].mxu0 %v1445
        %v1664 = vpop.f32.mrb[0].mxu0
        %v1665 = vadd.f32 0.0, %v1664
        %v1666 = vpop.f32.mrb[0].mxu0
        %v1667 = vpop.f32.mrb[0].mxu0
        %v1668 = vadd.f32 0.0, %v1667
        %v1669 = vpop.f32.mrb[0].mxu0
        %1670 = vdwg.mxu0
        %1671 = vst [vmem:[#allocation3] sm:$0xff] %v1545
        %1672 = vst [vmem:[#allocation3 + $0x8] sm:$0xff] %v1548
        %1673 = vst [vmem:[#allocation3 + $0x10] sm:$0xff] %v1553
        %1674 = vst [vmem:[#allocation3 + $0x18] sm:$0xff] %v1556
        %1675 = vst [vmem:[#allocation3 + $0x20] sm:$0xff] %v1561
        %1676 = vst [vmem:[#allocation3 + $0x28] sm:$0xff] %v1564
        %1677 = vst [vmem:[#allocation3 + $0x30] sm:$0xff] %v1569
        %1678 = vst [vmem:[#allocation3 + $0x38] sm:$0xff] %v1572
        %1679 = vst [vmem:[#allocation3 + $0x40] sm:$0xff] %v1577
        %1680 = vst [vmem:[#allocation3 + $0x48] sm:$0xff] %v1580
        %1681 = vst [vmem:[#allocation3 + $0x50] sm:$0xff] %v1585
        %1682 = vst [vmem:[#allocation3 + $0x58] sm:$0xff] %v1588
        %1683 = vst [vmem:[#allocation3 + $0x60] sm:$0xff] %v1593
        %1684 = vst [vmem:[#allocation3 + $0x68] sm:$0xff] %v1596
        %1685 = vst [vmem:[#allocation3 + $0x70] sm:$0xff] %v1601
        %1686 = vst [vmem:[#allocation3 + $0x78] sm:$0xff] %v1604
        %1687 = vst [vmem:[#allocation3 + $0x80] sm:$0xff] %v1609
        %1688 = vst [vmem:[#allocation3 + $0x88] sm:$0xff] %v1612
        %1689 = vst [vmem:[#allocation3 + $0x90] sm:$0xff] %v1617
        %1690 = vst [vmem:[#allocation3 + $0x98] sm:$0xff] %v1620
        %1691 = vst [vmem:[#allocation3 + $0xa0] sm:$0xff] %v1625
        %1692 = vst [vmem:[#allocation3 + $0xa8] sm:$0xff] %v1628
        %1693 = vst [vmem:[#allocation3 + $0xb0] sm:$0xff] %v1633
        %1694 = vst [vmem:[#allocation3 + $0xb8] sm:$0xff] %v1636
        %1695 = vst [vmem:[#allocation3 + $0xc0] sm:$0xff] %v1641
        %1696 = vst [vmem:[#allocation3 + $0xc8] sm:$0xff] %v1644
        %1697 = vst [vmem:[#allocation3 + $0xd0] sm:$0xff] %v1649
        %1698 = vst [vmem:[#allocation3 + $0xd8] sm:$0xff] %v1652
        %1699 = vst [vmem:[#allocation3 + $0xe0] sm:$0xff] %v1657
        %1700 = vst [vmem:[#allocation3 + $0xe8] sm:$0xff] %v1660
        %1701 = vst [vmem:[#allocation3 + $0xf0] sm:$0xff] %v1665
        %1702 = vst [vmem:[#allocation3 + $0xf8] sm:$0xff] %v1668
        %vm1703 = vsmask.f32 3328
        %vm1704 = vsmask.f32 7440
        %vm1705 = vmor %vm1703, %vm1704
        %v1707 = vshrl.u32 %v1302, 16
        %v1709 = vrot.slane %v1707, 4
        %v1710 = vshll.u32 %v1302, 16
        %v1712 = vrot.slane %v1710, 5
        %v1713 = vor.u32 %v1709, %v1712
        %v1714 = vrot.slane %v1713, 4
        %v1716 = vshll.u32 %v1303, 16
        %v1718 = vrot.slane %v1716, 5
        %v1719 = vsel %vm1705, %v1714, %v1718
        %v1720 = vshrl.u32 %v1303, 16
        %v1722 = vrot.slane %v1720, 4
        %v1723 = vor.u32 %v1722, %v1718
        %v1724 = vrot.slane %v1723, 4
        %v1726 = vshll.u32 %v1304, 16
        %v1728 = vrot.slane %v1726, 5
        %v1729 = vsel %vm1705, %v1724, %v1728
        %v1731 = vshrl.u32 %v1305, 16
        %v1733 = vrot.slane %v1731, 4
        %v1734 = vshll.u32 %v1305, 16
        %v1736 = vrot.slane %v1734, 5
        %v1737 = vor.u32 %v1733, %v1736
        %v1738 = vrot.slane %v1737, 4
        %v1740 = vshll.u32 %v1306, 16
        %v1742 = vrot.slane %v1740, 5
        %v1743 = vsel %vm1705, %v1738, %v1742
        %v1744 = vshrl.u32 %v1306, 16
        %v1746 = vrot.slane %v1744, 4
        %v1747 = vor.u32 %v1746, %v1742
        %v1748 = vrot.slane %v1747, 4
        %v1750 = vshll.u32 %v1307, 16
        %v1752 = vrot.slane %v1750, 5
        %v1753 = vsel %vm1705, %v1748, %v1752
        %v1755 = vshrl.u32 %v1308, 16
        %v1757 = vrot.slane %v1755, 4
        %v1758 = vshll.u32 %v1308, 16
        %v1760 = vrot.slane %v1758, 5
        %v1761 = vor.u32 %v1757, %v1760
        %v1762 = vrot.slane %v1761, 4
        %v1764 = vshll.u32 %v1309, 16
        %v1766 = vrot.slane %v1764, 5
        %v1767 = vsel %vm1705, %v1762, %v1766
        %v1768 = vshrl.u32 %v1309, 16
        %v1770 = vrot.slane %v1768, 4
        %v1771 = vor.u32 %v1770, %v1766
        %v1772 = vrot.slane %v1771, 4
        %v1774 = vshll.u32 %v1310, 16
        %v1776 = vrot.slane %v1774, 5
        %v1777 = vsel %vm1705, %v1772, %v1776
        %v1779 = vshrl.u32 %v1311, 16
        %v1781 = vrot.slane %v1779, 4
        %v1782 = vshll.u32 %v1311, 16
        %v1784 = vrot.slane %v1782, 5
        %v1785 = vor.u32 %v1781, %v1784
        %v1786 = vrot.slane %v1785, 4
        %v1788 = vshll.u32 %v1312, 16
        %v1790 = vrot.slane %v1788, 5
        %v1791 = vsel %vm1705, %v1786, %v1790
        %v1792 = vshrl.u32 %v1312, 16
        %v1794 = vrot.slane %v1792, 4
        %v1795 = vor.u32 %v1794, %v1790
        %v1796 = vrot.slane %v1795, 4
        %v1798 = vshll.u32 %v1313, 16
        %v1800 = vrot.slane %v1798, 5
        %v1801 = vsel %vm1705, %v1796, %v1800
        %v1803 = vshrl.u32 %v1314, 16
        %v1805 = vrot.slane %v1803, 4
        %v1806 = vshll.u32 %v1314, 16
        %v1808 = vrot.slane %v1806, 5
        %v1809 = vor.u32 %v1805, %v1808
        %v1810 = vrot.slane %v1809, 4
        %v1812 = vshll.u32 %v1315, 16
        %v1814 = vrot.slane %v1812, 5
        %v1815 = vsel %vm1705, %v1810, %v1814
        %v1816 = vshrl.u32 %v1315, 16
        %v1818 = vrot.slane %v1816, 4
        %v1819 = vor.u32 %v1818, %v1814
        %v1820 = vrot.slane %v1819, 4
        %v1822 = vshll.u32 %v1316, 16
        %v1824 = vrot.slane %v1822, 5
        %v1825 = vsel %vm1705, %v1820, %v1824
        %v1827 = vshrl.u32 %v1317, 16
        %v1829 = vrot.slane %v1827, 4
        %v1830 = vshll.u32 %v1317, 16
        %v1832 = vrot.slane %v1830, 5
        %v1833 = vor.u32 %v1829, %v1832
        %v1834 = vrot.slane %v1833, 4
        %v1836 = vshll.u32 %v1318, 16
        %v1838 = vrot.slane %v1836, 5
        %v1839 = vsel %vm1705, %v1834, %v1838
        %v1840 = vshrl.u32 %v1318, 16
        %v1842 = vrot.slane %v1840, 4
        %v1843 = vor.u32 %v1842, %v1838
        %v1844 = vrot.slane %v1843, 4
        %v1846 = vshll.u32 %v1319, 16
        %v1848 = vrot.slane %v1846, 5
        %v1849 = vsel %vm1705, %v1844, %v1848
        %v1851 = vshrl.u32 %v1320, 16
        %v1853 = vrot.slane %v1851, 4
        %v1854 = vshll.u32 %v1320, 16
        %v1856 = vrot.slane %v1854, 5
        %v1857 = vor.u32 %v1853, %v1856
        %v1858 = vrot.slane %v1857, 4
        %v1860 = vshll.u32 %v1321, 16
        %v1862 = vrot.slane %v1860, 5
        %v1863 = vsel %vm1705, %v1858, %v1862
        %v1864 = vshrl.u32 %v1321, 16
        %v1866 = vrot.slane %v1864, 4
        %v1867 = vor.u32 %v1866, %v1862
        %v1868 = vrot.slane %v1867, 4
        %v1870 = vshll.u32 %v1322, 16
        %v1872 = vrot.slane %v1870, 5
        %v1873 = vsel %vm1705, %v1868, %v1872
        %v1875 = vshrl.u32 %v1323, 16
        %v1877 = vrot.slane %v1875, 4
        %v1878 = vshll.u32 %v1323, 16
        %v1880 = vrot.slane %v1878, 5
        %v1881 = vor.u32 %v1877, %v1880
        %v1882 = vrot.slane %v1881, 4
        %v1884 = vshll.u32 %v1324, 16
        %v1886 = vrot.slane %v1884, 5
        %v1887 = vsel %vm1705, %v1882, %v1886
        %v1888 = vshrl.u32 %v1324, 16
        %v1890 = vrot.slane %v1888, 4
        %v1891 = vor.u32 %v1890, %v1886
        %v1892 = vrot.slane %v1891, 4
        %v1894 = vshll.u32 %v1325, 16
        %v1896 = vrot.slane %v1894, 5
        %v1897 = vsel %vm1705, %v1892, %v1896
        %v1899 = vshrl.u32 %v1326, 16
        %v1901 = vrot.slane %v1899, 4
        %v1902 = vshll.u32 %v1326, 16
        %v1904 = vrot.slane %v1902, 5
        %v1905 = vor.u32 %v1901, %v1904
        %v1906 = vrot.slane %v1905, 4
        %v1908 = vshll.u32 %v1327, 16
        %v1910 = vrot.slane %v1908, 5
        %v1911 = vsel %vm1705, %v1906, %v1910
        %v1912 = vshrl.u32 %v1327, 16
        %v1914 = vrot.slane %v1912, 4
        %v1915 = vor.u32 %v1914, %v1910
        %v1916 = vrot.slane %v1915, 4
        %v1918 = vshll.u32 %v1328, 16
        %v1920 = vrot.slane %v1918, 5
        %v1921 = vsel %vm1705, %v1916, %v1920
        %v1923 = vshrl.u32 %v1329, 16
        %v1925 = vrot.slane %v1923, 4
        %v1926 = vshll.u32 %v1329, 16
        %v1928 = vrot.slane %v1926, 5
        %v1929 = vor.u32 %v1925, %v1928
        %v1930 = vrot.slane %v1929, 4
        %v1932 = vshll.u32 %v1330, 16
        %v1934 = vrot.slane %v1932, 5
        %v1935 = vsel %vm1705, %v1930, %v1934
        %v1936 = vshrl.u32 %v1330, 16
        %v1938 = vrot.slane %v1936, 4
        %v1939 = vor.u32 %v1938, %v1934
        %v1940 = vrot.slane %v1939, 4
        %v1942 = vshll.u32 %v1331, 16
        %v1944 = vrot.slane %v1942, 5
        %v1945 = vsel %vm1705, %v1940, %v1944
        %v1947 = vshrl.u32 %v1332, 16
        %v1949 = vrot.slane %v1947, 4
        %v1950 = vshll.u32 %v1332, 16
        %v1952 = vrot.slane %v1950, 5
        %v1953 = vor.u32 %v1949, %v1952
        %v1954 = vrot.slane %v1953, 4
        %v1956 = vshll.u32 %v1333, 16
        %v1958 = vrot.slane %v1956, 5
        %v1959 = vsel %vm1705, %v1954, %v1958
        %v1960 = vshrl.u32 %v1333, 16
        %v1962 = vrot.slane %v1960, 4
        %v1963 = vor.u32 %v1962, %v1958
        %v1964 = vrot.slane %v1963, 4
        %v1966 = vshll.u32 %v1334, 16
        %v1968 = vrot.slane %v1966, 5
        %v1969 = vsel %vm1705, %v1964, %v1968
        %v1971 = vshrl.u32 %v1335, 16
        %v1973 = vrot.slane %v1971, 4
        %v1974 = vshll.u32 %v1335, 16
        %v1976 = vrot.slane %v1974, 5
        %v1977 = vor.u32 %v1973, %v1976
        %v1978 = vrot.slane %v1977, 4
        %v1980 = vshll.u32 %v1336, 16
        %v1982 = vrot.slane %v1980, 5
        %v1983 = vsel %vm1705, %v1978, %v1982
        %v1984 = vshrl.u32 %v1336, 16
        %v1986 = vrot.slane %v1984, 4
        %v1987 = vor.u32 %v1986, %v1982
        %v1988 = vrot.slane %v1987, 4
        %v1990 = vshll.u32 %v1337, 16
        %v1992 = vrot.slane %v1990, 5
        %v1993 = vsel %vm1705, %v1988, %v1992
        %v1995 = vshrl.u32 %v1338, 16
        %v1997 = vrot.slane %v1995, 4
        %v1998 = vshll.u32 %v1338, 16
        %v2000 = vrot.slane %v1998, 5
        %v2001 = vor.u32 %v1997, %v2000
        %v2002 = vrot.slane %v2001, 4
        %v2004 = vshll.u32 %v1339, 16
        %v2006 = vrot.slane %v2004, 5
        %v2007 = vsel %vm1705, %v2002, %v2006
        %v2008 = vshrl.u32 %v1339, 16
        %v2010 = vrot.slane %v2008, 4
        %v2011 = vor.u32 %v2010, %v2006
        %v2012 = vrot.slane %v2011, 4
        %v2014 = vshll.u32 %v1340, 16
        %v2016 = vrot.slane %v2014, 5
        %v2017 = vsel %vm1705, %v2012, %v2016
        %v2019 = vshrl.u32 %v1341, 16
        %v2021 = vrot.slane %v2019, 4
        %v2022 = vshll.u32 %v1341, 16
        %v2024 = vrot.slane %v2022, 5
        %v2025 = vor.u32 %v2021, %v2024
        %v2026 = vrot.slane %v2025, 4
        %v2028 = vshll.u32 %v1342, 16
        %v2030 = vrot.slane %v2028, 5
        %v2031 = vsel %vm1705, %v2026, %v2030
        %v2032 = vshrl.u32 %v1342, 16
        %v2034 = vrot.slane %v2032, 4
        %v2035 = vor.u32 %v2034, %v2030
        %v2036 = vrot.slane %v2035, 4
        %v2038 = vshll.u32 %v1343, 16
        %v2040 = vrot.slane %v2038, 5
        %v2041 = vsel %vm1705, %v2036, %v2040
        %v2043 = vshrl.u32 %v1344, 16
        %v2045 = vrot.slane %v2043, 4
        %v2046 = vshll.u32 %v1344, 16
        %v2048 = vrot.slane %v2046, 5
        %v2049 = vor.u32 %v2045, %v2048
        %v2050 = vrot.slane %v2049, 4
        %v2052 = vshll.u32 %v1345, 16
        %v2054 = vrot.slane %v2052, 5
        %v2055 = vsel %vm1705, %v2050, %v2054
        %v2056 = vshrl.u32 %v1345, 16
        %v2058 = vrot.slane %v2056, 4
        %v2059 = vor.u32 %v2058, %v2054
        %v2060 = vrot.slane %v2059, 4
        %v2062 = vshll.u32 %v1346, 16
        %v2064 = vrot.slane %v2062, 5
        %v2065 = vsel %vm1705, %v2060, %v2064
        %v2067 = vshrl.u32 %v1347, 16
        %v2069 = vrot.slane %v2067, 4
        %v2070 = vshll.u32 %v1347, 16
        %v2072 = vrot.slane %v2070, 5
        %v2073 = vor.u32 %v2069, %v2072
        %v2074 = vrot.slane %v2073, 4
        %v2076 = vshll.u32 %v1348, 16
        %v2078 = vrot.slane %v2076, 5
        %v2079 = vsel %vm1705, %v2074, %v2078
        %v2080 = vshrl.u32 %v1348, 16
        %v2082 = vrot.slane %v2080, 4
        %v2083 = vor.u32 %v2082, %v2078
        %v2084 = vrot.slane %v2083, 4
        %v2086 = vshll.u32 %v1349, 16
        %v2088 = vrot.slane %v2086, 5
        %v2089 = vsel %vm1705, %v2084, %v2088
        %s2090 = scalar_lea.vmem [#allocation9], 64
        %v2091 = vld [vmem:[%s2090] sm:$0xf]
        %v2092 = vld [vmem:[%s2090 + $0x4] sm:$0xf]
        %v2093 = vld [vmem:[%s2090 + $0x8] sm:$0xf]
        %v2094 = vld [vmem:[%s2090 + $0xc] sm:$0xf]
        %v2095 = vld [vmem:[%s2090 + $0x10] sm:$0xf]
        %v2096 = vld [vmem:[%s2090 + $0x14] sm:$0xf]
        %v2097 = vld [vmem:[%s2090 + $0x18] sm:$0xf]
        %v2098 = vld [vmem:[%s2090 + $0x1c] sm:$0xf]
        %v2099 = vld [vmem:[%s2090 + $0x20] sm:$0xf]
        %v2100 = vld [vmem:[%s2090 + $0x24] sm:$0xf]
        %v2101 = vld [vmem:[%s2090 + $0x28] sm:$0xf]
        %v2102 = vld [vmem:[%s2090 + $0x2c] sm:$0xf]
        %v2103 = vld [vmem:[%s2090 + $0x30] sm:$0xf]
        %v2104 = vld [vmem:[%s2090 + $0x34] sm:$0xf]
        %v2105 = vld [vmem:[%s2090 + $0x38] sm:$0xf]
        %v2106 = vld [vmem:[%s2090 + $0x3c] sm:$0xf]
        %v2107 = vunpack.c.l.b16 %v1719
        %v2108 = vunpack.c.l.b16 %v1729
        %v2109 = vunpack.c.l.b16 %v1743
        %v2110 = vunpack.c.l.b16 %v1753
        %v2111 = vunpack.c.l.b16 %v1767
        %v2112 = vunpack.c.l.b16 %v1777
        %v2113 = vunpack.c.l.b16 %v1791
        %v2114 = vunpack.c.l.b16 %v1801
        %v2115 = vunpack.c.l.b16 %v1815
        %v2116 = vunpack.c.l.b16 %v1825
        %v2117 = vunpack.c.l.b16 %v1839
        %v2118 = vunpack.c.l.b16 %v1849
        %v2119 = vunpack.c.l.b16 %v1863
        %v2120 = vunpack.c.l.b16 %v1873
        %v2121 = vunpack.c.l.b16 %v1887
        %v2122 = vunpack.c.l.b16 %v1897
        %v2123 = vunpack.c.l.b16 %v1911
        %v2124 = vunpack.c.l.b16 %v1921
        %v2125 = vunpack.c.l.b16 %v1935
        %v2126 = vunpack.c.l.b16 %v1945
        %v2127 = vunpack.c.l.b16 %v1959
        %v2128 = vunpack.c.l.b16 %v1969
        %v2129 = vunpack.c.l.b16 %v1983
        %v2130 = vunpack.c.l.b16 %v1993
        %v2131 = vunpack.c.l.b16 %v2007
        %v2132 = vunpack.c.l.b16 %v2017
        %v2133 = vunpack.c.l.b16 %v2031
        %v2134 = vunpack.c.l.b16 %v2041
        %v2135 = vunpack.c.l.b16 %v2055
        %v2136 = vunpack.c.l.b16 %v2065
        %v2137 = vunpack.c.l.b16 %v2079
        %v2138 = vunpack.c.l.b16 %v2089
        %v2139 = vpack.c.b16 %v2108, %v2107
        %v2140 = vpack.c.b16 %v2110, %v2109
        %v2141 = vpack.c.b16 %v2112, %v2111
        %v2142 = vpack.c.b16 %v2114, %v2113
        %v2143 = vpack.c.b16 %v2116, %v2115
        %v2144 = vpack.c.b16 %v2118, %v2117
        %v2145 = vpack.c.b16 %v2120, %v2119
        %v2146 = vpack.c.b16 %v2122, %v2121
        %v2147 = vpack.c.b16 %v2124, %v2123
        %v2148 = vpack.c.b16 %v2126, %v2125
        %v2149 = vpack.c.b16 %v2128, %v2127
        %v2150 = vpack.c.b16 %v2130, %v2129
        %v2151 = vpack.c.b16 %v2132, %v2131
        %v2152 = vpack.c.b16 %v2134, %v2133
        %v2153 = vpack.c.b16 %v2136, %v2135
        %v2154 = vpack.c.b16 %v2138, %v2137
        %v2187 = vunpack.c.l.b16 %v2091
        %v2188 = vunpack.c.l.b16 %v2092
        %v2189 = vunpack.c.l.b16 %v2093
        %v2190 = vunpack.c.l.b16 %v2094
        %v2191 = vunpack.c.l.b16 %v2095
        %v2192 = vunpack.c.l.b16 %v2096
        %v2193 = vunpack.c.l.b16 %v2097
        %v2194 = vunpack.c.l.b16 %v2098
        %v2195 = vunpack.c.l.b16 %v2099
        %v2196 = vunpack.c.l.b16 %v2100
        %v2197 = vunpack.c.l.b16 %v2101
        %v2198 = vunpack.c.l.b16 %v2102
        %v2199 = vunpack.c.l.b16 %v2103
        %v2200 = vunpack.c.l.b16 %v2104
        %v2201 = vunpack.c.l.b16 %v2105
        %v2202 = vunpack.c.l.b16 %v2106
        %v2203 = vpack.c.b16 %v2188, %v2187
        %v2204 = vpack.c.b16 %v2190, %v2189
        %v2205 = vpack.c.b16 %v2192, %v2191
        %v2206 = vpack.c.b16 %v2194, %v2193
        %v2207 = vpack.c.b16 %v2196, %v2195
        %v2208 = vpack.c.b16 %v2198, %v2197
        %v2209 = vpack.c.b16 %v2200, %v2199
        %v2210 = vpack.c.b16 %v2202, %v2201
        %2219 = vmatprep.subr.bf16.mxu0 0
        %2220 = vmatpush1.bf16.msra.mxu0 %v2203
        %2221 = vmatprep.subr.bf16.mxu0 0
        %2222 = vmatpush1.bf16.msra.mxu0 %v2204
        %2223 = vmatprep.subr.bf16.mxu0 0
        %2224 = vmatpush1.bf16.msra.mxu0 %v2205
        %2225 = vmatprep.subr.bf16.mxu0 0
        %2226 = vmatpush1.bf16.msra.mxu0 %v2206
        %2227 = vmatprep.subr.bf16.mxu0 0
        %2228 = vmatpush1.bf16.msra.mxu0 %v2207
        %2229 = vmatprep.subr.bf16.mxu0 0
        %2230 = vmatpush1.bf16.msra.mxu0 %v2208
        %2231 = vmatprep.subr.bf16.mxu0 0
        %2232 = vmatpush1.bf16.msra.mxu0 %v2209
        %2233 = vmatprep.subr.bf16.mxu0 0
        %2234 = vmatpush1.bf16.msra.mxu0 %v2210
        %2235 = vmatprep.subr.bf16.mxu0 0
        %2236 = vmatpush1.bf16.msra.mxu0 0
        %2237 = vmatprep.subr.bf16.mxu0 0
        %2238 = vmatpush1.bf16.msra.mxu0 0
        %2239 = vmatprep.subr.bf16.mxu0 0
        %2240 = vmatpush1.bf16.msra.mxu0 0
        %2241 = vmatprep.subr.bf16.mxu0 0
        %2242 = vmatpush1.bf16.msra.mxu0 0
        %2243 = vmatprep.subr.bf16.mxu0 0
        %2244 = vmatpush1.bf16.msra.mxu0 0
        %2245 = vmatprep.subr.bf16.mxu0 0
        %2246 = vmatpush1.bf16.msra.mxu0 0
        %2247 = vmatprep.subr.bf16.mxu0 0
        %2248 = vmatpush1.bf16.msra.mxu0 0
        %2249 = vmatprep.subr.bf16.mxu0 0
        %2250 = vmatpush1.bf16.msra.mxu0 0
        %2251 = vmatprep.mubr.bf16.mxu0 0
        %2252 = vmatmul.mubr.bf16.gmra.mrb[0].mxu0 %v2139
        %v2253 = vpop.f32.mrb[0].mxu0
        %v2254 = vadd.f32 0.0, %v2253
        %v2255 = vpop.f32.mrb[0].mxu0
        %v2256 = vpop.f32.mrb[0].mxu0
        %v2257 = vadd.f32 0.0, %v2256
        %v2258 = vpop.f32.mrb[0].mxu0
        %2259 = vmatprep.mubr.bf16.mxu0 0
        %2260 = vmatmul.mubr.bf16.gmra.mrb[0].mxu0 %v2140
        %v2261 = vpop.f32.mrb[0].mxu0
        %v2262 = vadd.f32 0.0, %v2261
        %v2263 = vpop.f32.mrb[0].mxu0
        %v2264 = vpop.f32.mrb[0].mxu0
        %v2265 = vadd.f32 0.0, %v2264
        %v2266 = vpop.f32.mrb[0].mxu0
        %2267 = vmatprep.mubr.bf16.mxu0 0
        %2268 = vmatmul.mubr.bf16.gmra.mrb[0].mxu0 %v2141
        %v2269 = vpop.f32.mrb[0].mxu0
        %v2270 = vadd.f32 0.0, %v2269
        %v2271 = vpop.f32.mrb[0].mxu0
        %v2272 = vpop.f32.mrb[0].mxu0
        %v2273 = vadd.f32 0.0, %v2272
        %v2274 = vpop.f32.mrb[0].mxu0
        %2275 = vmatprep.mubr.bf16.mxu0 0
        %2276 = vmatmul.mubr.bf16.gmra.mrb[0].mxu0 %v2142
        %v2277 = vpop.f32.mrb[0].mxu0
        %v2278 = vadd.f32 0.0, %v2277
        %v2279 = vpop.f32.mrb[0].mxu0
        %v2280 = vpop.f32.mrb[0].mxu0
        %v2281 = vadd.f32 0.0, %v2280
        %v2282 = vpop.f32.mrb[0].mxu0
        %2283 = vmatprep.mubr.bf16.mxu0 0
        %2284 = vmatmul.mubr.bf16.gmra.mrb[0].mxu0 %v2143
        %v2285 = vpop.f32.mrb[0].mxu0
        %v2286 = vadd.f32 0.0, %v2285
        %v2287 = vpop.f32.mrb[0].mxu0
        %v2288 = vpop.f32.mrb[0].mxu0
        %v2289 = vadd.f32 0.0, %v2288
        %v2290 = vpop.f32.mrb[0].mxu0
        %2291 = vmatprep.mubr.bf16.mxu0 0
        %2292 = vmatmul.mubr.bf16.gmra.mrb[0].mxu0 %v2144
        %v2293 = vpop.f32.mrb[0].mxu0
        %v2294 = vadd.f32 0.0, %v2293
        %v2295 = vpop.f32.mrb[0].mxu0
        %v2296 = vpop.f32.mrb[0].mxu0
        %v2297 = vadd.f32 0.0, %v2296
        %v2298 = vpop.f32.mrb[0].mxu0
        %2299 = vmatprep.mubr.bf16.mxu0 0
        %2300 = vmatmul.mubr.bf16.gmra.mrb[0].mxu0 %v2145
        %v2301 = vpop.f32.mrb[0].mxu0
        %v2302 = vadd.f32 0.0, %v2301
        %v2303 = vpop.f32.mrb[0].mxu0
        %v2304 = vpop.f32.mrb[0].mxu0
        %v2305 = vadd.f32 0.0, %v2304
        %v2306 = vpop.f32.mrb[0].mxu0
        %2307 = vmatprep.mubr.bf16.mxu0 0
        %2308 = vmatmul.mubr.bf16.gmra.mrb[0].mxu0 %v2146
        %v2309 = vpop.f32.mrb[0].mxu0
        %v2310 = vadd.f32 0.0, %v2309
        %v2311 = vpop.f32.mrb[0].mxu0
        %v2312 = vpop.f32.mrb[0].mxu0
        %v2313 = vadd.f32 0.0, %v2312
        %v2314 = vpop.f32.mrb[0].mxu0
        %2315 = vmatprep.mubr.bf16.mxu0 0
        %2316 = vmatmul.mubr.bf16.gmra.mrb[0].mxu0 %v2147
        %v2317 = vpop.f32.mrb[0].mxu0
        %v2318 = vadd.f32 0.0, %v2317
        %v2319 = vpop.f32.mrb[0].mxu0
        %v2320 = vpop.f32.mrb[0].mxu0
        %v2321 = vadd.f32 0.0, %v2320
        %v2322 = vpop.f32.mrb[0].mxu0
        %2323 = vmatprep.mubr.bf16.mxu0 0
        %2324 = vmatmul.mubr.bf16.gmra.mrb[0].mxu0 %v2148
        %v2325 = vpop.f32.mrb[0].mxu0
        %v2326 = vadd.f32 0.0, %v2325
        %v2327 = vpop.f32.mrb[0].mxu0
        %v2328 = vpop.f32.mrb[0].mxu0
        %v2329 = vadd.f32 0.0, %v2328
        %v2330 = vpop.f32.mrb[0].mxu0
        %2331 = vmatprep.mubr.bf16.mxu0 0
        %2332 = vmatmul.mubr.bf16.gmra.mrb[0].mxu0 %v2149
        %v2333 = vpop.f32.mrb[0].mxu0
        %v2334 = vadd.f32 0.0, %v2333
        %v2335 = vpop.f32.mrb[0].mxu0
        %v2336 = vpop.f32.mrb[0].mxu0
        %v2337 = vadd.f32 0.0, %v2336
        %v2338 = vpop.f32.mrb[0].mxu0
        %2339 = vmatprep.mubr.bf16.mxu0 0
        %2340 = vmatmul.mubr.bf16.gmra.mrb[0].mxu0 %v2150
        %v2341 = vpop.f32.mrb[0].mxu0
        %v2342 = vadd.f32 0.0, %v2341
        %v2343 = vpop.f32.mrb[0].mxu0
        %v2344 = vpop.f32.mrb[0].mxu0
        %v2345 = vadd.f32 0.0, %v2344
        %v2346 = vpop.f32.mrb[0].mxu0
        %2347 = vmatprep.mubr.bf16.mxu0 0
        %2348 = vmatmul.mubr.bf16.gmra.mrb[0].mxu0 %v2151
        %v2349 = vpop.f32.mrb[0].mxu0
        %v2350 = vadd.f32 0.0, %v2349
        %v2351 = vpop.f32.mrb[0].mxu0
        %v2352 = vpop.f32.mrb[0].mxu0
        %v2353 = vadd.f32 0.0, %v2352
        %v2354 = vpop.f32.mrb[0].mxu0
        %2355 = vmatprep.mubr.bf16.mxu0 0
        %2356 = vmatmul.mubr.bf16.gmra.mrb[0].mxu0 %v2152
        %v2357 = vpop.f32.mrb[0].mxu0
        %v2358 = vadd.f32 0.0, %v2357
        %v2359 = vpop.f32.mrb[0].mxu0
        %v2360 = vpop.f32.mrb[0].mxu0
        %v2361 = vadd.f32 0.0, %v2360
        %v2362 = vpop.f32.mrb[0].mxu0
        %2363 = vmatprep.mubr.bf16.mxu0 0
        %2364 = vmatmul.mubr.bf16.gmra.mrb[0].mxu0 %v2153
        %v2365 = vpop.f32.mrb[0].mxu0
        %v2366 = vadd.f32 0.0, %v2365
        %v2367 = vpop.f32.mrb[0].mxu0
        %v2368 = vpop.f32.mrb[0].mxu0
        %v2369 = vadd.f32 0.0, %v2368
        %v2370 = vpop.f32.mrb[0].mxu0
        %2371 = vmatprep.mubr.bf16.mxu0 0
        %2372 = vmatmul.mubr.bf16.gmra.mrb[0].mxu0 %v2154
        %v2373 = vpop.f32.mrb[0].mxu0
        %v2374 = vadd.f32 0.0, %v2373
        %v2375 = vpop.f32.mrb[0].mxu0
        %v2376 = vpop.f32.mrb[0].mxu0
        %v2377 = vadd.f32 0.0, %v2376
        %v2378 = vpop.f32.mrb[0].mxu0
        %2379 = vdwg.mxu0
        %v2380 = vld [vmem:[#allocation3] sm:$0xff]
        %v2381 = vld [vmem:[#allocation3 + $0x8] sm:$0xff]
        %v2382 = vld [vmem:[#allocation3 + $0x10] sm:$0xff]
        %v2383 = vld [vmem:[#allocation3 + $0x18] sm:$0xff]
        %v2384 = vld [vmem:[#allocation3 + $0x20] sm:$0xff]
        %v2385 = vld [vmem:[#allocation3 + $0x28] sm:$0xff]
        %v2386 = vld [vmem:[#allocation3 + $0x30] sm:$0xff]
        %v2387 = vld [vmem:[#allocation3 + $0x38] sm:$0xff]
        %v2388 = vld [vmem:[#allocation3 + $0x40] sm:$0xff]
        %v2389 = vld [vmem:[#allocation3 + $0x48] sm:$0xff]
        %v2390 = vld [vmem:[#allocation3 + $0x50] sm:$0xff]
        %v2391 = vld [vmem:[#allocation3 + $0x58] sm:$0xff]
        %v2392 = vld [vmem:[#allocation3 + $0x60] sm:$0xff]
        %v2393 = vld [vmem:[#allocation3 + $0x68] sm:$0xff]
        %v2394 = vld [vmem:[#allocation3 + $0x70] sm:$0xff]
        %v2395 = vld [vmem:[#allocation3 + $0x78] sm:$0xff]
        %v2396 = vld [vmem:[#allocation3 + $0x80] sm:$0xff]
        %v2397 = vld [vmem:[#allocation3 + $0x88] sm:$0xff]
        %v2398 = vld [vmem:[#allocation3 + $0x90] sm:$0xff]
        %v2399 = vld [vmem:[#allocation3 + $0x98] sm:$0xff]
        %v2400 = vld [vmem:[#allocation3 + $0xa0] sm:$0xff]
        %v2401 = vld [vmem:[#allocation3 + $0xa8] sm:$0xff]
        %v2402 = vld [vmem:[#allocation3 + $0xb0] sm:$0xff]
        %v2403 = vld [vmem:[#allocation3 + $0xb8] sm:$0xff]
        %v2404 = vld [vmem:[#allocation3 + $0xc0] sm:$0xff]
        %v2405 = vld [vmem:[#allocation3 + $0xc8] sm:$0xff]
        %v2406 = vld [vmem:[#allocation3 + $0xd0] sm:$0xff]
        %v2407 = vld [vmem:[#allocation3 + $0xd8] sm:$0xff]
        %v2408 = vld [vmem:[#allocation3 + $0xe0] sm:$0xff]
        %v2409 = vld [vmem:[#allocation3 + $0xe8] sm:$0xff]
        %v2410 = vld [vmem:[#allocation3 + $0xf0] sm:$0xff]
        %v2411 = vld [vmem:[#allocation3 + $0xf8] sm:$0xff]
        %v2412 = vadd.f32 %v2380, %v2254
        %v2413 = vadd.f32 %v2381, %v2257
        %v2414 = vadd.f32 %v2382, %v2262
        %v2415 = vadd.f32 %v2383, %v2265
        %v2416 = vadd.f32 %v2384, %v2270
        %v2417 = vadd.f32 %v2385, %v2273
        %v2418 = vadd.f32 %v2386, %v2278
        %v2419 = vadd.f32 %v2387, %v2281
        %v2420 = vadd.f32 %v2388, %v2286
        %v2421 = vadd.f32 %v2389, %v2289
        %v2422 = vadd.f32 %v2390, %v2294
        %v2423 = vadd.f32 %v2391, %v2297
        %v2424 = vadd.f32 %v2392, %v2302
        %v2425 = vadd.f32 %v2393, %v2305
        %v2426 = vadd.f32 %v2394, %v2310
        %v2427 = vadd.f32 %v2395, %v2313
        %v2428 = vadd.f32 %v2396, %v2318
        %v2429 = vadd.f32 %v2397, %v2321
        %v2430 = vadd.f32 %v2398, %v2326
        %v2431 = vadd.f32 %v2399, %v2329
        %v2432 = vadd.f32 %v2400, %v2334
        %v2433 = vadd.f32 %v2401, %v2337
        %v2434 = vadd.f32 %v2402, %v2342
        %v2435 = vadd.f32 %v2403, %v2345
        %v2436 = vadd.f32 %v2404, %v2350
        %v2437 = vadd.f32 %v2405, %v2353
        %v2438 = vadd.f32 %v2406, %v2358
        %v2439 = vadd.f32 %v2407, %v2361
        %v2440 = vadd.f32 %v2408, %v2366
        %v2441 = vadd.f32 %v2409, %v2369
        %v2442 = vadd.f32 %v2410, %v2374
        %v2443 = vadd.f32 %v2411, %v2377
        %2444 = vst [vmem:[#allocation3] sm:$0xff] %v2412
        %2445 = vst [vmem:[#allocation3 + $0x8] sm:$0xff] %v2413
        %2446 = vst [vmem:[#allocation3 + $0x10] sm:$0xff] %v2414
        %2447 = vst [vmem:[#allocation3 + $0x18] sm:$0xff] %v2415
        %2448 = vst [vmem:[#allocation3 + $0x20] sm:$0xff] %v2416
        %2449 = vst [vmem:[#allocation3 + $0x28] sm:$0xff] %v2417
        %2450 = vst [vmem:[#allocation3 + $0x30] sm:$0xff] %v2418
        %2451 = vst [vmem:[#allocation3 + $0x38] sm:$0xff] %v2419
        %2452 = vst [vmem:[#allocation3 + $0x40] sm:$0xff] %v2420
        %2453 = vst [vmem:[#allocation3 + $0x48] sm:$0xff] %v2421
        %2454 = vst [vmem:[#allocation3 + $0x50] sm:$0xff] %v2422
        %2455 = vst [vmem:[#allocation3 + $0x58] sm:$0xff] %v2423
        %2456 = vst [vmem:[#allocation3 + $0x60] sm:$0xff] %v2424
        %2457 = vst [vmem:[#allocation3 + $0x68] sm:$0xff] %v2425
        %2458 = vst [vmem:[#allocation3 + $0x70] sm:$0xff] %v2426
        %2459 = vst [vmem:[#allocation3 + $0x78] sm:$0xff] %v2427
        %2460 = vst [vmem:[#allocation3 + $0x80] sm:$0xff] %v2428
        %2461 = vst [vmem:[#allocation3 + $0x88] sm:$0xff] %v2429
        %2462 = vst [vmem:[#allocation3 + $0x90] sm:$0xff] %v2430
        %2463 = vst [vmem:[#allocation3 + $0x98] sm:$0xff] %v2431
        %2464 = vst [vmem:[#allocation3 + $0xa0] sm:$0xff] %v2432
        %2465 = vst [vmem:[#allocation3 + $0xa8] sm:$0xff] %v2433
        %2466 = vst [vmem:[#allocation3 + $0xb0] sm:$0xff] %v2434
        %2467 = vst [vmem:[#allocation3 + $0xb8] sm:$0xff] %v2435
        %2468 = vst [vmem:[#allocation3 + $0xc0] sm:$0xff] %v2436
        %2469 = vst [vmem:[#allocation3 + $0xc8] sm:$0xff] %v2437
        %2470 = vst [vmem:[#allocation3 + $0xd0] sm:$0xff] %v2438
        %2471 = vst [vmem:[#allocation3 + $0xd8] sm:$0xff] %v2439
        %2472 = vst [vmem:[#allocation3 + $0xe0] sm:$0xff] %v2440
        %2473 = vst [vmem:[#allocation3 + $0xe8] sm:$0xff] %v2441
        %2474 = vst [vmem:[#allocation3 + $0xf0] sm:$0xff] %v2442
        %2475 = vst [vmem:[#allocation3 + $0xf8] sm:$0xff] %v2443
        %vm2492 = vcmask 1042432
        %vm2493 = vcmask 1046532
        %vm2494 = vmor %vm2492, %vm2493
        %v2495 = vrot.slane %v1302, 5
        %v2496 = vrot.slane %v2495, 4
        %v2497 = vrot.slane %v1303, 5
        %v2498 = vsel %vm2494, %v2496, %v2497
        %v2499 = vrot.slane %v2497, 4
        %v2500 = vrot.slane %v1304, 5
        %v2501 = vsel %vm2494, %v2499, %v2500
        %v2502 = vrot.slane %v1305, 5
        %v2503 = vrot.slane %v2502, 4
        %v2504 = vrot.slane %v1306, 5
        %v2505 = vsel %vm2494, %v2503, %v2504
        %v2506 = vrot.slane %v2504, 4
        %v2507 = vrot.slane %v1307, 5
        %v2508 = vsel %vm2494, %v2506, %v2507
        %v2509 = vrot.slane %v1308, 5
        %v2510 = vrot.slane %v2509, 4
        %v2511 = vrot.slane %v1309, 5
        %v2512 = vsel %vm2494, %v2510, %v2511
        %v2513 = vrot.slane %v2511, 4
        %v2514 = vrot.slane %v1310, 5
        %v2515 = vsel %vm2494, %v2513, %v2514
        %v2516 = vrot.slane %v1311, 5
        %v2517 = vrot.slane %v2516, 4
        %v2518 = vrot.slane %v1312, 5
        %v2519 = vsel %vm2494, %v2517, %v2518
        %v2520 = vrot.slane %v2518, 4
        %v2521 = vrot.slane %v1313, 5
        %v2522 = vsel %vm2494, %v2520, %v2521
        %v2523 = vrot.slane %v1314, 5
        %v2524 = vrot.slane %v2523, 4
        %v2525 = vrot.slane %v1315, 5
        %v2526 = vsel %vm2494, %v2524, %v2525
        %v2527 = vrot.slane %v2525, 4
        %v2528 = vrot.slane %v1316, 5
        %v2529 = vsel %vm2494, %v2527, %v2528
        %v2530 = vrot.slane %v1317, 5
        %v2531 = vrot.slane %v2530, 4
        %v2532 = vrot.slane %v1318, 5
        %v2533 = vsel %vm2494, %v2531, %v2532
        %v2534 = vrot.slane %v2532, 4
        %v2535 = vrot.slane %v1319, 5
        %v2536 = vsel %vm2494, %v2534, %v2535
        %v2537 = vrot.slane %v1320, 5
        %v2538 = vrot.slane %v2537, 4
        %v2539 = vrot.slane %v1321, 5
        %v2540 = vsel %vm2494, %v2538, %v2539
        %v2541 = vrot.slane %v2539, 4
        %v2542 = vrot.slane %v1322, 5
        %v2543 = vsel %vm2494, %v2541, %v2542
        %v2544 = vrot.slane %v1323, 5
        %v2545 = vrot.slane %v2544, 4
        %v2546 = vrot.slane %v1324, 5
        %v2547 = vsel %vm2494, %v2545, %v2546
        %v2548 = vrot.slane %v2546, 4
        %v2549 = vrot.slane %v1325, 5
        %v2550 = vsel %vm2494, %v2548, %v2549
        %v2551 = vrot.slane %v1326, 5
        %v2552 = vrot.slane %v2551, 4
        %v2553 = vrot.slane %v1327, 5
        %v2554 = vsel %vm2494, %v2552, %v2553
        %v2555 = vrot.slane %v2553, 4
        %v2556 = vrot.slane %v1328, 5
        %v2557 = vsel %vm2494, %v2555, %v2556
        %v2558 = vrot.slane %v1329, 5
        %v2559 = vrot.slane %v2558, 4
        %v2560 = vrot.slane %v1330, 5
        %v2561 = vsel %vm2494, %v2559, %v2560
        %v2562 = vrot.slane %v2560, 4
        %v2563 = vrot.slane %v1331, 5
        %v2564 = vsel %vm2494, %v2562, %v2563
        %v2565 = vrot.slane %v1332, 5
        %v2566 = vrot.slane %v2565, 4
        %v2567 = vrot.slane %v1333, 5
        %v2568 = vsel %vm2494, %v2566, %v2567
        %v2569 = vrot.slane %v2567, 4
        %v2570 = vrot.slane %v1334, 5
        %v2571 = vsel %vm2494, %v2569, %v2570
        %v2572 = vrot.slane %v1335, 5
        %v2573 = vrot.slane %v2572, 4
        %v2574 = vrot.slane %v1336, 5
        %v2575 = vsel %vm2494, %v2573, %v2574
        %v2576 = vrot.slane %v2574, 4
        %v2577 = vrot.slane %v1337, 5
        %v2578 = vsel %vm2494, %v2576, %v2577
        %v2579 = vrot.slane %v1338, 5
        %v2580 = vrot.slane %v2579, 4
        %v2581 = vrot.slane %v1339, 5
        %v2582 = vsel %vm2494, %v2580, %v2581
        %v2583 = vrot.slane %v2581, 4
        %v2584 = vrot.slane %v1340, 5
        %v2585 = vsel %vm2494, %v2583, %v2584
        %v2586 = vrot.slane %v1341, 5
        %v2587 = vrot.slane %v2586, 4
        %v2588 = vrot.slane %v1342, 5
        %v2589 = vsel %vm2494, %v2587, %v2588
        %v2590 = vrot.slane %v2588, 4
        %v2591 = vrot.slane %v1343, 5
        %v2592 = vsel %vm2494, %v2590, %v2591
        %v2593 = vrot.slane %v1344, 5
        %v2594 = vrot.slane %v2593, 4
        %v2595 = vrot.slane %v1345, 5
        %v2596 = vsel %vm2494, %v2594, %v2595
        %v2597 = vrot.slane %v2595, 4
        %v2598 = vrot.slane %v1346, 5
        %v2599 = vsel %vm2494, %v2597, %v2598
        %v2600 = vrot.slane %v1347, 5
        %v2601 = vrot.slane %v2600, 4
        %v2602 = vrot.slane %v1348, 5
        %v2603 = vsel %vm2494, %v2601, %v2602
        %v2604 = vrot.slane %v2602, 4
        %v2605 = vrot.slane %v1349, 5
        %v2606 = vsel %vm2494, %v2604, %v2605
        %s2607 = scalar_lea.vmem [#allocation9], 128
        %v2608 = vld [vmem:[%s2607] sm:$0xf]
        %v2609 = vld [vmem:[%s2607 + $0x4] sm:$0xf]
        %v2610 = vld [vmem:[%s2607 + $0x8] sm:$0xf]
        %v2611 = vld [vmem:[%s2607 + $0xc] sm:$0xf]
        %v2612 = vld [vmem:[%s2607 + $0x10] sm:$0xf]
        %v2613 = vld [vmem:[%s2607 + $0x14] sm:$0xf]
        %v2614 = vld [vmem:[%s2607 + $0x18] sm:$0xf]
        %v2615 = vld [vmem:[%s2607 + $0x1c] sm:$0xf]
        %v2616 = vld [vmem:[%s2607 + $0x20] sm:$0xf]
        %v2617 = vld [vmem:[%s2607 + $0x24] sm:$0xf]
        %v2618 = vld [vmem:[%s2607 + $0x28] sm:$0xf]
        %v2619 = vld [vmem:[%s2607 + $0x2c] sm:$0xf]
        %v2620 = vld [vmem:[%s2607 + $0x30] sm:$0xf]
        %v2621 = vld [vmem:[%s2607 + $0x34] sm:$0xf]
        %v2622 = vld [vmem:[%s2607 + $0x38] sm:$0xf]
        %v2623 = vld [vmem:[%s2607 + $0x3c] sm:$0xf]
        %v2624 = vunpack.c.l.b16 %v2498
        %v2625 = vunpack.c.l.b16 %v2501
        %v2626 = vunpack.c.l.b16 %v2505
        %v2627 = vunpack.c.l.b16 %v2508
        %v2628 = vunpack.c.l.b16 %v2512
        %v2629 = vunpack.c.l.b16 %v2515
        %v2630 = vunpack.c.l.b16 %v2519
        %v2631 = vunpack.c.l.b16 %v2522
        %v2632 = vunpack.c.l.b16 %v2526
        %v2633 = vunpack.c.l.b16 %v2529
        %v2634 = vunpack.c.l.b16 %v2533
        %v2635 = vunpack.c.l.b16 %v2536
        %v2636 = vunpack.c.l.b16 %v2540
        %v2637 = vunpack.c.l.b16 %v2543
        %v2638 = vunpack.c.l.b16 %v2547
        %v2639 = vunpack.c.l.b16 %v2550
        %v2640 = vunpack.c.l.b16 %v2554
        %v2641 = vunpack.c.l.b16 %v2557
        %v2642 = vunpack.c.l.b16 %v2561
        %v2643 = vunpack.c.l.b16 %v2564
        %v2644 = vunpack.c.l.b16 %v2568
        %v2645 = vunpack.c.l.b16 %v2571
        %v2646 = vunpack.c.l.b16 %v2575
        %v2647 = vunpack.c.l.b16 %v2578
        %v2648 = vunpack.c.l.b16 %v2582
        %v2649 = vunpack.c.l.b16 %v2585
        %v2650 = vunpack.c.l.b16 %v2589
        %v2651 = vunpack.c.l.b16 %v2592
        %v2652 = vunpack.c.l.b16 %v2596
        %v2653 = vunpack.c.l.b16 %v2599
        %v2654 = vunpack.c.l.b16 %v2603
        %v2655 = vunpack.c.l.b16 %v2606
        %v2656 = vpack.c.b16 %v2625, %v2624
        %v2657 = vpack.c.b16 %v2627, %v2626
        %v2658 = vpack.c.b16 %v2629, %v2628
        %v2659 = vpack.c.b16 %v2631, %v2630
        %v2660 = vpack.c.b16 %v2633, %v2632
        %v2661 = vpack.c.b16 %v2635, %v2634
        %v2662 = vpack.c.b16 %v2637, %v2636
        %v2663 = vpack.c.b16 %v2639, %v2638
        %v2664 = vpack.c.b16 %v2641, %v2640
        %v2665 = vpack.c.b16 %v2643, %v2642
        %v2666 = vpack.c.b16 %v2645, %v2644
        %v2667 = vpack.c.b16 %v2647, %v2646
        %v2668 = vpack.c.b16 %v2649, %v2648
        %v2669 = vpack.c.b16 %v2651, %v2650
        %v2670 = vpack.c.b16 %v2653, %v2652
        %v2671 = vpack.c.b16 %v2655, %v2654
        %v2704 = vunpack.c.l.b16 %v2608
        %v2705 = vunpack.c.l.b16 %v2609
        %v2706 = vunpack.c.l.b16 %v2610
        %v2707 = vunpack.c.l.b16 %v2611
        %v2708 = vunpack.c.l.b16 %v2612
        %v2709 = vunpack.c.l.b16 %v2613
        %v2710 = vunpack.c.l.b16 %v2614
        %v2711 = vunpack.c.l.b16 %v2615
        %v2712 = vunpack.c.l.b16 %v2616
        %v2713 = vunpack.c.l.b16 %v2617
        %v2714 = vunpack.c.l.b16 %v2618
        %v2715 = vunpack.c.l.b16 %v2619
        %v2716 = vunpack.c.l.b16 %v2620
        %v2717 = vunpack.c.l.b16 %v2621
        %v2718 = vunpack.c.l.b16 %v2622
        %v2719 = vunpack.c.l.b16 %v2623
        %v2720 = vpack.c.b16 %v2705, %v2704
        %v2721 = vpack.c.b16 %v2707, %v2706
        %v2722 = vpack.c.b16 %v2709, %v2708
        %v2723 = vpack.c.b16 %v2711, %v2710
        %v2724 = vpack.c.b16 %v2713, %v2712
        %v2725 = vpack.c.b16 %v2715, %v2714
        %v2726 = vpack.c.b16 %v2717, %v2716
        %v2727 = vpack.c.b16 %v2719, %v2718
        %2736 = vmatprep.subr.bf16.mxu0 0
        %2737 = vmatpush1.bf16.msra.mxu0 %v2720
        %2738 = vmatprep.subr.bf16.mxu0 0
        %2739 = vmatpush1.bf16.msra.mxu0 %v2721
        %2740 = vmatprep.subr.bf16.mxu0 0
        %2741 = vmatpush1.bf16.msra.mxu0 %v2722
        %2742 = vmatprep.subr.bf16.mxu0 0
        %2743 = vmatpush1.bf16.msra.mxu0 %v2723
        %2744 = vmatprep.subr.bf16.mxu0 0
        %2745 = vmatpush1.bf16.msra.mxu0 %v2724
        %2746 = vmatprep.subr.bf16.mxu0 0
        %2747 = vmatpush1.bf16.msra.mxu0 %v2725
        %2748 = vmatprep.subr.bf16.mxu0 0
        %2749 = vmatpush1.bf16.msra.mxu0 %v2726
        %2750 = vmatprep.subr.bf16.mxu0 0
        %2751 = vmatpush1.bf16.msra.mxu0 %v2727
        %2752 = vmatprep.subr.bf16.mxu0 0
        %2753 = vmatpush1.bf16.msra.mxu0 0
        %2754 = vmatprep.subr.bf16.mxu0 0
        %2755 = vmatpush1.bf16.msra.mxu0 0
        %2756 = vmatprep.subr.bf16.mxu0 0
        %2757 = vmatpush1.bf16.msra.mxu0 0
        %2758 = vmatprep.subr.bf16.mxu0 0
        %2759 = vmatpush1.bf16.msra.mxu0 0
        %2760 = vmatprep.subr.bf16.mxu0 0
        %2761 = vmatpush1.bf16.msra.mxu0 0
        %2762 = vmatprep.subr.bf16.mxu0 0
        %2763 = vmatpush1.bf16.msra.mxu0 0
        %2764 = vmatprep.subr.bf16.mxu0 0
        %2765 = vmatpush1.bf16.msra.mxu0 0
        %2766 = vmatprep.subr.bf16.mxu0 0
        %2767 = vmatpush1.bf16.msra.mxu0 0
        %2768 = vmatprep.mubr.bf16.mxu0 0
        %2769 = vmatmul.mubr.bf16.gmra.mrb[0].mxu0 %v2656
        %v2770 = vpop.f32.mrb[0].mxu0
        %v2771 = vadd.f32 0.0, %v2770
        %v2772 = vpop.f32.mrb[0].mxu0
        %v2773 = vpop.f32.mrb[0].mxu0
        %v2774 = vadd.f32 0.0, %v2773
        %v2775 = vpop.f32.mrb[0].mxu0
        %2776 = vmatprep.mubr.bf16.mxu0 0
        %2777 = vmatmul.mubr.bf16.gmra.mrb[0].mxu0 %v2657
        %v2778 = vpop.f32.mrb[0].mxu0
        %v2779 = vadd.f32 0.0, %v2778
        %v2780 = vpop.f32.mrb[0].mxu0
        %v2781 = vpop.f32.mrb[0].mxu0
        %v2782 = vadd.f32 0.0, %v2781
        %v2783 = vpop.f32.mrb[0].mxu0
        %2784 = vmatprep.mubr.bf16.mxu0 0
        %2785 = vmatmul.mubr.bf16.gmra.mrb[0].mxu0 %v2658
        %v2786 = vpop.f32.mrb[0].mxu0
        %v2787 = vadd.f32 0.0, %v2786
        %v2788 = vpop.f32.mrb[0].mxu0
        %v2789 = vpop.f32.mrb[0].mxu0
        %v2790 = vadd.f32 0.0, %v2789
        %v2791 = vpop.f32.mrb[0].mxu0
        %2792 = vmatprep.mubr.bf16.mxu0 0
        %2793 = vmatmul.mubr.bf16.gmra.mrb[0].mxu0 %v2659
        %v2794 = vpop.f32.mrb[0].mxu0
        %v2795 = vadd.f32 0.0, %v2794
        %v2796 = vpop.f32.mrb[0].mxu0
        %v2797 = vpop.f32.mrb[0].mxu0
        %v2798 = vadd.f32 0.0, %v2797
        %v2799 = vpop.f32.mrb[0].mxu0
        %2800 = vmatprep.mubr.bf16.mxu0 0
        %2801 = vmatmul.mubr.bf16.gmra.mrb[0].mxu0 %v2660
        %v2802 = vpop.f32.mrb[0].mxu0
        %v2803 = vadd.f32 0.0, %v2802
        %v2804 = vpop.f32.mrb[0].mxu0
        %v2805 = vpop.f32.mrb[0].mxu0
        %v2806 = vadd.f32 0.0, %v2805
        %v2807 = vpop.f32.mrb[0].mxu0
        %2808 = vmatprep.mubr.bf16.mxu0 0
        %2809 = vmatmul.mubr.bf16.gmra.mrb[0].mxu0 %v2661
        %v2810 = vpop.f32.mrb[0].mxu0
        %v2811 = vadd.f32 0.0, %v2810
        %v2812 = vpop.f32.mrb[0].mxu0
        %v2813 = vpop.f32.mrb[0].mxu0
        %v2814 = vadd.f32 0.0, %v2813
        %v2815 = vpop.f32.mrb[0].mxu0
        %2816 = vmatprep.mubr.bf16.mxu0 0
        %2817 = vmatmul.mubr.bf16.gmra.mrb[0].mxu0 %v2662
        %v2818 = vpop.f32.mrb[0].mxu0
        %v2819 = vadd.f32 0.0, %v2818
        %v2820 = vpop.f32.mrb[0].mxu0
        %v2821 = vpop.f32.mrb[0].mxu0
        %v2822 = vadd.f32 0.0, %v2821
        %v2823 = vpop.f32.mrb[0].mxu0
        %2824 = vmatprep.mubr.bf16.mxu0 0
        %2825 = vmatmul.mubr.bf16.gmra.mrb[0].mxu0 %v2663
        %v2826 = vpop.f32.mrb[0].mxu0
        %v2827 = vadd.f32 0.0, %v2826
        %v2828 = vpop.f32.mrb[0].mxu0
        %v2829 = vpop.f32.mrb[0].mxu0
        %v2830 = vadd.f32 0.0, %v2829
        %v2831 = vpop.f32.mrb[0].mxu0
        %2832 = vmatprep.mubr.bf16.mxu0 0
        %2833 = vmatmul.mubr.bf16.gmra.mrb[0].mxu0 %v2664
        %v2834 = vpop.f32.mrb[0].mxu0
        %v2835 = vadd.f32 0.0, %v2834
        %v2836 = vpop.f32.mrb[0].mxu0
        %v2837 = vpop.f32.mrb[0].mxu0
        %v2838 = vadd.f32 0.0, %v2837
        %v2839 = vpop.f32.mrb[0].mxu0
        %2840 = vmatprep.mubr.bf16.mxu0 0
        %2841 = vmatmul.mubr.bf16.gmra.mrb[0].mxu0 %v2665
        %v2842 = vpop.f32.mrb[0].mxu0
        %v2843 = vadd.f32 0.0, %v2842
        %v2844 = vpop.f32.mrb[0].mxu0
        %v2845 = vpop.f32.mrb[0].mxu0
        %v2846 = vadd.f32 0.0, %v2845
        %v2847 = vpop.f32.mrb[0].mxu0
        %2848 = vmatprep.mubr.bf16.mxu0 0
        %2849 = vmatmul.mubr.bf16.gmra.mrb[0].mxu0 %v2666
        %v2850 = vpop.f32.mrb[0].mxu0
        %v2851 = vadd.f32 0.0, %v2850
        %v2852 = vpop.f32.mrb[0].mxu0
        %v2853 = vpop.f32.mrb[0].mxu0
        %v2854 = vadd.f32 0.0, %v2853
        %v2855 = vpop.f32.mrb[0].mxu0
        %2856 = vmatprep.mubr.bf16.mxu0 0
        %2857 = vmatmul.mubr.bf16.gmra.mrb[0].mxu0 %v2667
        %v2858 = vpop.f32.mrb[0].mxu0
        %v2859 = vadd.f32 0.0, %v2858
        %v2860 = vpop.f32.mrb[0].mxu0
        %v2861 = vpop.f32.mrb[0].mxu0
        %v2862 = vadd.f32 0.0, %v2861
        %v2863 = vpop.f32.mrb[0].mxu0
        %2864 = vmatprep.mubr.bf16.mxu0 0
        %2865 = vmatmul.mubr.bf16.gmra.mrb[0].mxu0 %v2668
        %v2866 = vpop.f32.mrb[0].mxu0
        %v2867 = vadd.f32 0.0, %v2866
        %v2868 = vpop.f32.mrb[0].mxu0
        %v2869 = vpop.f32.mrb[0].mxu0
        %v2870 = vadd.f32 0.0, %v2869
        %v2871 = vpop.f32.mrb[0].mxu0
        %2872 = vmatprep.mubr.bf16.mxu0 0
        %2873 = vmatmul.mubr.bf16.gmra.mrb[0].mxu0 %v2669
        %v2874 = vpop.f32.mrb[0].mxu0
        %v2875 = vadd.f32 0.0, %v2874
        %v2876 = vpop.f32.mrb[0].mxu0
        %v2877 = vpop.f32.mrb[0].mxu0
        %v2878 = vadd.f32 0.0, %v2877
        %v2879 = vpop.f32.mrb[0].mxu0
        %2880 = vmatprep.mubr.bf16.mxu0 0
        %2881 = vmatmul.mubr.bf16.gmra.mrb[0].mxu0 %v2670
        %v2882 = vpop.f32.mrb[0].mxu0
        %v2883 = vadd.f32 0.0, %v2882
        %v2884 = vpop.f32.mrb[0].mxu0
        %v2885 = vpop.f32.mrb[0].mxu0
        %v2886 = vadd.f32 0.0, %v2885
        %v2887 = vpop.f32.mrb[0].mxu0
        %2888 = vmatprep.mubr.bf16.mxu0 0
        %2889 = vmatmul.mubr.bf16.gmra.mrb[0].mxu0 %v2671
        %v2890 = vpop.f32.mrb[0].mxu0
        %v2891 = vadd.f32 0.0, %v2890
        %v2892 = vpop.f32.mrb[0].mxu0
        %v2893 = vpop.f32.mrb[0].mxu0
        %v2894 = vadd.f32 0.0, %v2893
        %v2895 = vpop.f32.mrb[0].mxu0
        %2896 = vdwg.mxu0
        %v2897 = vld [vmem:[#allocation3] sm:$0xff]
        %v2898 = vld [vmem:[#allocation3 + $0x8] sm:$0xff]
        %v2899 = vld [vmem:[#allocation3 + $0x10] sm:$0xff]
        %v2900 = vld [vmem:[#allocation3 + $0x18] sm:$0xff]
        %v2901 = vld [vmem:[#allocation3 + $0x20] sm:$0xff]
        %v2902 = vld [vmem:[#allocation3 + $0x28] sm:$0xff]
        %v2903 = vld [vmem:[#allocation3 + $0x30] sm:$0xff]
        %v2904 = vld [vmem:[#allocation3 + $0x38] sm:$0xff]
        %v2905 = vld [vmem:[#allocation3 + $0x40] sm:$0xff]
        %v2906 = vld [vmem:[#allocation3 + $0x48] sm:$0xff]
        %v2907 = vld [vmem:[#allocation3 + $0x50] sm:$0xff]
        %v2908 = vld [vmem:[#allocation3 + $0x58] sm:$0xff]
        %v2909 = vld [vmem:[#allocation3 + $0x60] sm:$0xff]
        %v2910 = vld [vmem:[#allocation3 + $0x68] sm:$0xff]
        %v2911 = vld [vmem:[#allocation3 + $0x70] sm:$0xff]
        %v2912 = vld [vmem:[#allocation3 + $0x78] sm:$0xff]
        %v2913 = vld [vmem:[#allocation3 + $0x80] sm:$0xff]
        %v2914 = vld [vmem:[#allocation3 + $0x88] sm:$0xff]
        %v2915 = vld [vmem:[#allocation3 + $0x90] sm:$0xff]
        %v2916 = vld [vmem:[#allocation3 + $0x98] sm:$0xff]
        %v2917 = vld [vmem:[#allocation3 + $0xa0] sm:$0xff]
        %v2918 = vld [vmem:[#allocation3 + $0xa8] sm:$0xff]
        %v2919 = vld [vmem:[#allocation3 + $0xb0] sm:$0xff]
        %v2920 = vld [vmem:[#allocation3 + $0xb8] sm:$0xff]
        %v2921 = vld [vmem:[#allocation3 + $0xc0] sm:$0xff]
        %v2922 = vld [vmem:[#allocation3 + $0xc8] sm:$0xff]
        %v2923 = vld [vmem:[#allocation3 + $0xd0] sm:$0xff]
        %v2924 = vld [vmem:[#allocation3 + $0xd8] sm:$0xff]
        %v2925 = vld [vmem:[#allocation3 + $0xe0] sm:$0xff]
        %v2926 = vld [vmem:[#allocation3 + $0xe8] sm:$0xff]
        %v2927 = vld [vmem:[#allocation3 + $0xf0] sm:$0xff]
        %v2928 = vld [vmem:[#allocation3 + $0xf8] sm:$0xff]
        %v2929 = vadd.f32 %v2897, %v2771
        %v2930 = vadd.f32 %v2898, %v2774
        %v2931 = vadd.f32 %v2899, %v2779
        %v2932 = vadd.f32 %v2900, %v2782
        %v2933 = vadd.f32 %v2901, %v2787
        %v2934 = vadd.f32 %v2902, %v2790
        %v2935 = vadd.f32 %v2903, %v2795
        %v2936 = vadd.f32 %v2904, %v2798
        %v2937 = vadd.f32 %v2905, %v2803
        %v2938 = vadd.f32 %v2906, %v2806
        %v2939 = vadd.f32 %v2907, %v2811
        %v2940 = vadd.f32 %v2908, %v2814
        %v2941 = vadd.f32 %v2909, %v2819
        %v2942 = vadd.f32 %v2910, %v2822
        %v2943 = vadd.f32 %v2911, %v2827
        %v2944 = vadd.f32 %v2912, %v2830
        %v2945 = vadd.f32 %v2913, %v2835
        %v2946 = vadd.f32 %v2914, %v2838
        %v2947 = vadd.f32 %v2915, %v2843
        %v2948 = vadd.f32 %v2916, %v2846
        %v2949 = vadd.f32 %v2917, %v2851
        %v2950 = vadd.f32 %v2918, %v2854
        %v2951 = vadd.f32 %v2919, %v2859
        %v2952 = vadd.f32 %v2920, %v2862
        %v2953 = vadd.f32 %v2921, %v2867
        %v2954 = vadd.f32 %v2922, %v2870
        %v2955 = vadd.f32 %v2923, %v2875
        %v2956 = vadd.f32 %v2924, %v2878
        %v2957 = vadd.f32 %v2925, %v2883
        %v2958 = vadd.f32 %v2926, %v2886
        %v2959 = vadd.f32 %v2927, %v2891
        %v2960 = vadd.f32 %v2928, %v2894
        %2961 = vst [vmem:[#allocation3] sm:$0xff] %v2929
        %2962 = vst [vmem:[#allocation3 + $0x8] sm:$0xff] %v2930
        %2963 = vst [vmem:[#allocation3 + $0x10] sm:$0xff] %v2931
        %2964 = vst [vmem:[#allocation3 + $0x18] sm:$0xff] %v2932
        %2965 = vst [vmem:[#allocation3 + $0x20] sm:$0xff] %v2933
        %2966 = vst [vmem:[#allocation3 + $0x28] sm:$0xff] %v2934
        %2967 = vst [vmem:[#allocation3 + $0x30] sm:$0xff] %v2935
        %2968 = vst [vmem:[#allocation3 + $0x38] sm:$0xff] %v2936
        %2969 = vst [vmem:[#allocation3 + $0x40] sm:$0xff] %v2937
        %2970 = vst [vmem:[#allocation3 + $0x48] sm:$0xff] %v2938
        %2971 = vst [vmem:[#allocation3 + $0x50] sm:$0xff] %v2939
        %2972 = vst [vmem:[#allocation3 + $0x58] sm:$0xff] %v2940
        %2973 = vst [vmem:[#allocation3 + $0x60] sm:$0xff] %v2941
        %2974 = vst [vmem:[#allocation3 + $0x68] sm:$0xff] %v2942
        %2975 = vst [vmem:[#allocation3 + $0x70] sm:$0xff] %v2943
        %2976 = vst [vmem:[#allocation3 + $0x78] sm:$0xff] %v2944
        %2977 = vst [vmem:[#allocation3 + $0x80] sm:$0xff] %v2945
        %2978 = vst [vmem:[#allocation3 + $0x88] sm:$0xff] %v2946
        %2979 = vst [vmem:[#allocation3 + $0x90] sm:$0xff] %v2947
        %2980 = vst [vmem:[#allocation3 + $0x98] sm:$0xff] %v2948
        %2981 = vst [vmem:[#allocation3 + $0xa0] sm:$0xff] %v2949
        %2982 = vst [vmem:[#allocation3 + $0xa8] sm:$0xff] %v2950
        %2983 = vst [vmem:[#allocation3 + $0xb0] sm:$0xff] %v2951
        %2984 = vst [vmem:[#allocation3 + $0xb8] sm:$0xff] %v2952
        %2985 = vst [vmem:[#allocation3 + $0xc0] sm:$0xff] %v2953
        %2986 = vst [vmem:[#allocation3 + $0xc8] sm:$0xff] %v2954
        %2987 = vst [vmem:[#allocation3 + $0xd0] sm:$0xff] %v2955
        %2988 = vst [vmem:[#allocation3 + $0xd8] sm:$0xff] %v2956
        %2989 = vst [vmem:[#allocation3 + $0xe0] sm:$0xff] %v2957
        %2990 = vst [vmem:[#allocation3 + $0xe8] sm:$0xff] %v2958
        %2991 = vst [vmem:[#allocation3 + $0xf0] sm:$0xff] %v2959
        %2992 = vst [vmem:[#allocation3 + $0xf8] sm:$0xff] %v2960
        %v2993 = vld [vmem:[%s1184] sm:$0xf]
        %v2994 = vld [vmem:[%s1184 + $0x4] sm:$0xf]
        %v2995 = vld [vmem:[%s1184 + $0x8] sm:$0xf]
        %v2996 = vld [vmem:[%s1184 + $0xc] sm:$0xf]
        %v2997 = vld [vmem:[%s1184 + $0x10] sm:$0xf]
        %v2998 = vld [vmem:[%s1184 + $0x14] sm:$0xf]
        %v2999 = vld [vmem:[%s1184 + $0x18] sm:$0xf]
        %v3000 = vld [vmem:[%s1184 + $0x1c] sm:$0xf]
        %v3001 = vld [vmem:[%s1184 + $0x20] sm:$0xf]
        %v3002 = vld [vmem:[%s1184 + $0x24] sm:$0xf]
        %v3003 = vld [vmem:[%s1184 + $0x28] sm:$0xf]
        %v3004 = vld [vmem:[%s1184 + $0x2c] sm:$0xf]
        %v3005 = vld [vmem:[%s1184 + $0x30] sm:$0xf]
        %v3006 = vld [vmem:[%s1184 + $0x34] sm:$0xf]
        %v3007 = vld [vmem:[%s1184 + $0x38] sm:$0xf]
        %v3008 = vld [vmem:[%s1184 + $0x3c] sm:$0xf]
        %v3009 = vld [vmem:[%s1184 + $0x40] sm:$0xf]
        %v3010 = vld [vmem:[%s1184 + $0x44] sm:$0xf]
        %v3011 = vld [vmem:[%s1184 + $0x48] sm:$0xf]
        %v3012 = vld [vmem:[%s1184 + $0x4c] sm:$0xf]
        %v3013 = vld [vmem:[%s1184 + $0x50] sm:$0xf]
        %v3014 = vld [vmem:[%s1184 + $0x54] sm:$0xf]
        %v3015 = vld [vmem:[%s1184 + $0x58] sm:$0xf]
        %v3016 = vld [vmem:[%s1184 + $0x5c] sm:$0xf]
        %v3017 = vld [vmem:[%s1184 + $0x60] sm:$0xf]
        %v3018 = vld [vmem:[%s1184 + $0x64] sm:$0xf]
        %v3019 = vld [vmem:[%s1184 + $0x68] sm:$0xf]
        %v3020 = vld [vmem:[%s1184 + $0x6c] sm:$0xf]
        %v3021 = vld [vmem:[%s1184 + $0x70] sm:$0xf]
        %v3022 = vld [vmem:[%s1184 + $0x74] sm:$0xf]
        %v3023 = vld [vmem:[%s1184 + $0x78] sm:$0xf]
        %v3024 = vld [vmem:[%s1184 + $0x7c] sm:$0xf]
        %v3025 = vld [vmem:[%s1184 + $0x80] sm:$0xf]
        %v3026 = vld [vmem:[%s1184 + $0x84] sm:$0xf]
        %v3027 = vld [vmem:[%s1184 + $0x88] sm:$0xf]
        %v3028 = vld [vmem:[%s1184 + $0x8c] sm:$0xf]
        %v3029 = vld [vmem:[%s1184 + $0x90] sm:$0xf]
        %v3030 = vld [vmem:[%s1184 + $0x94] sm:$0xf]
        %v3031 = vld [vmem:[%s1184 + $0x98] sm:$0xf]
        %v3032 = vld [vmem:[%s1184 + $0x9c] sm:$0xf]
        %v3033 = vld [vmem:[%s1184 + $0xa0] sm:$0xf]
        %v3034 = vld [vmem:[%s1184 + $0xa4] sm:$0xf]
        %v3035 = vld [vmem:[%s1184 + $0xa8] sm:$0xf]
        %v3036 = vld [vmem:[%s1184 + $0xac] sm:$0xf]
        %v3037 = vld [vmem:[%s1184 + $0xb0] sm:$0xf]
        %v3038 = vld [vmem:[%s1184 + $0xb4] sm:$0xf]
        %v3039 = vld [vmem:[%s1184 + $0xb8] sm:$0xf]
        %v3040 = vld [vmem:[%s1184 + $0xbc] sm:$0xf]
        %s3041 = scalar_lea.vmem [#allocation9], 192
        %v3042 = vld [vmem:[%s3041] sm:$0xf]
        %v3043 = vld [vmem:[%s3041 + $0x4] sm:$0xf]
        %v3044 = vld [vmem:[%s3041 + $0x8] sm:$0xf]
        %v3045 = vld [vmem:[%s3041 + $0xc] sm:$0xf]
        %v3046 = vld [vmem:[%s3041 + $0x10] sm:$0xf]
        %v3047 = vld [vmem:[%s3041 + $0x14] sm:$0xf]
        %v3048 = vld [vmem:[%s3041 + $0x18] sm:$0xf]
        %v3049 = vld [vmem:[%s3041 + $0x1c] sm:$0xf]
        %v3050 = vld [vmem:[%s3041 + $0x20] sm:$0xf]
        %v3051 = vld [vmem:[%s3041 + $0x24] sm:$0xf]
        %v3052 = vld [vmem:[%s3041 + $0x28] sm:$0xf]
        %v3053 = vld [vmem:[%s3041 + $0x2c] sm:$0xf]
        %v3054 = vld [vmem:[%s3041 + $0x30] sm:$0xf]
        %v3055 = vld [vmem:[%s3041 + $0x34] sm:$0xf]
        %v3056 = vld [vmem:[%s3041 + $0x38] sm:$0xf]
        %v3057 = vld [vmem:[%s3041 + $0x3c] sm:$0xf]
        %v3090 = vunpack.c.l.b16 %v2993
        %v3091 = vunpack.c.l.b16 %v2994
        %v3092 = vunpack.c.l.b16 %v2996
        %v3093 = vunpack.c.l.b16 %v2997
        %v3094 = vunpack.c.l.b16 %v2999
        %v3095 = vunpack.c.l.b16 %v3000
        %v3096 = vunpack.c.l.b16 %v3002
        %v3097 = vunpack.c.l.b16 %v3003
        %v3098 = vunpack.c.l.b16 %v3005
        %v3099 = vunpack.c.l.b16 %v3006
        %v3100 = vunpack.c.l.b16 %v3008
        %v3101 = vunpack.c.l.b16 %v3009
        %v3102 = vunpack.c.l.b16 %v3011
        %v3103 = vunpack.c.l.b16 %v3012
        %v3104 = vunpack.c.l.b16 %v3014
        %v3105 = vunpack.c.l.b16 %v3015
        %v3106 = vunpack.c.l.b16 %v3017
        %v3107 = vunpack.c.l.b16 %v3018
        %v3108 = vunpack.c.l.b16 %v3020
        %v3109 = vunpack.c.l.b16 %v3021
        %v3110 = vunpack.c.l.b16 %v3023
        %v3111 = vunpack.c.l.b16 %v3024
        %v3112 = vunpack.c.l.b16 %v3026
        %v3113 = vunpack.c.l.b16 %v3027
        %v3114 = vunpack.c.l.b16 %v3029
        %v3115 = vunpack.c.l.b16 %v3030
        %v3116 = vunpack.c.l.b16 %v3032
        %v3117 = vunpack.c.l.b16 %v3033
        %v3118 = vunpack.c.l.b16 %v3035
        %v3119 = vunpack.c.l.b16 %v3036
        %v3120 = vunpack.c.l.b16 %v3038
        %v3121 = vunpack.c.l.b16 %v3039
        %v3122 = vpack.c.b16 %v3091, %v3090
        %v3123 = vpack.c.b16 %v3093, %v3092
        %v3124 = vpack.c.b16 %v3095, %v3094
        %v3125 = vpack.c.b16 %v3097, %v3096
        %v3126 = vpack.c.b16 %v3099, %v3098
        %v3127 = vpack.c.b16 %v3101, %v3100
        %v3128 = vpack.c.b16 %v3103, %v3102
        %v3129 = vpack.c.b16 %v3105, %v3104
        %v3130 = vpack.c.b16 %v3107, %v3106
        %v3131 = vpack.c.b16 %v3109, %v3108
        %v3132 = vpack.c.b16 %v3111, %v3110
        %v3133 = vpack.c.b16 %v3113, %v3112
        %v3134 = vpack.c.b16 %v3115, %v3114
        %v3135 = vpack.c.b16 %v3117, %v3116
        %v3136 = vpack.c.b16 %v3119, %v3118
        %v3137 = vpack.c.b16 %v3121, %v3120
        %v3170 = vunpack.c.l.b16 %v3042
        %v3171 = vunpack.c.l.b16 %v3043
        %v3172 = vunpack.c.l.b16 %v3044
        %v3173 = vunpack.c.l.b16 %v3045
        %v3174 = vunpack.c.l.b16 %v3046
        %v3175 = vunpack.c.l.b16 %v3047
        %v3176 = vunpack.c.l.b16 %v3048
        %v3177 = vunpack.c.l.b16 %v3049
        %v3178 = vunpack.c.l.b16 %v3050
        %v3179 = vunpack.c.l.b16 %v3051
        %v3180 = vunpack.c.l.b16 %v3052
        %v3181 = vunpack.c.l.b16 %v3053
        %v3182 = vunpack.c.l.b16 %v3054
        %v3183 = vunpack.c.l.b16 %v3055
        %v3184 = vunpack.c.l.b16 %v3056
        %v3185 = vunpack.c.l.b16 %v3057
        %v3186 = vpack.c.b16 %v3171, %v3170
        %v3187 = vpack.c.b16 %v3173, %v3172
        %v3188 = vpack.c.b16 %v3175, %v3174
        %v3189 = vpack.c.b16 %v3177, %v3176
        %v3190 = vpack.c.b16 %v3179, %v3178
        %v3191 = vpack.c.b16 %v3181, %v3180
        %v3192 = vpack.c.b16 %v3183, %v3182
        %v3193 = vpack.c.b16 %v3185, %v3184
        %3202 = vmatprep.subr.bf16.mxu0 0
        %3203 = vmatpush1.bf16.msra.mxu0 %v3186
        %3204 = vmatprep.subr.bf16.mxu0 0
        %3205 = vmatpush1.bf16.msra.mxu0 %v3187
        %3206 = vmatprep.subr.bf16.mxu0 0
        %3207 = vmatpush1.bf16.msra.mxu0 %v3188
        %3208 = vmatprep.subr.bf16.mxu0 0
        %3209 = vmatpush1.bf16.msra.mxu0 %v3189
        %3210 = vmatprep.subr.bf16.mxu0 0
        %3211 = vmatpush1.bf16.msra.mxu0 %v3190
        %3212 = vmatprep.subr.bf16.mxu0 0
        %3213 = vmatpush1.bf16.msra.mxu0 %v3191
        %3214 = vmatprep.subr.bf16.mxu0 0
        %3215 = vmatpush1.bf16.msra.mxu0 %v3192
        %3216 = vmatprep.subr.bf16.mxu0 0
        %3217 = vmatpush1.bf16.msra.mxu0 %v3193
        %3218 = vmatprep.subr.bf16.mxu0 0
        %3219 = vmatpush1.bf16.msra.mxu0 0
        %3220 = vmatprep.subr.bf16.mxu0 0
        %3221 = vmatpush1.bf16.msra.mxu0 0
        %3222 = vmatprep.subr.bf16.mxu0 0
        %3223 = vmatpush1.bf16.msra.mxu0 0
        %3224 = vmatprep.subr.bf16.mxu0 0
        %3225 = vmatpush1.bf16.msra.mxu0 0
        %3226 = vmatprep.subr.bf16.mxu0 0
        %3227 = vmatpush1.bf16.msra.mxu0 0
        %3228 = vmatprep.subr.bf16.mxu0 0
        %3229 = vmatpush1.bf16.msra.mxu0 0
        %3230 = vmatprep.subr.bf16.mxu0 0
        %3231 = vmatpush1.bf16.msra.mxu0 0
        %3232 = vmatprep.subr.bf16.mxu0 0
        %3233 = vmatpush1.bf16.msra.mxu0 0
        %3234 = vmatprep.mubr.bf16.mxu0 0
        %3235 = vmatmul.mubr.bf16.gmra.mrb[0].mxu0 %v3122
        %v3236 = vpop.f32.mrb[0].mxu0
        %v3237 = vadd.f32 0.0, %v3236
        %v3238 = vpop.f32.mrb[0].mxu0
        %v3239 = vpop.f32.mrb[0].mxu0
        %v3240 = vadd.f32 0.0, %v3239
        %v3241 = vpop.f32.mrb[0].mxu0
        %3242 = vmatprep.mubr.bf16.mxu0 0
        %3243 = vmatmul.mubr.bf16.gmra.mrb[0].mxu0 %v3123
        %v3244 = vpop.f32.mrb[0].mxu0
        %v3245 = vadd.f32 0.0, %v3244
        %v3246 = vpop.f32.mrb[0].mxu0
        %v3247 = vpop.f32.mrb[0].mxu0
        %v3248 = vadd.f32 0.0, %v3247
        %v3249 = vpop.f32.mrb[0].mxu0
        %3250 = vmatprep.mubr.bf16.mxu0 0
        %3251 = vmatmul.mubr.bf16.gmra.mrb[0].mxu0 %v3124
        %v3252 = vpop.f32.mrb[0].mxu0
        %v3253 = vadd.f32 0.0, %v3252
        %v3254 = vpop.f32.mrb[0].mxu0
        %v3255 = vpop.f32.mrb[0].mxu0
        %v3256 = vadd.f32 0.0, %v3255
        %v3257 = vpop.f32.mrb[0].mxu0
        %3258 = vmatprep.mubr.bf16.mxu0 0
        %3259 = vmatmul.mubr.bf16.gmra.mrb[0].mxu0 %v3125
        %v3260 = vpop.f32.mrb[0].mxu0
        %v3261 = vadd.f32 0.0, %v3260
        %v3262 = vpop.f32.mrb[0].mxu0
        %v3263 = vpop.f32.mrb[0].mxu0
        %v3264 = vadd.f32 0.0, %v3263
        %v3265 = vpop.f32.mrb[0].mxu0
        %3266 = vmatprep.mubr.bf16.mxu0 0
        %3267 = vmatmul.mubr.bf16.gmra.mrb[0].mxu0 %v3126
        %v3268 = vpop.f32.mrb[0].mxu0
        %v3269 = vadd.f32 0.0, %v3268
        %v3270 = vpop.f32.mrb[0].mxu0
        %v3271 = vpop.f32.mrb[0].mxu0
        %v3272 = vadd.f32 0.0, %v3271
        %v3273 = vpop.f32.mrb[0].mxu0
        %3274 = vmatprep.mubr.bf16.mxu0 0
        %3275 = vmatmul.mubr.bf16.gmra.mrb[0].mxu0 %v3127
        %v3276 = vpop.f32.mrb[0].mxu0
        %v3277 = vadd.f32 0.0, %v3276
        %v3278 = vpop.f32.mrb[0].mxu0
        %v3279 = vpop.f32.mrb[0].mxu0
        %v3280 = vadd.f32 0.0, %v3279
        %v3281 = vpop.f32.mrb[0].mxu0
        %3282 = vmatprep.mubr.bf16.mxu0 0
        %3283 = vmatmul.mubr.bf16.gmra.mrb[0].mxu0 %v3128
        %v3284 = vpop.f32.mrb[0].mxu0
        %v3285 = vadd.f32 0.0, %v3284
        %v3286 = vpop.f32.mrb[0].mxu0
        %v3287 = vpop.f32.mrb[0].mxu0
        %v3288 = vadd.f32 0.0, %v3287
        %v3289 = vpop.f32.mrb[0].mxu0
        %3290 = vmatprep.mubr.bf16.mxu0 0
        %3291 = vmatmul.mubr.bf16.gmra.mrb[0].mxu0 %v3129
        %v3292 = vpop.f32.mrb[0].mxu0
        %v3293 = vadd.f32 0.0, %v3292
        %v3294 = vpop.f32.mrb[0].mxu0
        %v3295 = vpop.f32.mrb[0].mxu0
        %v3296 = vadd.f32 0.0, %v3295
        %v3297 = vpop.f32.mrb[0].mxu0
        %3298 = vmatprep.mubr.bf16.mxu0 0
        %3299 = vmatmul.mubr.bf16.gmra.mrb[0].mxu0 %v3130
        %v3300 = vpop.f32.mrb[0].mxu0
        %v3301 = vadd.f32 0.0, %v3300
        %v3302 = vpop.f32.mrb[0].mxu0
        %v3303 = vpop.f32.mrb[0].mxu0
        %v3304 = vadd.f32 0.0, %v3303
        %v3305 = vpop.f32.mrb[0].mxu0
        %3306 = vmatprep.mubr.bf16.mxu0 0
        %3307 = vmatmul.mubr.bf16.gmra.mrb[0].mxu0 %v3131
        %v3308 = vpop.f32.mrb[0].mxu0
        %v3309 = vadd.f32 0.0, %v3308
        %v3310 = vpop.f32.mrb[0].mxu0
        %v3311 = vpop.f32.mrb[0].mxu0
        %v3312 = vadd.f32 0.0, %v3311
        %v3313 = vpop.f32.mrb[0].mxu0
        %3314 = vmatprep.mubr.bf16.mxu0 0
        %3315 = vmatmul.mubr.bf16.gmra.mrb[0].mxu0 %v3132
        %v3316 = vpop.f32.mrb[0].mxu0
        %v3317 = vadd.f32 0.0, %v3316
        %v3318 = vpop.f32.mrb[0].mxu0
        %v3319 = vpop.f32.mrb[0].mxu0
        %v3320 = vadd.f32 0.0, %v3319
        %v3321 = vpop.f32.mrb[0].mxu0
        %3322 = vmatprep.mubr.bf16.mxu0 0
        %3323 = vmatmul.mubr.bf16.gmra.mrb[0].mxu0 %v3133
        %v3324 = vpop.f32.mrb[0].mxu0
        %v3325 = vadd.f32 0.0, %v3324
        %v3326 = vpop.f32.mrb[0].mxu0
        %v3327 = vpop.f32.mrb[0].mxu0
        %v3328 = vadd.f32 0.0, %v3327
        %v3329 = vpop.f32.mrb[0].mxu0
        %3330 = vmatprep.mubr.bf16.mxu0 0
        %3331 = vmatmul.mubr.bf16.gmra.mrb[0].mxu0 %v3134
        %v3332 = vpop.f32.mrb[0].mxu0
        %v3333 = vadd.f32 0.0, %v3332
        %v3334 = vpop.f32.mrb[0].mxu0
        %v3335 = vpop.f32.mrb[0].mxu0
        %v3336 = vadd.f32 0.0, %v3335
        %v3337 = vpop.f32.mrb[0].mxu0
        %3338 = vmatprep.mubr.bf16.mxu0 0
        %3339 = vmatmul.mubr.bf16.gmra.mrb[0].mxu0 %v3135
        %v3340 = vpop.f32.mrb[0].mxu0
        %v3341 = vadd.f32 0.0, %v3340
        %v3342 = vpop.f32.mrb[0].mxu0
        %v3343 = vpop.f32.mrb[0].mxu0
        %v3344 = vadd.f32 0.0, %v3343
        %v3345 = vpop.f32.mrb[0].mxu0
        %3346 = vmatprep.mubr.bf16.mxu0 0
        %3347 = vmatmul.mubr.bf16.gmra.mrb[0].mxu0 %v3136
        %v3348 = vpop.f32.mrb[0].mxu0
        %v3349 = vadd.f32 0.0, %v3348
        %v3350 = vpop.f32.mrb[0].mxu0
        %v3351 = vpop.f32.mrb[0].mxu0
        %v3352 = vadd.f32 0.0, %v3351
        %v3353 = vpop.f32.mrb[0].mxu0
        %3354 = vmatprep.mubr.bf16.mxu0 0
        %3355 = vmatmul.mubr.bf16.gmra.mrb[0].mxu0 %v3137
        %v3356 = vpop.f32.mrb[0].mxu0
        %v3357 = vadd.f32 0.0, %v3356
        %v3358 = vpop.f32.mrb[0].mxu0
        %v3359 = vpop.f32.mrb[0].mxu0
        %v3360 = vadd.f32 0.0, %v3359
        %v3361 = vpop.f32.mrb[0].mxu0
        %3362 = vdwg.mxu0
        %v3363 = vld [vmem:[#allocation3] sm:$0xff]
        %v3364 = vld [vmem:[#allocation3 + $0x8] sm:$0xff]
        %v3365 = vld [vmem:[#allocation3 + $0x10] sm:$0xff]
        %v3366 = vld [vmem:[#allocation3 + $0x18] sm:$0xff]
        %v3367 = vld [vmem:[#allocation3 + $0x20] sm:$0xff]
        %v3368 = vld [vmem:[#allocation3 + $0x28] sm:$0xff]
        %v3369 = vld [vmem:[#allocation3 + $0x30] sm:$0xff]
        %v3370 = vld [vmem:[#allocation3 + $0x38] sm:$0xff]
        %v3371 = vld [vmem:[#allocation3 + $0x40] sm:$0xff]
        %v3372 = vld [vmem:[#allocation3 + $0x48] sm:$0xff]
        %v3373 = vld [vmem:[#allocation3 + $0x50] sm:$0xff]
        %v3374 = vld [vmem:[#allocation3 + $0x58] sm:$0xff]
        %v3375 = vld [vmem:[#allocation3 + $0x60] sm:$0xff]
        %v3376 = vld [vmem:[#allocation3 + $0x68] sm:$0xff]
        %v3377 = vld [vmem:[#allocation3 + $0x70] sm:$0xff]
        %v3378 = vld [vmem:[#allocation3 + $0x78] sm:$0xff]
        %v3379 = vld [vmem:[#allocation3 + $0x80] sm:$0xff]
        %v3380 = vld [vmem:[#allocation3 + $0x88] sm:$0xff]
        %v3381 = vld [vmem:[#allocation3 + $0x90] sm:$0xff]
        %v3382 = vld [vmem:[#allocation3 + $0x98] sm:$0xff]
        %v3383 = vld [vmem:[#allocation3 + $0xa0] sm:$0xff]
        %v3384 = vld [vmem:[#allocation3 + $0xa8] sm:$0xff]
        %v3385 = vld [vmem:[#allocation3 + $0xb0] sm:$0xff]
        %v3386 = vld [vmem:[#allocation3 + $0xb8] sm:$0xff]
        %v3387 = vld [vmem:[#allocation3 + $0xc0] sm:$0xff]
        %v3388 = vld [vmem:[#allocation3 + $0xc8] sm:$0xff]
        %v3389 = vld [vmem:[#allocation3 + $0xd0] sm:$0xff]
        %v3390 = vld [vmem:[#allocation3 + $0xd8] sm:$0xff]
        %v3391 = vld [vmem:[#allocation3 + $0xe0] sm:$0xff]
        %v3392 = vld [vmem:[#allocation3 + $0xe8] sm:$0xff]
        %v3393 = vld [vmem:[#allocation3 + $0xf0] sm:$0xff]
        %v3394 = vld [vmem:[#allocation3 + $0xf8] sm:$0xff]
        %v3395 = vadd.f32 %v3363, %v3237
        %v3396 = vadd.f32 %v3364, %v3240
        %v3397 = vadd.f32 %v3365, %v3245
        %v3398 = vadd.f32 %v3366, %v3248
        %v3399 = vadd.f32 %v3367, %v3253
        %v3400 = vadd.f32 %v3368, %v3256
        %v3401 = vadd.f32 %v3369, %v3261
        %v3402 = vadd.f32 %v3370, %v3264
        %v3403 = vadd.f32 %v3371, %v3269
        %v3404 = vadd.f32 %v3372, %v3272
        %v3405 = vadd.f32 %v3373, %v3277
        %v3406 = vadd.f32 %v3374, %v3280
        %v3407 = vadd.f32 %v3375, %v3285
        %v3408 = vadd.f32 %v3376, %v3288
        %v3409 = vadd.f32 %v3377, %v3293
        %v3410 = vadd.f32 %v3378, %v3296
        %v3411 = vadd.f32 %v3379, %v3301
        %v3412 = vadd.f32 %v3380, %v3304
        %v3413 = vadd.f32 %v3381, %v3309
        %v3414 = vadd.f32 %v3382, %v3312
        %v3415 = vadd.f32 %v3383, %v3317
        %v3416 = vadd.f32 %v3384, %v3320
        %v3417 = vadd.f32 %v3385, %v3325
        %v3418 = vadd.f32 %v3386, %v3328
        %v3419 = vadd.f32 %v3387, %v3333
        %v3420 = vadd.f32 %v3388, %v3336
        %v3421 = vadd.f32 %v3389, %v3341
        %v3422 = vadd.f32 %v3390, %v3344
        %v3423 = vadd.f32 %v3391, %v3349
        %v3424 = vadd.f32 %v3392, %v3352
        %v3425 = vadd.f32 %v3393, %v3357
        %v3426 = vadd.f32 %v3394, %v3360
        %3427 = vst [vmem:[#allocation3] sm:$0xff] %v3395
        %3428 = vst [vmem:[#allocation3 + $0x8] sm:$0xff] %v3396
        %3429 = vst [vmem:[#allocation3 + $0x10] sm:$0xff] %v3397
        %3430 = vst [vmem:[#allocation3 + $0x18] sm:$0xff] %v3398
        %3431 = vst [vmem:[#allocation3 + $0x20] sm:$0xff] %v3399
        %3432 = vst [vmem:[#allocation3 + $0x28] sm:$0xff] %v3400
        %3433 = vst [vmem:[#allocation3 + $0x30] sm:$0xff] %v3401
        %3434 = vst [vmem:[#allocation3 + $0x38] sm:$0xff] %v3402
        %3435 = vst [vmem:[#allocation3 + $0x40] sm:$0xff] %v3403
        %3436 = vst [vmem:[#allocation3 + $0x48] sm:$0xff] %v3404
        %3437 = vst [vmem:[#allocation3 + $0x50] sm:$0xff] %v3405
        %3438 = vst [vmem:[#allocation3 + $0x58] sm:$0xff] %v3406
        %3439 = vst [vmem:[#allocation3 + $0x60] sm:$0xff] %v3407
        %3440 = vst [vmem:[#allocation3 + $0x68] sm:$0xff] %v3408
        %3441 = vst [vmem:[#allocation3 + $0x70] sm:$0xff] %v3409
        %3442 = vst [vmem:[#allocation3 + $0x78] sm:$0xff] %v3410
        %3443 = vst [vmem:[#allocation3 + $0x80] sm:$0xff] %v3411
        %3444 = vst [vmem:[#allocation3 + $0x88] sm:$0xff] %v3412
        %3445 = vst [vmem:[#allocation3 + $0x90] sm:$0xff] %v3413
        %3446 = vst [vmem:[#allocation3 + $0x98] sm:$0xff] %v3414
        %3447 = vst [vmem:[#allocation3 + $0xa0] sm:$0xff] %v3415
        %3448 = vst [vmem:[#allocation3 + $0xa8] sm:$0xff] %v3416
        %3449 = vst [vmem:[#allocation3 + $0xb0] sm:$0xff] %v3417
        %3450 = vst [vmem:[#allocation3 + $0xb8] sm:$0xff] %v3418
        %3451 = vst [vmem:[#allocation3 + $0xc0] sm:$0xff] %v3419
        %3452 = vst [vmem:[#allocation3 + $0xc8] sm:$0xff] %v3420
        %3453 = vst [vmem:[#allocation3 + $0xd0] sm:$0xff] %v3421
        %3454 = vst [vmem:[#allocation3 + $0xd8] sm:$0xff] %v3422
        %3455 = vst [vmem:[#allocation3 + $0xe0] sm:$0xff] %v3423
        %3456 = vst [vmem:[#allocation3 + $0xe8] sm:$0xff] %v3424
        %3457 = vst [vmem:[#allocation3 + $0xf0] sm:$0xff] %v3425
        %3458 = vst [vmem:[#allocation3 + $0xf8] sm:$0xff] %v3426
        %v3460 = vshrl.u32 %v2993, 16
        %v3462 = vrot.slane %v3460, 4
        %v3463 = vshll.u32 %v2993, 16
        %v3465 = vrot.slane %v3463, 5
        %v3466 = vor.u32 %v3462, %v3465
        %v3467 = vrot.slane %v3466, 4
        %v3469 = vshll.u32 %v2994, 16
        %v3471 = vrot.slane %v3469, 5
        %v3472 = vsel %vm1705, %v3467, %v3471
        %v3473 = vshrl.u32 %v2994, 16
        %v3475 = vrot.slane %v3473, 4
        %v3476 = vor.u32 %v3475, %v3471
        %v3477 = vrot.slane %v3476, 4
        %v3479 = vshll.u32 %v2995, 16
        %v3481 = vrot.slane %v3479, 5
        %v3482 = vsel %vm1705, %v3477, %v3481
        %v3484 = vshrl.u32 %v2996, 16
        %v3486 = vrot.slane %v3484, 4
        %v3487 = vshll.u32 %v2996, 16
        %v3489 = vrot.slane %v3487, 5
        %v3490 = vor.u32 %v3486, %v3489
        %v3491 = vrot.slane %v3490, 4
        %v3493 = vshll.u32 %v2997, 16
        %v3495 = vrot.slane %v3493, 5
        %v3496 = vsel %vm1705, %v3491, %v3495
        %v3497 = vshrl.u32 %v2997, 16
        %v3499 = vrot.slane %v3497, 4
        %v3500 = vor.u32 %v3499, %v3495
        %v3501 = vrot.slane %v3500, 4
        %v3503 = vshll.u32 %v2998, 16
        %v3505 = vrot.slane %v3503, 5
        %v3506 = vsel %vm1705, %v3501, %v3505
        %v3508 = vshrl.u32 %v2999, 16
        %v3510 = vrot.slane %v3508, 4
        %v3511 = vshll.u32 %v2999, 16
        %v3513 = vrot.slane %v3511, 5
        %v3514 = vor.u32 %v3510, %v3513
        %v3515 = vrot.slane %v3514, 4
        %v3517 = vshll.u32 %v3000, 16
        %v3519 = vrot.slane %v3517, 5
        %v3520 = vsel %vm1705, %v3515, %v3519
        %v3521 = vshrl.u32 %v3000, 16
        %v3523 = vrot.slane %v3521, 4
        %v3524 = vor.u32 %v3523, %v3519
        %v3525 = vrot.slane %v3524, 4
        %v3527 = vshll.u32 %v3001, 16
        %v3529 = vrot.slane %v3527, 5
        %v3530 = vsel %vm1705, %v3525, %v3529
        %v3532 = vshrl.u32 %v3002, 16
        %v3534 = vrot.slane %v3532, 4
        %v3535 = vshll.u32 %v3002, 16
        %v3537 = vrot.slane %v3535, 5
        %v3538 = vor.u32 %v3534, %v3537
        %v3539 = vrot.slane %v3538, 4
        %v3541 = vshll.u32 %v3003, 16
        %v3543 = vrot.slane %v3541, 5
        %v3544 = vsel %vm1705, %v3539, %v3543
        %v3545 = vshrl.u32 %v3003, 16
        %v3547 = vrot.slane %v3545, 4
        %v3548 = vor.u32 %v3547, %v3543
        %v3549 = vrot.slane %v3548, 4
        %v3551 = vshll.u32 %v3004, 16
        %v3553 = vrot.slane %v3551, 5
        %v3554 = vsel %vm1705, %v3549, %v3553
        %v3556 = vshrl.u32 %v3005, 16
        %v3558 = vrot.slane %v3556, 4
        %v3559 = vshll.u32 %v3005, 16
        %v3561 = vrot.slane %v3559, 5
        %v3562 = vor.u32 %v3558, %v3561
        %v3563 = vrot.slane %v3562, 4
        %v3565 = vshll.u32 %v3006, 16
        %v3567 = vrot.slane %v3565, 5
        %v3568 = vsel %vm1705, %v3563, %v3567
        %v3569 = vshrl.u32 %v3006, 16
        %v3571 = vrot.slane %v3569, 4
        %v3572 = vor.u32 %v3571, %v3567
        %v3573 = vrot.slane %v3572, 4
        %v3575 = vshll.u32 %v3007, 16
        %v3577 = vrot.slane %v3575, 5
        %v3578 = vsel %vm1705, %v3573, %v3577
        %v3580 = vshrl.u32 %v3008, 16
        %v3582 = vrot.slane %v3580, 4
        %v3583 = vshll.u32 %v3008, 16
        %v3585 = vrot.slane %v3583, 5
        %v3586 = vor.u32 %v3582, %v3585
        %v3587 = vrot.slane %v3586, 4
        %v3589 = vshll.u32 %v3009, 16
        %v3591 = vrot.slane %v3589, 5
        %v3592 = vsel %vm1705, %v3587, %v3591
        %v3593 = vshrl.u32 %v3009, 16
        %v3595 = vrot.slane %v3593, 4
        %v3596 = vor.u32 %v3595, %v3591
        %v3597 = vrot.slane %v3596, 4
        %v3599 = vshll.u32 %v3010, 16
        %v3601 = vrot.slane %v3599, 5
        %v3602 = vsel %vm1705, %v3597, %v3601
        %v3604 = vshrl.u32 %v3011, 16
        %v3606 = vrot.slane %v3604, 4
        %v3607 = vshll.u32 %v3011, 16
        %v3609 = vrot.slane %v3607, 5
        %v3610 = vor.u32 %v3606, %v3609
        %v3611 = vrot.slane %v3610, 4
        %v3613 = vshll.u32 %v3012, 16
        %v3615 = vrot.slane %v3613, 5
        %v3616 = vsel %vm1705, %v3611, %v3615
        %v3617 = vshrl.u32 %v3012, 16
        %v3619 = vrot.slane %v3617, 4
        %v3620 = vor.u32 %v3619, %v3615
        %v3621 = vrot.slane %v3620, 4
        %v3623 = vshll.u32 %v3013, 16
        %v3625 = vrot.slane %v3623, 5
        %v3626 = vsel %vm1705, %v3621, %v3625
        %v3628 = vshrl.u32 %v3014, 16
        %v3630 = vrot.slane %v3628, 4
        %v3631 = vshll.u32 %v3014, 16
        %v3633 = vrot.slane %v3631, 5
        %v3634 = vor.u32 %v3630, %v3633
        %v3635 = vrot.slane %v3634, 4
        %v3637 = vshll.u32 %v3015, 16
        %v3639 = vrot.slane %v3637, 5
        %v3640 = vsel %vm1705, %v3635, %v3639
        %v3641 = vshrl.u32 %v3015, 16
        %v3643 = vrot.slane %v3641, 4
        %v3644 = vor.u32 %v3643, %v3639
        %v3645 = vrot.slane %v3644, 4
        %v3647 = vshll.u32 %v3016, 16
        %v3649 = vrot.slane %v3647, 5
        %v3650 = vsel %vm1705, %v3645, %v3649
        %v3652 = vshrl.u32 %v3017, 16
        %v3654 = vrot.slane %v3652, 4
        %v3655 = vshll.u32 %v3017, 16
        %v3657 = vrot.slane %v3655, 5
        %v3658 = vor.u32 %v3654, %v3657
        %v3659 = vrot.slane %v3658, 4
        %v3661 = vshll.u32 %v3018, 16
        %v3663 = vrot.slane %v3661, 5
        %v3664 = vsel %vm1705, %v3659, %v3663
        %v3665 = vshrl.u32 %v3018, 16
        %v3667 = vrot.slane %v3665, 4
        %v3668 = vor.u32 %v3667, %v3663
        %v3669 = vrot.slane %v3668, 4
        %v3671 = vshll.u32 %v3019, 16
        %v3673 = vrot.slane %v3671, 5
        %v3674 = vsel %vm1705, %v3669, %v3673
        %v3676 = vshrl.u32 %v3020, 16
        %v3678 = vrot.slane %v3676, 4
        %v3679 = vshll.u32 %v3020, 16
        %v3681 = vrot.slane %v3679, 5
        %v3682 = vor.u32 %v3678, %v3681
        %v3683 = vrot.slane %v3682, 4
        %v3685 = vshll.u32 %v3021, 16
        %v3687 = vrot.slane %v3685, 5
        %v3688 = vsel %vm1705, %v3683, %v3687
        %v3689 = vshrl.u32 %v3021, 16
        %v3691 = vrot.slane %v3689, 4
        %v3692 = vor.u32 %v3691, %v3687
        %v3693 = vrot.slane %v3692, 4
        %v3695 = vshll.u32 %v3022, 16
        %v3697 = vrot.slane %v3695, 5
        %v3698 = vsel %vm1705, %v3693, %v3697
        %v3700 = vshrl.u32 %v3023, 16
        %v3702 = vrot.slane %v3700, 4
        %v3703 = vshll.u32 %v3023, 16
        %v3705 = vrot.slane %v3703, 5
        %v3706 = vor.u32 %v3702, %v3705
        %v3707 = vrot.slane %v3706, 4
        %v3709 = vshll.u32 %v3024, 16
        %v3711 = vrot.slane %v3709, 5
        %v3712 = vsel %vm1705, %v3707, %v3711
        %v3713 = vshrl.u32 %v3024, 16
        %v3715 = vrot.slane %v3713, 4
        %v3716 = vor.u32 %v3715, %v3711
        %v3717 = vrot.slane %v3716, 4
        %v3719 = vshll.u32 %v3025, 16
        %v3721 = vrot.slane %v3719, 5
        %v3722 = vsel %vm1705, %v3717, %v3721
        %v3724 = vshrl.u32 %v3026, 16
        %v3726 = vrot.slane %v3724, 4
        %v3727 = vshll.u32 %v3026, 16
        %v3729 = vrot.slane %v3727, 5
        %v3730 = vor.u32 %v3726, %v3729
        %v3731 = vrot.slane %v3730, 4
        %v3733 = vshll.u32 %v3027, 16
        %v3735 = vrot.slane %v3733, 5
        %v3736 = vsel %vm1705, %v3731, %v3735
        %v3737 = vshrl.u32 %v3027, 16
        %v3739 = vrot.slane %v3737, 4
        %v3740 = vor.u32 %v3739, %v3735
        %v3741 = vrot.slane %v3740, 4
        %v3743 = vshll.u32 %v3028, 16
        %v3745 = vrot.slane %v3743, 5
        %v3746 = vsel %vm1705, %v3741, %v3745
        %v3748 = vshrl.u32 %v3029, 16
        %v3750 = vrot.slane %v3748, 4
        %v3751 = vshll.u32 %v3029, 16
        %v3753 = vrot.slane %v3751, 5
        %v3754 = vor.u32 %v3750, %v3753
        %v3755 = vrot.slane %v3754, 4
        %v3757 = vshll.u32 %v3030, 16
        %v3759 = vrot.slane %v3757, 5
        %v3760 = vsel %vm1705, %v3755, %v3759
        %v3761 = vshrl.u32 %v3030, 16
        %v3763 = vrot.slane %v3761, 4
        %v3764 = vor.u32 %v3763, %v3759
        %v3765 = vrot.slane %v3764, 4
        %v3767 = vshll.u32 %v3031, 16
        %v3769 = vrot.slane %v3767, 5
        %v3770 = vsel %vm1705, %v3765, %v3769
        %v3772 = vshrl.u32 %v3032, 16
        %v3774 = vrot.slane %v3772, 4
        %v3775 = vshll.u32 %v3032, 16
        %v3777 = vrot.slane %v3775, 5
        %v3778 = vor.u32 %v3774, %v3777
        %v3779 = vrot.slane %v3778, 4
        %v3781 = vshll.u32 %v3033, 16
        %v3783 = vrot.slane %v3781, 5
        %v3784 = vsel %vm1705, %v3779, %v3783
        %v3785 = vshrl.u32 %v3033, 16
        %v3787 = vrot.slane %v3785, 4
        %v3788 = vor.u32 %v3787, %v3783
        %v3789 = vrot.slane %v3788, 4
        %v3791 = vshll.u32 %v3034, 16
        %v3793 = vrot.slane %v3791, 5
        %v3794 = vsel %vm1705, %v3789, %v3793
        %v3796 = vshrl.u32 %v3035, 16
        %v3798 = vrot.slane %v3796, 4
        %v3799 = vshll.u32 %v3035, 16
        %v3801 = vrot.slane %v3799, 5
        %v3802 = vor.u32 %v3798, %v3801
        %v3803 = vrot.slane %v3802, 4
        %v3805 = vshll.u32 %v3036, 16
        %v3807 = vrot.slane %v3805, 5
        %v3808 = vsel %vm1705, %v3803, %v3807
        %v3809 = vshrl.u32 %v3036, 16
        %v3811 = vrot.slane %v3809, 4
        %v3812 = vor.u32 %v3811, %v3807
        %v3813 = vrot.slane %v3812, 4
        %v3815 = vshll.u32 %v3037, 16
        %v3817 = vrot.slane %v3815, 5
        %v3818 = vsel %vm1705, %v3813, %v3817
        %v3820 = vshrl.u32 %v3038, 16
        %v3822 = vrot.slane %v3820, 4
        %v3823 = vshll.u32 %v3038, 16
        %v3825 = vrot.slane %v3823, 5
        %v3826 = vor.u32 %v3822, %v3825
        %v3827 = vrot.slane %v3826, 4
        %v3829 = vshll.u32 %v3039, 16
        %v3831 = vrot.slane %v3829, 5
        %v3832 = vsel %vm1705, %v3827, %v3831
        %v3833 = vshrl.u32 %v3039, 16
        %v3835 = vrot.slane %v3833, 4
        %v3836 = vor.u32 %v3835, %v3831
        %v3837 = vrot.slane %v3836, 4
        %v3839 = vshll.u32 %v3040, 16
        %v3841 = vrot.slane %v3839, 5
        %v3842 = vsel %vm1705, %v3837, %v3841
        %s3843 = scalar_lea.vmem [#allocation9], 256
        %v3844 = vld [vmem:[%s3843] sm:$0xf]
        %v3845 = vld [vmem:[%s3843 + $0x4] sm:$0xf]
        %v3846 = vld [vmem:[%s3843 + $0x8] sm:$0xf]
        %v3847 = vld [vmem:[%s3843 + $0xc] sm:$0xf]
        %v3848 = vld [vmem:[%s3843 + $0x10] sm:$0xf]
        %v3849 = vld [vmem:[%s3843 + $0x14] sm:$0xf]
        %v3850 = vld [vmem:[%s3843 + $0x18] sm:$0xf]
        %v3851 = vld [vmem:[%s3843 + $0x1c] sm:$0xf]
        %v3852 = vld [vmem:[%s3843 + $0x20] sm:$0xf]
        %v3853 = vld [vmem:[%s3843 + $0x24] sm:$0xf]
        %v3854 = vld [vmem:[%s3843 + $0x28] sm:$0xf]
        %v3855 = vld [vmem:[%s3843 + $0x2c] sm:$0xf]
        %v3856 = vld [vmem:[%s3843 + $0x30] sm:$0xf]
        %v3857 = vld [vmem:[%s3843 + $0x34] sm:$0xf]
        %v3858 = vld [vmem:[%s3843 + $0x38] sm:$0xf]
        %v3859 = vld [vmem:[%s3843 + $0x3c] sm:$0xf]
        %v3860 = vunpack.c.l.b16 %v3472
        %v3861 = vunpack.c.l.b16 %v3482
        %v3862 = vunpack.c.l.b16 %v3496
        %v3863 = vunpack.c.l.b16 %v3506
        %v3864 = vunpack.c.l.b16 %v3520
        %v3865 = vunpack.c.l.b16 %v3530
        %v3866 = vunpack.c.l.b16 %v3544
        %v3867 = vunpack.c.l.b16 %v3554
        %v3868 = vunpack.c.l.b16 %v3568
        %v3869 = vunpack.c.l.b16 %v3578
        %v3870 = vunpack.c.l.b16 %v3592
        %v3871 = vunpack.c.l.b16 %v3602
        %v3872 = vunpack.c.l.b16 %v3616
        %v3873 = vunpack.c.l.b16 %v3626
        %v3874 = vunpack.c.l.b16 %v3640
        %v3875 = vunpack.c.l.b16 %v3650
        %v3876 = vunpack.c.l.b16 %v3664
        %v3877 = vunpack.c.l.b16 %v3674
        %v3878 = vunpack.c.l.b16 %v3688
        %v3879 = vunpack.c.l.b16 %v3698
        %v3880 = vunpack.c.l.b16 %v3712
        %v3881 = vunpack.c.l.b16 %v3722
        %v3882 = vunpack.c.l.b16 %v3736
        %v3883 = vunpack.c.l.b16 %v3746
        %v3884 = vunpack.c.l.b16 %v3760
        %v3885 = vunpack.c.l.b16 %v3770
        %v3886 = vunpack.c.l.b16 %v3784
        %v3887 = vunpack.c.l.b16 %v3794
        %v3888 = vunpack.c.l.b16 %v3808
        %v3889 = vunpack.c.l.b16 %v3818
        %v3890 = vunpack.c.l.b16 %v3832
        %v3891 = vunpack.c.l.b16 %v3842
        %v3892 = vpack.c.b16 %v3861, %v3860
        %v3893 = vpack.c.b16 %v3863, %v3862
        %v3894 = vpack.c.b16 %v3865, %v3864
        %v3895 = vpack.c.b16 %v3867, %v3866
        %v3896 = vpack.c.b16 %v3869, %v3868
        %v3897 = vpack.c.b16 %v3871, %v3870
        %v3898 = vpack.c.b16 %v3873, %v3872
        %v3899 = vpack.c.b16 %v3875, %v3874
        %v3900 = vpack.c.b16 %v3877, %v3876
        %v3901 = vpack.c.b16 %v3879, %v3878
        %v3902 = vpack.c.b16 %v3881, %v3880
        %v3903 = vpack.c.b16 %v3883, %v3882
        %v3904 = vpack.c.b16 %v3885, %v3884
        %v3905 = vpack.c.b16 %v3887, %v3886
        %v3906 = vpack.c.b16 %v3889, %v3888
        %v3907 = vpack.c.b16 %v3891, %v3890
        %v3940 = vunpack.c.l.b16 %v3844
        %v3941 = vunpack.c.l.b16 %v3845
        %v3942 = vunpack.c.l.b16 %v3846
        %v3943 = vunpack.c.l.b16 %v3847
        %v3944 = vunpack.c.l.b16 %v3848
        %v3945 = vunpack.c.l.b16 %v3849
        %v3946 = vunpack.c.l.b16 %v3850
        %v3947 = vunpack.c.l.b16 %v3851
        %v3948 = vunpack.c.l.b16 %v3852
        %v3949 = vunpack.c.l.b16 %v3853
        %v3950 = vunpack.c.l.b16 %v3854
        %v3951 = vunpack.c.l.b16 %v3855
        %v3952 = vunpack.c.l.b16 %v3856
        %v3953 = vunpack.c.l.b16 %v3857
        %v3954 = vunpack.c.l.b16 %v3858
        %v3955 = vunpack.c.l.b16 %v3859
        %v3956 = vpack.c.b16 %v3941, %v3940
        %v3957 = vpack.c.b16 %v3943, %v3942
        %v3958 = vpack.c.b16 %v3945, %v3944
        %v3959 = vpack.c.b16 %v3947, %v3946
        %v3960 = vpack.c.b16 %v3949, %v3948
        %v3961 = vpack.c.b16 %v3951, %v3950
        %v3962 = vpack.c.b16 %v3953, %v3952
        %v3963 = vpack.c.b16 %v3955, %v3954
        %3972 = vmatprep.subr.bf16.mxu0 0
        %3973 = vmatpush1.bf16.msra.mxu0 %v3956
        %3974 = vmatprep.subr.bf16.mxu0 0
        %3975 = vmatpush1.bf16.msra.mxu0 %v3957
        %3976 = vmatprep.subr.bf16.mxu0 0
        %3977 = vmatpush1.bf16.msra.mxu0 %v3958
        %3978 = vmatprep.subr.bf16.mxu0 0
        %3979 = vmatpush1.bf16.msra.mxu0 %v3959
        %3980 = vmatprep.subr.bf16.mxu0 0
        %3981 = vmatpush1.bf16.msra.mxu0 %v3960
        %3982 = vmatprep.subr.bf16.mxu0 0
        %3983 = vmatpush1.bf16.msra.mxu0 %v3961
        %3984 = vmatprep.subr.bf16.mxu0 0
        %3985 = vmatpush1.bf16.msra.mxu0 %v3962
        %3986 = vmatprep.subr.bf16.mxu0 0
        %3987 = vmatpush1.bf16.msra.mxu0 %v3963
        %3988 = vmatprep.subr.bf16.mxu0 0
        %3989 = vmatpush1.bf16.msra.mxu0 0
        %3990 = vmatprep.subr.bf16.mxu0 0
        %3991 = vmatpush1.bf16.msra.mxu0 0
        %3992 = vmatprep.subr.bf16.mxu0 0
        %3993 = vmatpush1.bf16.msra.mxu0 0
        %3994 = vmatprep.subr.bf16.mxu0 0
        %3995 = vmatpush1.bf16.msra.mxu0 0
        %3996 = vmatprep.subr.bf16.mxu0 0
        %3997 = vmatpush1.bf16.msra.mxu0 0
        %3998 = vmatprep.subr.bf16.mxu0 0
        %3999 = vmatpush1.bf16.msra.mxu0 0
        %4000 = vmatprep.subr.bf16.mxu0 0
        %4001 = vmatpush1.bf16.msra.mxu0 0
        %4002 = vmatprep.subr.bf16.mxu0 0
        %4003 = vmatpush1.bf16.msra.mxu0 0
        %4004 = vmatprep.mubr.bf16.mxu0 0
        %4005 = vmatmul.mubr.bf16.gmra.mrb[0].mxu0 %v3892
        %v4006 = vpop.f32.mrb[0].mxu0
        %v4007 = vadd.f32 0.0, %v4006
        %v4008 = vpop.f32.mrb[0].mxu0
        %v4009 = vpop.f32.mrb[0].mxu0
        %v4010 = vadd.f32 0.0, %v4009
        %v4011 = vpop.f32.mrb[0].mxu0
        %4012 = vmatprep.mubr.bf16.mxu0 0
        %4013 = vmatmul.mubr.bf16.gmra.mrb[0].mxu0 %v3893
        %v4014 = vpop.f32.mrb[0].mxu0
        %v4015 = vadd.f32 0.0, %v4014
        %v4016 = vpop.f32.mrb[0].mxu0
        %v4017 = vpop.f32.mrb[0].mxu0
        %v4018 = vadd.f32 0.0, %v4017
        %v4019 = vpop.f32.mrb[0].mxu0
        %4020 = vmatprep.mubr.bf16.mxu0 0
        %4021 = vmatmul.mubr.bf16.gmra.mrb[0].mxu0 %v3894
        %v4022 = vpop.f32.mrb[0].mxu0
        %v4023 = vadd.f32 0.0, %v4022
        %v4024 = vpop.f32.mrb[0].mxu0
        %v4025 = vpop.f32.mrb[0].mxu0
        %v4026 = vadd.f32 0.0, %v4025
        %v4027 = vpop.f32.mrb[0].mxu0
        %4028 = vmatprep.mubr.bf16.mxu0 0
        %4029 = vmatmul.mubr.bf16.gmra.mrb[0].mxu0 %v3895
        %v4030 = vpop.f32.mrb[0].mxu0
        %v4031 = vadd.f32 0.0, %v4030
        %v4032 = vpop.f32.mrb[0].mxu0
        %v4033 = vpop.f32.mrb[0].mxu0
        %v4034 = vadd.f32 0.0, %v4033
        %v4035 = vpop.f32.mrb[0].mxu0
        %4036 = vmatprep.mubr.bf16.mxu0 0
        %4037 = vmatmul.mubr.bf16.gmra.mrb[0].mxu0 %v3896
        %v4038 = vpop.f32.mrb[0].mxu0
        %v4039 = vadd.f32 0.0, %v4038
        %v4040 = vpop.f32.mrb[0].mxu0
        %v4041 = vpop.f32.mrb[0].mxu0
        %v4042 = vadd.f32 0.0, %v4041
        %v4043 = vpop.f32.mrb[0].mxu0
        %4044 = vmatprep.mubr.bf16.mxu0 0
        %4045 = vmatmul.mubr.bf16.gmra.mrb[0].mxu0 %v3897
        %v4046 = vpop.f32.mrb[0].mxu0
        %v4047 = vadd.f32 0.0, %v4046
        %v4048 = vpop.f32.mrb[0].mxu0
        %v4049 = vpop.f32.mrb[0].mxu0
        %v4050 = vadd.f32 0.0, %v4049
        %v4051 = vpop.f32.mrb[0].mxu0
        %4052 = vmatprep.mubr.bf16.mxu0 0
        %4053 = vmatmul.mubr.bf16.gmra.mrb[0].mxu0 %v3898
        %v4054 = vpop.f32.mrb[0].mxu0
        %v4055 = vadd.f32 0.0, %v4054
        %v4056 = vpop.f32.mrb[0].mxu0
        %v4057 = vpop.f32.mrb[0].mxu0
        %v4058 = vadd.f32 0.0, %v4057
        %v4059 = vpop.f32.mrb[0].mxu0
        %4060 = vmatprep.mubr.bf16.mxu0 0
        %4061 = vmatmul.mubr.bf16.gmra.mrb[0].mxu0 %v3899
        %v4062 = vpop.f32.mrb[0].mxu0
        %v4063 = vadd.f32 0.0, %v4062
        %v4064 = vpop.f32.mrb[0].mxu0
        %v4065 = vpop.f32.mrb[0].mxu0
        %v4066 = vadd.f32 0.0, %v4065
        %v4067 = vpop.f32.mrb[0].mxu0
        %4068 = vmatprep.mubr.bf16.mxu0 0
        %4069 = vmatmul.mubr.bf16.gmra.mrb[0].mxu0 %v3900
        %v4070 = vpop.f32.mrb[0].mxu0
        %v4071 = vadd.f32 0.0, %v4070
        %v4072 = vpop.f32.mrb[0].mxu0
        %v4073 = vpop.f32.mrb[0].mxu0
        %v4074 = vadd.f32 0.0, %v4073
        %v4075 = vpop.f32.mrb[0].mxu0
        %4076 = vmatprep.mubr.bf16.mxu0 0
        %4077 = vmatmul.mubr.bf16.gmra.mrb[0].mxu0 %v3901
        %v4078 = vpop.f32.mrb[0].mxu0
        %v4079 = vadd.f32 0.0, %v4078
        %v4080 = vpop.f32.mrb[0].mxu0
        %v4081 = vpop.f32.mrb[0].mxu0
        %v4082 = vadd.f32 0.0, %v4081
        %v4083 = vpop.f32.mrb[0].mxu0
        %4084 = vmatprep.mubr.bf16.mxu0 0
        %4085 = vmatmul.mubr.bf16.gmra.mrb[0].mxu0 %v3902
        %v4086 = vpop.f32.mrb[0].mxu0
        %v4087 = vadd.f32 0.0, %v4086
        %v4088 = vpop.f32.mrb[0].mxu0
        %v4089 = vpop.f32.mrb[0].mxu0
        %v4090 = vadd.f32 0.0, %v4089
        %v4091 = vpop.f32.mrb[0].mxu0
        %4092 = vmatprep.mubr.bf16.mxu0 0
        %4093 = vmatmul.mubr.bf16.gmra.mrb[0].mxu0 %v3903
        %v4094 = vpop.f32.mrb[0].mxu0
        %v4095 = vadd.f32 0.0, %v4094
        %v4096 = vpop.f32.mrb[0].mxu0
        %v4097 = vpop.f32.mrb[0].mxu0
        %v4098 = vadd.f32 0.0, %v4097
        %v4099 = vpop.f32.mrb[0].mxu0
        %4100 = vmatprep.mubr.bf16.mxu0 0
        %4101 = vmatmul.mubr.bf16.gmra.mrb[0].mxu0 %v3904
        %v4102 = vpop.f32.mrb[0].mxu0
        %v4103 = vadd.f32 0.0, %v4102
        %v4104 = vpop.f32.mrb[0].mxu0
        %v4105 = vpop.f32.mrb[0].mxu0
        %v4106 = vadd.f32 0.0, %v4105
        %v4107 = vpop.f32.mrb[0].mxu0
        %4108 = vmatprep.mubr.bf16.mxu0 0
        %4109 = vmatmul.mubr.bf16.gmra.mrb[0].mxu0 %v3905
        %v4110 = vpop.f32.mrb[0].mxu0
        %v4111 = vadd.f32 0.0, %v4110
        %v4112 = vpop.f32.mrb[0].mxu0
        %v4113 = vpop.f32.mrb[0].mxu0
        %v4114 = vadd.f32 0.0, %v4113
        %v4115 = vpop.f32.mrb[0].mxu0
        %4116 = vmatprep.mubr.bf16.mxu0 0
        %4117 = vmatmul.mubr.bf16.gmra.mrb[0].mxu0 %v3906
        %v4118 = vpop.f32.mrb[0].mxu0
        %v4119 = vadd.f32 0.0, %v4118
        %v4120 = vpop.f32.mrb[0].mxu0
        %v4121 = vpop.f32.mrb[0].mxu0
        %v4122 = vadd.f32 0.0, %v4121
        %v4123 = vpop.f32.mrb[0].mxu0
        %4124 = vmatprep.mubr.bf16.mxu0 0
        %4125 = vmatmul.mubr.bf16.gmra.mrb[0].mxu0 %v3907
        %v4126 = vpop.f32.mrb[0].mxu0
        %v4127 = vadd.f32 0.0, %v4126
        %v4128 = vpop.f32.mrb[0].mxu0
        %v4129 = vpop.f32.mrb[0].mxu0
        %v4130 = vadd.f32 0.0, %v4129
        %v4131 = vpop.f32.mrb[0].mxu0
        %4132 = vdwg.mxu0
        %v4133 = vld [vmem:[#allocation3] sm:$0xff]
        %v4134 = vld [vmem:[#allocation3 + $0x8] sm:$0xff]
        %v4135 = vld [vmem:[#allocation3 + $0x10] sm:$0xff]
        %v4136 = vld [vmem:[#allocation3 + $0x18] sm:$0xff]
        %v4137 = vld [vmem:[#allocation3 + $0x20] sm:$0xff]
        %v4138 = vld [vmem:[#allocation3 + $0x28] sm:$0xff]
        %v4139 = vld [vmem:[#allocation3 + $0x30] sm:$0xff]
        %v4140 = vld [vmem:[#allocation3 + $0x38] sm:$0xff]
        %v4141 = vld [vmem:[#allocation3 + $0x40] sm:$0xff]
        %v4142 = vld [vmem:[#allocation3 + $0x48] sm:$0xff]
        %v4143 = vld [vmem:[#allocation3 + $0x50] sm:$0xff]
        %v4144 = vld [vmem:[#allocation3 + $0x58] sm:$0xff]
        %v4145 = vld [vmem:[#allocation3 + $0x60] sm:$0xff]
        %v4146 = vld [vmem:[#allocation3 + $0x68] sm:$0xff]
        %v4147 = vld [vmem:[#allocation3 + $0x70] sm:$0xff]
        %v4148 = vld [vmem:[#allocation3 + $0x78] sm:$0xff]
        %v4149 = vld [vmem:[#allocation3 + $0x80] sm:$0xff]
        %v4150 = vld [vmem:[#allocation3 + $0x88] sm:$0xff]
        %v4151 = vld [vmem:[#allocation3 + $0x90] sm:$0xff]
        %v4152 = vld [vmem:[#allocation3 + $0x98] sm:$0xff]
        %v4153 = vld [vmem:[#allocation3 + $0xa0] sm:$0xff]
        %v4154 = vld [vmem:[#allocation3 + $0xa8] sm:$0xff]
        %v4155 = vld [vmem:[#allocation3 + $0xb0] sm:$0xff]
        %v4156 = vld [vmem:[#allocation3 + $0xb8] sm:$0xff]
        %v4157 = vld [vmem:[#allocation3 + $0xc0] sm:$0xff]
        %v4158 = vld [vmem:[#allocation3 + $0xc8] sm:$0xff]
        %v4159 = vld [vmem:[#allocation3 + $0xd0] sm:$0xff]
        %v4160 = vld [vmem:[#allocation3 + $0xd8] sm:$0xff]
        %v4161 = vld [vmem:[#allocation3 + $0xe0] sm:$0xff]
        %v4162 = vld [vmem:[#allocation3 + $0xe8] sm:$0xff]
        %v4163 = vld [vmem:[#allocation3 + $0xf0] sm:$0xff]
        %v4164 = vld [vmem:[#allocation3 + $0xf8] sm:$0xff]
        %v4165 = vadd.f32 %v4133, %v4007
        %v4166 = vadd.f32 %v4134, %v4010
        %v4167 = vadd.f32 %v4135, %v4015
        %v4168 = vadd.f32 %v4136, %v4018
        %v4169 = vadd.f32 %v4137, %v4023
        %v4170 = vadd.f32 %v4138, %v4026
        %v4171 = vadd.f32 %v4139, %v4031
        %v4172 = vadd.f32 %v4140, %v4034
        %v4173 = vadd.f32 %v4141, %v4039
        %v4174 = vadd.f32 %v4142, %v4042
        %v4175 = vadd.f32 %v4143, %v4047
        %v4176 = vadd.f32 %v4144, %v4050
        %v4177 = vadd.f32 %v4145, %v4055
        %v4178 = vadd.f32 %v4146, %v4058
        %v4179 = vadd.f32 %v4147, %v4063
        %v4180 = vadd.f32 %v4148, %v4066
        %v4181 = vadd.f32 %v4149, %v4071
        %v4182 = vadd.f32 %v4150, %v4074
        %v4183 = vadd.f32 %v4151, %v4079
        %v4184 = vadd.f32 %v4152, %v4082
        %v4185 = vadd.f32 %v4153, %v4087
        %v4186 = vadd.f32 %v4154, %v4090
        %v4187 = vadd.f32 %v4155, %v4095
        %v4188 = vadd.f32 %v4156, %v4098
        %v4189 = vadd.f32 %v4157, %v4103
        %v4190 = vadd.f32 %v4158, %v4106
        %v4191 = vadd.f32 %v4159, %v4111
        %v4192 = vadd.f32 %v4160, %v4114
        %v4193 = vadd.f32 %v4161, %v4119
        %v4194 = vadd.f32 %v4162, %v4122
        %v4195 = vadd.f32 %v4163, %v4127
        %v4196 = vadd.f32 %v4164, %v4130
        %4197 = vst [vmem:[#allocation3] sm:$0xff] %v4165
        %4198 = vst [vmem:[#allocation3 + $0x8] sm:$0xff] %v4166
        %4199 = vst [vmem:[#allocation3 + $0x10] sm:$0xff] %v4167
        %4200 = vst [vmem:[#allocation3 + $0x18] sm:$0xff] %v4168
        %4201 = vst [vmem:[#allocation3 + $0x20] sm:$0xff] %v4169
        %4202 = vst [vmem:[#allocation3 + $0x28] sm:$0xff] %v4170
        %4203 = vst [vmem:[#allocation3 + $0x30] sm:$0xff] %v4171
        %4204 = vst [vmem:[#allocation3 + $0x38] sm:$0xff] %v4172
        %4205 = vst [vmem:[#allocation3 + $0x40] sm:$0xff] %v4173
        %4206 = vst [vmem:[#allocation3 + $0x48] sm:$0xff] %v4174
        %4207 = vst [vmem:[#allocation3 + $0x50] sm:$0xff] %v4175
        %4208 = vst [vmem:[#allocation3 + $0x58] sm:$0xff] %v4176
        %4209 = vst [vmem:[#allocation3 + $0x60] sm:$0xff] %v4177
        %4210 = vst [vmem:[#allocation3 + $0x68] sm:$0xff] %v4178
        %4211 = vst [vmem:[#allocation3 + $0x70] sm:$0xff] %v4179
        %4212 = vst [vmem:[#allocation3 + $0x78] sm:$0xff] %v4180
        %4213 = vst [vmem:[#allocation3 + $0x80] sm:$0xff] %v4181
        %4214 = vst [vmem:[#allocation3 + $0x88] sm:$0xff] %v4182
        %4215 = vst [vmem:[#allocation3 + $0x90] sm:$0xff] %v4183
        %4216 = vst [vmem:[#allocation3 + $0x98] sm:$0xff] %v4184
        %4217 = vst [vmem:[#allocation3 + $0xa0] sm:$0xff] %v4185
        %4218 = vst [vmem:[#allocation3 + $0xa8] sm:$0xff] %v4186
        %4219 = vst [vmem:[#allocation3 + $0xb0] sm:$0xff] %v4187
        %4220 = vst [vmem:[#allocation3 + $0xb8] sm:$0xff] %v4188
        %4221 = vst [vmem:[#allocation3 + $0xc0] sm:$0xff] %v4189
        %4222 = vst [vmem:[#allocation3 + $0xc8] sm:$0xff] %v4190
        %4223 = vst [vmem:[#allocation3 + $0xd0] sm:$0xff] %v4191
        %4224 = vst [vmem:[#allocation3 + $0xd8] sm:$0xff] %v4192
        %4225 = vst [vmem:[#allocation3 + $0xe0] sm:$0xff] %v4193
        %4226 = vst [vmem:[#allocation3 + $0xe8] sm:$0xff] %v4194
        %4227 = vst [vmem:[#allocation3 + $0xf0] sm:$0xff] %v4195
        %4228 = vst [vmem:[#allocation3 + $0xf8] sm:$0xff] %v4196
        %v4245 = vrot.slane %v2993, 5
        %v4246 = vrot.slane %v4245, 4
        %v4247 = vrot.slane %v2994, 5
        %v4248 = vsel %vm2494, %v4246, %v4247
        %v4249 = vrot.slane %v4247, 4
        %v4250 = vrot.slane %v2995, 5
        %v4251 = vsel %vm2494, %v4249, %v4250
        %v4252 = vrot.slane %v2996, 5
        %v4253 = vrot.slane %v4252, 4
        %v4254 = vrot.slane %v2997, 5
        %v4255 = vsel %vm2494, %v4253, %v4254
        %v4256 = vrot.slane %v4254, 4
        %v4257 = vrot.slane %v2998, 5
        %v4258 = vsel %vm2494, %v4256, %v4257
        %v4259 = vrot.slane %v2999, 5
        %v4260 = vrot.slane %v4259, 4
        %v4261 = vrot.slane %v3000, 5
        %v4262 = vsel %vm2494, %v4260, %v4261
        %v4263 = vrot.slane %v4261, 4
        %v4264 = vrot.slane %v3001, 5
        %v4265 = vsel %vm2494, %v4263, %v4264
        %v4266 = vrot.slane %v3002, 5
        %v4267 = vrot.slane %v4266, 4
        %v4268 = vrot.slane %v3003, 5
        %v4269 = vsel %vm2494, %v4267, %v4268
        %v4270 = vrot.slane %v4268, 4
        %v4271 = vrot.slane %v3004, 5
        %v4272 = vsel %vm2494, %v4270, %v4271
        %v4273 = vrot.slane %v3005, 5
        %v4274 = vrot.slane %v4273, 4
        %v4275 = vrot.slane %v3006, 5
        %v4276 = vsel %vm2494, %v4274, %v4275
        %v4277 = vrot.slane %v4275, 4
        %v4278 = vrot.slane %v3007, 5
        %v4279 = vsel %vm2494, %v4277, %v4278
        %v4280 = vrot.slane %v3008, 5
        %v4281 = vrot.slane %v4280, 4
        %v4282 = vrot.slane %v3009, 5
        %v4283 = vsel %vm2494, %v4281, %v4282
        %v4284 = vrot.slane %v4282, 4
        %v4285 = vrot.slane %v3010, 5
        %v4286 = vsel %vm2494, %v4284, %v4285
        %v4287 = vrot.slane %v3011, 5
        %v4288 = vrot.slane %v4287, 4
        %v4289 = vrot.slane %v3012, 5
        %v4290 = vsel %vm2494, %v4288, %v4289
        %v4291 = vrot.slane %v4289, 4
        %v4292 = vrot.slane %v3013, 5
        %v4293 = vsel %vm2494, %v4291, %v4292
        %v4294 = vrot.slane %v3014, 5
        %v4295 = vrot.slane %v4294, 4
        %v4296 = vrot.slane %v3015, 5
        %v4297 = vsel %vm2494, %v4295, %v4296
        %v4298 = vrot.slane %v4296, 4
        %v4299 = vrot.slane %v3016, 5
        %v4300 = vsel %vm2494, %v4298, %v4299
        %v4301 = vrot.slane %v3017, 5
        %v4302 = vrot.slane %v4301, 4
        %v4303 = vrot.slane %v3018, 5
        %v4304 = vsel %vm2494, %v4302, %v4303
        %v4305 = vrot.slane %v4303, 4
        %v4306 = vrot.slane %v3019, 5
        %v4307 = vsel %vm2494, %v4305, %v4306
        %v4308 = vrot.slane %v3020, 5
        %v4309 = vrot.slane %v4308, 4
        %v4310 = vrot.slane %v3021, 5
        %v4311 = vsel %vm2494, %v4309, %v4310
        %v4312 = vrot.slane %v4310, 4
        %v4313 = vrot.slane %v3022, 5
        %v4314 = vsel %vm2494, %v4312, %v4313
        %v4315 = vrot.slane %v3023, 5
        %v4316 = vrot.slane %v4315, 4
        %v4317 = vrot.slane %v3024, 5
        %v4318 = vsel %vm2494, %v4316, %v4317
        %v4319 = vrot.slane %v4317, 4
        %v4320 = vrot.slane %v3025, 5
        %v4321 = vsel %vm2494, %v4319, %v4320
        %v4322 = vrot.slane %v3026, 5
        %v4323 = vrot.slane %v4322, 4
        %v4324 = vrot.slane %v3027, 5
        %v4325 = vsel %vm2494, %v4323, %v4324
        %v4326 = vrot.slane %v4324, 4
        %v4327 = vrot.slane %v3028, 5
        %v4328 = vsel %vm2494, %v4326, %v4327
        %v4329 = vrot.slane %v3029, 5
        %v4330 = vrot.slane %v4329, 4
        %v4331 = vrot.slane %v3030, 5
        %v4332 = vsel %vm2494, %v4330, %v4331
        %v4333 = vrot.slane %v4331, 4
        %v4334 = vrot.slane %v3031, 5
        %v4335 = vsel %vm2494, %v4333, %v4334
        %v4336 = vrot.slane %v3032, 5
        %v4337 = vrot.slane %v4336, 4
        %v4338 = vrot.slane %v3033, 5
        %v4339 = vsel %vm2494, %v4337, %v4338
        %v4340 = vrot.slane %v4338, 4
        %v4341 = vrot.slane %v3034, 5
        %v4342 = vsel %vm2494, %v4340, %v4341
        %v4343 = vrot.slane %v3035, 5
        %v4344 = vrot.slane %v4343, 4
        %v4345 = vrot.slane %v3036, 5
        %v4346 = vsel %vm2494, %v4344, %v4345
        %v4347 = vrot.slane %v4345, 4
        %v4348 = vrot.slane %v3037, 5
        %v4349 = vsel %vm2494, %v4347, %v4348
        %v4350 = vrot.slane %v3038, 5
        %v4351 = vrot.slane %v4350, 4
        %v4352 = vrot.slane %v3039, 5
        %v4353 = vsel %vm2494, %v4351, %v4352
        %v4354 = vrot.slane %v4352, 4
        %v4355 = vrot.slane %v3040, 5
        %v4356 = vsel %vm2494, %v4354, %v4355
        %s4357 = scalar_lea.vmem [#allocation9], 320
        %v4358 = vld [vmem:[%s4357] sm:$0xf]
        %v4359 = vld [vmem:[%s4357 + $0x4] sm:$0xf]
        %v4360 = vld [vmem:[%s4357 + $0x8] sm:$0xf]
        %v4361 = vld [vmem:[%s4357 + $0xc] sm:$0xf]
        %v4362 = vld [vmem:[%s4357 + $0x10] sm:$0xf]
        %v4363 = vld [vmem:[%s4357 + $0x14] sm:$0xf]
        %v4364 = vld [vmem:[%s4357 + $0x18] sm:$0xf]
        %v4365 = vld [vmem:[%s4357 + $0x1c] sm:$0xf]
        %v4366 = vld [vmem:[%s4357 + $0x20] sm:$0xf]
        %v4367 = vld [vmem:[%s4357 + $0x24] sm:$0xf]
        %v4368 = vld [vmem:[%s4357 + $0x28] sm:$0xf]
        %v4369 = vld [vmem:[%s4357 + $0x2c] sm:$0xf]
        %v4370 = vld [vmem:[%s4357 + $0x30] sm:$0xf]
        %v4371 = vld [vmem:[%s4357 + $0x34] sm:$0xf]
        %v4372 = vld [vmem:[%s4357 + $0x38] sm:$0xf]
        %v4373 = vld [vmem:[%s4357 + $0x3c] sm:$0xf]
        %v4374 = vunpack.c.l.b16 %v4248
        %v4375 = vunpack.c.l.b16 %v4251
        %v4376 = vunpack.c.l.b16 %v4255
        %v4377 = vunpack.c.l.b16 %v4258
        %v4378 = vunpack.c.l.b16 %v4262
        %v4379 = vunpack.c.l.b16 %v4265
        %v4380 = vunpack.c.l.b16 %v4269
        %v4381 = vunpack.c.l.b16 %v4272
        %v4382 = vunpack.c.l.b16 %v4276
        %v4383 = vunpack.c.l.b16 %v4279
        %v4384 = vunpack.c.l.b16 %v4283
        %v4385 = vunpack.c.l.b16 %v4286
        %v4386 = vunpack.c.l.b16 %v4290
        %v4387 = vunpack.c.l.b16 %v4293
        %v4388 = vunpack.c.l.b16 %v4297
        %v4389 = vunpack.c.l.b16 %v4300
        %v4390 = vunpack.c.l.b16 %v4304
        %v4391 = vunpack.c.l.b16 %v4307
        %v4392 = vunpack.c.l.b16 %v4311
        %v4393 = vunpack.c.l.b16 %v4314
        %v4394 = vunpack.c.l.b16 %v4318
        %v4395 = vunpack.c.l.b16 %v4321
        %v4396 = vunpack.c.l.b16 %v4325
        %v4397 = vunpack.c.l.b16 %v4328
        %v4398 = vunpack.c.l.b16 %v4332
        %v4399 = vunpack.c.l.b16 %v4335
        %v4400 = vunpack.c.l.b16 %v4339
        %v4401 = vunpack.c.l.b16 %v4342
        %v4402 = vunpack.c.l.b16 %v4346
        %v4403 = vunpack.c.l.b16 %v4349
        %v4404 = vunpack.c.l.b16 %v4353
        %v4405 = vunpack.c.l.b16 %v4356
        %v4406 = vpack.c.b16 %v4375, %v4374
        %v4407 = vpack.c.b16 %v4377, %v4376
        %v4408 = vpack.c.b16 %v4379, %v4378
        %v4409 = vpack.c.b16 %v4381, %v4380
        %v4410 = vpack.c.b16 %v4383, %v4382
        %v4411 = vpack.c.b16 %v4385, %v4384
        %v4412 = vpack.c.b16 %v4387, %v4386
        %v4413 = vpack.c.b16 %v4389, %v4388
        %v4414 = vpack.c.b16 %v4391, %v4390
        %v4415 = vpack.c.b16 %v4393, %v4392
        %v4416 = vpack.c.b16 %v4395, %v4394
        %v4417 = vpack.c.b16 %v4397, %v4396
        %v4418 = vpack.c.b16 %v4399, %v4398
        %v4419 = vpack.c.b16 %v4401, %v4400
        %v4420 = vpack.c.b16 %v4403, %v4402
        %v4421 = vpack.c.b16 %v4405, %v4404
        %v4454 = vunpack.c.l.b16 %v4358
        %v4455 = vunpack.c.l.b16 %v4359
        %v4456 = vunpack.c.l.b16 %v4360
        %v4457 = vunpack.c.l.b16 %v4361
        %v4458 = vunpack.c.l.b16 %v4362
        %v4459 = vunpack.c.l.b16 %v4363
        %v4460 = vunpack.c.l.b16 %v4364
        %v4461 = vunpack.c.l.b16 %v4365
        %v4462 = vunpack.c.l.b16 %v4366
        %v4463 = vunpack.c.l.b16 %v4367
        %v4464 = vunpack.c.l.b16 %v4368
        %v4465 = vunpack.c.l.b16 %v4369
        %v4466 = vunpack.c.l.b16 %v4370
        %v4467 = vunpack.c.l.b16 %v4371
        %v4468 = vunpack.c.l.b16 %v4372
        %v4469 = vunpack.c.l.b16 %v4373
        %v4470 = vpack.c.b16 %v4455, %v4454
        %v4471 = vpack.c.b16 %v4457, %v4456
        %v4472 = vpack.c.b16 %v4459, %v4458
        %v4473 = vpack.c.b16 %v4461, %v4460
        %v4474 = vpack.c.b16 %v4463, %v4462
        %v4475 = vpack.c.b16 %v4465, %v4464
        %v4476 = vpack.c.b16 %v4467, %v4466
        %v4477 = vpack.c.b16 %v4469, %v4468
        %4486 = vmatprep.subr.bf16.mxu0 0
        %4487 = vmatpush1.bf16.msra.mxu0 %v4470
        %4488 = vmatprep.subr.bf16.mxu0 0
        %4489 = vmatpush1.bf16.msra.mxu0 %v4471
        %4490 = vmatprep.subr.bf16.mxu0 0
        %4491 = vmatpush1.bf16.msra.mxu0 %v4472
        %4492 = vmatprep.subr.bf16.mxu0 0
        %4493 = vmatpush1.bf16.msra.mxu0 %v4473
        %4494 = vmatprep.subr.bf16.mxu0 0
        %4495 = vmatpush1.bf16.msra.mxu0 %v4474
        %4496 = vmatprep.subr.bf16.mxu0 0
        %4497 = vmatpush1.bf16.msra.mxu0 %v4475
        %4498 = vmatprep.subr.bf16.mxu0 0
        %4499 = vmatpush1.bf16.msra.mxu0 %v4476
        %4500 = vmatprep.subr.bf16.mxu0 0
        %4501 = vmatpush1.bf16.msra.mxu0 %v4477
        %4502 = vmatprep.subr.bf16.mxu0 0
        %4503 = vmatpush1.bf16.msra.mxu0 0
        %4504 = vmatprep.subr.bf16.mxu0 0
        %4505 = vmatpush1.bf16.msra.mxu0 0
        %4506 = vmatprep.subr.bf16.mxu0 0
        %4507 = vmatpush1.bf16.msra.mxu0 0
        %4508 = vmatprep.subr.bf16.mxu0 0
        %4509 = vmatpush1.bf16.msra.mxu0 0
        %4510 = vmatprep.subr.bf16.mxu0 0
        %4511 = vmatpush1.bf16.msra.mxu0 0
        %4512 = vmatprep.subr.bf16.mxu0 0
        %4513 = vmatpush1.bf16.msra.mxu0 0
        %4514 = vmatprep.subr.bf16.mxu0 0
        %4515 = vmatpush1.bf16.msra.mxu0 0
        %4516 = vmatprep.subr.bf16.mxu0 0
        %4517 = vmatpush1.bf16.msra.mxu0 0
        %4518 = vmatprep.mubr.bf16.mxu0 0
        %4519 = vmatmul.mubr.bf16.gmra.mrb[0].mxu0 %v4406
        %v4520 = vpop.f32.mrb[0].mxu0
        %v4521 = vadd.f32 0.0, %v4520
        %v4522 = vpop.f32.mrb[0].mxu0
        %v4523 = vpop.f32.mrb[0].mxu0
        %v4524 = vadd.f32 0.0, %v4523
        %v4525 = vpop.f32.mrb[0].mxu0
        %4526 = vmatprep.mubr.bf16.mxu0 0
        %4527 = vmatmul.mubr.bf16.gmra.mrb[0].mxu0 %v4407
        %v4528 = vpop.f32.mrb[0].mxu0
        %v4529 = vadd.f32 0.0, %v4528
        %v4530 = vpop.f32.mrb[0].mxu0
        %v4531 = vpop.f32.mrb[0].mxu0
        %v4532 = vadd.f32 0.0, %v4531
        %v4533 = vpop.f32.mrb[0].mxu0
        %4534 = vmatprep.mubr.bf16.mxu0 0
        %4535 = vmatmul.mubr.bf16.gmra.mrb[0].mxu0 %v4408
        %v4536 = vpop.f32.mrb[0].mxu0
        %v4537 = vadd.f32 0.0, %v4536
        %v4538 = vpop.f32.mrb[0].mxu0
        %v4539 = vpop.f32.mrb[0].mxu0
        %v4540 = vadd.f32 0.0, %v4539
        %v4541 = vpop.f32.mrb[0].mxu0
        %4542 = vmatprep.mubr.bf16.mxu0 0
        %4543 = vmatmul.mubr.bf16.gmra.mrb[0].mxu0 %v4409
        %v4544 = vpop.f32.mrb[0].mxu0
        %v4545 = vadd.f32 0.0, %v4544
        %v4546 = vpop.f32.mrb[0].mxu0
        %v4547 = vpop.f32.mrb[0].mxu0
        %v4548 = vadd.f32 0.0, %v4547
        %v4549 = vpop.f32.mrb[0].mxu0
        %4550 = vmatprep.mubr.bf16.mxu0 0
        %4551 = vmatmul.mubr.bf16.gmra.mrb[0].mxu0 %v4410
        %v4552 = vpop.f32.mrb[0].mxu0
        %v4553 = vadd.f32 0.0, %v4552
        %v4554 = vpop.f32.mrb[0].mxu0
        %v4555 = vpop.f32.mrb[0].mxu0
        %v4556 = vadd.f32 0.0, %v4555
        %v4557 = vpop.f32.mrb[0].mxu0
        %4558 = vmatprep.mubr.bf16.mxu0 0
        %4559 = vmatmul.mubr.bf16.gmra.mrb[0].mxu0 %v4411
        %v4560 = vpop.f32.mrb[0].mxu0
        %v4561 = vadd.f32 0.0, %v4560
        %v4562 = vpop.f32.mrb[0].mxu0
        %v4563 = vpop.f32.mrb[0].mxu0
        %v4564 = vadd.f32 0.0, %v4563
        %v4565 = vpop.f32.mrb[0].mxu0
        %4566 = vmatprep.mubr.bf16.mxu0 0
        %4567 = vmatmul.mubr.bf16.gmra.mrb[0].mxu0 %v4412
        %v4568 = vpop.f32.mrb[0].mxu0
        %v4569 = vadd.f32 0.0, %v4568
        %v4570 = vpop.f32.mrb[0].mxu0
        %v4571 = vpop.f32.mrb[0].mxu0
        %v4572 = vadd.f32 0.0, %v4571
        %v4573 = vpop.f32.mrb[0].mxu0
        %4574 = vmatprep.mubr.bf16.mxu0 0
        %4575 = vmatmul.mubr.bf16.gmra.mrb[0].mxu0 %v4413
        %v4576 = vpop.f32.mrb[0].mxu0
        %v4577 = vadd.f32 0.0, %v4576
        %v4578 = vpop.f32.mrb[0].mxu0
        %v4579 = vpop.f32.mrb[0].mxu0
        %v4580 = vadd.f32 0.0, %v4579
        %v4581 = vpop.f32.mrb[0].mxu0
        %4582 = vmatprep.mubr.bf16.mxu0 0
        %4583 = vmatmul.mubr.bf16.gmra.mrb[0].mxu0 %v4414
        %v4584 = vpop.f32.mrb[0].mxu0
        %v4585 = vadd.f32 0.0, %v4584
        %v4586 = vpop.f32.mrb[0].mxu0
        %v4587 = vpop.f32.mrb[0].mxu0
        %v4588 = vadd.f32 0.0, %v4587
        %v4589 = vpop.f32.mrb[0].mxu0
        %4590 = vmatprep.mubr.bf16.mxu0 0
        %4591 = vmatmul.mubr.bf16.gmra.mrb[0].mxu0 %v4415
        %v4592 = vpop.f32.mrb[0].mxu0
        %v4593 = vadd.f32 0.0, %v4592
        %v4594 = vpop.f32.mrb[0].mxu0
        %v4595 = vpop.f32.mrb[0].mxu0
        %v4596 = vadd.f32 0.0, %v4595
        %v4597 = vpop.f32.mrb[0].mxu0
        %4598 = vmatprep.mubr.bf16.mxu0 0
        %4599 = vmatmul.mubr.bf16.gmra.mrb[0].mxu0 %v4416
        %v4600 = vpop.f32.mrb[0].mxu0
        %v4601 = vadd.f32 0.0, %v4600
        %v4602 = vpop.f32.mrb[0].mxu0
        %v4603 = vpop.f32.mrb[0].mxu0
        %v4604 = vadd.f32 0.0, %v4603
        %v4605 = vpop.f32.mrb[0].mxu0
        %4606 = vmatprep.mubr.bf16.mxu0 0
        %4607 = vmatmul.mubr.bf16.gmra.mrb[0].mxu0 %v4417
        %v4608 = vpop.f32.mrb[0].mxu0
        %v4609 = vadd.f32 0.0, %v4608
        %v4610 = vpop.f32.mrb[0].mxu0
        %v4611 = vpop.f32.mrb[0].mxu0
        %v4612 = vadd.f32 0.0, %v4611
        %v4613 = vpop.f32.mrb[0].mxu0
        %4614 = vmatprep.mubr.bf16.mxu0 0
        %4615 = vmatmul.mubr.bf16.gmra.mrb[0].mxu0 %v4418
        %v4616 = vpop.f32.mrb[0].mxu0
        %v4617 = vadd.f32 0.0, %v4616
        %v4618 = vpop.f32.mrb[0].mxu0
        %v4619 = vpop.f32.mrb[0].mxu0
        %v4620 = vadd.f32 0.0, %v4619
        %v4621 = vpop.f32.mrb[0].mxu0
        %4622 = vmatprep.mubr.bf16.mxu0 0
        %4623 = vmatmul.mubr.bf16.gmra.mrb[0].mxu0 %v4419
        %v4624 = vpop.f32.mrb[0].mxu0
        %v4625 = vadd.f32 0.0, %v4624
        %v4626 = vpop.f32.mrb[0].mxu0
        %v4627 = vpop.f32.mrb[0].mxu0
        %v4628 = vadd.f32 0.0, %v4627
        %v4629 = vpop.f32.mrb[0].mxu0
        %4630 = vmatprep.mubr.bf16.mxu0 0
        %4631 = vmatmul.mubr.bf16.gmra.mrb[0].mxu0 %v4420
        %v4632 = vpop.f32.mrb[0].mxu0
        %v4633 = vadd.f32 0.0, %v4632
        %v4634 = vpop.f32.mrb[0].mxu0
        %v4635 = vpop.f32.mrb[0].mxu0
        %v4636 = vadd.f32 0.0, %v4635
        %v4637 = vpop.f32.mrb[0].mxu0
        %4638 = vmatprep.mubr.bf16.mxu0 0
        %4639 = vmatmul.mubr.bf16.gmra.mrb[0].mxu0 %v4421
        %v4640 = vpop.f32.mrb[0].mxu0
        %v4641 = vadd.f32 0.0, %v4640
        %v4642 = vpop.f32.mrb[0].mxu0
        %v4643 = vpop.f32.mrb[0].mxu0
        %v4644 = vadd.f32 0.0, %v4643
        %v4645 = vpop.f32.mrb[0].mxu0
        %4646 = vdwg.mxu0
        %v4647 = vld [vmem:[#allocation3] sm:$0xff]
        %v4648 = vld [vmem:[#allocation3 + $0x8] sm:$0xff]
        %v4649 = vld [vmem:[#allocation3 + $0x10] sm:$0xff]
        %v4650 = vld [vmem:[#allocation3 + $0x18] sm:$0xff]
        %v4651 = vld [vmem:[#allocation3 + $0x20] sm:$0xff]
        %v4652 = vld [vmem:[#allocation3 + $0x28] sm:$0xff]
        %v4653 = vld [vmem:[#allocation3 + $0x30] sm:$0xff]
        %v4654 = vld [vmem:[#allocation3 + $0x38] sm:$0xff]
        %v4655 = vld [vmem:[#allocation3 + $0x40] sm:$0xff]
        %v4656 = vld [vmem:[#allocation3 + $0x48] sm:$0xff]
        %v4657 = vld [vmem:[#allocation3 + $0x50] sm:$0xff]
        %v4658 = vld [vmem:[#allocation3 + $0x58] sm:$0xff]
        %v4659 = vld [vmem:[#allocation3 + $0x60] sm:$0xff]
        %v4660 = vld [vmem:[#allocation3 + $0x68] sm:$0xff]
        %v4661 = vld [vmem:[#allocation3 + $0x70] sm:$0xff]
        %v4662 = vld [vmem:[#allocation3 + $0x78] sm:$0xff]
        %v4663 = vld [vmem:[#allocation3 + $0x80] sm:$0xff]
        %v4664 = vld [vmem:[#allocation3 + $0x88] sm:$0xff]
        %v4665 = vld [vmem:[#allocation3 + $0x90] sm:$0xff]
        %v4666 = vld [vmem:[#allocation3 + $0x98] sm:$0xff]
        %v4667 = vld [vmem:[#allocation3 + $0xa0] sm:$0xff]
        %v4668 = vld [vmem:[#allocation3 + $0xa8] sm:$0xff]
        %v4669 = vld [vmem:[#allocation3 + $0xb0] sm:$0xff]
        %v4670 = vld [vmem:[#allocation3 + $0xb8] sm:$0xff]
        %v4671 = vld [vmem:[#allocation3 + $0xc0] sm:$0xff]
        %v4672 = vld [vmem:[#allocation3 + $0xc8] sm:$0xff]
        %v4673 = vld [vmem:[#allocation3 + $0xd0] sm:$0xff]
        %v4674 = vld [vmem:[#allocation3 + $0xd8] sm:$0xff]
        %v4675 = vld [vmem:[#allocation3 + $0xe0] sm:$0xff]
        %v4676 = vld [vmem:[#allocation3 + $0xe8] sm:$0xff]
        %v4677 = vld [vmem:[#allocation3 + $0xf0] sm:$0xff]
        %v4678 = vld [vmem:[#allocation3 + $0xf8] sm:$0xff]
        %v4679 = vadd.f32 %v4647, %v4521
        %v4680 = vadd.f32 %v4648, %v4524
        %v4681 = vadd.f32 %v4649, %v4529
        %v4682 = vadd.f32 %v4650, %v4532
        %v4683 = vadd.f32 %v4651, %v4537
        %v4684 = vadd.f32 %v4652, %v4540
        %v4685 = vadd.f32 %v4653, %v4545
        %v4686 = vadd.f32 %v4654, %v4548
        %v4687 = vadd.f32 %v4655, %v4553
        %v4688 = vadd.f32 %v4656, %v4556
        %v4689 = vadd.f32 %v4657, %v4561
        %v4690 = vadd.f32 %v4658, %v4564
        %v4691 = vadd.f32 %v4659, %v4569
        %v4692 = vadd.f32 %v4660, %v4572
        %v4693 = vadd.f32 %v4661, %v4577
        %v4694 = vadd.f32 %v4662, %v4580
        %v4695 = vadd.f32 %v4663, %v4585
        %v4696 = vadd.f32 %v4664, %v4588
        %v4697 = vadd.f32 %v4665, %v4593
        %v4698 = vadd.f32 %v4666, %v4596
        %v4699 = vadd.f32 %v4667, %v4601
        %v4700 = vadd.f32 %v4668, %v4604
        %v4701 = vadd.f32 %v4669, %v4609
        %v4702 = vadd.f32 %v4670, %v4612
        %v4703 = vadd.f32 %v4671, %v4617
        %v4704 = vadd.f32 %v4672, %v4620
        %v4705 = vadd.f32 %v4673, %v4625
        %v4706 = vadd.f32 %v4674, %v4628
        %v4707 = vadd.f32 %v4675, %v4633
        %v4708 = vadd.f32 %v4676, %v4636
        %v4709 = vadd.f32 %v4677, %v4641
        %v4710 = vadd.f32 %v4678, %v4644
        %4711 = vst [vmem:[#allocation3] sm:$0xff] %v4679
        %4712 = vst [vmem:[#allocation3 + $0x8] sm:$0xff] %v4680
        %4713 = vst [vmem:[#allocation3 + $0x10] sm:$0xff] %v4681
        %4714 = vst [vmem:[#allocation3 + $0x18] sm:$0xff] %v4682
        %4715 = vst [vmem:[#allocation3 + $0x20] sm:$0xff] %v4683
        %4716 = vst [vmem:[#allocation3 + $0x28] sm:$0xff] %v4684
        %4717 = vst [vmem:[#allocation3 + $0x30] sm:$0xff] %v4685
        %4718 = vst [vmem:[#allocation3 + $0x38] sm:$0xff] %v4686
        %4719 = vst [vmem:[#allocation3 + $0x40] sm:$0xff] %v4687
        %4720 = vst [vmem:[#allocation3 + $0x48] sm:$0xff] %v4688
        %4721 = vst [vmem:[#allocation3 + $0x50] sm:$0xff] %v4689
        %4722 = vst [vmem:[#allocation3 + $0x58] sm:$0xff] %v4690
        %4723 = vst [vmem:[#allocation3 + $0x60] sm:$0xff] %v4691
        %4724 = vst [vmem:[#allocation3 + $0x68] sm:$0xff] %v4692
        %4725 = vst [vmem:[#allocation3 + $0x70] sm:$0xff] %v4693
        %4726 = vst [vmem:[#allocation3 + $0x78] sm:$0xff] %v4694
        %4727 = vst [vmem:[#allocation3 + $0x80] sm:$0xff] %v4695
        %4728 = vst [vmem:[#allocation3 + $0x88] sm:$0xff] %v4696
        %4729 = vst [vmem:[#allocation3 + $0x90] sm:$0xff] %v4697
        %4730 = vst [vmem:[#allocation3 + $0x98] sm:$0xff] %v4698
        %4731 = vst [vmem:[#allocation3 + $0xa0] sm:$0xff] %v4699
        %4732 = vst [vmem:[#allocation3 + $0xa8] sm:$0xff] %v4700
        %4733 = vst [vmem:[#allocation3 + $0xb0] sm:$0xff] %v4701
        %4734 = vst [vmem:[#allocation3 + $0xb8] sm:$0xff] %v4702
        %4735 = vst [vmem:[#allocation3 + $0xc0] sm:$0xff] %v4703
        %4736 = vst [vmem:[#allocation3 + $0xc8] sm:$0xff] %v4704
        %4737 = vst [vmem:[#allocation3 + $0xd0] sm:$0xff] %v4705
        %4738 = vst [vmem:[#allocation3 + $0xd8] sm:$0xff] %v4706
        %4739 = vst [vmem:[#allocation3 + $0xe0] sm:$0xff] %v4707
        %4740 = vst [vmem:[#allocation3 + $0xe8] sm:$0xff] %v4708
        %4741 = vst [vmem:[#allocation3 + $0xf0] sm:$0xff] %v4709
        %4742 = vst [vmem:[#allocation3 + $0xf8] sm:$0xff] %v4710
        %s4743 = scalar_lea.vmem [#allocation2], 24
        %v4744 = vld [vmem:[%s4743] sm:$0xf]
        %v4745 = vld [vmem:[%s4743 + $0x4] sm:$0xf]
        %v4746 = vld [vmem:[%s4743 + $0x8] sm:$0xf]
        %v4747 = vld [vmem:[%s4743 + $0xc] sm:$0xf]
        %v4748 = vld [vmem:[%s4743 + $0x10] sm:$0xf]
        %v4749 = vld [vmem:[%s4743 + $0x14] sm:$0xf]
        %v4750 = vld [vmem:[%s4743 + $0x18] sm:$0xf]
        %v4751 = vld [vmem:[%s4743 + $0x1c] sm:$0xf]
        %v4752 = vld [vmem:[%s4743 + $0x20] sm:$0xf]
        %v4753 = vld [vmem:[%s4743 + $0x24] sm:$0xf]
        %v4754 = vld [vmem:[%s4743 + $0x28] sm:$0xf]
        %v4755 = vld [vmem:[%s4743 + $0x2c] sm:$0xf]
        %v4756 = vld [vmem:[%s4743 + $0x30] sm:$0xf]
        %v4757 = vld [vmem:[%s4743 + $0x34] sm:$0xf]
        %v4758 = vld [vmem:[%s4743 + $0x38] sm:$0xf]
        %v4759 = vld [vmem:[%s4743 + $0x3c] sm:$0xf]
        %v4760 = vld [vmem:[%s4743 + $0x40] sm:$0xf]
        %v4761 = vld [vmem:[%s4743 + $0x44] sm:$0xf]
        %v4762 = vld [vmem:[%s4743 + $0x48] sm:$0xf]
        %v4763 = vld [vmem:[%s4743 + $0x4c] sm:$0xf]
        %v4764 = vld [vmem:[%s4743 + $0x50] sm:$0xf]
        %v4765 = vld [vmem:[%s4743 + $0x54] sm:$0xf]
        %v4766 = vld [vmem:[%s4743 + $0x58] sm:$0xf]
        %v4767 = vld [vmem:[%s4743 + $0x5c] sm:$0xf]
        %v4768 = vld [vmem:[%s4743 + $0x60] sm:$0xf]
        %v4769 = vld [vmem:[%s4743 + $0x64] sm:$0xf]
        %v4770 = vld [vmem:[%s4743 + $0x68] sm:$0xf]
        %v4771 = vld [vmem:[%s4743 + $0x6c] sm:$0xf]
        %v4772 = vld [vmem:[%s4743 + $0x70] sm:$0xf]
        %v4773 = vld [vmem:[%s4743 + $0x74] sm:$0xf]
        %v4774 = vld [vmem:[%s4743 + $0x78] sm:$0xf]
        %v4775 = vld [vmem:[%s4743 + $0x7c] sm:$0xf]
        %v4776 = vld [vmem:[%s4743 + $0x80] sm:$0xf]
        %v4777 = vld [vmem:[%s4743 + $0x84] sm:$0xf]
        %v4778 = vld [vmem:[%s4743 + $0x88] sm:$0xf]
        %v4779 = vld [vmem:[%s4743 + $0x8c] sm:$0xf]
        %v4780 = vld [vmem:[%s4743 + $0x90] sm:$0xf]
        %v4781 = vld [vmem:[%s4743 + $0x94] sm:$0xf]
        %v4782 = vld [vmem:[%s4743 + $0x98] sm:$0xf]
        %v4783 = vld [vmem:[%s4743 + $0x9c] sm:$0xf]
        %v4784 = vld [vmem:[%s4743 + $0xa0] sm:$0xf]
        %v4785 = vld [vmem:[%s4743 + $0xa4] sm:$0xf]
        %v4786 = vld [vmem:[%s4743 + $0xa8] sm:$0xf]
        %v4787 = vld [vmem:[%s4743 + $0xac] sm:$0xf]
        %v4788 = vld [vmem:[%s4743 + $0xb0] sm:$0xf]
        %v4789 = vld [vmem:[%s4743 + $0xb4] sm:$0xf]
        %v4790 = vld [vmem:[%s4743 + $0xb8] sm:$0xf]
        %v4791 = vld [vmem:[%s4743 + $0xbc] sm:$0xf]
        %s4792 = scalar_lea.vmem [#allocation9], 384
        %v4793 = vld [vmem:[%s4792] sm:$0xf]
        %v4794 = vld [vmem:[%s4792 + $0x4] sm:$0xf]
        %v4795 = vld [vmem:[%s4792 + $0x8] sm:$0xf]
        %v4796 = vld [vmem:[%s4792 + $0xc] sm:$0xf]
        %v4797 = vld [vmem:[%s4792 + $0x10] sm:$0xf]
        %v4798 = vld [vmem:[%s4792 + $0x14] sm:$0xf]
        %v4799 = vld [vmem:[%s4792 + $0x18] sm:$0xf]
        %v4800 = vld [vmem:[%s4792 + $0x1c] sm:$0xf]
        %v4801 = vld [vmem:[%s4792 + $0x20] sm:$0xf]
        %v4802 = vld [vmem:[%s4792 + $0x24] sm:$0xf]
        %v4803 = vld [vmem:[%s4792 + $0x28] sm:$0xf]
        %v4804 = vld [vmem:[%s4792 + $0x2c] sm:$0xf]
        %v4805 = vld [vmem:[%s4792 + $0x30] sm:$0xf]
        %v4806 = vld [vmem:[%s4792 + $0x34] sm:$0xf]
        %v4807 = vld [vmem:[%s4792 + $0x38] sm:$0xf]
        %v4808 = vld [vmem:[%s4792 + $0x3c] sm:$0xf]
        %v4841 = vunpack.c.l.b16 %v4744
        %v4842 = vunpack.c.l.b16 %v4745
        %v4843 = vunpack.c.l.b16 %v4747
        %v4844 = vunpack.c.l.b16 %v4748
        %v4845 = vunpack.c.l.b16 %v4750
        %v4846 = vunpack.c.l.b16 %v4751
        %v4847 = vunpack.c.l.b16 %v4753
        %v4848 = vunpack.c.l.b16 %v4754
        %v4849 = vunpack.c.l.b16 %v4756
        %v4850 = vunpack.c.l.b16 %v4757
        %v4851 = vunpack.c.l.b16 %v4759
        %v4852 = vunpack.c.l.b16 %v4760
        %v4853 = vunpack.c.l.b16 %v4762
        %v4854 = vunpack.c.l.b16 %v4763
        %v4855 = vunpack.c.l.b16 %v4765
        %v4856 = vunpack.c.l.b16 %v4766
        %v4857 = vunpack.c.l.b16 %v4768
        %v4858 = vunpack.c.l.b16 %v4769
        %v4859 = vunpack.c.l.b16 %v4771
        %v4860 = vunpack.c.l.b16 %v4772
        %v4861 = vunpack.c.l.b16 %v4774
        %v4862 = vunpack.c.l.b16 %v4775
        %v4863 = vunpack.c.l.b16 %v4777
        %v4864 = vunpack.c.l.b16 %v4778
        %v4865 = vunpack.c.l.b16 %v4780
        %v4866 = vunpack.c.l.b16 %v4781
        %v4867 = vunpack.c.l.b16 %v4783
        %v4868 = vunpack.c.l.b16 %v4784
        %v4869 = vunpack.c.l.b16 %v4786
        %v4870 = vunpack.c.l.b16 %v4787
        %v4871 = vunpack.c.l.b16 %v4789
        %v4872 = vunpack.c.l.b16 %v4790
        %v4873 = vpack.c.b16 %v4842, %v4841
        %v4874 = vpack.c.b16 %v4844, %v4843
        %v4875 = vpack.c.b16 %v4846, %v4845
        %v4876 = vpack.c.b16 %v4848, %v4847
        %v4877 = vpack.c.b16 %v4850, %v4849
        %v4878 = vpack.c.b16 %v4852, %v4851
        %v4879 = vpack.c.b16 %v4854, %v4853
        %v4880 = vpack.c.b16 %v4856, %v4855
        %v4881 = vpack.c.b16 %v4858, %v4857
        %v4882 = vpack.c.b16 %v4860, %v4859
        %v4883 = vpack.c.b16 %v4862, %v4861
        %v4884 = vpack.c.b16 %v4864, %v4863
        %v4885 = vpack.c.b16 %v4866, %v4865
        %v4886 = vpack.c.b16 %v4868, %v4867
        %v4887 = vpack.c.b16 %v4870, %v4869
        %v4888 = vpack.c.b16 %v4872, %v4871
        %v4921 = vunpack.c.l.b16 %v4793
        %v4922 = vunpack.c.l.b16 %v4794
        %v4923 = vunpack.c.l.b16 %v4795
        %v4924 = vunpack.c.l.b16 %v4796
        %v4925 = vunpack.c.l.b16 %v4797
        %v4926 = vunpack.c.l.b16 %v4798
        %v4927 = vunpack.c.l.b16 %v4799
        %v4928 = vunpack.c.l.b16 %v4800
        %v4929 = vunpack.c.l.b16 %v4801
        %v4930 = vunpack.c.l.b16 %v4802
        %v4931 = vunpack.c.l.b16 %v4803
        %v4932 = vunpack.c.l.b16 %v4804
        %v4933 = vunpack.c.l.b16 %v4805
        %v4934 = vunpack.c.l.b16 %v4806
        %v4935 = vunpack.c.l.b16 %v4807
        %v4936 = vunpack.c.l.b16 %v4808
        %v4937 = vpack.c.b16 %v4922, %v4921
        %v4938 = vpack.c.b16 %v4924, %v4923
        %v4939 = vpack.c.b16 %v4926, %v4925
        %v4940 = vpack.c.b16 %v4928, %v4927
        %v4941 = vpack.c.b16 %v4930, %v4929
        %v4942 = vpack.c.b16 %v4932, %v4931
        %v4943 = vpack.c.b16 %v4934, %v4933
        %v4944 = vpack.c.b16 %v4936, %v4935
        %4953 = vmatprep.subr.bf16.mxu0 0
        %4954 = vmatpush1.bf16.msra.mxu0 %v4937
        %4955 = vmatprep.subr.bf16.mxu0 0
        %4956 = vmatpush1.bf16.msra.mxu0 %v4938
        %4957 = vmatprep.subr.bf16.mxu0 0
        %4958 = vmatpush1.bf16.msra.mxu0 %v4939
        %4959 = vmatprep.subr.bf16.mxu0 0
        %4960 = vmatpush1.bf16.msra.mxu0 %v4940
        %4961 = vmatprep.subr.bf16.mxu0 0
        %4962 = vmatpush1.bf16.msra.mxu0 %v4941
        %4963 = vmatprep.subr.bf16.mxu0 0
        %4964 = vmatpush1.bf16.msra.mxu0 %v4942
        %4965 = vmatprep.subr.bf16.mxu0 0
        %4966 = vmatpush1.bf16.msra.mxu0 %v4943
        %4967 = vmatprep.subr.bf16.mxu0 0
        %4968 = vmatpush1.bf16.msra.mxu0 %v4944
        %4969 = vmatprep.subr.bf16.mxu0 0
        %4970 = vmatpush1.bf16.msra.mxu0 0
        %4971 = vmatprep.subr.bf16.mxu0 0
        %4972 = vmatpush1.bf16.msra.mxu0 0
        %4973 = vmatprep.subr.bf16.mxu0 0
        %4974 = vmatpush1.bf16.msra.mxu0 0
        %4975 = vmatprep.subr.bf16.mxu0 0
        %4976 = vmatpush1.bf16.msra.mxu0 0
        %4977 = vmatprep.subr.bf16.mxu0 0
        %4978 = vmatpush1.bf16.msra.mxu0 0
        %4979 = vmatprep.subr.bf16.mxu0 0
        %4980 = vmatpush1.bf16.msra.mxu0 0
        %4981 = vmatprep.subr.bf16.mxu0 0
        %4982 = vmatpush1.bf16.msra.mxu0 0
        %4983 = vmatprep.subr.bf16.mxu0 0
        %4984 = vmatpush1.bf16.msra.mxu0 0
        %4985 = vmatprep.mubr.bf16.mxu0 0
        %4986 = vmatmul.mubr.bf16.gmra.mrb[0].mxu0 %v4873
        %v4987 = vpop.f32.mrb[0].mxu0
        %v4988 = vadd.f32 0.0, %v4987
        %v4989 = vpop.f32.mrb[0].mxu0
        %v4990 = vpop.f32.mrb[0].mxu0
        %v4991 = vadd.f32 0.0, %v4990
        %v4992 = vpop.f32.mrb[0].mxu0
        %4993 = vmatprep.mubr.bf16.mxu0 0
        %4994 = vmatmul.mubr.bf16.gmra.mrb[0].mxu0 %v4874
        %v4995 = vpop.f32.mrb[0].mxu0
        %v4996 = vadd.f32 0.0, %v4995
        %v4997 = vpop.f32.mrb[0].mxu0
        %v4998 = vpop.f32.mrb[0].mxu0
        %v4999 = vadd.f32 0.0, %v4998
        %v5000 = vpop.f32.mrb[0].mxu0
        %5001 = vmatprep.mubr.bf16.mxu0 0
        %5002 = vmatmul.mubr.bf16.gmra.mrb[0].mxu0 %v4875
        %v5003 = vpop.f32.mrb[0].mxu0
        %v5004 = vadd.f32 0.0, %v5003
        %v5005 = vpop.f32.mrb[0].mxu0
        %v5006 = vpop.f32.mrb[0].mxu0
        %v5007 = vadd.f32 0.0, %v5006
        %v5008 = vpop.f32.mrb[0].mxu0
        %5009 = vmatprep.mubr.bf16.mxu0 0
        %5010 = vmatmul.mubr.bf16.gmra.mrb[0].mxu0 %v4876
        %v5011 = vpop.f32.mrb[0].mxu0
        %v5012 = vadd.f32 0.0, %v5011
        %v5013 = vpop.f32.mrb[0].mxu0
        %v5014 = vpop.f32.mrb[0].mxu0
        %v5015 = vadd.f32 0.0, %v5014
        %v5016 = vpop.f32.mrb[0].mxu0
        %5017 = vmatprep.mubr.bf16.mxu0 0
        %5018 = vmatmul.mubr.bf16.gmra.mrb[0].mxu0 %v4877
        %v5019 = vpop.f32.mrb[0].mxu0
        %v5020 = vadd.f32 0.0, %v5019
        %v5021 = vpop.f32.mrb[0].mxu0
        %v5022 = vpop.f32.mrb[0].mxu0
        %v5023 = vadd.f32 0.0, %v5022
        %v5024 = vpop.f32.mrb[0].mxu0
        %5025 = vmatprep.mubr.bf16.mxu0 0
        %5026 = vmatmul.mubr.bf16.gmra.mrb[0].mxu0 %v4878
        %v5027 = vpop.f32.mrb[0].mxu0
        %v5028 = vadd.f32 0.0, %v5027
        %v5029 = vpop.f32.mrb[0].mxu0
        %v5030 = vpop.f32.mrb[0].mxu0
        %v5031 = vadd.f32 0.0, %v5030
        %v5032 = vpop.f32.mrb[0].mxu0
        %5033 = vmatprep.mubr.bf16.mxu0 0
        %5034 = vmatmul.mubr.bf16.gmra.mrb[0].mxu0 %v4879
        %v5035 = vpop.f32.mrb[0].mxu0
        %v5036 = vadd.f32 0.0, %v5035
        %v5037 = vpop.f32.mrb[0].mxu0
        %v5038 = vpop.f32.mrb[0].mxu0
        %v5039 = vadd.f32 0.0, %v5038
        %v5040 = vpop.f32.mrb[0].mxu0
        %5041 = vmatprep.mubr.bf16.mxu0 0
        %5042 = vmatmul.mubr.bf16.gmra.mrb[0].mxu0 %v4880
        %v5043 = vpop.f32.mrb[0].mxu0
        %v5044 = vadd.f32 0.0, %v5043
        %v5045 = vpop.f32.mrb[0].mxu0
        %v5046 = vpop.f32.mrb[0].mxu0
        %v5047 = vadd.f32 0.0, %v5046
        %v5048 = vpop.f32.mrb[0].mxu0
        %5049 = vmatprep.mubr.bf16.mxu0 0
        %5050 = vmatmul.mubr.bf16.gmra.mrb[0].mxu0 %v4881
        %v5051 = vpop.f32.mrb[0].mxu0
        %v5052 = vadd.f32 0.0, %v5051
        %v5053 = vpop.f32.mrb[0].mxu0
        %v5054 = vpop.f32.mrb[0].mxu0
        %v5055 = vadd.f32 0.0, %v5054
        %v5056 = vpop.f32.mrb[0].mxu0
        %5057 = vmatprep.mubr.bf16.mxu0 0
        %5058 = vmatmul.mubr.bf16.gmra.mrb[0].mxu0 %v4882
        %v5059 = vpop.f32.mrb[0].mxu0
        %v5060 = vadd.f32 0.0, %v5059
        %v5061 = vpop.f32.mrb[0].mxu0
        %v5062 = vpop.f32.mrb[0].mxu0
        %v5063 = vadd.f32 0.0, %v5062
        %v5064 = vpop.f32.mrb[0].mxu0
        %5065 = vmatprep.mubr.bf16.mxu0 0
        %5066 = vmatmul.mubr.bf16.gmra.mrb[0].mxu0 %v4883
        %v5067 = vpop.f32.mrb[0].mxu0
        %v5068 = vadd.f32 0.0, %v5067
        %v5069 = vpop.f32.mrb[0].mxu0
        %v5070 = vpop.f32.mrb[0].mxu0
        %v5071 = vadd.f32 0.0, %v5070
        %v5072 = vpop.f32.mrb[0].mxu0
        %5073 = vmatprep.mubr.bf16.mxu0 0
        %5074 = vmatmul.mubr.bf16.gmra.mrb[0].mxu0 %v4884
        %v5075 = vpop.f32.mrb[0].mxu0
        %v5076 = vadd.f32 0.0, %v5075
        %v5077 = vpop.f32.mrb[0].mxu0
        %v5078 = vpop.f32.mrb[0].mxu0
        %v5079 = vadd.f32 0.0, %v5078
        %v5080 = vpop.f32.mrb[0].mxu0
        %5081 = vmatprep.mubr.bf16.mxu0 0
        %5082 = vmatmul.mubr.bf16.gmra.mrb[0].mxu0 %v4885
        %v5083 = vpop.f32.mrb[0].mxu0
        %v5084 = vadd.f32 0.0, %v5083
        %v5085 = vpop.f32.mrb[0].mxu0
        %v5086 = vpop.f32.mrb[0].mxu0
        %v5087 = vadd.f32 0.0, %v5086
        %v5088 = vpop.f32.mrb[0].mxu0
        %5089 = vmatprep.mubr.bf16.mxu0 0
        %5090 = vmatmul.mubr.bf16.gmra.mrb[0].mxu0 %v4886
        %v5091 = vpop.f32.mrb[0].mxu0
        %v5092 = vadd.f32 0.0, %v5091
        %v5093 = vpop.f32.mrb[0].mxu0
        %v5094 = vpop.f32.mrb[0].mxu0
        %v5095 = vadd.f32 0.0, %v5094
        %v5096 = vpop.f32.mrb[0].mxu0
        %5097 = vmatprep.mubr.bf16.mxu0 0
        %5098 = vmatmul.mubr.bf16.gmra.mrb[0].mxu0 %v4887
        %v5099 = vpop.f32.mrb[0].mxu0
        %v5100 = vadd.f32 0.0, %v5099
        %v5101 = vpop.f32.mrb[0].mxu0
        %v5102 = vpop.f32.mrb[0].mxu0
        %v5103 = vadd.f32 0.0, %v5102
        %v5104 = vpop.f32.mrb[0].mxu0
        %5105 = vmatprep.mubr.bf16.mxu0 0
        %5106 = vmatmul.mubr.bf16.gmra.mrb[0].mxu0 %v4888
        %v5107 = vpop.f32.mrb[0].mxu0
        %v5108 = vadd.f32 0.0, %v5107
        %v5109 = vpop.f32.mrb[0].mxu0
        %v5110 = vpop.f32.mrb[0].mxu0
        %v5111 = vadd.f32 0.0, %v5110
        %v5112 = vpop.f32.mrb[0].mxu0
        %5113 = vdwg.mxu0
        %v5114 = vld [vmem:[#allocation3] sm:$0xff]
        %v5115 = vld [vmem:[#allocation3 + $0x8] sm:$0xff]
        %v5116 = vld [vmem:[#allocation3 + $0x10] sm:$0xff]
        %v5117 = vld [vmem:[#allocation3 + $0x18] sm:$0xff]
        %v5118 = vld [vmem:[#allocation3 + $0x20] sm:$0xff]
        %v5119 = vld [vmem:[#allocation3 + $0x28] sm:$0xff]
        %v5120 = vld [vmem:[#allocation3 + $0x30] sm:$0xff]
        %v5121 = vld [vmem:[#allocation3 + $0x38] sm:$0xff]
        %v5122 = vld [vmem:[#allocation3 + $0x40] sm:$0xff]
        %v5123 = vld [vmem:[#allocation3 + $0x48] sm:$0xff]
        %v5124 = vld [vmem:[#allocation3 + $0x50] sm:$0xff]
        %v5125 = vld [vmem:[#allocation3 + $0x58] sm:$0xff]
        %v5126 = vld [vmem:[#allocation3 + $0x60] sm:$0xff]
        %v5127 = vld [vmem:[#allocation3 + $0x68] sm:$0xff]
        %v5128 = vld [vmem:[#allocation3 + $0x70] sm:$0xff]
        %v5129 = vld [vmem:[#allocation3 + $0x78] sm:$0xff]
        %v5130 = vld [vmem:[#allocation3 + $0x80] sm:$0xff]
        %v5131 = vld [vmem:[#allocation3 + $0x88] sm:$0xff]
        %v5132 = vld [vmem:[#allocation3 + $0x90] sm:$0xff]
        %v5133 = vld [vmem:[#allocation3 + $0x98] sm:$0xff]
        %v5134 = vld [vmem:[#allocation3 + $0xa0] sm:$0xff]
        %v5135 = vld [vmem:[#allocation3 + $0xa8] sm:$0xff]
        %v5136 = vld [vmem:[#allocation3 + $0xb0] sm:$0xff]
        %v5137 = vld [vmem:[#allocation3 + $0xb8] sm:$0xff]
        %v5138 = vld [vmem:[#allocation3 + $0xc0] sm:$0xff]
        %v5139 = vld [vmem:[#allocation3 + $0xc8] sm:$0xff]
        %v5140 = vld [vmem:[#allocation3 + $0xd0] sm:$0xff]
        %v5141 = vld [vmem:[#allocation3 + $0xd8] sm:$0xff]
        %v5142 = vld [vmem:[#allocation3 + $0xe0] sm:$0xff]
        %v5143 = vld [vmem:[#allocation3 + $0xe8] sm:$0xff]
        %v5144 = vld [vmem:[#allocation3 + $0xf0] sm:$0xff]
        %v5145 = vld [vmem:[#allocation3 + $0xf8] sm:$0xff]
        %v5146 = vadd.f32 %v5114, %v4988
        %v5147 = vadd.f32 %v5115, %v4991
        %v5148 = vadd.f32 %v5116, %v4996
        %v5149 = vadd.f32 %v5117, %v4999
        %v5150 = vadd.f32 %v5118, %v5004
        %v5151 = vadd.f32 %v5119, %v5007
        %v5152 = vadd.f32 %v5120, %v5012
        %v5153 = vadd.f32 %v5121, %v5015
        %v5154 = vadd.f32 %v5122, %v5020
        %v5155 = vadd.f32 %v5123, %v5023
        %v5156 = vadd.f32 %v5124, %v5028
        %v5157 = vadd.f32 %v5125, %v5031
        %v5158 = vadd.f32 %v5126, %v5036
        %v5159 = vadd.f32 %v5127, %v5039
        %v5160 = vadd.f32 %v5128, %v5044
        %v5161 = vadd.f32 %v5129, %v5047
        %v5162 = vadd.f32 %v5130, %v5052
        %v5163 = vadd.f32 %v5131, %v5055
        %v5164 = vadd.f32 %v5132, %v5060
        %v5165 = vadd.f32 %v5133, %v5063
        %v5166 = vadd.f32 %v5134, %v5068
        %v5167 = vadd.f32 %v5135, %v5071
        %v5168 = vadd.f32 %v5136, %v5076
        %v5169 = vadd.f32 %v5137, %v5079
        %v5170 = vadd.f32 %v5138, %v5084
        %v5171 = vadd.f32 %v5139, %v5087
        %v5172 = vadd.f32 %v5140, %v5092
        %v5173 = vadd.f32 %v5141, %v5095
        %v5174 = vadd.f32 %v5142, %v5100
        %v5175 = vadd.f32 %v5143, %v5103
        %v5176 = vadd.f32 %v5144, %v5108
        %v5177 = vadd.f32 %v5145, %v5111
        %5178 = vst [vmem:[#allocation3] sm:$0xff] %v5146
        %5179 = vst [vmem:[#allocation3 + $0x8] sm:$0xff] %v5147
        %5180 = vst [vmem:[#allocation3 + $0x10] sm:$0xff] %v5148
        %5181 = vst [vmem:[#allocation3 + $0x18] sm:$0xff] %v5149
        %5182 = vst [vmem:[#allocation3 + $0x20] sm:$0xff] %v5150
        %5183 = vst [vmem:[#allocation3 + $0x28] sm:$0xff] %v5151
        %5184 = vst [vmem:[#allocation3 + $0x30] sm:$0xff] %v5152
        %5185 = vst [vmem:[#allocation3 + $0x38] sm:$0xff] %v5153
        %5186 = vst [vmem:[#allocation3 + $0x40] sm:$0xff] %v5154
        %5187 = vst [vmem:[#allocation3 + $0x48] sm:$0xff] %v5155
        %5188 = vst [vmem:[#allocation3 + $0x50] sm:$0xff] %v5156
        %5189 = vst [vmem:[#allocation3 + $0x58] sm:$0xff] %v5157
        %5190 = vst [vmem:[#allocation3 + $0x60] sm:$0xff] %v5158
        %5191 = vst [vmem:[#allocation3 + $0x68] sm:$0xff] %v5159
        %5192 = vst [vmem:[#allocation3 + $0x70] sm:$0xff] %v5160
        %5193 = vst [vmem:[#allocation3 + $0x78] sm:$0xff] %v5161
        %5194 = vst [vmem:[#allocation3 + $0x80] sm:$0xff] %v5162
        %5195 = vst [vmem:[#allocation3 + $0x88] sm:$0xff] %v5163
        %5196 = vst [vmem:[#allocation3 + $0x90] sm:$0xff] %v5164
        %5197 = vst [vmem:[#allocation3 + $0x98] sm:$0xff] %v5165
        %5198 = vst [vmem:[#allocation3 + $0xa0] sm:$0xff] %v5166
        %5199 = vst [vmem:[#allocation3 + $0xa8] sm:$0xff] %v5167
        %5200 = vst [vmem:[#allocation3 + $0xb0] sm:$0xff] %v5168
        %5201 = vst [vmem:[#allocation3 + $0xb8] sm:$0xff] %v5169
        %5202 = vst [vmem:[#allocation3 + $0xc0] sm:$0xff] %v5170
        %5203 = vst [vmem:[#allocation3 + $0xc8] sm:$0xff] %v5171
        %5204 = vst [vmem:[#allocation3 + $0xd0] sm:$0xff] %v5172
        %5205 = vst [vmem:[#allocation3 + $0xd8] sm:$0xff] %v5173
        %5206 = vst [vmem:[#allocation3 + $0xe0] sm:$0xff] %v5174
        %5207 = vst [vmem:[#allocation3 + $0xe8] sm:$0xff] %v5175
        %5208 = vst [vmem:[#allocation3 + $0xf0] sm:$0xff] %v5176
        %5209 = vst [vmem:[#allocation3 + $0xf8] sm:$0xff] %v5177
        %v5211 = vshrl.u32 %v4744, 16
        %v5213 = vrot.slane %v5211, 4
        %v5214 = vshll.u32 %v4744, 16
        %v5216 = vrot.slane %v5214, 5
        %v5217 = vor.u32 %v5213, %v5216
        %v5218 = vrot.slane %v5217, 4
        %v5220 = vshll.u32 %v4745, 16
        %v5222 = vrot.slane %v5220, 5
        %v5223 = vsel %vm1705, %v5218, %v5222
        %v5224 = vshrl.u32 %v4745, 16
        %v5226 = vrot.slane %v5224, 4
        %v5227 = vor.u32 %v5226, %v5222
        %v5228 = vrot.slane %v5227, 4
        %v5230 = vshll.u32 %v4746, 16
        %v5232 = vrot.slane %v5230, 5
        %v5233 = vsel %vm1705, %v5228, %v5232
        %v5235 = vshrl.u32 %v4747, 16
        %v5237 = vrot.slane %v5235, 4
        %v5238 = vshll.u32 %v4747, 16
        %v5240 = vrot.slane %v5238, 5
        %v5241 = vor.u32 %v5237, %v5240
        %v5242 = vrot.slane %v5241, 4
        %v5244 = vshll.u32 %v4748, 16
        %v5246 = vrot.slane %v5244, 5
        %v5247 = vsel %vm1705, %v5242, %v5246
        %v5248 = vshrl.u32 %v4748, 16
        %v5250 = vrot.slane %v5248, 4
        %v5251 = vor.u32 %v5250, %v5246
        %v5252 = vrot.slane %v5251, 4
        %v5254 = vshll.u32 %v4749, 16
        %v5256 = vrot.slane %v5254, 5
        %v5257 = vsel %vm1705, %v5252, %v5256
        %v5259 = vshrl.u32 %v4750, 16
        %v5261 = vrot.slane %v5259, 4
        %v5262 = vshll.u32 %v4750, 16
        %v5264 = vrot.slane %v5262, 5
        %v5265 = vor.u32 %v5261, %v5264
        %v5266 = vrot.slane %v5265, 4
        %v5268 = vshll.u32 %v4751, 16
        %v5270 = vrot.slane %v5268, 5
        %v5271 = vsel %vm1705, %v5266, %v5270
        %v5272 = vshrl.u32 %v4751, 16
        %v5274 = vrot.slane %v5272, 4
        %v5275 = vor.u32 %v5274, %v5270
        %v5276 = vrot.slane %v5275, 4
        %v5278 = vshll.u32 %v4752, 16
        %v5280 = vrot.slane %v5278, 5
        %v5281 = vsel %vm1705, %v5276, %v5280
        %v5283 = vshrl.u32 %v4753, 16
        %v5285 = vrot.slane %v5283, 4
        %v5286 = vshll.u32 %v4753, 16
        %v5288 = vrot.slane %v5286, 5
        %v5289 = vor.u32 %v5285, %v5288
        %v5290 = vrot.slane %v5289, 4
        %v5292 = vshll.u32 %v4754, 16
        %v5294 = vrot.slane %v5292, 5
        %v5295 = vsel %vm1705, %v5290, %v5294
        %v5296 = vshrl.u32 %v4754, 16
        %v5298 = vrot.slane %v5296, 4
        %v5299 = vor.u32 %v5298, %v5294
        %v5300 = vrot.slane %v5299, 4
        %v5302 = vshll.u32 %v4755, 16
        %v5304 = vrot.slane %v5302, 5
        %v5305 = vsel %vm1705, %v5300, %v5304
        %v5307 = vshrl.u32 %v4756, 16
        %v5309 = vrot.slane %v5307, 4
        %v5310 = vshll.u32 %v4756, 16
        %v5312 = vrot.slane %v5310, 5
        %v5313 = vor.u32 %v5309, %v5312
        %v5314 = vrot.slane %v5313, 4
        %v5316 = vshll.u32 %v4757, 16
        %v5318 = vrot.slane %v5316, 5
        %v5319 = vsel %vm1705, %v5314, %v5318
        %v5320 = vshrl.u32 %v4757, 16
        %v5322 = vrot.slane %v5320, 4
        %v5323 = vor.u32 %v5322, %v5318
        %v5324 = vrot.slane %v5323, 4
        %v5326 = vshll.u32 %v4758, 16
        %v5328 = vrot.slane %v5326, 5
        %v5329 = vsel %vm1705, %v5324, %v5328
        %v5331 = vshrl.u32 %v4759, 16
        %v5333 = vrot.slane %v5331, 4
        %v5334 = vshll.u32 %v4759, 16
        %v5336 = vrot.slane %v5334, 5
        %v5337 = vor.u32 %v5333, %v5336
        %v5338 = vrot.slane %v5337, 4
        %v5340 = vshll.u32 %v4760, 16
        %v5342 = vrot.slane %v5340, 5
        %v5343 = vsel %vm1705, %v5338, %v5342
        %v5344 = vshrl.u32 %v4760, 16
        %v5346 = vrot.slane %v5344, 4
        %v5347 = vor.u32 %v5346, %v5342
        %v5348 = vrot.slane %v5347, 4
        %v5350 = vshll.u32 %v4761, 16
        %v5352 = vrot.slane %v5350, 5
        %v5353 = vsel %vm1705, %v5348, %v5352
        %v5355 = vshrl.u32 %v4762, 16
        %v5357 = vrot.slane %v5355, 4
        %v5358 = vshll.u32 %v4762, 16
        %v5360 = vrot.slane %v5358, 5
        %v5361 = vor.u32 %v5357, %v5360
        %v5362 = vrot.slane %v5361, 4
        %v5364 = vshll.u32 %v4763, 16
        %v5366 = vrot.slane %v5364, 5
        %v5367 = vsel %vm1705, %v5362, %v5366
        %v5368 = vshrl.u32 %v4763, 16
        %v5370 = vrot.slane %v5368, 4
        %v5371 = vor.u32 %v5370, %v5366
        %v5372 = vrot.slane %v5371, 4
        %v5374 = vshll.u32 %v4764, 16
        %v5376 = vrot.slane %v5374, 5
        %v5377 = vsel %vm1705, %v5372, %v5376
        %v5379 = vshrl.u32 %v4765, 16
        %v5381 = vrot.slane %v5379, 4
        %v5382 = vshll.u32 %v4765, 16
        %v5384 = vrot.slane %v5382, 5
        %v5385 = vor.u32 %v5381, %v5384
        %v5386 = vrot.slane %v5385, 4
        %v5388 = vshll.u32 %v4766, 16
        %v5390 = vrot.slane %v5388, 5
        %v5391 = vsel %vm1705, %v5386, %v5390
        %v5392 = vshrl.u32 %v4766, 16
        %v5394 = vrot.slane %v5392, 4
        %v5395 = vor.u32 %v5394, %v5390
        %v5396 = vrot.slane %v5395, 4
        %v5398 = vshll.u32 %v4767, 16
        %v5400 = vrot.slane %v5398, 5
        %v5401 = vsel %vm1705, %v5396, %v5400
        %v5403 = vshrl.u32 %v4768, 16
        %v5405 = vrot.slane %v5403, 4
        %v5406 = vshll.u32 %v4768, 16
        %v5408 = vrot.slane %v5406, 5
        %v5409 = vor.u32 %v5405, %v5408
        %v5410 = vrot.slane %v5409, 4
        %v5412 = vshll.u32 %v4769, 16
        %v5414 = vrot.slane %v5412, 5
        %v5415 = vsel %vm1705, %v5410, %v5414
        %v5416 = vshrl.u32 %v4769, 16
        %v5418 = vrot.slane %v5416, 4
        %v5419 = vor.u32 %v5418, %v5414
        %v5420 = vrot.slane %v5419, 4
        %v5422 = vshll.u32 %v4770, 16
        %v5424 = vrot.slane %v5422, 5
        %v5425 = vsel %vm1705, %v5420, %v5424
        %v5427 = vshrl.u32 %v4771, 16
        %v5429 = vrot.slane %v5427, 4
        %v5430 = vshll.u32 %v4771, 16
        %v5432 = vrot.slane %v5430, 5
        %v5433 = vor.u32 %v5429, %v5432
        %v5434 = vrot.slane %v5433, 4
        %v5436 = vshll.u32 %v4772, 16
        %v5438 = vrot.slane %v5436, 5
        %v5439 = vsel %vm1705, %v5434, %v5438
        %v5440 = vshrl.u32 %v4772, 16
        %v5442 = vrot.slane %v5440, 4
        %v5443 = vor.u32 %v5442, %v5438
        %v5444 = vrot.slane %v5443, 4
        %v5446 = vshll.u32 %v4773, 16
        %v5448 = vrot.slane %v5446, 5
        %v5449 = vsel %vm1705, %v5444, %v5448
        %v5451 = vshrl.u32 %v4774, 16
        %v5453 = vrot.slane %v5451, 4
        %v5454 = vshll.u32 %v4774, 16
        %v5456 = vrot.slane %v5454, 5
        %v5457 = vor.u32 %v5453, %v5456
        %v5458 = vrot.slane %v5457, 4
        %v5460 = vshll.u32 %v4775, 16
        %v5462 = vrot.slane %v5460, 5
        %v5463 = vsel %vm1705, %v5458, %v5462
        %v5464 = vshrl.u32 %v4775, 16
        %v5466 = vrot.slane %v5464, 4
        %v5467 = vor.u32 %v5466, %v5462
        %v5468 = vrot.slane %v5467, 4
        %v5470 = vshll.u32 %v4776, 16
        %v5472 = vrot.slane %v5470, 5
        %v5473 = vsel %vm1705, %v5468, %v5472
        %v5475 = vshrl.u32 %v4777, 16
        %v5477 = vrot.slane %v5475, 4
        %v5478 = vshll.u32 %v4777, 16
        %v5480 = vrot.slane %v5478, 5
        %v5481 = vor.u32 %v5477, %v5480
        %v5482 = vrot.slane %v5481, 4
        %v5484 = vshll.u32 %v4778, 16
        %v5486 = vrot.slane %v5484, 5
        %v5487 = vsel %vm1705, %v5482, %v5486
        %v5488 = vshrl.u32 %v4778, 16
        %v5490 = vrot.slane %v5488, 4
        %v5491 = vor.u32 %v5490, %v5486
        %v5492 = vrot.slane %v5491, 4
        %v5494 = vshll.u32 %v4779, 16
        %v5496 = vrot.slane %v5494, 5
        %v5497 = vsel %vm1705, %v5492, %v5496
        %v5499 = vshrl.u32 %v4780, 16
        %v5501 = vrot.slane %v5499, 4
        %v5502 = vshll.u32 %v4780, 16
        %v5504 = vrot.slane %v5502, 5
        %v5505 = vor.u32 %v5501, %v5504
        %v5506 = vrot.slane %v5505, 4
        %v5508 = vshll.u32 %v4781, 16
        %v5510 = vrot.slane %v5508, 5
        %v5511 = vsel %vm1705, %v5506, %v5510
        %v5512 = vshrl.u32 %v4781, 16
        %v5514 = vrot.slane %v5512, 4
        %v5515 = vor.u32 %v5514, %v5510
        %v5516 = vrot.slane %v5515, 4
        %v5518 = vshll.u32 %v4782, 16
        %v5520 = vrot.slane %v5518, 5
        %v5521 = vsel %vm1705, %v5516, %v5520
        %v5523 = vshrl.u32 %v4783, 16
        %v5525 = vrot.slane %v5523, 4
        %v5526 = vshll.u32 %v4783, 16
        %v5528 = vrot.slane %v5526, 5
        %v5529 = vor.u32 %v5525, %v5528
        %v5530 = vrot.slane %v5529, 4
        %v5532 = vshll.u32 %v4784, 16
        %v5534 = vrot.slane %v5532, 5
        %v5535 = vsel %vm1705, %v5530, %v5534
        %v5536 = vshrl.u32 %v4784, 16
        %v5538 = vrot.slane %v5536, 4
        %v5539 = vor.u32 %v5538, %v5534
        %v5540 = vrot.slane %v5539, 4
        %v5542 = vshll.u32 %v4785, 16
        %v5544 = vrot.slane %v5542, 5
        %v5545 = vsel %vm1705, %v5540, %v5544
        %v5547 = vshrl.u32 %v4786, 16
        %v5549 = vrot.slane %v5547, 4
        %v5550 = vshll.u32 %v4786, 16
        %v5552 = vrot.slane %v5550, 5
        %v5553 = vor.u32 %v5549, %v5552
        %v5554 = vrot.slane %v5553, 4
        %v5556 = vshll.u32 %v4787, 16
        %v5558 = vrot.slane %v5556, 5
        %v5559 = vsel %vm1705, %v5554, %v5558
        %v5560 = vshrl.u32 %v4787, 16
        %v5562 = vrot.slane %v5560, 4
        %v5563 = vor.u32 %v5562, %v5558
        %v5564 = vrot.slane %v5563, 4
        %v5566 = vshll.u32 %v4788, 16
        %v5568 = vrot.slane %v5566, 5
        %v5569 = vsel %vm1705, %v5564, %v5568
        %v5571 = vshrl.u32 %v4789, 16
        %v5573 = vrot.slane %v5571, 4
        %v5574 = vshll.u32 %v4789, 16
        %v5576 = vrot.slane %v5574, 5
        %v5577 = vor.u32 %v5573, %v5576
        %v5578 = vrot.slane %v5577, 4
        %v5580 = vshll.u32 %v4790, 16
        %v5582 = vrot.slane %v5580, 5
        %v5583 = vsel %vm1705, %v5578, %v5582
        %v5584 = vshrl.u32 %v4790, 16
        %v5586 = vrot.slane %v5584, 4
        %v5587 = vor.u32 %v5586, %v5582
        %v5588 = vrot.slane %v5587, 4
        %v5590 = vshll.u32 %v4791, 16
        %v5592 = vrot.slane %v5590, 5
        %v5593 = vsel %vm1705, %v5588, %v5592
        %s5594 = scalar_lea.vmem [#allocation9], 448
        %v5595 = vld [vmem:[%s5594] sm:$0xf]
        %v5596 = vld [vmem:[%s5594 + $0x4] sm:$0xf]
        %v5597 = vld [vmem:[%s5594 + $0x8] sm:$0xf]
        %v5598 = vld [vmem:[%s5594 + $0xc] sm:$0xf]
        %v5599 = vld [vmem:[%s5594 + $0x10] sm:$0xf]
        %v5600 = vld [vmem:[%s5594 + $0x14] sm:$0xf]
        %v5601 = vld [vmem:[%s5594 + $0x18] sm:$0xf]
        %v5602 = vld [vmem:[%s5594 + $0x1c] sm:$0xf]
        %v5603 = vld [vmem:[%s5594 + $0x20] sm:$0xf]
        %v5604 = vld [vmem:[%s5594 + $0x24] sm:$0xf]
        %v5605 = vld [vmem:[%s5594 + $0x28] sm:$0xf]
        %v5606 = vld [vmem:[%s5594 + $0x2c] sm:$0xf]
        %v5607 = vld [vmem:[%s5594 + $0x30] sm:$0xf]
        %v5608 = vld [vmem:[%s5594 + $0x34] sm:$0xf]
        %v5609 = vld [vmem:[%s5594 + $0x38] sm:$0xf]
        %v5610 = vld [vmem:[%s5594 + $0x3c] sm:$0xf]
        %v5611 = vunpack.c.l.b16 %v5223
        %v5612 = vunpack.c.l.b16 %v5233
        %v5613 = vunpack.c.l.b16 %v5247
        %v5614 = vunpack.c.l.b16 %v5257
        %v5615 = vunpack.c.l.b16 %v5271
        %v5616 = vunpack.c.l.b16 %v5281
        %v5617 = vunpack.c.l.b16 %v5295
        %v5618 = vunpack.c.l.b16 %v5305
        %v5619 = vunpack.c.l.b16 %v5319
        %v5620 = vunpack.c.l.b16 %v5329
        %v5621 = vunpack.c.l.b16 %v5343
        %v5622 = vunpack.c.l.b16 %v5353
        %v5623 = vunpack.c.l.b16 %v5367
        %v5624 = vunpack.c.l.b16 %v5377
        %v5625 = vunpack.c.l.b16 %v5391
        %v5626 = vunpack.c.l.b16 %v5401
        %v5627 = vunpack.c.l.b16 %v5415
        %v5628 = vunpack.c.l.b16 %v5425
        %v5629 = vunpack.c.l.b16 %v5439
        %v5630 = vunpack.c.l.b16 %v5449
        %v5631 = vunpack.c.l.b16 %v5463
        %v5632 = vunpack.c.l.b16 %v5473
        %v5633 = vunpack.c.l.b16 %v5487
        %v5634 = vunpack.c.l.b16 %v5497
        %v5635 = vunpack.c.l.b16 %v5511
        %v5636 = vunpack.c.l.b16 %v5521
        %v5637 = vunpack.c.l.b16 %v5535
        %v5638 = vunpack.c.l.b16 %v5545
        %v5639 = vunpack.c.l.b16 %v5559
        %v5640 = vunpack.c.l.b16 %v5569
        %v5641 = vunpack.c.l.b16 %v5583
        %v5642 = vunpack.c.l.b16 %v5593
        %v5643 = vpack.c.b16 %v5612, %v5611
        %v5644 = vpack.c.b16 %v5614, %v5613
        %v5645 = vpack.c.b16 %v5616, %v5615
        %v5646 = vpack.c.b16 %v5618, %v5617
        %v5647 = vpack.c.b16 %v5620, %v5619
        %v5648 = vpack.c.b16 %v5622, %v5621
        %v5649 = vpack.c.b16 %v5624, %v5623
        %v5650 = vpack.c.b16 %v5626, %v5625
        %v5651 = vpack.c.b16 %v5628, %v5627
        %v5652 = vpack.c.b16 %v5630, %v5629
        %v5653 = vpack.c.b16 %v5632, %v5631
        %v5654 = vpack.c.b16 %v5634, %v5633
        %v5655 = vpack.c.b16 %v5636, %v5635
        %v5656 = vpack.c.b16 %v5638, %v5637
        %v5657 = vpack.c.b16 %v5640, %v5639
        %v5658 = vpack.c.b16 %v5642, %v5641
        %v5691 = vunpack.c.l.b16 %v5595
        %v5692 = vunpack.c.l.b16 %v5596
        %v5693 = vunpack.c.l.b16 %v5597
        %v5694 = vunpack.c.l.b16 %v5598
        %v5695 = vunpack.c.l.b16 %v5599
        %v5696 = vunpack.c.l.b16 %v5600
        %v5697 = vunpack.c.l.b16 %v5601
        %v5698 = vunpack.c.l.b16 %v5602
        %v5699 = vunpack.c.l.b16 %v5603
        %v5700 = vunpack.c.l.b16 %v5604
        %v5701 = vunpack.c.l.b16 %v5605
        %v5702 = vunpack.c.l.b16 %v5606
        %v5703 = vunpack.c.l.b16 %v5607
        %v5704 = vunpack.c.l.b16 %v5608
        %v5705 = vunpack.c.l.b16 %v5609
        %v5706 = vunpack.c.l.b16 %v5610
        %v5707 = vpack.c.b16 %v5692, %v5691
        %v5708 = vpack.c.b16 %v5694, %v5693
        %v5709 = vpack.c.b16 %v5696, %v5695
        %v5710 = vpack.c.b16 %v5698, %v5697
        %v5711 = vpack.c.b16 %v5700, %v5699
        %v5712 = vpack.c.b16 %v5702, %v5701
        %v5713 = vpack.c.b16 %v5704, %v5703
        %v5714 = vpack.c.b16 %v5706, %v5705
        %5723 = vmatprep.subr.bf16.mxu0 0
        %5724 = vmatpush1.bf16.msra.mxu0 %v5707
        %5725 = vmatprep.subr.bf16.mxu0 0
        %5726 = vmatpush1.bf16.msra.mxu0 %v5708
        %5727 = vmatprep.subr.bf16.mxu0 0
        %5728 = vmatpush1.bf16.msra.mxu0 %v5709
        %5729 = vmatprep.subr.bf16.mxu0 0
        %5730 = vmatpush1.bf16.msra.mxu0 %v5710
        %5731 = vmatprep.subr.bf16.mxu0 0
        %5732 = vmatpush1.bf16.msra.mxu0 %v5711
        %5733 = vmatprep.subr.bf16.mxu0 0
        %5734 = vmatpush1.bf16.msra.mxu0 %v5712
        %5735 = vmatprep.subr.bf16.mxu0 0
        %5736 = vmatpush1.bf16.msra.mxu0 %v5713
        %5737 = vmatprep.subr.bf16.mxu0 0
        %5738 = vmatpush1.bf16.msra.mxu0 %v5714
        %5739 = vmatprep.subr.bf16.mxu0 0
        %5740 = vmatpush1.bf16.msra.mxu0 0
        %5741 = vmatprep.subr.bf16.mxu0 0
        %5742 = vmatpush1.bf16.msra.mxu0 0
        %5743 = vmatprep.subr.bf16.mxu0 0
        %5744 = vmatpush1.bf16.msra.mxu0 0
        %5745 = vmatprep.subr.bf16.mxu0 0
        %5746 = vmatpush1.bf16.msra.mxu0 0
        %5747 = vmatprep.subr.bf16.mxu0 0
        %5748 = vmatpush1.bf16.msra.mxu0 0
        %5749 = vmatprep.subr.bf16.mxu0 0
        %5750 = vmatpush1.bf16.msra.mxu0 0
        %5751 = vmatprep.subr.bf16.mxu0 0
        %5752 = vmatpush1.bf16.msra.mxu0 0
        %5753 = vmatprep.subr.bf16.mxu0 0
        %5754 = vmatpush1.bf16.msra.mxu0 0
        %5755 = vmatprep.mubr.bf16.mxu0 0
        %5756 = vmatmul.mubr.bf16.gmra.mrb[0].mxu0 %v5643
        %v5757 = vpop.f32.mrb[0].mxu0
        %v5758 = vadd.f32 0.0, %v5757
        %v5759 = vpop.f32.mrb[0].mxu0
        %v5760 = vpop.f32.mrb[0].mxu0
        %v5761 = vadd.f32 0.0, %v5760
        %v5762 = vpop.f32.mrb[0].mxu0
        %5763 = vmatprep.mubr.bf16.mxu0 0
        %5764 = vmatmul.mubr.bf16.gmra.mrb[0].mxu0 %v5644
        %v5765 = vpop.f32.mrb[0].mxu0
        %v5766 = vadd.f32 0.0, %v5765
        %v5767 = vpop.f32.mrb[0].mxu0
        %v5768 = vpop.f32.mrb[0].mxu0
        %v5769 = vadd.f32 0.0, %v5768
        %v5770 = vpop.f32.mrb[0].mxu0
        %5771 = vmatprep.mubr.bf16.mxu0 0
        %5772 = vmatmul.mubr.bf16.gmra.mrb[0].mxu0 %v5645
        %v5773 = vpop.f32.mrb[0].mxu0
        %v5774 = vadd.f32 0.0, %v5773
        %v5775 = vpop.f32.mrb[0].mxu0
        %v5776 = vpop.f32.mrb[0].mxu0
        %v5777 = vadd.f32 0.0, %v5776
        %v5778 = vpop.f32.mrb[0].mxu0
        %5779 = vmatprep.mubr.bf16.mxu0 0
        %5780 = vmatmul.mubr.bf16.gmra.mrb[0].mxu0 %v5646
        %v5781 = vpop.f32.mrb[0].mxu0
        %v5782 = vadd.f32 0.0, %v5781
        %v5783 = vpop.f32.mrb[0].mxu0
        %v5784 = vpop.f32.mrb[0].mxu0
        %v5785 = vadd.f32 0.0, %v5784
        %v5786 = vpop.f32.mrb[0].mxu0
        %5787 = vmatprep.mubr.bf16.mxu0 0
        %5788 = vmatmul.mubr.bf16.gmra.mrb[0].mxu0 %v5647
        %v5789 = vpop.f32.mrb[0].mxu0
        %v5790 = vadd.f32 0.0, %v5789
        %v5791 = vpop.f32.mrb[0].mxu0
        %v5792 = vpop.f32.mrb[0].mxu0
        %v5793 = vadd.f32 0.0, %v5792
        %v5794 = vpop.f32.mrb[0].mxu0
        %5795 = vmatprep.mubr.bf16.mxu0 0
        %5796 = vmatmul.mubr.bf16.gmra.mrb[0].mxu0 %v5648
        %v5797 = vpop.f32.mrb[0].mxu0
        %v5798 = vadd.f32 0.0, %v5797
        %v5799 = vpop.f32.mrb[0].mxu0
        %v5800 = vpop.f32.mrb[0].mxu0
        %v5801 = vadd.f32 0.0, %v5800
        %v5802 = vpop.f32.mrb[0].mxu0
        %5803 = vmatprep.mubr.bf16.mxu0 0
        %5804 = vmatmul.mubr.bf16.gmra.mrb[0].mxu0 %v5649
        %v5805 = vpop.f32.mrb[0].mxu0
        %v5806 = vadd.f32 0.0, %v5805
        %v5807 = vpop.f32.mrb[0].mxu0
        %v5808 = vpop.f32.mrb[0].mxu0
        %v5809 = vadd.f32 0.0, %v5808
        %v5810 = vpop.f32.mrb[0].mxu0
        %5811 = vmatprep.mubr.bf16.mxu0 0
        %5812 = vmatmul.mubr.bf16.gmra.mrb[0].mxu0 %v5650
        %v5813 = vpop.f32.mrb[0].mxu0
        %v5814 = vadd.f32 0.0, %v5813
        %v5815 = vpop.f32.mrb[0].mxu0
        %v5816 = vpop.f32.mrb[0].mxu0
        %v5817 = vadd.f32 0.0, %v5816
        %v5818 = vpop.f32.mrb[0].mxu0
        %5819 = vmatprep.mubr.bf16.mxu0 0
        %5820 = vmatmul.mubr.bf16.gmra.mrb[0].mxu0 %v5651
        %v5821 = vpop.f32.mrb[0].mxu0
        %v5822 = vadd.f32 0.0, %v5821
        %v5823 = vpop.f32.mrb[0].mxu0
        %v5824 = vpop.f32.mrb[0].mxu0
        %v5825 = vadd.f32 0.0, %v5824
        %v5826 = vpop.f32.mrb[0].mxu0
        %5827 = vmatprep.mubr.bf16.mxu0 0
        %5828 = vmatmul.mubr.bf16.gmra.mrb[0].mxu0 %v5652
        %v5829 = vpop.f32.mrb[0].mxu0
        %v5830 = vadd.f32 0.0, %v5829
        %v5831 = vpop.f32.mrb[0].mxu0
        %v5832 = vpop.f32.mrb[0].mxu0
        %v5833 = vadd.f32 0.0, %v5832
        %v5834 = vpop.f32.mrb[0].mxu0
        %5835 = vmatprep.mubr.bf16.mxu0 0
        %5836 = vmatmul.mubr.bf16.gmra.mrb[0].mxu0 %v5653
        %v5837 = vpop.f32.mrb[0].mxu0
        %v5838 = vadd.f32 0.0, %v5837
        %v5839 = vpop.f32.mrb[0].mxu0
        %v5840 = vpop.f32.mrb[0].mxu0
        %v5841 = vadd.f32 0.0, %v5840
        %v5842 = vpop.f32.mrb[0].mxu0
        %5843 = vmatprep.mubr.bf16.mxu0 0
        %5844 = vmatmul.mubr.bf16.gmra.mrb[0].mxu0 %v5654
        %v5845 = vpop.f32.mrb[0].mxu0
        %v5846 = vadd.f32 0.0, %v5845
        %v5847 = vpop.f32.mrb[0].mxu0
        %v5848 = vpop.f32.mrb[0].mxu0
        %v5849 = vadd.f32 0.0, %v5848
        %v5850 = vpop.f32.mrb[0].mxu0
        %5851 = vmatprep.mubr.bf16.mxu0 0
        %5852 = vmatmul.mubr.bf16.gmra.mrb[0].mxu0 %v5655
        %v5853 = vpop.f32.mrb[0].mxu0
        %v5854 = vadd.f32 0.0, %v5853
        %v5855 = vpop.f32.mrb[0].mxu0
        %v5856 = vpop.f32.mrb[0].mxu0
        %v5857 = vadd.f32 0.0, %v5856
        %v5858 = vpop.f32.mrb[0].mxu0
        %5859 = vmatprep.mubr.bf16.mxu0 0
        %5860 = vmatmul.mubr.bf16.gmra.mrb[0].mxu0 %v5656
        %v5861 = vpop.f32.mrb[0].mxu0
        %v5862 = vadd.f32 0.0, %v5861
        %v5863 = vpop.f32.mrb[0].mxu0
        %v5864 = vpop.f32.mrb[0].mxu0
        %v5865 = vadd.f32 0.0, %v5864
        %v5866 = vpop.f32.mrb[0].mxu0
        %5867 = vmatprep.mubr.bf16.mxu0 0
        %5868 = vmatmul.mubr.bf16.gmra.mrb[0].mxu0 %v5657
        %v5869 = vpop.f32.mrb[0].mxu0
        %v5870 = vadd.f32 0.0, %v5869
        %v5871 = vpop.f32.mrb[0].mxu0
        %v5872 = vpop.f32.mrb[0].mxu0
        %v5873 = vadd.f32 0.0, %v5872
        %v5874 = vpop.f32.mrb[0].mxu0
        %5875 = vmatprep.mubr.bf16.mxu0 0
        %5876 = vmatmul.mubr.bf16.gmra.mrb[0].mxu0 %v5658
        %v5877 = vpop.f32.mrb[0].mxu0
        %v5878 = vadd.f32 0.0, %v5877
        %v5879 = vpop.f32.mrb[0].mxu0
        %v5880 = vpop.f32.mrb[0].mxu0
        %v5881 = vadd.f32 0.0, %v5880
        %v5882 = vpop.f32.mrb[0].mxu0
        %5883 = vdwg.mxu0
        %v5884 = vld [vmem:[#allocation3] sm:$0xff]
        %v5885 = vld [vmem:[#allocation3 + $0x8] sm:$0xff]
        %v5886 = vld [vmem:[#allocation3 + $0x10] sm:$0xff]
        %v5887 = vld [vmem:[#allocation3 + $0x18] sm:$0xff]
        %v5888 = vld [vmem:[#allocation3 + $0x20] sm:$0xff]
        %v5889 = vld [vmem:[#allocation3 + $0x28] sm:$0xff]
        %v5890 = vld [vmem:[#allocation3 + $0x30] sm:$0xff]
        %v5891 = vld [vmem:[#allocation3 + $0x38] sm:$0xff]
        %v5892 = vld [vmem:[#allocation3 + $0x40] sm:$0xff]
        %v5893 = vld [vmem:[#allocation3 + $0x48] sm:$0xff]
        %v5894 = vld [vmem:[#allocation3 + $0x50] sm:$0xff]
        %v5895 = vld [vmem:[#allocation3 + $0x58] sm:$0xff]
        %v5896 = vld [vmem:[#allocation3 + $0x60] sm:$0xff]
        %v5897 = vld [vmem:[#allocation3 + $0x68] sm:$0xff]
        %v5898 = vld [vmem:[#allocation3 + $0x70] sm:$0xff]
        %v5899 = vld [vmem:[#allocation3 + $0x78] sm:$0xff]
        %v5900 = vld [vmem:[#allocation3 + $0x80] sm:$0xff]
        %v5901 = vld [vmem:[#allocation3 + $0x88] sm:$0xff]
        %v5902 = vld [vmem:[#allocation3 + $0x90] sm:$0xff]
        %v5903 = vld [vmem:[#allocation3 + $0x98] sm:$0xff]
        %v5904 = vld [vmem:[#allocation3 + $0xa0] sm:$0xff]
        %v5905 = vld [vmem:[#allocation3 + $0xa8] sm:$0xff]
        %v5906 = vld [vmem:[#allocation3 + $0xb0] sm:$0xff]
        %v5907 = vld [vmem:[#allocation3 + $0xb8] sm:$0xff]
        %v5908 = vld [vmem:[#allocation3 + $0xc0] sm:$0xff]
        %v5909 = vld [vmem:[#allocation3 + $0xc8] sm:$0xff]
        %v5910 = vld [vmem:[#allocation3 + $0xd0] sm:$0xff]
        %v5911 = vld [vmem:[#allocation3 + $0xd8] sm:$0xff]
        %v5912 = vld [vmem:[#allocation3 + $0xe0] sm:$0xff]
        %v5913 = vld [vmem:[#allocation3 + $0xe8] sm:$0xff]
        %v5914 = vld [vmem:[#allocation3 + $0xf0] sm:$0xff]
        %v5915 = vld [vmem:[#allocation3 + $0xf8] sm:$0xff]
        %v5916 = vadd.f32 %v5884, %v5758
        %v5917 = vadd.f32 %v5885, %v5761
        %v5918 = vadd.f32 %v5886, %v5766
        %v5919 = vadd.f32 %v5887, %v5769
        %v5920 = vadd.f32 %v5888, %v5774
        %v5921 = vadd.f32 %v5889, %v5777
        %v5922 = vadd.f32 %v5890, %v5782
        %v5923 = vadd.f32 %v5891, %v5785
        %v5924 = vadd.f32 %v5892, %v5790
        %v5925 = vadd.f32 %v5893, %v5793
        %v5926 = vadd.f32 %v5894, %v5798
        %v5927 = vadd.f32 %v5895, %v5801
        %v5928 = vadd.f32 %v5896, %v5806
        %v5929 = vadd.f32 %v5897, %v5809
        %v5930 = vadd.f32 %v5898, %v5814
        %v5931 = vadd.f32 %v5899, %v5817
        %v5932 = vadd.f32 %v5900, %v5822
        %v5933 = vadd.f32 %v5901, %v5825
        %v5934 = vadd.f32 %v5902, %v5830
        %v5935 = vadd.f32 %v5903, %v5833
        %v5936 = vadd.f32 %v5904, %v5838
        %v5937 = vadd.f32 %v5905, %v5841
        %v5938 = vadd.f32 %v5906, %v5846
        %v5939 = vadd.f32 %v5907, %v5849
        %v5940 = vadd.f32 %v5908, %v5854
        %v5941 = vadd.f32 %v5909, %v5857
        %v5942 = vadd.f32 %v5910, %v5862
        %v5943 = vadd.f32 %v5911, %v5865
        %v5944 = vadd.f32 %v5912, %v5870
        %v5945 = vadd.f32 %v5913, %v5873
        %v5946 = vadd.f32 %v5914, %v5878
        %v5947 = vadd.f32 %v5915, %v5881
        %5948 = vst [vmem:[#allocation3] sm:$0xff] %v5916
        %5949 = vst [vmem:[#allocation3 + $0x8] sm:$0xff] %v5917
        %5950 = vst [vmem:[#allocation3 + $0x10] sm:$0xff] %v5918
        %5951 = vst [vmem:[#allocation3 + $0x18] sm:$0xff] %v5919
        %5952 = vst [vmem:[#allocation3 + $0x20] sm:$0xff] %v5920
        %5953 = vst [vmem:[#allocation3 + $0x28] sm:$0xff] %v5921
        %5954 = vst [vmem:[#allocation3 + $0x30] sm:$0xff] %v5922
        %5955 = vst [vmem:[#allocation3 + $0x38] sm:$0xff] %v5923
        %5956 = vst [vmem:[#allocation3 + $0x40] sm:$0xff] %v5924
        %5957 = vst [vmem:[#allocation3 + $0x48] sm:$0xff] %v5925
        %5958 = vst [vmem:[#allocation3 + $0x50] sm:$0xff] %v5926
        %5959 = vst [vmem:[#allocation3 + $0x58] sm:$0xff] %v5927
        %5960 = vst [vmem:[#allocation3 + $0x60] sm:$0xff] %v5928
        %5961 = vst [vmem:[#allocation3 + $0x68] sm:$0xff] %v5929
        %5962 = vst [vmem:[#allocation3 + $0x70] sm:$0xff] %v5930
        %5963 = vst [vmem:[#allocation3 + $0x78] sm:$0xff] %v5931
        %5964 = vst [vmem:[#allocation3 + $0x80] sm:$0xff] %v5932
        %5965 = vst [vmem:[#allocation3 + $0x88] sm:$0xff] %v5933
        %5966 = vst [vmem:[#allocation3 + $0x90] sm:$0xff] %v5934
        %5967 = vst [vmem:[#allocation3 + $0x98] sm:$0xff] %v5935
        %5968 = vst [vmem:[#allocation3 + $0xa0] sm:$0xff] %v5936
        %5969 = vst [vmem:[#allocation3 + $0xa8] sm:$0xff] %v5937
        %5970 = vst [vmem:[#allocation3 + $0xb0] sm:$0xff] %v5938
        %5971 = vst [vmem:[#allocation3 + $0xb8] sm:$0xff] %v5939
        %5972 = vst [vmem:[#allocation3 + $0xc0] sm:$0xff] %v5940
        %5973 = vst [vmem:[#allocation3 + $0xc8] sm:$0xff] %v5941
        %5974 = vst [vmem:[#allocation3 + $0xd0] sm:$0xff] %v5942
        %5975 = vst [vmem:[#allocation3 + $0xd8] sm:$0xff] %v5943
        %5976 = vst [vmem:[#allocation3 + $0xe0] sm:$0xff] %v5944
        %5977 = vst [vmem:[#allocation3 + $0xe8] sm:$0xff] %v5945
        %5978 = vst [vmem:[#allocation3 + $0xf0] sm:$0xff] %v5946
        %5979 = vst [vmem:[#allocation3 + $0xf8] sm:$0xff] %v5947
        %v5996 = vrot.slane %v4744, 5
        %v5997 = vrot.slane %v5996, 4
        %v5998 = vrot.slane %v4745, 5
        %v5999 = vsel %vm2494, %v5997, %v5998
        %v6000 = vrot.slane %v5998, 4
        %v6001 = vrot.slane %v4746, 5
        %v6002 = vsel %vm2494, %v6000, %v6001
        %v6003 = vrot.slane %v4747, 5
        %v6004 = vrot.slane %v6003, 4
        %v6005 = vrot.slane %v4748, 5
        %v6006 = vsel %vm2494, %v6004, %v6005
        %v6007 = vrot.slane %v6005, 4
        %v6008 = vrot.slane %v4749, 5
        %v6009 = vsel %vm2494, %v6007, %v6008
        %v6010 = vrot.slane %v4750, 5
        %v6011 = vrot.slane %v6010, 4
        %v6012 = vrot.slane %v4751, 5
        %v6013 = vsel %vm2494, %v6011, %v6012
        %v6014 = vrot.slane %v6012, 4
        %v6015 = vrot.slane %v4752, 5
        %v6016 = vsel %vm2494, %v6014, %v6015
        %v6017 = vrot.slane %v4753, 5
        %v6018 = vrot.slane %v6017, 4
        %v6019 = vrot.slane %v4754, 5
        %v6020 = vsel %vm2494, %v6018, %v6019
        %v6021 = vrot.slane %v6019, 4
        %v6022 = vrot.slane %v4755, 5
        %v6023 = vsel %vm2494, %v6021, %v6022
        %v6024 = vrot.slane %v4756, 5
        %v6025 = vrot.slane %v6024, 4
        %v6026 = vrot.slane %v4757, 5
        %v6027 = vsel %vm2494, %v6025, %v6026
        %v6028 = vrot.slane %v6026, 4
        %v6029 = vrot.slane %v4758, 5
        %v6030 = vsel %vm2494, %v6028, %v6029
        %v6031 = vrot.slane %v4759, 5
        %v6032 = vrot.slane %v6031, 4
        %v6033 = vrot.slane %v4760, 5
        %v6034 = vsel %vm2494, %v6032, %v6033
        %v6035 = vrot.slane %v6033, 4
        %v6036 = vrot.slane %v4761, 5
        %v6037 = vsel %vm2494, %v6035, %v6036
        %v6038 = vrot.slane %v4762, 5
        %v6039 = vrot.slane %v6038, 4
        %v6040 = vrot.slane %v4763, 5
        %v6041 = vsel %vm2494, %v6039, %v6040
        %v6042 = vrot.slane %v6040, 4
        %v6043 = vrot.slane %v4764, 5
        %v6044 = vsel %vm2494, %v6042, %v6043
        %v6045 = vrot.slane %v4765, 5
        %v6046 = vrot.slane %v6045, 4
        %v6047 = vrot.slane %v4766, 5
        %v6048 = vsel %vm2494, %v6046, %v6047
        %v6049 = vrot.slane %v6047, 4
        %v6050 = vrot.slane %v4767, 5
        %v6051 = vsel %vm2494, %v6049, %v6050
        %v6052 = vrot.slane %v4768, 5
        %v6053 = vrot.slane %v6052, 4
        %v6054 = vrot.slane %v4769, 5
        %v6055 = vsel %vm2494, %v6053, %v6054
        %v6056 = vrot.slane %v6054, 4
        %v6057 = vrot.slane %v4770, 5
        %v6058 = vsel %vm2494, %v6056, %v6057
        %v6059 = vrot.slane %v4771, 5
        %v6060 = vrot.slane %v6059, 4
        %v6061 = vrot.slane %v4772, 5
        %v6062 = vsel %vm2494, %v6060, %v6061
        %v6063 = vrot.slane %v6061, 4
        %v6064 = vrot.slane %v4773, 5
        %v6065 = vsel %vm2494, %v6063, %v6064
        %v6066 = vrot.slane %v4774, 5
        %v6067 = vrot.slane %v6066, 4
        %v6068 = vrot.slane %v4775, 5
        %v6069 = vsel %vm2494, %v6067, %v6068
        %v6070 = vrot.slane %v6068, 4
        %v6071 = vrot.slane %v4776, 5
        %v6072 = vsel %vm2494, %v6070, %v6071
        %v6073 = vrot.slane %v4777, 5
        %v6074 = vrot.slane %v6073, 4
        %v6075 = vrot.slane %v4778, 5
        %v6076 = vsel %vm2494, %v6074, %v6075
        %v6077 = vrot.slane %v6075, 4
        %v6078 = vrot.slane %v4779, 5
        %v6079 = vsel %vm2494, %v6077, %v6078
        %v6080 = vrot.slane %v4780, 5
        %v6081 = vrot.slane %v6080, 4
        %v6082 = vrot.slane %v4781, 5
        %v6083 = vsel %vm2494, %v6081, %v6082
        %v6084 = vrot.slane %v6082, 4
        %v6085 = vrot.slane %v4782, 5
        %v6086 = vsel %vm2494, %v6084, %v6085
        %v6087 = vrot.slane %v4783, 5
        %v6088 = vrot.slane %v6087, 4
        %v6089 = vrot.slane %v4784, 5
        %v6090 = vsel %vm2494, %v6088, %v6089
        %v6091 = vrot.slane %v6089, 4
        %v6092 = vrot.slane %v4785, 5
        %v6093 = vsel %vm2494, %v6091, %v6092
        %v6094 = vrot.slane %v4786, 5
        %v6095 = vrot.slane %v6094, 4
        %v6096 = vrot.slane %v4787, 5
        %v6097 = vsel %vm2494, %v6095, %v6096
        %v6098 = vrot.slane %v6096, 4
        %v6099 = vrot.slane %v4788, 5
        %v6100 = vsel %vm2494, %v6098, %v6099
        %v6101 = vrot.slane %v4789, 5
        %v6102 = vrot.slane %v6101, 4
        %v6103 = vrot.slane %v4790, 5
        %v6104 = vsel %vm2494, %v6102, %v6103
        %v6105 = vrot.slane %v6103, 4
        %v6106 = vrot.slane %v4791, 5
        %v6107 = vsel %vm2494, %v6105, %v6106
        %s6108 = scalar_lea.vmem [#allocation9], 512
        %v6109 = vld [vmem:[%s6108] sm:$0xf]
        %v6110 = vld [vmem:[%s6108 + $0x4] sm:$0xf]
        %v6111 = vld [vmem:[%s6108 + $0x8] sm:$0xf]
        %v6112 = vld [vmem:[%s6108 + $0xc] sm:$0xf]
        %v6113 = vld [vmem:[%s6108 + $0x10] sm:$0xf]
        %v6114 = vld [vmem:[%s6108 + $0x14] sm:$0xf]
        %v6115 = vld [vmem:[%s6108 + $0x18] sm:$0xf]
        %v6116 = vld [vmem:[%s6108 + $0x1c] sm:$0xf]
        %v6117 = vld [vmem:[%s6108 + $0x20] sm:$0xf]
        %v6118 = vld [vmem:[%s6108 + $0x24] sm:$0xf]
        %v6119 = vld [vmem:[%s6108 + $0x28] sm:$0xf]
        %v6120 = vld [vmem:[%s6108 + $0x2c] sm:$0xf]
        %v6121 = vld [vmem:[%s6108 + $0x30] sm:$0xf]
        %v6122 = vld [vmem:[%s6108 + $0x34] sm:$0xf]
        %v6123 = vld [vmem:[%s6108 + $0x38] sm:$0xf]
        %v6124 = vld [vmem:[%s6108 + $0x3c] sm:$0xf]
        %v6125 = vunpack.c.l.b16 %v5999
        %v6126 = vunpack.c.l.b16 %v6002
        %v6127 = vunpack.c.l.b16 %v6006
        %v6128 = vunpack.c.l.b16 %v6009
        %v6129 = vunpack.c.l.b16 %v6013
        %v6130 = vunpack.c.l.b16 %v6016
        %v6131 = vunpack.c.l.b16 %v6020
        %v6132 = vunpack.c.l.b16 %v6023
        %v6133 = vunpack.c.l.b16 %v6027
        %v6134 = vunpack.c.l.b16 %v6030
        %v6135 = vunpack.c.l.b16 %v6034
        %v6136 = vunpack.c.l.b16 %v6037
        %v6137 = vunpack.c.l.b16 %v6041
        %v6138 = vunpack.c.l.b16 %v6044
        %v6139 = vunpack.c.l.b16 %v6048
        %v6140 = vunpack.c.l.b16 %v6051
        %v6141 = vunpack.c.l.b16 %v6055
        %v6142 = vunpack.c.l.b16 %v6058
        %v6143 = vunpack.c.l.b16 %v6062
        %v6144 = vunpack.c.l.b16 %v6065
        %v6145 = vunpack.c.l.b16 %v6069
        %v6146 = vunpack.c.l.b16 %v6072
        %v6147 = vunpack.c.l.b16 %v6076
        %v6148 = vunpack.c.l.b16 %v6079
        %v6149 = vunpack.c.l.b16 %v6083
        %v6150 = vunpack.c.l.b16 %v6086
        %v6151 = vunpack.c.l.b16 %v6090
        %v6152 = vunpack.c.l.b16 %v6093
        %v6153 = vunpack.c.l.b16 %v6097
        %v6154 = vunpack.c.l.b16 %v6100
        %v6155 = vunpack.c.l.b16 %v6104
        %v6156 = vunpack.c.l.b16 %v6107
        %v6157 = vpack.c.b16 %v6126, %v6125
        %v6158 = vpack.c.b16 %v6128, %v6127
        %v6159 = vpack.c.b16 %v6130, %v6129
        %v6160 = vpack.c.b16 %v6132, %v6131
        %v6161 = vpack.c.b16 %v6134, %v6133
        %v6162 = vpack.c.b16 %v6136, %v6135
        %v6163 = vpack.c.b16 %v6138, %v6137
        %v6164 = vpack.c.b16 %v6140, %v6139
        %v6165 = vpack.c.b16 %v6142, %v6141
        %v6166 = vpack.c.b16 %v6144, %v6143
        %v6167 = vpack.c.b16 %v6146, %v6145
        %v6168 = vpack.c.b16 %v6148, %v6147
        %v6169 = vpack.c.b16 %v6150, %v6149
        %v6170 = vpack.c.b16 %v6152, %v6151
        %v6171 = vpack.c.b16 %v6154, %v6153
        %v6172 = vpack.c.b16 %v6156, %v6155
        %v6205 = vunpack.c.l.b16 %v6109
        %v6206 = vunpack.c.l.b16 %v6110
        %v6207 = vunpack.c.l.b16 %v6111
        %v6208 = vunpack.c.l.b16 %v6112
        %v6209 = vunpack.c.l.b16 %v6113
        %v6210 = vunpack.c.l.b16 %v6114
        %v6211 = vunpack.c.l.b16 %v6115
        %v6212 = vunpack.c.l.b16 %v6116
        %v6213 = vunpack.c.l.b16 %v6117
        %v6214 = vunpack.c.l.b16 %v6118
        %v6215 = vunpack.c.l.b16 %v6119
        %v6216 = vunpack.c.l.b16 %v6120
        %v6217 = vunpack.c.l.b16 %v6121
        %v6218 = vunpack.c.l.b16 %v6122
        %v6219 = vunpack.c.l.b16 %v6123
        %v6220 = vunpack.c.l.b16 %v6124
        %v6221 = vpack.c.b16 %v6206, %v6205
        %v6222 = vpack.c.b16 %v6208, %v6207
        %v6223 = vpack.c.b16 %v6210, %v6209
        %v6224 = vpack.c.b16 %v6212, %v6211
        %v6225 = vpack.c.b16 %v6214, %v6213
        %v6226 = vpack.c.b16 %v6216, %v6215
        %v6227 = vpack.c.b16 %v6218, %v6217
        %v6228 = vpack.c.b16 %v6220, %v6219
        %6237 = vmatprep.subr.bf16.mxu0 0
        %6238 = vmatpush1.bf16.msra.mxu0 %v6221
        %6239 = vmatprep.subr.bf16.mxu0 0
        %6240 = vmatpush1.bf16.msra.mxu0 %v6222
        %6241 = vmatprep.subr.bf16.mxu0 0
        %6242 = vmatpush1.bf16.msra.mxu0 %v6223
        %6243 = vmatprep.subr.bf16.mxu0 0
        %6244 = vmatpush1.bf16.msra.mxu0 %v6224
        %6245 = vmatprep.subr.bf16.mxu0 0
        %6246 = vmatpush1.bf16.msra.mxu0 %v6225
        %6247 = vmatprep.subr.bf16.mxu0 0
        %6248 = vmatpush1.bf16.msra.mxu0 %v6226
        %6249 = vmatprep.subr.bf16.mxu0 0
        %6250 = vmatpush1.bf16.msra.mxu0 %v6227
        %6251 = vmatprep.subr.bf16.mxu0 0
        %6252 = vmatpush1.bf16.msra.mxu0 %v6228
        %6253 = vmatprep.subr.bf16.mxu0 0
        %6254 = vmatpush1.bf16.msra.mxu0 0
        %6255 = vmatprep.subr.bf16.mxu0 0
        %6256 = vmatpush1.bf16.msra.mxu0 0
        %6257 = vmatprep.subr.bf16.mxu0 0
        %6258 = vmatpush1.bf16.msra.mxu0 0
        %6259 = vmatprep.subr.bf16.mxu0 0
        %6260 = vmatpush1.bf16.msra.mxu0 0
        %6261 = vmatprep.subr.bf16.mxu0 0
        %6262 = vmatpush1.bf16.msra.mxu0 0
        %6263 = vmatprep.subr.bf16.mxu0 0
        %6264 = vmatpush1.bf16.msra.mxu0 0
        %6265 = vmatprep.subr.bf16.mxu0 0
        %6266 = vmatpush1.bf16.msra.mxu0 0
        %6267 = vmatprep.subr.bf16.mxu0 0
        %6268 = vmatpush1.bf16.msra.mxu0 0
        %6269 = vmatprep.mubr.bf16.mxu0 0
        %6270 = vmatmul.mubr.bf16.gmra.mrb[0].mxu0 %v6157
        %v6271 = vpop.f32.mrb[0].mxu0
        %v6272 = vadd.f32 0.0, %v6271
        %v6273 = vpop.f32.mrb[0].mxu0
        %v6274 = vpop.f32.mrb[0].mxu0
        %v6275 = vadd.f32 0.0, %v6274
        %v6276 = vpop.f32.mrb[0].mxu0
        %6277 = vmatprep.mubr.bf16.mxu0 0
        %6278 = vmatmul.mubr.bf16.gmra.mrb[0].mxu0 %v6158
        %v6279 = vpop.f32.mrb[0].mxu0
        %v6280 = vadd.f32 0.0, %v6279
        %v6281 = vpop.f32.mrb[0].mxu0
        %v6282 = vpop.f32.mrb[0].mxu0
        %v6283 = vadd.f32 0.0, %v6282
        %v6284 = vpop.f32.mrb[0].mxu0
        %6285 = vmatprep.mubr.bf16.mxu0 0
        %6286 = vmatmul.mubr.bf16.gmra.mrb[0].mxu0 %v6159
        %v6287 = vpop.f32.mrb[0].mxu0
        %v6288 = vadd.f32 0.0, %v6287
        %v6289 = vpop.f32.mrb[0].mxu0
        %v6290 = vpop.f32.mrb[0].mxu0
        %v6291 = vadd.f32 0.0, %v6290
        %v6292 = vpop.f32.mrb[0].mxu0
        %6293 = vmatprep.mubr.bf16.mxu0 0
        %6294 = vmatmul.mubr.bf16.gmra.mrb[0].mxu0 %v6160
        %v6295 = vpop.f32.mrb[0].mxu0
        %v6296 = vadd.f32 0.0, %v6295
        %v6297 = vpop.f32.mrb[0].mxu0
        %v6298 = vpop.f32.mrb[0].mxu0
        %v6299 = vadd.f32 0.0, %v6298
        %v6300 = vpop.f32.mrb[0].mxu0
        %6301 = vmatprep.mubr.bf16.mxu0 0
        %6302 = vmatmul.mubr.bf16.gmra.mrb[0].mxu0 %v6161
        %v6303 = vpop.f32.mrb[0].mxu0
        %v6304 = vadd.f32 0.0, %v6303
        %v6305 = vpop.f32.mrb[0].mxu0
        %v6306 = vpop.f32.mrb[0].mxu0
        %v6307 = vadd.f32 0.0, %v6306
        %v6308 = vpop.f32.mrb[0].mxu0
        %6309 = vmatprep.mubr.bf16.mxu0 0
        %6310 = vmatmul.mubr.bf16.gmra.mrb[0].mxu0 %v6162
        %v6311 = vpop.f32.mrb[0].mxu0
        %v6312 = vadd.f32 0.0, %v6311
        %v6313 = vpop.f32.mrb[0].mxu0
        %v6314 = vpop.f32.mrb[0].mxu0
        %v6315 = vadd.f32 0.0, %v6314
        %v6316 = vpop.f32.mrb[0].mxu0
        %6317 = vmatprep.mubr.bf16.mxu0 0
        %6318 = vmatmul.mubr.bf16.gmra.mrb[0].mxu0 %v6163
        %v6319 = vpop.f32.mrb[0].mxu0
        %v6320 = vadd.f32 0.0, %v6319
        %v6321 = vpop.f32.mrb[0].mxu0
        %v6322 = vpop.f32.mrb[0].mxu0
        %v6323 = vadd.f32 0.0, %v6322
        %v6324 = vpop.f32.mrb[0].mxu0
        %6325 = vmatprep.mubr.bf16.mxu0 0
        %6326 = vmatmul.mubr.bf16.gmra.mrb[0].mxu0 %v6164
        %v6327 = vpop.f32.mrb[0].mxu0
        %v6328 = vadd.f32 0.0, %v6327
        %v6329 = vpop.f32.mrb[0].mxu0
        %v6330 = vpop.f32.mrb[0].mxu0
        %v6331 = vadd.f32 0.0, %v6330
        %v6332 = vpop.f32.mrb[0].mxu0
        %6333 = vmatprep.mubr.bf16.mxu0 0
        %6334 = vmatmul.mubr.bf16.gmra.mrb[0].mxu0 %v6165
        %v6335 = vpop.f32.mrb[0].mxu0
        %v6336 = vadd.f32 0.0, %v6335
        %v6337 = vpop.f32.mrb[0].mxu0
        %v6338 = vpop.f32.mrb[0].mxu0
        %v6339 = vadd.f32 0.0, %v6338
        %v6340 = vpop.f32.mrb[0].mxu0
        %6341 = vmatprep.mubr.bf16.mxu0 0
        %6342 = vmatmul.mubr.bf16.gmra.mrb[0].mxu0 %v6166
        %v6343 = vpop.f32.mrb[0].mxu0
        %v6344 = vadd.f32 0.0, %v6343
        %v6345 = vpop.f32.mrb[0].mxu0
        %v6346 = vpop.f32.mrb[0].mxu0
        %v6347 = vadd.f32 0.0, %v6346
        %v6348 = vpop.f32.mrb[0].mxu0
        %6349 = vmatprep.mubr.bf16.mxu0 0
        %6350 = vmatmul.mubr.bf16.gmra.mrb[0].mxu0 %v6167
        %v6351 = vpop.f32.mrb[0].mxu0
        %v6352 = vadd.f32 0.0, %v6351
        %v6353 = vpop.f32.mrb[0].mxu0
        %v6354 = vpop.f32.mrb[0].mxu0
        %v6355 = vadd.f32 0.0, %v6354
        %v6356 = vpop.f32.mrb[0].mxu0
        %6357 = vmatprep.mubr.bf16.mxu0 0
        %6358 = vmatmul.mubr.bf16.gmra.mrb[0].mxu0 %v6168
        %v6359 = vpop.f32.mrb[0].mxu0
        %v6360 = vadd.f32 0.0, %v6359
        %v6361 = vpop.f32.mrb[0].mxu0
        %v6362 = vpop.f32.mrb[0].mxu0
        %v6363 = vadd.f32 0.0, %v6362
        %v6364 = vpop.f32.mrb[0].mxu0
        %6365 = vmatprep.mubr.bf16.mxu0 0
        %6366 = vmatmul.mubr.bf16.gmra.mrb[0].mxu0 %v6169
        %v6367 = vpop.f32.mrb[0].mxu0
        %v6368 = vadd.f32 0.0, %v6367
        %v6369 = vpop.f32.mrb[0].mxu0
        %v6370 = vpop.f32.mrb[0].mxu0
        %v6371 = vadd.f32 0.0, %v6370
        %v6372 = vpop.f32.mrb[0].mxu0
        %6373 = vmatprep.mubr.bf16.mxu0 0
        %6374 = vmatmul.mubr.bf16.gmra.mrb[0].mxu0 %v6170
        %v6375 = vpop.f32.mrb[0].mxu0
        %v6376 = vadd.f32 0.0, %v6375
        %v6377 = vpop.f32.mrb[0].mxu0
        %v6378 = vpop.f32.mrb[0].mxu0
        %v6379 = vadd.f32 0.0, %v6378
        %v6380 = vpop.f32.mrb[0].mxu0
        %6381 = vmatprep.mubr.bf16.mxu0 0
        %6382 = vmatmul.mubr.bf16.gmra.mrb[0].mxu0 %v6171
        %v6383 = vpop.f32.mrb[0].mxu0
        %v6384 = vadd.f32 0.0, %v6383
        %v6385 = vpop.f32.mrb[0].mxu0
        %v6386 = vpop.f32.mrb[0].mxu0
        %v6387 = vadd.f32 0.0, %v6386
        %v6388 = vpop.f32.mrb[0].mxu0
        %6389 = vmatprep.mubr.bf16.mxu0 0
        %6390 = vmatmul.mubr.bf16.gmra.mrb[0].mxu0 %v6172
        %v6391 = vpop.f32.mrb[0].mxu0
        %v6392 = vadd.f32 0.0, %v6391
        %v6393 = vpop.f32.mrb[0].mxu0
        %v6394 = vpop.f32.mrb[0].mxu0
        %v6395 = vadd.f32 0.0, %v6394
        %v6396 = vpop.f32.mrb[0].mxu0
        %6397 = vdwg.mxu0
        %v6398 = vld [vmem:[#allocation3] sm:$0xff]
        %v6399 = vld [vmem:[#allocation3 + $0x8] sm:$0xff]
        %v6400 = vld [vmem:[#allocation3 + $0x10] sm:$0xff]
        %v6401 = vld [vmem:[#allocation3 + $0x18] sm:$0xff]
        %v6402 = vld [vmem:[#allocation3 + $0x20] sm:$0xff]
        %v6403 = vld [vmem:[#allocation3 + $0x28] sm:$0xff]
        %v6404 = vld [vmem:[#allocation3 + $0x30] sm:$0xff]
        %v6405 = vld [vmem:[#allocation3 + $0x38] sm:$0xff]
        %v6406 = vld [vmem:[#allocation3 + $0x40] sm:$0xff]
        %v6407 = vld [vmem:[#allocation3 + $0x48] sm:$0xff]
        %v6408 = vld [vmem:[#allocation3 + $0x50] sm:$0xff]
        %v6409 = vld [vmem:[#allocation3 + $0x58] sm:$0xff]
        %v6410 = vld [vmem:[#allocation3 + $0x60] sm:$0xff]
        %v6411 = vld [vmem:[#allocation3 + $0x68] sm:$0xff]
        %v6412 = vld [vmem:[#allocation3 + $0x70] sm:$0xff]
        %v6413 = vld [vmem:[#allocation3 + $0x78] sm:$0xff]
        %v6414 = vld [vmem:[#allocation3 + $0x80] sm:$0xff]
        %v6415 = vld [vmem:[#allocation3 + $0x88] sm:$0xff]
        %v6416 = vld [vmem:[#allocation3 + $0x90] sm:$0xff]
        %v6417 = vld [vmem:[#allocation3 + $0x98] sm:$0xff]
        %v6418 = vld [vmem:[#allocation3 + $0xa0] sm:$0xff]
        %v6419 = vld [vmem:[#allocation3 + $0xa8] sm:$0xff]
        %v6420 = vld [vmem:[#allocation3 + $0xb0] sm:$0xff]
        %v6421 = vld [vmem:[#allocation3 + $0xb8] sm:$0xff]
        %v6422 = vld [vmem:[#allocation3 + $0xc0] sm:$0xff]
        %v6423 = vld [vmem:[#allocation3 + $0xc8] sm:$0xff]
        %v6424 = vld [vmem:[#allocation3 + $0xd0] sm:$0xff]
        %v6425 = vld [vmem:[#allocation3 + $0xd8] sm:$0xff]
        %v6426 = vld [vmem:[#allocation3 + $0xe0] sm:$0xff]
        %v6427 = vld [vmem:[#allocation3 + $0xe8] sm:$0xff]
        %v6428 = vld [vmem:[#allocation3 + $0xf0] sm:$0xff]
        %v6429 = vld [vmem:[#allocation3 + $0xf8] sm:$0xff]
        %v6430 = vadd.f32 %v6398, %v6272
        %v6431 = vadd.f32 %v6399, %v6275
        %v6432 = vadd.f32 %v6400, %v6280
        %v6433 = vadd.f32 %v6401, %v6283
        %v6434 = vadd.f32 %v6402, %v6288
        %v6435 = vadd.f32 %v6403, %v6291
        %v6436 = vadd.f32 %v6404, %v6296
        %v6437 = vadd.f32 %v6405, %v6299
        %v6438 = vadd.f32 %v6406, %v6304
        %v6439 = vadd.f32 %v6407, %v6307
        %v6440 = vadd.f32 %v6408, %v6312
        %v6441 = vadd.f32 %v6409, %v6315
        %v6442 = vadd.f32 %v6410, %v6320
        %v6443 = vadd.f32 %v6411, %v6323
        %v6444 = vadd.f32 %v6412, %v6328
        %v6445 = vadd.f32 %v6413, %v6331
        %v6446 = vadd.f32 %v6414, %v6336
        %v6447 = vadd.f32 %v6415, %v6339
        %v6448 = vadd.f32 %v6416, %v6344
        %v6449 = vadd.f32 %v6417, %v6347
        %v6450 = vadd.f32 %v6418, %v6352
        %v6451 = vadd.f32 %v6419, %v6355
        %v6452 = vadd.f32 %v6420, %v6360
        %v6453 = vadd.f32 %v6421, %v6363
        %v6454 = vadd.f32 %v6422, %v6368
        %v6455 = vadd.f32 %v6423, %v6371
        %v6456 = vadd.f32 %v6424, %v6376
        %v6457 = vadd.f32 %v6425, %v6379
        %v6458 = vadd.f32 %v6426, %v6384
        %v6459 = vadd.f32 %v6427, %v6387
        %v6460 = vadd.f32 %v6428, %v6392
        %v6461 = vadd.f32 %v6429, %v6395
        %6462 = vst [vmem:[#allocation3] sm:$0xff] %v6430
        %6463 = vst [vmem:[#allocation3 + $0x8] sm:$0xff] %v6431
        %6464 = vst [vmem:[#allocation3 + $0x10] sm:$0xff] %v6432
        %6465 = vst [vmem:[#allocation3 + $0x18] sm:$0xff] %v6433
        %6466 = vst [vmem:[#allocation3 + $0x20] sm:$0xff] %v6434
        %6467 = vst [vmem:[#allocation3 + $0x28] sm:$0xff] %v6435
        %6468 = vst [vmem:[#allocation3 + $0x30] sm:$0xff] %v6436
        %6469 = vst [vmem:[#allocation3 + $0x38] sm:$0xff] %v6437
        %6470 = vst [vmem:[#allocation3 + $0x40] sm:$0xff] %v6438
        %6471 = vst [vmem:[#allocation3 + $0x48] sm:$0xff] %v6439
        %6472 = vst [vmem:[#allocation3 + $0x50] sm:$0xff] %v6440
        %6473 = vst [vmem:[#allocation3 + $0x58] sm:$0xff] %v6441
        %6474 = vst [vmem:[#allocation3 + $0x60] sm:$0xff] %v6442
        %6475 = vst [vmem:[#allocation3 + $0x68] sm:$0xff] %v6443
        %6476 = vst [vmem:[#allocation3 + $0x70] sm:$0xff] %v6444
        %6477 = vst [vmem:[#allocation3 + $0x78] sm:$0xff] %v6445
        %6478 = vst [vmem:[#allocation3 + $0x80] sm:$0xff] %v6446
        %6479 = vst [vmem:[#allocation3 + $0x88] sm:$0xff] %v6447
        %6480 = vst [vmem:[#allocation3 + $0x90] sm:$0xff] %v6448
        %6481 = vst [vmem:[#allocation3 + $0x98] sm:$0xff] %v6449
        %6482 = vst [vmem:[#allocation3 + $0xa0] sm:$0xff] %v6450
        %6483 = vst [vmem:[#allocation3 + $0xa8] sm:$0xff] %v6451
        %6484 = vst [vmem:[#allocation3 + $0xb0] sm:$0xff] %v6452
        %6485 = vst [vmem:[#allocation3 + $0xb8] sm:$0xff] %v6453
        %6486 = vst [vmem:[#allocation3 + $0xc0] sm:$0xff] %v6454
        %6487 = vst [vmem:[#allocation3 + $0xc8] sm:$0xff] %v6455
        %6488 = vst [vmem:[#allocation3 + $0xd0] sm:$0xff] %v6456
        %6489 = vst [vmem:[#allocation3 + $0xd8] sm:$0xff] %v6457
        %6490 = vst [vmem:[#allocation3 + $0xe0] sm:$0xff] %v6458
        %6491 = vst [vmem:[#allocation3 + $0xe8] sm:$0xff] %v6459
        %6492 = vst [vmem:[#allocation3 + $0xf0] sm:$0xff] %v6460
        %6493 = vst [vmem:[#allocation3 + $0xf8] sm:$0xff] %v6461
        %v6494 = vld [vmem:[#allocation3] sm:$0xff]
        %v6495 = vld [vmem:[#allocation3 + $0x8] sm:$0xff]
        %v6496 = vld [vmem:[#allocation3 + $0x10] sm:$0xff]
        %v6497 = vld [vmem:[#allocation3 + $0x18] sm:$0xff]
        %v6498 = vld [vmem:[#allocation3 + $0x20] sm:$0xff]
        %v6499 = vld [vmem:[#allocation3 + $0x28] sm:$0xff]
        %v6500 = vld [vmem:[#allocation3 + $0x30] sm:$0xff]
        %v6501 = vld [vmem:[#allocation3 + $0x38] sm:$0xff]
        %v6502 = vld [vmem:[#allocation3 + $0x40] sm:$0xff]
        %v6503 = vld [vmem:[#allocation3 + $0x48] sm:$0xff]
        %v6504 = vld [vmem:[#allocation3 + $0x50] sm:$0xff]
        %v6505 = vld [vmem:[#allocation3 + $0x58] sm:$0xff]
        %v6506 = vld [vmem:[#allocation3 + $0x60] sm:$0xff]
        %v6507 = vld [vmem:[#allocation3 + $0x68] sm:$0xff]
        %v6508 = vld [vmem:[#allocation3 + $0x70] sm:$0xff]
        %v6509 = vld [vmem:[#allocation3 + $0x78] sm:$0xff]
        %v6510 = vld [vmem:[#allocation3 + $0x80] sm:$0xff]
        %v6511 = vld [vmem:[#allocation3 + $0x88] sm:$0xff]
        %v6512 = vld [vmem:[#allocation3 + $0x90] sm:$0xff]
        %v6513 = vld [vmem:[#allocation3 + $0x98] sm:$0xff]
        %v6514 = vld [vmem:[#allocation3 + $0xa0] sm:$0xff]
        %v6515 = vld [vmem:[#allocation3 + $0xa8] sm:$0xff]
        %v6516 = vld [vmem:[#allocation3 + $0xb0] sm:$0xff]
        %v6517 = vld [vmem:[#allocation3 + $0xb8] sm:$0xff]
        %v6518 = vld [vmem:[#allocation3 + $0xc0] sm:$0xff]
        %v6519 = vld [vmem:[#allocation3 + $0xc8] sm:$0xff]
        %v6520 = vld [vmem:[#allocation3 + $0xd0] sm:$0xff]
        %v6521 = vld [vmem:[#allocation3 + $0xd8] sm:$0xff]
        %v6522 = vld [vmem:[#allocation3 + $0xe0] sm:$0xff]
        %v6523 = vld [vmem:[#allocation3 + $0xe8] sm:$0xff]
        %v6524 = vld [vmem:[#allocation3 + $0xf0] sm:$0xff]
        %v6525 = vld [vmem:[#allocation3 + $0xf8] sm:$0xff]
        %v6526 = vlaneseq
        %v6527 = vshrl.u32 %v6526, 7
        %v6528 = vsub.s32 0, %v6527
        %v6529 = vrot.slane %v375, %v6528
        %v6530 = vmul.f32 %v6494, %v6529
        %v6531 = vmul.f32 %v6495, %v6529
        %v6532 = vmul.f32 %v6496, %v6529
        %v6533 = vmul.f32 %v6497, %v6529
        %v6534 = vmul.f32 %v6498, %v6529
        %v6535 = vmul.f32 %v6499, %v6529
        %v6536 = vmul.f32 %v6500, %v6529
        %v6537 = vmul.f32 %v6501, %v6529
        %v6538 = vmul.f32 %v6502, %v6529
        %v6539 = vmul.f32 %v6503, %v6529
        %v6540 = vmul.f32 %v6504, %v6529
        %v6541 = vmul.f32 %v6505, %v6529
        %v6542 = vmul.f32 %v6506, %v6529
        %v6543 = vmul.f32 %v6507, %v6529
        %v6544 = vmul.f32 %v6508, %v6529
        %v6545 = vmul.f32 %v6509, %v6529
        %v6546 = vmul.f32 %v6510, %v6529
        %v6547 = vmul.f32 %v6511, %v6529
        %v6548 = vmul.f32 %v6512, %v6529
        %v6549 = vmul.f32 %v6513, %v6529
        %v6550 = vmul.f32 %v6514, %v6529
        %v6551 = vmul.f32 %v6515, %v6529
        %v6552 = vmul.f32 %v6516, %v6529
        %v6553 = vmul.f32 %v6517, %v6529
        %v6554 = vmul.f32 %v6518, %v6529
        %v6555 = vmul.f32 %v6519, %v6529
        %v6556 = vmul.f32 %v6520, %v6529
        %v6557 = vmul.f32 %v6521, %v6529
        %v6558 = vmul.f32 %v6522, %v6529
        %v6559 = vmul.f32 %v6523, %v6529
        %v6560 = vmul.f32 %v6524, %v6529
        %v6561 = vmul.f32 %v6525, %v6529
        %v6562 = vlaneseq
        %v6563 = vshrl.u32 %v6562, 7
        %v6564 = vsub.s32 1, %v6563
        %v6565 = vrot.slane %v375, %v6564
        %v6566 = vadd.f32 %v6530, %v6565
        %v6567 = vadd.f32 %v6531, %v6565
        %v6568 = vadd.f32 %v6532, %v6565
        %v6569 = vadd.f32 %v6533, %v6565
        %v6570 = vadd.f32 %v6534, %v6565
        %v6571 = vadd.f32 %v6535, %v6565
        %v6572 = vadd.f32 %v6536, %v6565
        %v6573 = vadd.f32 %v6537, %v6565
        %v6574 = vadd.f32 %v6538, %v6565
        %v6575 = vadd.f32 %v6539, %v6565
        %v6576 = vadd.f32 %v6540, %v6565
        %v6577 = vadd.f32 %v6541, %v6565
        %v6578 = vadd.f32 %v6542, %v6565
        %v6579 = vadd.f32 %v6543, %v6565
        %v6580 = vadd.f32 %v6544, %v6565
        %v6581 = vadd.f32 %v6545, %v6565
        %v6582 = vadd.f32 %v6546, %v6565
        %v6583 = vadd.f32 %v6547, %v6565
        %v6584 = vadd.f32 %v6548, %v6565
        %v6585 = vadd.f32 %v6549, %v6565
        %v6586 = vadd.f32 %v6550, %v6565
        %v6587 = vadd.f32 %v6551, %v6565
        %v6588 = vadd.f32 %v6552, %v6565
        %v6589 = vadd.f32 %v6553, %v6565
        %v6590 = vadd.f32 %v6554, %v6565
        %v6591 = vadd.f32 %v6555, %v6565
        %v6592 = vadd.f32 %v6556, %v6565
        %v6593 = vadd.f32 %v6557, %v6565
        %v6594 = vadd.f32 %v6558, %v6565
        %v6595 = vadd.f32 %v6559, %v6565
        %v6596 = vadd.f32 %v6560, %v6565
        %v6597 = vadd.f32 %v6561, %v6565
        %v6598 = vmax.f32 %v6566, 0.0
        %v6599 = vmax.f32 %v6567, 0.0
        %v6600 = vmax.f32 %v6568, 0.0
        %v6601 = vmax.f32 %v6569, 0.0
        %v6602 = vmax.f32 %v6570, 0.0
        %v6603 = vmax.f32 %v6571, 0.0
        %v6604 = vmax.f32 %v6572, 0.0
        %v6605 = vmax.f32 %v6573, 0.0
        %v6606 = vmax.f32 %v6574, 0.0
        %v6607 = vmax.f32 %v6575, 0.0
        %v6608 = vmax.f32 %v6576, 0.0
        %v6609 = vmax.f32 %v6577, 0.0
        %v6610 = vmax.f32 %v6578, 0.0
        %v6611 = vmax.f32 %v6579, 0.0
        %v6612 = vmax.f32 %v6580, 0.0
        %v6613 = vmax.f32 %v6581, 0.0
        %v6614 = vmax.f32 %v6582, 0.0
        %v6615 = vmax.f32 %v6583, 0.0
        %v6616 = vmax.f32 %v6584, 0.0
        %v6617 = vmax.f32 %v6585, 0.0
        %v6618 = vmax.f32 %v6586, 0.0
        %v6619 = vmax.f32 %v6587, 0.0
        %v6620 = vmax.f32 %v6588, 0.0
        %v6621 = vmax.f32 %v6589, 0.0
        %v6622 = vmax.f32 %v6590, 0.0
        %v6623 = vmax.f32 %v6591, 0.0
        %v6624 = vmax.f32 %v6592, 0.0
        %v6625 = vmax.f32 %v6593, 0.0
        %v6626 = vmax.f32 %v6594, 0.0
        %v6627 = vmax.f32 %v6595, 0.0
        %v6628 = vmax.f32 %v6596, 0.0
        %v6629 = vmax.f32 %v6597, 0.0
        %v6630 = vpack.c.bf16 %v6599, %v6598
        %v6631 = vpack.c.bf16 %v6601, %v6600
        %v6632 = vpack.c.bf16 %v6603, %v6602
        %v6633 = vpack.c.bf16 %v6605, %v6604
        %v6634 = vpack.c.bf16 %v6607, %v6606
        %v6635 = vpack.c.bf16 %v6609, %v6608
        %v6636 = vpack.c.bf16 %v6611, %v6610
        %v6637 = vpack.c.bf16 %v6613, %v6612
        %v6638 = vpack.c.bf16 %v6615, %v6614
        %v6639 = vpack.c.bf16 %v6617, %v6616
        %v6640 = vpack.c.bf16 %v6619, %v6618
        %v6641 = vpack.c.bf16 %v6621, %v6620
        %v6642 = vpack.c.bf16 %v6623, %v6622
        %v6643 = vpack.c.bf16 %v6625, %v6624
        %v6644 = vpack.c.bf16 %v6627, %v6626
        %v6645 = vpack.c.bf16 %v6629, %v6628
        %v6646 = vld [vmem:[#allocation10] sm:$0xf]
        %v6647 = vld [vmem:[#allocation10 + $0x4] sm:$0xf]
        %v6648 = vld [vmem:[#allocation10 + $0x8] sm:$0xf]
        %v6649 = vld [vmem:[#allocation10 + $0xc] sm:$0xf]
        %v6650 = vld [vmem:[#allocation10 + $0x10] sm:$0xf]
        %v6651 = vld [vmem:[#allocation10 + $0x14] sm:$0xf]
        %v6652 = vld [vmem:[#allocation10 + $0x18] sm:$0xf]
        %v6653 = vld [vmem:[#allocation10 + $0x1c] sm:$0xf]
        %v6654 = vld [vmem:[#allocation10 + $0x20] sm:$0xf]
        %v6655 = vld [vmem:[#allocation10 + $0x24] sm:$0xf]
        %v6656 = vld [vmem:[#allocation10 + $0x28] sm:$0xf]
        %v6657 = vld [vmem:[#allocation10 + $0x2c] sm:$0xf]
        %v6658 = vld [vmem:[#allocation10 + $0x30] sm:$0xf]
        %v6659 = vld [vmem:[#allocation10 + $0x34] sm:$0xf]
        %v6660 = vld [vmem:[#allocation10 + $0x38] sm:$0xf]
        %v6661 = vld [vmem:[#allocation10 + $0x3c] sm:$0xf]
        %v6678 = vunpack.c.l.b16 %v6646
        %v6679 = vunpack.c.l.b16 %v6647
        %v6680 = vunpack.c.l.b16 %v6648
        %v6681 = vunpack.c.l.b16 %v6649
        %v6682 = vunpack.c.l.b16 %v6650
        %v6683 = vunpack.c.l.b16 %v6651
        %v6684 = vunpack.c.l.b16 %v6652
        %v6685 = vunpack.c.l.b16 %v6653
        %v6686 = vunpack.c.l.b16 %v6654
        %v6687 = vunpack.c.l.b16 %v6655
        %v6688 = vunpack.c.l.b16 %v6656
        %v6689 = vunpack.c.l.b16 %v6657
        %v6690 = vunpack.c.l.b16 %v6658
        %v6691 = vunpack.c.l.b16 %v6659
        %v6692 = vunpack.c.l.b16 %v6660
        %v6693 = vunpack.c.l.b16 %v6661
        %v6694 = vpack.c.b16 %v6679, %v6678
        %v6695 = vpack.c.b16 %v6681, %v6680
        %v6696 = vpack.c.b16 %v6683, %v6682
        %v6697 = vpack.c.b16 %v6685, %v6684
        %v6698 = vpack.c.b16 %v6687, %v6686
        %v6699 = vpack.c.b16 %v6689, %v6688
        %v6700 = vpack.c.b16 %v6691, %v6690
        %v6701 = vpack.c.b16 %v6693, %v6692
        %6710 = vmatprep.subr.bf16.mxu0 0
        %6711 = vmatpush1.bf16.msra.mxu0 %v6694
        %6712 = vmatprep.subr.bf16.mxu0 0
        %6713 = vmatpush1.bf16.msra.mxu0 %v6695
        %6714 = vmatprep.subr.bf16.mxu0 0
        %6715 = vmatpush1.bf16.msra.mxu0 %v6696
        %6716 = vmatprep.subr.bf16.mxu0 0
        %6717 = vmatpush1.bf16.msra.mxu0 %v6697
        %6718 = vmatprep.subr.bf16.mxu0 0
        %6719 = vmatpush1.bf16.msra.mxu0 %v6698
        %6720 = vmatprep.subr.bf16.mxu0 0
        %6721 = vmatpush1.bf16.msra.mxu0 %v6699
        %6722 = vmatprep.subr.bf16.mxu0 0
        %6723 = vmatpush1.bf16.msra.mxu0 %v6700
        %6724 = vmatprep.subr.bf16.mxu0 0
        %6725 = vmatpush1.bf16.msra.mxu0 %v6701
        %6726 = vmatprep.subr.bf16.mxu0 0
        %6727 = vmatpush1.bf16.msra.mxu0 0
        %6728 = vmatprep.subr.bf16.mxu0 0
        %6729 = vmatpush1.bf16.msra.mxu0 0
        %6730 = vmatprep.subr.bf16.mxu0 0
        %6731 = vmatpush1.bf16.msra.mxu0 0
        %6732 = vmatprep.subr.bf16.mxu0 0
        %6733 = vmatpush1.bf16.msra.mxu0 0
        %6734 = vmatprep.subr.bf16.mxu0 0
        %6735 = vmatpush1.bf16.msra.mxu0 0
        %6736 = vmatprep.subr.bf16.mxu0 0
        %6737 = vmatpush1.bf16.msra.mxu0 0
        %6738 = vmatprep.subr.bf16.mxu0 0
        %6739 = vmatpush1.bf16.msra.mxu0 0
        %6740 = vmatprep.subr.bf16.mxu0 0
        %6741 = vmatpush1.bf16.msra.mxu0 0
        %6742 = vmatprep.mubr.bf16.mxu0 0
        %6743 = vmatmul.mubr.bf16.gmra.mrb[0].mxu0 %v6630
        %v6744 = vpop.f32.mrb[0].mxu0
        %v6745 = vadd.f32 0.0, %v6744
        %v6746 = vpop.f32.mrb[0].mxu0
        %v6747 = vpop.f32.mrb[0].mxu0
        %v6748 = vadd.f32 0.0, %v6747
        %v6749 = vpop.f32.mrb[0].mxu0
        %6750 = vmatprep.mubr.bf16.mxu0 0
        %6751 = vmatmul.mubr.bf16.gmra.mrb[0].mxu0 %v6631
        %v6752 = vpop.f32.mrb[0].mxu0
        %v6753 = vadd.f32 0.0, %v6752
        %v6754 = vpop.f32.mrb[0].mxu0
        %v6755 = vpop.f32.mrb[0].mxu0
        %v6756 = vadd.f32 0.0, %v6755
        %v6757 = vpop.f32.mrb[0].mxu0
        %6758 = vmatprep.mubr.bf16.mxu0 0
        %6759 = vmatmul.mubr.bf16.gmra.mrb[0].mxu0 %v6632
        %v6760 = vpop.f32.mrb[0].mxu0
        %v6761 = vadd.f32 0.0, %v6760
        %v6762 = vpop.f32.mrb[0].mxu0
        %v6763 = vpop.f32.mrb[0].mxu0
        %v6764 = vadd.f32 0.0, %v6763
        %v6765 = vpop.f32.mrb[0].mxu0
        %6766 = vmatprep.mubr.bf16.mxu0 0
        %6767 = vmatmul.mubr.bf16.gmra.mrb[0].mxu0 %v6633
        %v6768 = vpop.f32.mrb[0].mxu0
        %v6769 = vadd.f32 0.0, %v6768
        %v6770 = vpop.f32.mrb[0].mxu0
        %v6771 = vpop.f32.mrb[0].mxu0
        %v6772 = vadd.f32 0.0, %v6771
        %v6773 = vpop.f32.mrb[0].mxu0
        %6774 = vmatprep.mubr.bf16.mxu0 0
        %6775 = vmatmul.mubr.bf16.gmra.mrb[0].mxu0 %v6634
        %v6776 = vpop.f32.mrb[0].mxu0
        %v6777 = vadd.f32 0.0, %v6776
        %v6778 = vpop.f32.mrb[0].mxu0
        %v6779 = vpop.f32.mrb[0].mxu0
        %v6780 = vadd.f32 0.0, %v6779
        %v6781 = vpop.f32.mrb[0].mxu0
        %6782 = vmatprep.mubr.bf16.mxu0 0
        %6783 = vmatmul.mubr.bf16.gmra.mrb[0].mxu0 %v6635
        %v6784 = vpop.f32.mrb[0].mxu0
        %v6785 = vadd.f32 0.0, %v6784
        %v6786 = vpop.f32.mrb[0].mxu0
        %v6787 = vpop.f32.mrb[0].mxu0
        %v6788 = vadd.f32 0.0, %v6787
        %v6789 = vpop.f32.mrb[0].mxu0
        %6790 = vmatprep.mubr.bf16.mxu0 0
        %6791 = vmatmul.mubr.bf16.gmra.mrb[0].mxu0 %v6636
        %v6792 = vpop.f32.mrb[0].mxu0
        %v6793 = vadd.f32 0.0, %v6792
        %v6794 = vpop.f32.mrb[0].mxu0
        %v6795 = vpop.f32.mrb[0].mxu0
        %v6796 = vadd.f32 0.0, %v6795
        %v6797 = vpop.f32.mrb[0].mxu0
        %6798 = vmatprep.mubr.bf16.mxu0 0
        %6799 = vmatmul.mubr.bf16.gmra.mrb[0].mxu0 %v6637
        %v6800 = vpop.f32.mrb[0].mxu0
        %v6801 = vadd.f32 0.0, %v6800
        %v6802 = vpop.f32.mrb[0].mxu0
        %v6803 = vpop.f32.mrb[0].mxu0
        %v6804 = vadd.f32 0.0, %v6803
        %v6805 = vpop.f32.mrb[0].mxu0
        %6806 = vmatprep.mubr.bf16.mxu0 0
        %6807 = vmatmul.mubr.bf16.gmra.mrb[0].mxu0 %v6638
        %v6808 = vpop.f32.mrb[0].mxu0
        %v6809 = vadd.f32 0.0, %v6808
        %v6810 = vpop.f32.mrb[0].mxu0
        %v6811 = vpop.f32.mrb[0].mxu0
        %v6812 = vadd.f32 0.0, %v6811
        %v6813 = vpop.f32.mrb[0].mxu0
        %6814 = vmatprep.mubr.bf16.mxu0 0
        %6815 = vmatmul.mubr.bf16.gmra.mrb[0].mxu0 %v6639
        %v6816 = vpop.f32.mrb[0].mxu0
        %v6817 = vadd.f32 0.0, %v6816
        %v6818 = vpop.f32.mrb[0].mxu0
        %v6819 = vpop.f32.mrb[0].mxu0
        %v6820 = vadd.f32 0.0, %v6819
        %v6821 = vpop.f32.mrb[0].mxu0
        %6822 = vmatprep.mubr.bf16.mxu0 0
        %6823 = vmatmul.mubr.bf16.gmra.mrb[0].mxu0 %v6640
        %v6824 = vpop.f32.mrb[0].mxu0
        %v6825 = vadd.f32 0.0, %v6824
        %v6826 = vpop.f32.mrb[0].mxu0
        %v6827 = vpop.f32.mrb[0].mxu0
        %v6828 = vadd.f32 0.0, %v6827
        %v6829 = vpop.f32.mrb[0].mxu0
        %6830 = vmatprep.mubr.bf16.mxu0 0
        %6831 = vmatmul.mubr.bf16.gmra.mrb[0].mxu0 %v6641
        %v6832 = vpop.f32.mrb[0].mxu0
        %v6833 = vadd.f32 0.0, %v6832
        %v6834 = vpop.f32.mrb[0].mxu0
        %v6835 = vpop.f32.mrb[0].mxu0
        %v6836 = vadd.f32 0.0, %v6835
        %v6837 = vpop.f32.mrb[0].mxu0
        %6838 = vmatprep.mubr.bf16.mxu0 0
        %6839 = vmatmul.mubr.bf16.gmra.mrb[0].mxu0 %v6642
        %v6840 = vpop.f32.mrb[0].mxu0
        %v6841 = vadd.f32 0.0, %v6840
        %v6842 = vpop.f32.mrb[0].mxu0
        %v6843 = vpop.f32.mrb[0].mxu0
        %v6844 = vadd.f32 0.0, %v6843
        %v6845 = vpop.f32.mrb[0].mxu0
        %6846 = vmatprep.mubr.bf16.mxu0 0
        %6847 = vmatmul.mubr.bf16.gmra.mrb[0].mxu0 %v6643
        %v6848 = vpop.f32.mrb[0].mxu0
        %v6849 = vadd.f32 0.0, %v6848
        %v6850 = vpop.f32.mrb[0].mxu0
        %v6851 = vpop.f32.mrb[0].mxu0
        %v6852 = vadd.f32 0.0, %v6851
        %v6853 = vpop.f32.mrb[0].mxu0
        %6854 = vmatprep.mubr.bf16.mxu0 0
        %6855 = vmatmul.mubr.bf16.gmra.mrb[0].mxu0 %v6644
        %v6856 = vpop.f32.mrb[0].mxu0
        %v6857 = vadd.f32 0.0, %v6856
        %v6858 = vpop.f32.mrb[0].mxu0
        %v6859 = vpop.f32.mrb[0].mxu0
        %v6860 = vadd.f32 0.0, %v6859
        %v6861 = vpop.f32.mrb[0].mxu0
        %6862 = vmatprep.mubr.bf16.mxu0 0
        %6863 = vmatmul.mubr.bf16.gmra.mrb[0].mxu0 %v6645
        %v6864 = vpop.f32.mrb[0].mxu0
        %v6865 = vadd.f32 0.0, %v6864
        %v6866 = vpop.f32.mrb[0].mxu0
        %v6867 = vpop.f32.mrb[0].mxu0
        %v6868 = vadd.f32 0.0, %v6867
        %v6869 = vpop.f32.mrb[0].mxu0
        %6870 = vdwg.mxu0
        %v6871 = vlaneseq
        %v6872 = vshrl.u32 %v6871, 7
        %v6873 = vsub.s32 0, %v6872
        %v6874 = vrot.slane %v376, %v6873
        %v6875 = vmul.f32 %v6745, %v6874
        %v6876 = vmul.f32 %v6748, %v6874
        %v6877 = vmul.f32 %v6753, %v6874
        %v6878 = vmul.f32 %v6756, %v6874
        %v6879 = vmul.f32 %v6761, %v6874
        %v6880 = vmul.f32 %v6764, %v6874
        %v6881 = vmul.f32 %v6769, %v6874
        %v6882 = vmul.f32 %v6772, %v6874
        %v6883 = vmul.f32 %v6777, %v6874
        %v6884 = vmul.f32 %v6780, %v6874
        %v6885 = vmul.f32 %v6785, %v6874
        %v6886 = vmul.f32 %v6788, %v6874
        %v6887 = vmul.f32 %v6793, %v6874
        %v6888 = vmul.f32 %v6796, %v6874
        %v6889 = vmul.f32 %v6801, %v6874
        %v6890 = vmul.f32 %v6804, %v6874
        %v6891 = vmul.f32 %v6809, %v6874
        %v6892 = vmul.f32 %v6812, %v6874
        %v6893 = vmul.f32 %v6817, %v6874
        %v6894 = vmul.f32 %v6820, %v6874
        %v6895 = vmul.f32 %v6825, %v6874
        %v6896 = vmul.f32 %v6828, %v6874
        %v6897 = vmul.f32 %v6833, %v6874
        %v6898 = vmul.f32 %v6836, %v6874
        %v6899 = vmul.f32 %v6841, %v6874
        %v6900 = vmul.f32 %v6844, %v6874
        %v6901 = vmul.f32 %v6849, %v6874
        %v6902 = vmul.f32 %v6852, %v6874
        %v6903 = vmul.f32 %v6857, %v6874
        %v6904 = vmul.f32 %v6860, %v6874
        %v6905 = vmul.f32 %v6865, %v6874
        %v6906 = vmul.f32 %v6868, %v6874
        %v6907 = vlaneseq
        %v6908 = vshrl.u32 %v6907, 7
        %v6909 = vsub.s32 1, %v6908
        %v6910 = vrot.slane %v376, %v6909
        %v6911 = vadd.f32 %v6875, %v6910
        %v6912 = vadd.f32 %v6876, %v6910
        %v6913 = vadd.f32 %v6877, %v6910
        %v6914 = vadd.f32 %v6878, %v6910
        %v6915 = vadd.f32 %v6879, %v6910
        %v6916 = vadd.f32 %v6880, %v6910
        %v6917 = vadd.f32 %v6881, %v6910
        %v6918 = vadd.f32 %v6882, %v6910
        %v6919 = vadd.f32 %v6883, %v6910
        %v6920 = vadd.f32 %v6884, %v6910
        %v6921 = vadd.f32 %v6885, %v6910
        %v6922 = vadd.f32 %v6886, %v6910
        %v6923 = vadd.f32 %v6887, %v6910
        %v6924 = vadd.f32 %v6888, %v6910
        %v6925 = vadd.f32 %v6889, %v6910
        %v6926 = vadd.f32 %v6890, %v6910
        %v6927 = vadd.f32 %v6891, %v6910
        %v6928 = vadd.f32 %v6892, %v6910
        %v6929 = vadd.f32 %v6893, %v6910
        %v6930 = vadd.f32 %v6894, %v6910
        %v6931 = vadd.f32 %v6895, %v6910
        %v6932 = vadd.f32 %v6896, %v6910
        %v6933 = vadd.f32 %v6897, %v6910
        %v6934 = vadd.f32 %v6898, %v6910
        %v6935 = vadd.f32 %v6899, %v6910
        %v6936 = vadd.f32 %v6900, %v6910
        %v6937 = vadd.f32 %v6901, %v6910
        %v6938 = vadd.f32 %v6902, %v6910
        %v6939 = vadd.f32 %v6903, %v6910
        %v6940 = vadd.f32 %v6904, %v6910
        %v6941 = vadd.f32 %v6905, %v6910
        %v6942 = vadd.f32 %v6906, %v6910
        %v6943 = vmax.f32 %v6911, 0.0
        %v6944 = vmax.f32 %v6912, 0.0
        %v6945 = vmax.f32 %v6913, 0.0
        %v6946 = vmax.f32 %v6914, 0.0
        %v6947 = vmax.f32 %v6915, 0.0
        %v6948 = vmax.f32 %v6916, 0.0
        %v6949 = vmax.f32 %v6917, 0.0
        %v6950 = vmax.f32 %v6918, 0.0
        %v6951 = vmax.f32 %v6919, 0.0
        %v6952 = vmax.f32 %v6920, 0.0
        %v6953 = vmax.f32 %v6921, 0.0
        %v6954 = vmax.f32 %v6922, 0.0
        %v6955 = vmax.f32 %v6923, 0.0
        %v6956 = vmax.f32 %v6924, 0.0
        %v6957 = vmax.f32 %v6925, 0.0
        %v6958 = vmax.f32 %v6926, 0.0
        %v6959 = vmax.f32 %v6927, 0.0
        %v6960 = vmax.f32 %v6928, 0.0
        %v6961 = vmax.f32 %v6929, 0.0
        %v6962 = vmax.f32 %v6930, 0.0
        %v6963 = vmax.f32 %v6931, 0.0
        %v6964 = vmax.f32 %v6932, 0.0
        %v6965 = vmax.f32 %v6933, 0.0
        %v6966 = vmax.f32 %v6934, 0.0
        %v6967 = vmax.f32 %v6935, 0.0
        %v6968 = vmax.f32 %v6936, 0.0
        %v6969 = vmax.f32 %v6937, 0.0
        %v6970 = vmax.f32 %v6938, 0.0
        %v6971 = vmax.f32 %v6939, 0.0
        %v6972 = vmax.f32 %v6940, 0.0
        %v6973 = vmax.f32 %v6941, 0.0
        %v6974 = vmax.f32 %v6942, 0.0
        %v6975 = vadd.f32 %v6943, %v342
        %v6976 = vadd.f32 %v6944, %v343
        %v6977 = vadd.f32 %v6945, %v344
        %v6978 = vadd.f32 %v6946, %v345
        %v6979 = vadd.f32 %v6947, %v346
        %v6980 = vadd.f32 %v6948, %v347
        %v6981 = vadd.f32 %v6949, %v348
        %v6982 = vadd.f32 %v6950, %v349
        %v6983 = vadd.f32 %v6951, %v350
        %v6984 = vadd.f32 %v6952, %v351
        %v6985 = vadd.f32 %v6953, %v352
        %v6986 = vadd.f32 %v6954, %v353
        %v6987 = vadd.f32 %v6955, %v354
        %v6988 = vadd.f32 %v6956, %v355
        %v6989 = vadd.f32 %v6957, %v356
        %v6990 = vadd.f32 %v6958, %v357
        %v6991 = vadd.f32 %v6959, %v358
        %v6992 = vadd.f32 %v6960, %v359
        %v6993 = vadd.f32 %v6961, %v360
        %v6994 = vadd.f32 %v6962, %v361
        %v6995 = vadd.f32 %v6963, %v362
        %v6996 = vadd.f32 %v6964, %v363
        %v6997 = vadd.f32 %v6965, %v364
        %v6998 = vadd.f32 %v6966, %v365
        %v6999 = vadd.f32 %v6967, %v366
        %v7000 = vadd.f32 %v6968, %v367
        %v7001 = vadd.f32 %v6969, %v368
        %v7002 = vadd.f32 %v6970, %v369
        %v7003 = vadd.f32 %v6971, %v370
        %v7004 = vadd.f32 %v6972, %v371
        %v7005 = vadd.f32 %v6973, %v372
        %v7006 = vadd.f32 %v6974, %v373
        %v7007 = vmax.f32 %v6975, 0.0
        %v7008 = vmax.f32 %v6976, 0.0
        %v7009 = vmax.f32 %v6977, 0.0
        %v7010 = vmax.f32 %v6978, 0.0
        %v7011 = vmax.f32 %v6979, 0.0
        %v7012 = vmax.f32 %v6980, 0.0
        %v7013 = vmax.f32 %v6981, 0.0
        %v7014 = vmax.f32 %v6982, 0.0
        %v7015 = vmax.f32 %v6983, 0.0
        %v7016 = vmax.f32 %v6984, 0.0
        %v7017 = vmax.f32 %v6985, 0.0
        %v7018 = vmax.f32 %v6986, 0.0
        %v7019 = vmax.f32 %v6987, 0.0
        %v7020 = vmax.f32 %v6988, 0.0
        %v7021 = vmax.f32 %v6989, 0.0
        %v7022 = vmax.f32 %v6990, 0.0
        %v7023 = vmax.f32 %v6991, 0.0
        %v7024 = vmax.f32 %v6992, 0.0
        %v7025 = vmax.f32 %v6993, 0.0
        %v7026 = vmax.f32 %v6994, 0.0
        %v7027 = vmax.f32 %v6995, 0.0
        %v7028 = vmax.f32 %v6996, 0.0
        %v7029 = vmax.f32 %v6997, 0.0
        %v7030 = vmax.f32 %v6998, 0.0
        %v7031 = vmax.f32 %v6999, 0.0
        %v7032 = vmax.f32 %v7000, 0.0
        %v7033 = vmax.f32 %v7001, 0.0
        %v7034 = vmax.f32 %v7002, 0.0
        %v7035 = vmax.f32 %v7003, 0.0
        %v7036 = vmax.f32 %v7004, 0.0
        %v7037 = vmax.f32 %v7005, 0.0
        %v7038 = vmax.f32 %v7006, 0.0
        %7039 = vst [vmem:[%s340] sm:$0xff] %v7007
        %7040 = vst [vmem:[%s340 + $0x8] sm:$0xff] %v7008
        %7041 = vst [vmem:[%s340 + $0x10] sm:$0xff] %v7009
        %7042 = vst [vmem:[%s340 + $0x18] sm:$0xff] %v7010
        %7043 = vst [vmem:[%s340 + $0x20] sm:$0xff] %v7011
        %7044 = vst [vmem:[%s340 + $0x28] sm:$0xff] %v7012
        %7045 = vst [vmem:[%s340 + $0x30] sm:$0xff] %v7013
        %7046 = vst [vmem:[%s340 + $0x38] sm:$0xff] %v7014
        %7047 = vst [vmem:[%s340 + $0x40] sm:$0xff] %v7015
        %7048 = vst [vmem:[%s340 + $0x48] sm:$0xff] %v7016
        %7049 = vst [vmem:[%s340 + $0x50] sm:$0xff] %v7017
        %7050 = vst [vmem:[%s340 + $0x58] sm:$0xff] %v7018
        %7051 = vst [vmem:[%s340 + $0x60] sm:$0xff] %v7019
        %7052 = vst [vmem:[%s340 + $0x68] sm:$0xff] %v7020
        %7053 = vst [vmem:[%s340 + $0x70] sm:$0xff] %v7021
        %7054 = vst [vmem:[%s340 + $0x78] sm:$0xff] %v7022
        %7055 = vst [vmem:[%s340 + $0x80] sm:$0xff] %v7023
        %7056 = vst [vmem:[%s340 + $0x88] sm:$0xff] %v7024
        %7057 = vst [vmem:[%s340 + $0x90] sm:$0xff] %v7025
        %7058 = vst [vmem:[%s340 + $0x98] sm:$0xff] %v7026
        %7059 = vst [vmem:[%s340 + $0xa0] sm:$0xff] %v7027
        %7060 = vst [vmem:[%s340 + $0xa8] sm:$0xff] %v7028
        %7061 = vst [vmem:[%s340 + $0xb0] sm:$0xff] %v7029
        %7062 = vst [vmem:[%s340 + $0xb8] sm:$0xff] %v7030
        %7063 = vst [vmem:[%s340 + $0xc0] sm:$0xff] %v7031
        %7064 = vst [vmem:[%s340 + $0xc8] sm:$0xff] %v7032
        %7065 = vst [vmem:[%s340 + $0xd0] sm:$0xff] %v7033
        %7066 = vst [vmem:[%s340 + $0xd8] sm:$0xff] %v7034
        %7067 = vst [vmem:[%s340 + $0xe0] sm:$0xff] %v7035
        %7068 = vst [vmem:[%s340 + $0xe8] sm:$0xff] %v7036
        %7069 = vst [vmem:[%s340 + $0xf0] sm:$0xff] %v7037
        %7070 = vst [vmem:[%s340 + $0xf8] sm:$0xff] %v7038
        %s7071 = sand.u32 %s186, 1
        %s7072 = scalar_lea.sflag [#allocation6], %s7071
        %s7073 = sand.u32 %s186, 1
        %s7074 = smul.addr %s7073, 256
        %s7075 = scalar_lea.vmem [#allocation12], %s7074
        // Predicated region
        $region65: #{tpu_custom_call.1} parent=47 // pred_check
          %p7076 = pneg %p196
        $region66: #{tpu_custom_call.1} parent=47 // pred_check_branch
          %7078 = sbr.rel (%p7076) target = $region68
        $region67: #{tpu_custom_call.1} parent=47 // pred_region
          %s7080 = ssub.s32 4096, 4096
          %7081 = vsyncadd %s7072, %s7080
          %s7082 = smul.addr %s26, 32
          %s7083 = smul.addr %s7082, 128
          %s7084 = scalar_lea.hbm %s7, %s7083
          %s7085 = sshll.u32 %s7075, 4
          %s7086 = int_to_ptr.vmem [resolvable:$true] %s7085
          %7091 = dma.vmem_to_hbm [thread:$0]  %s7086, 4096, %s7084, %s7072, 128, 128, 8
        $region68: #{tpu_custom_call.1} parent=47 // pred_fallthru
          _
      $region48: #{tpu_custom_call.1} parent=5 // pred_fallthru
        _
      %p7092 = scmp.le.s32.totalorder 2, %s21
      // Predicated region
      $region69: #{tpu_custom_call.1} parent=5 // pred_check
        %p7093 = pneg %p7092
      $region70: #{tpu_custom_call.1} parent=5 // pred_check_branch
        %7095 = sbr.rel (%p7093) target = $region72
      $region71: #{tpu_custom_call.1} parent=5 // pred_region
        %s7096 = ssub.s32 %s21, 2
        // Predicated region
        $region73: #{tpu_custom_call.1} parent=71 // pred_check
          %p7097 = pneg %p202
        $region74: #{tpu_custom_call.1} parent=71 // pred_check_branch
          %7099 = sbr.rel (%p7097) target = $region76
        $region75: #{tpu_custom_call.1} parent=71 // pred_region
          %s7100 = sand.u32 %s187, 1
          %s7101 = scalar_lea.sflag [#allocation6], %s7100
          %s7102 = sand.u32 %s187, 1
          %s7103 = smul.addr %s7102, 256
          %s7104 = scalar_lea.vmem [#allocation12], %s7103
          %7105 = dma.done %s7101, 4096
        $region76: #{tpu_custom_call.1} parent=71 // pred_fallthru
          _
      $region72: #{tpu_custom_call.1} parent=5 // pred_fallthru
        _
    $region6: #{tpu_custom_call.1} parent=1 // loop_footer
      %s25 = sadd.s32 1, %s21
    $region7: #{tpu_custom_call.1} parent=1 // loop_footer_branch
      %20 = sbr.rel target = $region3
    $region8: #{tpu_custom_call.1} parent=1 // loop_exit
      _
    %7106 = vsyncpa [#allocation5], 1
    %s7107 = scalar_lea.sflag [#allocation5], 1
    %7108 = vsyncpa %s7107, 1
    %7109 = vsyncpa [#allocation8], 1
    %7110 = vsyncpa [#allocation11], 1
    %7111 = vsyncpa [#allocation6], 1
    %s7112 = scalar_lea.sflag [#allocation6], 1
    %7113 = vsyncpa %s7112, 1

</llo_original>
